<compile_context>
chip_gen: v7x
topology: tpu7x:2x2x1
jax: 0.10.0
libtpu: 0.0.40
codegen_flags: <defaults>
</compile_context>

<pallas_src>
import functools
import math

import jax
import jax.numpy as jnp
from jax.experimental import pallas as pl
from jax.experimental.pallas import tpu as pltpu


def _round_up(x, m):
    return (x + m - 1) // m * m


# ----------------------------------------------------------------------------
# Pallas kernels
# ----------------------------------------------------------------------------
def _linear_kernel(x_ref, w_ref, b_ref, o_ref, *, apply_relu):
    """One (M,N) tile of  y = (relu)(x @ w + b)  on the MXU (bf16 in, f32 acc)."""
    y = jnp.dot(x_ref[...], w_ref[...], preferred_element_type=jnp.float32)
    y = y + b_ref[...]                       # b_ref is (1, tn) f32, broadcasts over rows
    if apply_relu:
        y = jnp.maximum(y, 0.0)
    o_ref[...] = y.astype(o_ref.dtype)


def _head2_dueling_kernel(x_ref, w_ref, b_ref, o_ref, *, num_actions, inv_num_actions):
    """Fused second head layer + dueling combine.

    Weight layout: column 0 = value, columns 1..num_actions = advantage, rest zero.
    Output columns 1..num_actions hold  q = v + a - sum(a)/num_actions.
    """
    y = jnp.dot(x_ref[...], w_ref[...], preferred_element_type=jnp.float32)
    y = y + b_ref[...]
    col = jax.lax.broadcasted_iota(jnp.int32, y.shape, 1)
    adv_mask = (col >= 1) & (col <= num_actions)
    adv = jnp.where(adv_mask, y, 0.0)        # padded / value columns excluded from the sum
    value = y[:, 0:1]
    s = jnp.sum(adv, axis=1, keepdims=True)
    o_ref[...] = (value + adv - s * inv_num_actions).astype(o_ref.dtype)


# ----------------------------------------------------------------------------
# Pallas wrappers
# ----------------------------------------------------------------------------
def _choose_tm(m):
    """Pick an M tile: multiple of 16 (safe bf16 sublane count); prefer an even
    split into <=512-row tiles so the M grid axis has parallel work."""
    mp = _round_up(m, 16)
    if mp <= 512:
        return mp
    for tiles in range(2, 9):
        tm = mp // tiles
        if mp % tiles == 0 and tm % 16 == 0 and tm <= 512:
            return tm
    return 256


def _vmem_limit(tm, tn, kp):
    # x tile (bf16) + w tile (bf16) + bias + out tile (f32), x2 for double buffering.
    tile = tm * kp * 2 + kp * tn * 2 + 8 * tn * 4 + tm * tn * 4
    limit = 2 * tile + (4 << 20)
    return int(max(16 << 20, min(limit, 40 << 20)))   # stays well inside v7x's 64 MiB


def pallas_linear(x, w, b, *, relu, tn=None):
    """y = (relu)(x @ w + b).

    x: [M, K] (any float; zero-padded/cast to w.dtype up to w's K rows)
    w: [Kp, N] pre-padded bf16 weight, b: [1, N] f32.  Returns [M, N] f32.
    """
    M, K = x.shape
    Kp, N = w.shape
    assert K <= Kp and Kp % 128 == 0 and N % 128 == 0, (K, Kp, N)
    tn = tn if tn is not None else min(N, 256)
    assert N % tn == 0

    tm = _choose_tm(M)
    Mp = _round_up(M, tm)
    if M == Mp and K == Kp:
        xp = x.astype(w.dtype)
    else:
        xp = jnp.zeros((Mp, Kp), w.dtype).at[:M, :K].set(x.astype(w.dtype))

    out = pl.pallas_call(
        functools.partial(_linear_kernel, apply_relu=relu),
        out_shape=jax.ShapeDtypeStruct((Mp, N), jnp.float32),
        grid_spec=pltpu.PrefetchScalarGridSpec(
            num_scalar_prefetch=0,
            grid=(Mp // tm, N // tn),
            in_specs=[
                pl.BlockSpec((tm, Kp), lambda i, j: (i, 0)),
                pl.BlockSpec((Kp, tn), lambda i, j: (0, j)),
                pl.BlockSpec((1, tn), lambda i, j: (0, j)),
            ],
            out_specs=pl.BlockSpec((tm, tn), lambda i, j: (i, j)),
        ),
        compiler_params=pltpu.CompilerParams(
            dimension_semantics=("parallel", "parallel"),
            vmem_limit_bytes=_vmem_limit(tm, tn, Kp),
        ),
    )(xp, w, b)
    return out[:M] if Mp != M else out


def pallas_head2_dueling(x, w, b, num_actions):
    """Fused fc2 (value|advantage) + dueling combine.  Returns q: [M, num_actions]."""
    M, K = x.shape
    Kp, N = w.shape
    assert K <= Kp and N % 128 == 0
    tm = _choose_tm(M)
    Mp = _round_up(M, tm)
    if M == Mp and K == Kp:
        xp = x.astype(w.dtype)
    else:
        xp = jnp.zeros((Mp, Kp), w.dtype).at[:M, :K].set(x.astype(w.dtype))

    kernel = functools.partial(_head2_dueling_kernel,
                               num_actions=num_actions,
                               inv_num_actions=1.0 / float(num_actions))
    out = pl.pallas_call(
        kernel,
        out_shape=jax.ShapeDtypeStruct((Mp, N), jnp.float32),
        grid_spec=pltpu.PrefetchScalarGridSpec(
            num_scalar_prefetch=0,
            grid=(Mp // tm,),
            in_specs=[
                pl.BlockSpec((tm, Kp), lambda i: (i, 0)),
                pl.BlockSpec((Kp, N), lambda i: (0, 0)),
                pl.BlockSpec((1, N), lambda i: (0, 0)),
            ],
            out_specs=pl.BlockSpec((tm, N), lambda i: (i, 0)),
        ),
        compiler_params=pltpu.CompilerParams(
            dimension_semantics=("parallel",),
            vmem_limit_bytes=_vmem_limit(tm, N, Kp),
        ),
    )(xp, w, b)
    return out[:M, 1:1 + num_actions]


# ----------------------------------------------------------------------------
# Conv-as-im2col glue (pure JAX, NHWC, column order (i, j, c))
# ----------------------------------------------------------------------------
def _conv_layer(x_nhwc, wb, ksize, stride):
    w, b = wb                                   # w: [KH*KW*Cin_pad, Cout_pad] bf16
    B, H, W, C = x_nhwc.shape
    oh = (H - ksize) // stride + 1
    ow = (W - ksize) // stride + 1
    cols = []
    for i in range(ksize):
        for j in range(ksize):
            cols.append(x_nhwc[:, i:i + stride * oh:stride, j:j + stride * ow:stride, :])
    p = jnp.stack(cols, axis=3)                 # [B, OH, OW, KH*KW, C]
    p = p.reshape(B * oh * ow, ksize * ksize * C)
    y = pallas_linear(p, w, b, relu=True)       # [B*OH*OW, Cout_pad]
    return y.reshape(B, oh, ow, w.shape[1])     # stay NHWC, channels kept padded


# ----------------------------------------------------------------------------
# Parameters: torch-layout init + one-time Pallas-layout prep
# ----------------------------------------------------------------------------
def init_params(key, in_ch, num_actions, width=1):
    """Torch-layout parameters (conv: [Cout,Cin,KH,KW]; linear: [out,in])."""
    def linear(k, fan_out, fan_in):
        kw_, kb = jax.random.split(k)
        bound = 1.0 / math.sqrt(fan_in)
        w = jax.random.uniform(kw_, (fan_out, fan_in), jnp.float32, -bound, bound)
        b = jax.random.uniform(kb, (fan_out,), jnp.float32, -bound, bound)
        return w, b

    def conv(k, cout, cin, ksz):
        kk, kb = jax.random.split(k)
        fan_in = cin * ksz * ksz
        bound = 1.0 / math.sqrt(fan_in)
        w = jax.random.uniform(kk, (cout, cin, ksz, ksz), jnp.float32, -bound, bound)
        b = jax.random.uniform(kb, (cout,), jnp.float32, -bound, bound)
        return w, b

    ks = jax.random.split(key, 7)
    return dict(
        conv1=conv(ks[0], 32 * width, in_ch, 8),
        conv2=conv(ks[1], 64 * width, 32 * width, 4),
        conv3=conv(ks[2], 64 * width, 64 * width, 3),
        adv1=linear(ks[3], 512 * width, 3136 * width),
        adv2=linear(ks[4], num_actions, 512 * width),
        val1=linear(ks[5], 512 * width, 3136 * width),
        val2=linear(ks[6], 1, 512 * width),
    )


def prepare_params(raw, weight_dtype=jnp.bfloat16):
    """One-time pack of torch-layout params into padded, MXU-ready matrices."""
    def prep_conv(w, b, cin_pad, cout_pad):
        cout, cin, kh, kw = w.shape
        assert cin <= cin_pad and cout <= cout_pad, (w.shape, cin_pad, cout_pad)
        wt = jnp.transpose(w, (2, 3, 1, 0))                       # [KH, KW, Cin, Cout]
        wf = jnp.zeros((kh, kw, cin_pad, cout_pad), jnp.float32)
        wf = wf.at[:, :, :cin, :cout].set(wt)
        wf = wf.reshape(kh * kw * cin_pad, cout_pad).astype(weight_dtype)
        bf = jnp.zeros((1, cout_pad), jnp.float32).at[0, :cout].set(b)
        return wf, bf

    c1w, c1b = raw["conv1"]
    c2w, c2b = raw["conv2"]
    c3w, c3b = raw["conv3"]
    # Padded Cout of each conv layer == padded Cin of the next (activations stay
    # padded to 128 lanes between conv layers).
    c1_coutp = _round_up(c1w.shape[0], 128)
    c2_coutp = _round_up(c2w.shape[0], 128)
    c3_coutp = _round_up(c3w.shape[0], 128)
    c1 = prep_conv(c1w, c1b, c1w.shape[1], c1_coutp)   # conv1 consumes the raw 4-ch image
    c2 = prep_conv(c2w, c2b, c1_coutp, c2_coutp)
    c3 = prep_conv(c3w, c3b, c2_coutp, c3_coutp)

    # --- fused head fc1: [K1p, 2*hidden], rows in NHWC flatten order (h, w, c) ---
    vw1, vb1 = raw["val1"]
    aw1, ab1 = raw["adv1"]
    hidden = vw1.shape[0]
    cout3 = c3w.shape[0]
    K1 = 49 * cout3                      # 7x7 spatial is forced by the hardcoded 3136
    assert vw1.shape[1] == K1 and aw1.shape[1] == K1, (vw1.shape, K1)
    K1p = _round_up(K1, 128)

    def permute_fc1(w):                  # torch cols (c,h,w) -> rows (h,w,c)
        return jnp.transpose(w.reshape(hidden, cout3, 7, 7), (2, 3, 1, 0)).reshape(K1, hidden)

    w1 = jnp.zeros((K1p, 2 * hidden), jnp.float32)
    w1 = w1.at[:K1, :hidden].set(permute_fc1(vw1))
    w1 = w1.at[:K1, hidden:].set(permute_fc1(aw1))
    w1 = w1.astype(weight_dtype)
    b1 = jnp.concatenate([vb1, ab1]).reshape(1, 2 * hidden).astype(jnp.float32)

    # --- fused head fc2 + dueling: col 0 = value, cols 1..A = advantage ---
    vw2, vb2 = raw["val2"]
    aw2, ab2 = raw["adv2"]
    A = aw2.shape[0]
    N2 = _round_up(1 + A, 128)
    w2 = jnp.zeros((2 * hidden, N2), jnp.float32)
    w2 = w2.at[:hidden, 0].set(vw2[0])
    w2 = w2.at[hidden:, 1:1 + A].set(aw2.T)
    w2 = w2.astype(weight_dtype)
    b2 = jnp.zeros((1, N2), jnp.float32)
    b2 = b2.at[0, 0].set(vb2[0]).at[0, 1:1 + A].set(ab2)

    weights = dict(conv1=c1, conv2=c2, conv3=c3, fc1=(w1, b1), fc2=(w2, b2))
    meta = dict(num_actions=A, cout3=cout3)
    return weights, meta


# ----------------------------------------------------------------------------
# Forward
# ----------------------------------------------------------------------------
def dueling_cnn_dqn_forward(weights, x, *, num_actions, cout3):
    if x.ndim == 3:                       # matches torch: unsqueeze missing batch dim
        x = x[None]
    x = jnp.transpose(x, (0, 2, 3, 1)).astype(jnp.float32)     # NCHW -> NHWC, once

    h = _conv_layer(x, weights["conv1"], 8, 4)                 # [B, 20, 20, 128]
    h = _conv_layer(h, weights["conv2"], 4, 2)                 # [B,  9,  9, 128]
    h = _conv_layer(h, weights["conv3"], 3, 1)                 # [B,  7,  7, 128]

    B = h.shape[0]
    cnn = h[..., :cout3].reshape(B, -1)                        # NHWC flatten (h, w, c)

    h1 = pallas_linear(cnn, *weights["fc1"], relu=True, tn=256)   # [B, 1024] = [value|adv]
    q = pallas_head2_dueling(h1, *weights["fc2"], num_actions)    # fused fc2 + dueling
    return q


if __name__ == "__main__":
    num_actions = 6
    input_shape = (4, 84, 84)    # 84x84 is forced by the hardcoded 3136 flatten size
    batch = 2

    key = jax.random.PRNGKey(0)
    k_params, k_x = jax.random.split(key)
    raw_params = init_params(k_params, input_shape[0], num_actions, width=1)
    weights, meta = prepare_params(raw_params)          # one-time weight packing
    x = jax.random.uniform(k_x, (batch,) + input_shape, jnp.float32)

    fwd = jax.jit(functools.partial(dueling_cnn_dqn_forward, **meta))
    q = fwd(weights, x)
    jax.block_until_ready(q)
    assert q.shape == (batch, num_actions), q.shape
    assert q.dtype == jnp.float32
    print("KERNEL_OK")
</pallas_src>

<mosaic_0001>
module attributes {stable_mosaic.version = 11 : i64} {
  func.func @_linear_kernel(%arg0: i32, %arg1: i32, %arg2: memref<400x256xbf16, #tpu.memory_space<vmem>>, %arg3: memref<256x128xbf16, #tpu.memory_space<vmem>>, %arg4: memref<1x128xf32, #tpu.memory_space<vmem>>, %arg5: memref<400x128xf32, #tpu.memory_space<vmem>>) attributes {dimension_semantics = [#tpu.dimension_semantics<parallel>, #tpu.dimension_semantics<parallel>], iteration_bounds = array<i64: 2, 1>, scalar_prefetch = 0 : i64, scratch_operands = 0 : i64, tpu.core_type = #tpu.core_type<tc>, window_params = [{transform_indices = @transform_0, window_bounds = array<i64: 400, 256>}, {transform_indices = @transform_1, window_bounds = array<i64: 256, 128>}, {transform_indices = @transform_2, window_bounds = array<i64: 1, 128>}, {transform_indices = @transform_3, window_bounds = array<i64: 400, 128>}]} {
    %c0 = arith.constant 0 : index
    %c0_0 = arith.constant 0 : index
    %0 = vector.load %arg2[%c0, %c0_0] : memref<400x256xbf16, #tpu.memory_space<vmem>>, vector<400x256xbf16>
    %c0_1 = arith.constant 0 : index
    %c0_2 = arith.constant 0 : index
    %1 = vector.load %arg3[%c0_1, %c0_2] : memref<256x128xbf16, #tpu.memory_space<vmem>>, vector<256x128xbf16>
    %cst = arith.constant dense<0.000000e+00> : vector<400x128xf32>
    %2 = tpu.matmul %0, %1, %cst {dimension_numbers = #tpu.dot_dimension_numbers<[1], [0], [0], [1], [0, 0, 1, 1], [], []>} : vector<400x256xbf16>, vector<256x128xbf16>, vector<400x128xf32> -> vector<400x128xf32>
    %c0_3 = arith.constant 0 : index
    %c0_4 = arith.constant 0 : index
    %3 = vector.load %arg4[%c0_3, %c0_4] : memref<1x128xf32, #tpu.memory_space<vmem>>, vector<1x128xf32>
    %4 = vector.broadcast %3 : vector<1x128xf32> to vector<400x128xf32>
    %5 = arith.addf %2, %4 : vector<400x128xf32>
    %cst_5 = arith.constant 0.000000e+00 : f32
    %6 = vector.broadcast %cst_5 : f32 to vector<400x128xf32>
    %7 = arith.maximumf %5, %6 : vector<400x128xf32>
    %c0_6 = arith.constant 0 : index
    %c0_7 = arith.constant 0 : index
    %8 = vector.load %arg5[%c0_6, %c0_7] : memref<400x128xf32, #tpu.memory_space<vmem>>, vector<400x128xf32>
    tpu.vector_store %arg5[%c0_6, %c0_7], %7 {strides = array<i32>} : memref<400x128xf32, #tpu.memory_space<vmem>>, vector<400x128xf32>,
    return
  }
  func.func @transform_0(%arg0: i32, %arg1: i32) -> (i32, i32) {
    %c0_i32 = arith.constant 0 : i32
    %c0_i32_0 = arith.constant 0 : i32
    return %arg0, %c0_i32 : i32, i32
  }
  func.func @transform_1(%arg0: i32, %arg1: i32) -> (i32, i32) {
    %c0_i32 = arith.constant 0 : i32
    %c0_i32_0 = arith.constant 0 : i32
    return %c0_i32, %arg1 : i32, i32
  }
  func.func @transform_2(%arg0: i32, %arg1: i32) -> (i32, i32) {
    %c0_i32 = arith.constant 0 : i32
    %c0_i32_0 = arith.constant 0 : i32
    return %c0_i32, %arg1 : i32, i32
  }
  func.func @transform_3(%arg0: i32, %arg1: i32) -> (i32, i32) {
    %c0_i32 = arith.constant 0 : i32
    return %arg0, %arg1 : i32, i32
  }
}

module attributes {stable_mosaic.version = 11 : i64} {
  func.func @_linear_kernel(%arg0: i32, %arg1: i32, %arg2: memref<176x2048xbf16, #tpu.memory_space<vmem>>, %arg3: memref<2048x128xbf16, #tpu.memory_space<vmem>>, %arg4: memref<1x128xf32, #tpu.memory_space<vmem>>, %arg5: memref<176x128xf32, #tpu.memory_space<vmem>>) attributes {dimension_semantics = [#tpu.dimension_semantics<parallel>, #tpu.dimension_semantics<parallel>], iteration_bounds = array<i64: 1, 1>, scalar_prefetch = 0 : i64, scratch_operands = 0 : i64, tpu.core_type = #tpu.core_type<tc>, window_params = [{transform_indices = @transform_0, window_bounds = array<i64: 176, 2048>}, {transform_indices = @transform_1, window_bounds = array<i64: 2048, 128>}, {transform_indices = @transform_2, window_bounds = array<i64: 1, 128>}, {transform_indices = @transform_3, window_bounds = array<i64: 176, 128>}]} {
    %c0 = arith.constant 0 : index
    %c0_0 = arith.constant 0 : index
    %0 = vector.load %arg2[%c0, %c0_0] : memref<176x2048xbf16, #tpu.memory_space<vmem>>, vector<176x2048xbf16>
    %c0_1 = arith.constant 0 : index
    %c0_2 = arith.constant 0 : index
    %1 = vector.load %arg3[%c0_1, %c0_2] : memref<2048x128xbf16, #tpu.memory_space<vmem>>, vector<2048x128xbf16>
    %cst = arith.constant dense<0.000000e+00> : vector<176x128xf32>
    %2 = tpu.matmul %0, %1, %cst {dimension_numbers = #tpu.dot_dimension_numbers<[1], [0], [0], [1], [0, 0, 1, 1], [], []>} : vector<176x2048xbf16>, vector<2048x128xbf16>, vector<176x128xf32> -> vector<176x128xf32>
    %c0_3 = arith.constant 0 : index
    %c0_4 = arith.constant 0 : index
    %3 = vector.load %arg4[%c0_3, %c0_4] : memref<1x128xf32, #tpu.memory_space<vmem>>, vector<1x128xf32>
    %4 = vector.broadcast %3 : vector<1x128xf32> to vector<176x128xf32>
    %5 = arith.addf %2, %4 : vector<176x128xf32>
    %cst_5 = arith.constant 0.000000e+00 : f32
    %6 = vector.broadcast %cst_5 : f32 to vector<176x128xf32>
    %7 = arith.maximumf %5, %6 : vector<176x128xf32>
    %c0_6 = arith.constant 0 : index
    %c0_7 = arith.constant 0 : index
    %8 = vector.load %arg5[%c0_6, %c0_7] : memref<176x128xf32, #tpu.memory_space<vmem>>, vector<176x128xf32>
    tpu.vector_store %arg5[%c0_6, %c0_7], %7 {strides = array<i32>} : memref<176x128xf32, #tpu.memory_space<vmem>>, vector<176x128xf32>,
    return
  }
  func.func @transform_0(%arg0: i32, %arg1: i32) -> (i32, i32) {
    %c0_i32 = arith.constant 0 : i32
    %c0_i32_0 = arith.constant 0 : i32
    return %arg0, %c0_i32 : i32, i32
  }
  func.func @transform_1(%arg0: i32, %arg1: i32) -> (i32, i32) {
    %c0_i32 = arith.constant 0 : i32
    %c0_i32_0 = arith.constant 0 : i32
    return %c0_i32, %arg1 : i32, i32
  }
  func.func @transform_2(%arg0: i32, %arg1: i32) -> (i32, i32) {
    %c0_i32 = arith.constant 0 : i32
    %c0_i32_0 = arith.constant 0 : i32
    return %c0_i32, %arg1 : i32, i32
  }
  func.func @transform_3(%arg0: i32, %arg1: i32) -> (i32, i32) {
    %c0_i32 = arith.constant 0 : i32
    return %arg0, %arg1 : i32, i32
  }
}

module attributes {stable_mosaic.version = 11 : i64} {
  func.func @_linear_kernel(%arg0: i32, %arg1: i32, %arg2: memref<112x1152xbf16, #tpu.memory_space<vmem>>, %arg3: memref<1152x128xbf16, #tpu.memory_space<vmem>>, %arg4: memref<1x128xf32, #tpu.memory_space<vmem>>, %arg5: memref<112x128xf32, #tpu.memory_space<vmem>>) attributes {dimension_semantics = [#tpu.dimension_semantics<parallel>, #tpu.dimension_semantics<parallel>], iteration_bounds = array<i64: 1, 1>, scalar_prefetch = 0 : i64, scratch_operands = 0 : i64, tpu.core_type = #tpu.core_type<tc>, window_params = [{transform_indices = @transform_0, window_bounds = array<i64: 112, 1152>}, {transform_indices = @transform_1, window_bounds = array<i64: 1152, 128>}, {transform_indices = @transform_2, window_bounds = array<i64: 1, 128>}, {transform_indices = @transform_3, window_bounds = array<i64: 112, 128>}]} {
    %c0 = arith.constant 0 : index
    %c0_0 = arith.constant 0 : index
    %0 = vector.load %arg2[%c0, %c0_0] : memref<112x1152xbf16, #tpu.memory_space<vmem>>, vector<112x1152xbf16>
    %c0_1 = arith.constant 0 : index
    %c0_2 = arith.constant 0 : index
    %1 = vector.load %arg3[%c0_1, %c0_2] : memref<1152x128xbf16, #tpu.memory_space<vmem>>, vector<1152x128xbf16>
    %cst = arith.constant dense<0.000000e+00> : vector<112x128xf32>
    %2 = tpu.matmul %0, %1, %cst {dimension_numbers = #tpu.dot_dimension_numbers<[1], [0], [0], [1], [0, 0, 1, 1], [], []>} : vector<112x1152xbf16>, vector<1152x128xbf16>, vector<112x128xf32> -> vector<112x128xf32>
    %c0_3 = arith.constant 0 : index
    %c0_4 = arith.constant 0 : index
    %3 = vector.load %arg4[%c0_3, %c0_4] : memref<1x128xf32, #tpu.memory_space<vmem>>, vector<1x128xf32>
    %4 = vector.broadcast %3 : vector<1x128xf32> to vector<112x128xf32>
    %5 = arith.addf %2, %4 : vector<112x128xf32>
    %cst_5 = arith.constant 0.000000e+00 : f32
    %6 = vector.broadcast %cst_5 : f32 to vector<112x128xf32>
    %7 = arith.maximumf %5, %6 : vector<112x128xf32>
    %c0_6 = arith.constant 0 : index
    %c0_7 = arith.constant 0 : index
    %8 = vector.load %arg5[%c0_6, %c0_7] : memref<112x128xf32, #tpu.memory_space<vmem>>, vector<112x128xf32>
    tpu.vector_store %arg5[%c0_6, %c0_7], %7 {strides = array<i32>} : memref<112x128xf32, #tpu.memory_space<vmem>>, vector<112x128xf32>,
    return
  }
  func.func @transform_0(%arg0: i32, %arg1: i32) -> (i32, i32) {
    %c0_i32 = arith.constant 0 : i32
    %c0_i32_0 = arith.constant 0 : i32
    return %arg0, %c0_i32 : i32, i32
  }
  func.func @transform_1(%arg0: i32, %arg1: i32) -> (i32, i32) {
    %c0_i32 = arith.constant 0 : i32
    %c0_i32_0 = arith.constant 0 : i32
    return %c0_i32, %arg1 : i32, i32
  }
  func.func @transform_2(%arg0: i32, %arg1: i32) -> (i32, i32) {
    %c0_i32 = arith.constant 0 : i32
    %c0_i32_0 = arith.constant 0 : i32
    return %c0_i32, %arg1 : i32, i32
  }
  func.func @transform_3(%arg0: i32, %arg1: i32) -> (i32, i32) {
    %c0_i32 = arith.constant 0 : i32
    return %arg0, %arg1 : i32, i32
  }
}

module attributes {stable_mosaic.version = 11 : i64} {
  func.func @_linear_kernel(%arg0: i32, %arg1: i32, %arg2: memref<16x3200xbf16, #tpu.memory_space<vmem>>, %arg3: memref<3200x256xbf16, #tpu.memory_space<vmem>>, %arg4: memref<1x256xf32, #tpu.memory_space<vmem>>, %arg5: memref<16x256xf32, #tpu.memory_space<vmem>>) attributes {dimension_semantics = [#tpu.dimension_semantics<parallel>, #tpu.dimension_semantics<parallel>], iteration_bounds = array<i64: 1, 4>, scalar_prefetch = 0 : i64, scratch_operands = 0 : i64, tpu.core_type = #tpu.core_type<tc>, window_params = [{transform_indices = @transform_0, window_bounds = array<i64: 16, 3200>}, {transform_indices = @transform_1, window_bounds = array<i64: 3200, 256>}, {transform_indices = @transform_2, window_bounds = array<i64: 1, 256>}, {transform_indices = @transform_3, window_bounds = array<i64: 16, 256>}]} {
    %c0 = arith.constant 0 : index
    %c0_0 = arith.constant 0 : index
    %0 = vector.load %arg2[%c0, %c0_0] : memref<16x3200xbf16, #tpu.memory_space<vmem>>, vector<16x3200xbf16>
    %c0_1 = arith.constant 0 : index
    %c0_2 = arith.constant 0 : index
    %1 = vector.load %arg3[%c0_1, %c0_2] : memref<3200x256xbf16, #tpu.memory_space<vmem>>, vector<3200x256xbf16>
    %cst = arith.constant dense<0.000000e+00> : vector<16x256xf32>
    %2 = tpu.matmul %0, %1, %cst {dimension_numbers = #tpu.dot_dimension_numbers<[1], [0], [0], [1], [0, 0, 1, 1], [], []>} : vector<16x3200xbf16>, vector<3200x256xbf16>, vector<16x256xf32> -> vector<16x256xf32>
    %c0_3 = arith.constant 0 : index
    %c0_4 = arith.constant 0 : index
    %3 = vector.load %arg4[%c0_3, %c0_4] : memref<1x256xf32, #tpu.memory_space<vmem>>, vector<1x256xf32>
    %4 = vector.broadcast %3 : vector<1x256xf32> to vector<16x256xf32>
    %5 = arith.addf %2, %4 : vector<16x256xf32>
    %cst_5 = arith.constant 0.000000e+00 : f32
    %6 = vector.broadcast %cst_5 : f32 to vector<16x256xf32>
    %7 = arith.maximumf %5, %6 : vector<16x256xf32>
    %c0_6 = arith.constant 0 : index
    %c0_7 = arith.constant 0 : index
    %8 = vector.load %arg5[%c0_6, %c0_7] : memref<16x256xf32, #tpu.memory_space<vmem>>, vector<16x256xf32>
    tpu.vector_store %arg5[%c0_6, %c0_7], %7 {strides = array<i32>} : memref<16x256xf32, #tpu.memory_space<vmem>>, vector<16x256xf32>,
    return
  }
  func.func @transform_0(%arg0: i32, %arg1: i32) -> (i32, i32) {
    %c0_i32 = arith.constant 0 : i32
    %c0_i32_0 = arith.constant 0 : i32
    return %arg0, %c0_i32 : i32, i32
  }
  func.func @transform_1(%arg0: i32, %arg1: i32) -> (i32, i32) {
    %c0_i32 = arith.constant 0 : i32
    %c0_i32_0 = arith.constant 0 : i32
    return %c0_i32, %arg1 : i32, i32
  }
  func.func @transform_2(%arg0: i32, %arg1: i32) -> (i32, i32) {
    %c0_i32 = arith.constant 0 : i32
    %c0_i32_0 = arith.constant 0 : i32
    return %c0_i32, %arg1 : i32, i32
  }
  func.func @transform_3(%arg0: i32, %arg1: i32) -> (i32, i32) {
    %c0_i32 = arith.constant 0 : i32
    return %arg0, %arg1 : i32, i32
  }
}

module attributes {stable_mosaic.version = 11 : i64} {
  func.func @_head2_dueling_kernel(%arg0: i32, %arg1: memref<16x1024xbf16, #tpu.memory_space<vmem>>, %arg2: memref<1024x128xbf16, #tpu.memory_space<vmem>>, %arg3: memref<1x128xf32, #tpu.memory_space<vmem>>, %arg4: memref<16x128xf32, #tpu.memory_space<vmem>>) attributes {dimension_semantics = [#tpu.dimension_semantics<parallel>], iteration_bounds = array<i64: 1>, scalar_prefetch = 0 : i64, scratch_operands = 0 : i64, tpu.core_type = #tpu.core_type<tc>, window_params = [{transform_indices = @transform_0, window_bounds = array<i64: 16, 1024>}, {pipeline_mode = #tpu.pipeline_mode<synchronous>, transform_indices = @transform_1, window_bounds = array<i64: 1024, 128>}, {pipeline_mode = #tpu.pipeline_mode<synchronous>, transform_indices = @transform_2, window_bounds = array<i64: 1, 128>}, {transform_indices = @transform_3, window_bounds = array<i64: 16, 128>}]} {
    %c0 = arith.constant 0 : index
    %c0_0 = arith.constant 0 : index
    %0 = vector.load %arg1[%c0, %c0_0] : memref<16x1024xbf16, #tpu.memory_space<vmem>>, vector<16x1024xbf16>
    %c0_1 = arith.constant 0 : index
    %c0_2 = arith.constant 0 : index
    %1 = vector.load %arg2[%c0_1, %c0_2] : memref<1024x128xbf16, #tpu.memory_space<vmem>>, vector<1024x128xbf16>
    %cst = arith.constant dense<0.000000e+00> : vector<16x128xf32>
    %2 = tpu.matmul %0, %1, %cst {dimension_numbers = #tpu.dot_dimension_numbers<[1], [0], [0], [1], [0, 0, 1, 1], [], []>} : vector<16x1024xbf16>, vector<1024x128xbf16>, vector<16x128xf32> -> vector<16x128xf32>
    %c0_3 = arith.constant 0 : index
    %c0_4 = arith.constant 0 : index
    %3 = vector.load %arg3[%c0_3, %c0_4] : memref<1x128xf32, #tpu.memory_space<vmem>>, vector<1x128xf32>
    %4 = vector.broadcast %3 : vector<1x128xf32> to vector<16x128xf32>
    %5 = arith.addf %2, %4 : vector<16x128xf32>
    %6 = tpu.iota {dimensions = array<i32: 1>} : vector<16x128xi32>
    %c1_i32 = arith.constant 1 : i32
    %7 = vector.broadcast %c1_i32 : i32 to vector<16x128xi32>
    %8 = arith.cmpi sge, %6, %7 : vector<16x128xi32>
    %c6_i32 = arith.constant 6 : i32
    %9 = vector.broadcast %c6_i32 : i32 to vector<16x128xi32>
    %10 = arith.cmpi sle, %6, %9 : vector<16x128xi32>
    %11 = arith.andi %8, %10 : vector<16x128xi1>
    %cst_5 = arith.constant 0.000000e+00 : f32
    %12 = vector.broadcast %cst_5 : f32 to vector<16x128xf32>
    %13 = arith.select %11, %5, %12 : vector<16x128xi1>, vector<16x128xf32>
    %14 = vector.extract_strided_slice %5 {offsets = [0, 0], sizes = [16, 1], strides = [1, 1]} : vector<16x128xf32> to vector<16x1xf32>
    %cst_6 = arith.constant dense<0.000000e+00> : vector<16xf32>
    %15 = vector.multi_reduction <add>, %13, %cst_6 [1] : vector<16x128xf32> to vector<16xf32>
    %16 = vector.shape_cast %15 : vector<16xf32> to vector<16x1xf32>
    %17 = vector.broadcast %14 : vector<16x1xf32> to vector<16x128xf32>
    %18 = arith.addf %17, %13 : vector<16x128xf32>
    %cst_7 = arith.constant 0.166666672 : f32
    %19 = vector.broadcast %cst_7 : f32 to vector<16x1xf32>
    %20 = arith.mulf %16, %19 : vector<16x1xf32>
    %21 = vector.broadcast %20 : vector<16x1xf32> to vector<16x128xf32>
    %22 = arith.subf %18, %21 : vector<16x128xf32>
    %c0_8 = arith.constant 0 : index
    %c0_9 = arith.constant 0 : index
    %23 = vector.load %arg4[%c0_8, %c0_9] : memref<16x128xf32, #tpu.memory_space<vmem>>, vector<16x128xf32>
    tpu.vector_store %arg4[%c0_8, %c0_9], %22 {strides = array<i32>} : memref<16x128xf32, #tpu.memory_space<vmem>>, vector<16x128xf32>,
    return
  }
  func.func @transform_0(%arg0: i32) -> (i32, i32) {
    %c0_i32 = arith.constant 0 : i32
    %c0_i32_0 = arith.constant 0 : i32
    return %arg0, %c0_i32 : i32, i32
  }
  func.func @transform_1(%arg0: i32) -> (i32, i32) {
    %c0_i32 = arith.constant 0 : i32
    %c0_i32_0 = arith.constant 0 : i32
    %c0_i32_1 = arith.constant 0 : i32
    return %c0_i32, %c0_i32_0 : i32, i32
  }
  func.func @transform_2(%arg0: i32) -> (i32, i32) {
    %c0_i32 = arith.constant 0 : i32
    %c0_i32_0 = arith.constant 0 : i32
    %c0_i32_1 = arith.constant 0 : i32
    return %c0_i32, %c0_i32_0 : i32, i32
  }
  func.func @transform_3(%arg0: i32) -> (i32, i32) {
    %c0_i32 = arith.constant 0 : i32
    %c0_i32_0 = arith.constant 0 : i32
    return %arg0, %c0_i32 : i32, i32
  }
}

</mosaic_0001>

<llo_original>
// kernel: dueling_cnn_dqn_forward.5
$region0: #{dueling_cnn_dqn_forward.5}
  #allocation0 [shape = 'u32[]', space=smem, size = 0x4, offset = 0x4, fixed_abs, tag = 'smem constant byte address 0x4 - core index']
  #allocation1 [shape = 'u32[144,128]{1,0:T(1,128)}', space=vmem, size = 0x12000, scoped, tag = 'internal scratch']
  %s0 = inlined_call_operand.vmem [shape: bf16[800,256], index: 0, kind: input, shape index: {}]
  %s1 = inlined_call_operand.vmem [shape: bf16[256,128], index: 1, kind: input, shape index: {}]
  %s2 = inlined_call_operand.vmem [shape: f32[1,128], index: 2, kind: input, shape index: {}]
  %s3 = inlined_call_operand.vmem [shape: f32[800,128], index: 3, kind: output, shape index: {}]
  %s4 = sld [smem:[#allocation0]]
  $region45: #{dueling_cnn_dqn_forward.5} parent=0
    _
  %s6 = ssub.s32 1, %s4
  %s7 = scalar_select 0, %s6, %s4
  loop: start=0, step=1, limit=4
  $region2: #{dueling_cnn_dqn_forward.5} parent=0 // loop_pre_header
    _
  $region3: #{dueling_cnn_dqn_forward.5} parent=0 // loop_header
    %s9 = sphi 0, %s13
    %p10 = scmp.ge.s32.totalorder %s9, 4
    %s16 = sphi 0, %s28
    %s17 = sphi 0, %s24
    %s18 = sphi 0, %s16
    %s19 = sphi 0, %s17
    %s20 = sphi 0, %s18
    %s21 = sphi 0, %s19
    %s31 = sphi 0, %s33
    %s34 = sphi 0, %s31
    %s35 = sphi 0, %s34
    %s51 = sphi 0, %s35
    %s57 = sphi 0, %s59
    %s60 = sphi 0, %s57
    %s61 = sphi 0, %s60
    %s77 = sphi 0, %s61
    %s83 = sphi 0, %s85
    %s86 = sphi 0, %s83
    %s87 = sphi 0, %s86
    %s103 = sphi 0, %s87
    %s111 = sphi 0, %s113
    %s114 = sphi 0, %s111
    %s115 = sphi 0, %s114
    %s131 = sphi 0, %s115
  $region4: #{dueling_cnn_dqn_forward.5} parent=0 // loop_header_branch
    %12 = sbr.rel (%p10) target = $region8
  $region5: #{dueling_cnn_dqn_forward.5} parent=0 // loop_body
    %s14 = ssub.s32 %s9, 1
    %s15 = ssub.s32 %s9, 2
    %s22 = sadd.s32 1, %s17
    %p23 = scmp.ge.s32.totalorder %s22, 1
    %s24 = scalar_select %p23, 0, %s22
    %s25 = sadd.s32 1, %s16
    %s26 = scalar_select %p23, %s25, %s16
    %p27 = scmp.ge.s32.totalorder %s26, 2
    %s28 = scalar_select %p27, 0, %s26
    %s29 = ssub.s32 %s16, %s28
    %p30 = scmp.eq.s32.totalorder %s29, 0
    %s32 = sadd.s32 %s31, 1
    %s33 = scalar_select %p30, %s31, %s32
    %p36 = pneg %p30
    %p37 = scmp.eq.s32.totalorder %s9, 1
    %p38 = por %p36, %p37
    %p39 = scmp.ne.s32.totalorder %s31, %s34
    %p40 = scmp.eq.s32.totalorder %s9, 0
    %p41 = por %p39, %p40
    %p42 = scmp.ne.s32.totalorder %s31, %s34
    %p43 = scmp.eq.s32.totalorder %s14, 1
    %p44 = por %p42, %p43
    %p45 = scmp.ne.s32.totalorder %s34, %s35
    %p46 = scmp.eq.s32.totalorder %s14, 0
    %p47 = por %p45, %p46
    %p48 = scmp.ne.s32.totalorder %s34, %s35
    %p49 = scmp.eq.s32.totalorder %s15, 1
    %p50 = por %p48, %p49
    %p52 = scmp.ne.s32.totalorder %s35, %s51
    %p53 = scmp.eq.s32.totalorder %s15, 0
    %p54 = por %p52, %p53
    %s55 = ssub.s32 %s17, %s24
    %p56 = scmp.eq.s32.totalorder %s55, 0
    %s58 = sadd.s32 %s57, 1
    %s59 = scalar_select %p56, %s57, %s58
    %p62 = pneg %p56
    %p63 = scmp.eq.s32.totalorder %s9, 1
    %p64 = por %p62, %p63
    %p65 = scmp.ne.s32.totalorder %s57, %s60
    %p66 = scmp.eq.s32.totalorder %s9, 0
    %p67 = por %p65, %p66
    %p68 = scmp.ne.s32.totalorder %s57, %s60
    %p69 = scmp.eq.s32.totalorder %s14, 1
    %p70 = por %p68, %p69
    %p71 = scmp.ne.s32.totalorder %s60, %s61
    %p72 = scmp.eq.s32.totalorder %s14, 0
    %p73 = por %p71, %p72
    %p74 = scmp.ne.s32.totalorder %s60, %s61
    %p75 = scmp.eq.s32.totalorder %s15, 1
    %p76 = por %p74, %p75
    %p78 = scmp.ne.s32.totalorder %s61, %s77
    %p79 = scmp.eq.s32.totalorder %s15, 0
    %p80 = por %p78, %p79
    %s81 = ssub.s32 %s17, %s24
    %p82 = scmp.eq.s32.totalorder %s81, 0
    %s84 = sadd.s32 %s83, 1
    %s85 = scalar_select %p82, %s83, %s84
    %p88 = pneg %p82
    %p89 = scmp.eq.s32.totalorder %s9, 1
    %p90 = por %p88, %p89
    %p91 = scmp.ne.s32.totalorder %s83, %s86
    %p92 = scmp.eq.s32.totalorder %s9, 0
    %p93 = por %p91, %p92
    %p94 = scmp.ne.s32.totalorder %s83, %s86
    %p95 = scmp.eq.s32.totalorder %s14, 1
    %p96 = por %p94, %p95
    %p97 = scmp.ne.s32.totalorder %s86, %s87
    %p98 = scmp.eq.s32.totalorder %s14, 0
    %p99 = por %p97, %p98
    %p100 = scmp.ne.s32.totalorder %s86, %s87
    %p101 = scmp.eq.s32.totalorder %s15, 1
    %p102 = por %p100, %p101
    %p104 = scmp.ne.s32.totalorder %s87, %s103
    %p105 = scmp.eq.s32.totalorder %s15, 0
    %p106 = por %p104, %p105
    %s107 = ssub.s32 %s16, %s28
    %s108 = ssub.s32 %s17, %s24
    %s109 = sor.u32 %s107, %s108
    %p110 = scmp.eq.s32.totalorder %s109, 0
    %s112 = sadd.s32 %s111, 1
    %s113 = scalar_select %p110, %s111, %s112
    %p116 = pneg %p110
    %p117 = scmp.eq.s32.totalorder %s9, 1
    %p118 = por %p116, %p117
    %p119 = scmp.ne.s32.totalorder %s111, %s114
    %p120 = scmp.eq.s32.totalorder %s9, 0
    %p121 = por %p119, %p120
    %p122 = scmp.ne.s32.totalorder %s111, %s114
    %p123 = scmp.eq.s32.totalorder %s14, 1
    %p124 = por %p122, %p123
    %p125 = scmp.ne.s32.totalorder %s114, %s115
    %p126 = scmp.eq.s32.totalorder %s14, 0
    %p127 = por %p125, %p126
    %p128 = scmp.ne.s32.totalorder %s114, %s115
    %p129 = scmp.eq.s32.totalorder %s15, 1
    %p130 = por %p128, %p129
    %p132 = scmp.ne.s32.totalorder %s115, %s131
    %p133 = scmp.eq.s32.totalorder %s15, 0
    %p134 = por %p132, %p133
    %p135 = scmp.le.s32.totalorder 1, %s9
    %p136 = scmp.lt.s32.totalorder %s9, 3
    %p137 = pnand %p135, %p136
    %p138 = pneg %p137
    // Predicated region
    $region9: #{dueling_cnn_dqn_forward.5} parent=5 // pred_check
      _
    $region10: #{dueling_cnn_dqn_forward.5} parent=5 // pred_check_branch
      %140 = sbr.rel (%p137) target = $region12
    $region11: #{dueling_cnn_dqn_forward.5} parent=5 // pred_region
      %s141 = ssub.s32 %s9, 1
      // Predicated region
      $region13: #{dueling_cnn_dqn_forward.5} parent=11 // pred_check
        %p142 = pneg %p73
      $region14: #{dueling_cnn_dqn_forward.5} parent=11 // pred_check_branch
        %144 = sbr.rel (%p142) target = $region16
      $region15: #{dueling_cnn_dqn_forward.5} parent=11 // pred_region
        %p145 = scmp.lt.s32.totalorder %s19, 0
        %s146 = scalar_select %p145, %s19, 0
        %s147 = smul.addr %s146, 4
        %s148 = scalar_lea.vmem %s1, %s147
      $region16: #{dueling_cnn_dqn_forward.5} parent=11 // pred_fallthru
        _
      // Predicated region
      $region17: #{dueling_cnn_dqn_forward.5} parent=11 // pred_check
        %p149 = pneg %p99
      $region18: #{dueling_cnn_dqn_forward.5} parent=11 // pred_check_branch
        %151 = sbr.rel (%p149) target = $region20
      $region19: #{dueling_cnn_dqn_forward.5} parent=11 // pred_region
        %p152 = scmp.lt.s32.totalorder %s19, 0
        %s153 = scalar_select %p152, %s19, 0
        %s154 = scalar_lea.vmem %s2, %s153
      $region20: #{dueling_cnn_dqn_forward.5} parent=11 // pred_fallthru
        _
    $region12: #{dueling_cnn_dqn_forward.5} parent=5 // pred_fallthru
      _
    %p155 = scmp.lt.s32.totalorder %s9, 2
    // Predicated region
    $region21: #{dueling_cnn_dqn_forward.5} parent=5 // pred_check
      %p156 = pneg %p155
    $region22: #{dueling_cnn_dqn_forward.5} parent=5 // pred_check_branch
      %158 = sbr.rel (%p156) target = $region24
    $region23: #{dueling_cnn_dqn_forward.5} parent=5 // pred_region
      // Predicated region
      $region25: #{dueling_cnn_dqn_forward.5} parent=23 // pred_check
        %p159 = pneg %p41
      $region26: #{dueling_cnn_dqn_forward.5} parent=23 // pred_check_branch
        %161 = sbr.rel (%p159) target = $region28
      $region27: #{dueling_cnn_dqn_forward.5} parent=23 // pred_region
        %s162 = smul.u32 50, %s16
        %p163 = scmp.lt.s32.totalorder %s162, 99
        %s164 = scalar_select %p163, %s162, 99
        %s165 = smul.addr %s164, 2
        %s166 = smul.addr %s165, 4
        %s167 = scalar_lea.vmem %s0, %s166
        %s168 = smul.u32 50, %s16
      $region28: #{dueling_cnn_dqn_forward.5} parent=23 // pred_fallthru
        _
    $region24: #{dueling_cnn_dqn_forward.5} parent=5 // pred_fallthru
      _
    %p169 = scmp.le.s32.totalorder 1, %s9
    %p170 = scmp.lt.s32.totalorder %s9, 3
    %p171 = pnand %p169, %p170
    %p172 = pneg %p171
    // Predicated region
    $region29: #{dueling_cnn_dqn_forward.5} parent=5 // pred_check
      _
    $region30: #{dueling_cnn_dqn_forward.5} parent=5 // pred_check_branch
      %174 = sbr.rel (%p171) target = $region32
    $region31: #{dueling_cnn_dqn_forward.5} parent=5 // pred_region
      %s175 = ssub.s32 %s9, 1
      %s176 = smul.u32 50, %s18
      %p177 = scmp.lt.s32.totalorder %s176, 99
      %s178 = scalar_select %p177, %s176, 99
      %s179 = smul.addr %s178, 2
      %s180 = smul.addr %s179, 4
      %s181 = scalar_lea.vmem %s0, %s180
      %p182 = pneg %p47
      %p183 = pneg %p44
      %p184 = scmp.lt.s32.totalorder %s19, 0
      %s185 = scalar_select %p184, %s19, 0
      %s186 = smul.addr %s185, 4
      %s187 = scalar_lea.vmem %s1, %s186
      %p188 = pneg %p73
      %p189 = pneg %p70
      %p190 = scmp.lt.s32.totalorder %s19, 0
      %s191 = scalar_select %p190, %s19, 0
      %s192 = scalar_lea.vmem %s2, %s191
      %p193 = pneg %p99
      %p194 = pneg %p96
      %p195 = pneg %p127
      %p196 = pneg %p124
      %s197 = smul.u32 50, %s18
      %p198 = scmp.lt.s32.totalorder %s197, 99
      %s199 = scalar_select %p198, %s197, 99
      %p200 = scmp.lt.s32.totalorder %s19, 0
      %s201 = scalar_select %p200, %s19, 0
      %s202 = sadd.s32 %s201, %s199
      %s203 = smul.addr %s202, 8
      %s204 = scalar_lea.vmem %s3, %s203
      %s205 = smul.u32 50, %s18
      %p206 = scmp.lt.s32.totalorder %s205, 99
      %s207 = scalar_select %p206, %s205, 99
      %s208 = smul.addr %s207, 2
      %s209 = smul.addr %s208, 4
      %s210 = scalar_lea.vmem %s0, %s209
      %s211 = smul.u32 50, %s18
      %p212 = scmp.lt.s32.totalorder %s19, 0
      %s213 = scalar_select %p212, %s19, 0
      %s214 = smul.addr %s213, 4
      %s215 = scalar_lea.vmem %s1, %s214
      %p216 = scmp.lt.s32.totalorder %s19, 0
      %s217 = scalar_select %p216, %s19, 0
      %s218 = scalar_lea.vmem %s2, %s217
      %s219 = smul.u32 50, %s18
      %p220 = scmp.lt.s32.totalorder %s219, 99
      %s221 = scalar_select %p220, %s219, 99
      %p222 = scmp.lt.s32.totalorder %s19, 0
      %s223 = scalar_select %p222, %s19, 0
      %s224 = sadd.s32 %s223, %s221
      %s225 = smul.addr %s224, 8
      %s226 = scalar_lea.vmem %s3, %s225
      %s227 = smul.u32 50, %s18
      %v229 = vld [vmem:[%s210] sm:$0xff]
      %v230 = vld [vmem:[%s210 + $0x8] sm:$0xff]
      %v231 = vld [vmem:[%s210 + $0x10] sm:$0xff]
      %v232 = vld [vmem:[%s210 + $0x18] sm:$0xff]
      %v233 = vld [vmem:[%s210 + $0x20] sm:$0xff]
      %v234 = vld [vmem:[%s210 + $0x28] sm:$0xff]
      %v235 = vld [vmem:[%s210 + $0x30] sm:$0xff]
      %v236 = vld [vmem:[%s210 + $0x38] sm:$0xff]
      %v237 = vld [vmem:[%s210 + $0x40] sm:$0xff]
      %v238 = vld [vmem:[%s210 + $0x48] sm:$0xff]
      %v239 = vld [vmem:[%s210 + $0x50] sm:$0xff]
      %v240 = vld [vmem:[%s210 + $0x58] sm:$0xff]
      %v241 = vld [vmem:[%s210 + $0x60] sm:$0xff]
      %v242 = vld [vmem:[%s210 + $0x68] sm:$0xff]
      %v243 = vld [vmem:[%s210 + $0x70] sm:$0xff]
      %v244 = vld [vmem:[%s210 + $0x78] sm:$0xff]
      %v245 = vld [vmem:[%s210 + $0x80] sm:$0xff]
      %v246 = vld [vmem:[%s210 + $0x88] sm:$0xff]
      %v247 = vld [vmem:[%s210 + $0x90] sm:$0xff]
      %v248 = vld [vmem:[%s210 + $0x98] sm:$0xff]
      %v249 = vld [vmem:[%s210 + $0xa0] sm:$0xff]
      %v250 = vld [vmem:[%s210 + $0xa8] sm:$0xff]
      %v251 = vld [vmem:[%s210 + $0xb0] sm:$0xff]
      %v252 = vld [vmem:[%s210 + $0xb8] sm:$0xff]
      %v253 = vld [vmem:[%s210 + $0xc0] sm:$0xff]
      %v254 = vld [vmem:[%s210 + $0xc8] sm:$0xff]
      %v255 = vld [vmem:[%s210 + $0xd0] sm:$0xff]
      %v256 = vld [vmem:[%s210 + $0xd8] sm:$0xff]
      %v257 = vld [vmem:[%s210 + $0xe0] sm:$0xff]
      %v258 = vld [vmem:[%s210 + $0xe8] sm:$0xff]
      %v259 = vld [vmem:[%s210 + $0xf0] sm:$0xff]
      %v260 = vld [vmem:[%s210 + $0xf8] sm:$0xff]
      %v261 = vld [vmem:[%s210 + $0x100] sm:$0xff]
      %v262 = vld [vmem:[%s210 + $0x108] sm:$0xff]
      %v263 = vld [vmem:[%s210 + $0x110] sm:$0xff]
      %v264 = vld [vmem:[%s210 + $0x118] sm:$0xff]
      %v265 = vld [vmem:[%s210 + $0x120] sm:$0xff]
      %v266 = vld [vmem:[%s210 + $0x128] sm:$0xff]
      %v267 = vld [vmem:[%s210 + $0x130] sm:$0xff]
      %v268 = vld [vmem:[%s210 + $0x138] sm:$0xff]
      %v269 = vld [vmem:[%s210 + $0x140] sm:$0xff]
      %v270 = vld [vmem:[%s210 + $0x148] sm:$0xff]
      %v271 = vld [vmem:[%s210 + $0x150] sm:$0xff]
      %v272 = vld [vmem:[%s210 + $0x158] sm:$0xff]
      %v273 = vld [vmem:[%s210 + $0x160] sm:$0xff]
      %v274 = vld [vmem:[%s210 + $0x168] sm:$0xff]
      %v275 = vld [vmem:[%s210 + $0x170] sm:$0xff]
      %v276 = vld [vmem:[%s210 + $0x178] sm:$0xff]
      %v277 = vld [vmem:[%s210 + $0x180] sm:$0xff]
      %v278 = vld [vmem:[%s210 + $0x188] sm:$0xff]
      %v279 = vld [vmem:[%s215] sm:$0xf]
      %v280 = vld [vmem:[%s215 + $0x4] sm:$0xf]
      %v281 = vld [vmem:[%s215 + $0x8] sm:$0xf]
      %v282 = vld [vmem:[%s215 + $0xc] sm:$0xf]
      %v283 = vld [vmem:[%s215 + $0x10] sm:$0xf]
      %v284 = vld [vmem:[%s215 + $0x14] sm:$0xf]
      %v285 = vld [vmem:[%s215 + $0x18] sm:$0xf]
      %v286 = vld [vmem:[%s215 + $0x1c] sm:$0xf]
      %v287 = vld [vmem:[%s215 + $0x20] sm:$0xf]
      %v288 = vld [vmem:[%s215 + $0x24] sm:$0xf]
      %v289 = vld [vmem:[%s215 + $0x28] sm:$0xf]
      %v290 = vld [vmem:[%s215 + $0x2c] sm:$0xf]
      %v291 = vld [vmem:[%s215 + $0x30] sm:$0xf]
      %v292 = vld [vmem:[%s215 + $0x34] sm:$0xf]
      %v293 = vld [vmem:[%s215 + $0x38] sm:$0xf]
      %v294 = vld [vmem:[%s215 + $0x3c] sm:$0xf]
      %v295 = vld [vmem:[%s215 + $0x40] sm:$0xf]
      %v296 = vld [vmem:[%s215 + $0x44] sm:$0xf]
      %v297 = vld [vmem:[%s215 + $0x48] sm:$0xf]
      %v298 = vld [vmem:[%s215 + $0x4c] sm:$0xf]
      %v299 = vld [vmem:[%s215 + $0x50] sm:$0xf]
      %v300 = vld [vmem:[%s215 + $0x54] sm:$0xf]
      %v301 = vld [vmem:[%s215 + $0x58] sm:$0xf]
      %v302 = vld [vmem:[%s215 + $0x5c] sm:$0xf]
      %v303 = vld [vmem:[%s215 + $0x60] sm:$0xf]
      %v304 = vld [vmem:[%s215 + $0x64] sm:$0xf]
      %v305 = vld [vmem:[%s215 + $0x68] sm:$0xf]
      %v306 = vld [vmem:[%s215 + $0x6c] sm:$0xf]
      %v307 = vld [vmem:[%s215 + $0x70] sm:$0xf]
      %v308 = vld [vmem:[%s215 + $0x74] sm:$0xf]
      %v309 = vld [vmem:[%s215 + $0x78] sm:$0xf]
      %v310 = vld [vmem:[%s215 + $0x7c] sm:$0xf]
      %v311 = vld [vmem:[%s218] sm:$0x1]
      %v313 = vlaneseq
      %v314 = vshrl.u32 %v313, 7
      %v315 = vsub.s32 0, %v314
      %v316 = vrot.slane %v311, %v315
      %v368 = vunpack.c.l.b16 %v229
      %v369 = vunpack.c.h.b16 %v229
      %v370 = vunpack.c.l.b16 %v230
      %v371 = vunpack.c.h.b16 %v230
      %v372 = vunpack.c.l.b16 %v231
      %v373 = vunpack.c.h.b16 %v231
      %v374 = vunpack.c.l.b16 %v232
      %v375 = vunpack.c.h.b16 %v232
      %v376 = vunpack.c.l.b16 %v233
      %v377 = vunpack.c.h.b16 %v233
      %v378 = vunpack.c.l.b16 %v234
      %v379 = vunpack.c.h.b16 %v234
      %v380 = vunpack.c.l.b16 %v235
      %v381 = vunpack.c.h.b16 %v235
      %v382 = vunpack.c.l.b16 %v236
      %v383 = vunpack.c.h.b16 %v236
      %v384 = vunpack.c.l.b16 %v237
      %v385 = vunpack.c.h.b16 %v237
      %v386 = vunpack.c.l.b16 %v238
      %v387 = vunpack.c.h.b16 %v238
      %v388 = vunpack.c.l.b16 %v239
      %v389 = vunpack.c.h.b16 %v239
      %v390 = vunpack.c.l.b16 %v240
      %v391 = vunpack.c.h.b16 %v240
      %v392 = vunpack.c.l.b16 %v241
      %v393 = vunpack.c.h.b16 %v241
      %v394 = vunpack.c.l.b16 %v242
      %v395 = vunpack.c.h.b16 %v242
      %v396 = vunpack.c.l.b16 %v243
      %v397 = vunpack.c.h.b16 %v243
      %v398 = vunpack.c.l.b16 %v244
      %v399 = vunpack.c.h.b16 %v244
      %v400 = vunpack.c.l.b16 %v245
      %v401 = vunpack.c.h.b16 %v245
      %v402 = vunpack.c.l.b16 %v246
      %v403 = vunpack.c.h.b16 %v246
      %v404 = vunpack.c.l.b16 %v247
      %v405 = vunpack.c.h.b16 %v247
      %v406 = vunpack.c.l.b16 %v248
      %v407 = vunpack.c.h.b16 %v248
      %v408 = vunpack.c.l.b16 %v249
      %v409 = vunpack.c.h.b16 %v249
      %v410 = vunpack.c.l.b16 %v250
      %v411 = vunpack.c.h.b16 %v250
      %v412 = vunpack.c.l.b16 %v251
      %v413 = vunpack.c.h.b16 %v251
      %v414 = vunpack.c.l.b16 %v252
      %v415 = vunpack.c.h.b16 %v252
      %v416 = vunpack.c.l.b16 %v253
      %v417 = vunpack.c.h.b16 %v253
      %v418 = vunpack.c.l.b16 %v254
      %v419 = vunpack.c.h.b16 %v254
      %v420 = vunpack.c.l.b16 %v255
      %v421 = vunpack.c.h.b16 %v255
      %v422 = vunpack.c.l.b16 %v256
      %v423 = vunpack.c.h.b16 %v256
      %v424 = vunpack.c.l.b16 %v257
      %v425 = vunpack.c.h.b16 %v257
      %v426 = vunpack.c.l.b16 %v258
      %v427 = vunpack.c.h.b16 %v258
      %v428 = vunpack.c.l.b16 %v259
      %v429 = vunpack.c.h.b16 %v259
      %v430 = vunpack.c.l.b16 %v260
      %v431 = vunpack.c.h.b16 %v260
      %v432 = vunpack.c.l.b16 %v261
      %v433 = vunpack.c.h.b16 %v261
      %v434 = vunpack.c.l.b16 %v262
      %v435 = vunpack.c.h.b16 %v262
      %v436 = vunpack.c.l.b16 %v263
      %v437 = vunpack.c.h.b16 %v263
      %v438 = vunpack.c.l.b16 %v264
      %v439 = vunpack.c.h.b16 %v264
      %v440 = vunpack.c.l.b16 %v265
      %v441 = vunpack.c.h.b16 %v265
      %v442 = vunpack.c.l.b16 %v266
      %v443 = vunpack.c.h.b16 %v266
      %v444 = vunpack.c.l.b16 %v267
      %v445 = vunpack.c.h.b16 %v267
      %v446 = vunpack.c.l.b16 %v268
      %v447 = vunpack.c.h.b16 %v268
      %v448 = vunpack.c.l.b16 %v269
      %v449 = vunpack.c.h.b16 %v269
      %v450 = vunpack.c.l.b16 %v270
      %v451 = vunpack.c.h.b16 %v270
      %v452 = vunpack.c.l.b16 %v271
      %v453 = vunpack.c.h.b16 %v271
      %v454 = vunpack.c.l.b16 %v272
      %v455 = vunpack.c.h.b16 %v272
      %v456 = vunpack.c.l.b16 %v273
      %v457 = vunpack.c.h.b16 %v273
      %v458 = vunpack.c.l.b16 %v274
      %v459 = vunpack.c.h.b16 %v274
      %v460 = vunpack.c.l.b16 %v275
      %v461 = vunpack.c.h.b16 %v275
      %v462 = vunpack.c.l.b16 %v276
      %v463 = vunpack.c.h.b16 %v276
      %v464 = vunpack.c.l.b16 %v277
      %v465 = vunpack.c.h.b16 %v277
      %v466 = vunpack.c.l.b16 %v278
      %v467 = vunpack.c.h.b16 %v278
      %v468 = vpack.c.b16 %v370, %v368
      %v469 = vpack.c.b16 %v371, %v369
      %v470 = vpack.c.b16 %v374, %v372
      %v471 = vpack.c.b16 %v375, %v373
      %v472 = vpack.c.b16 %v378, %v376
      %v473 = vpack.c.b16 %v379, %v377
      %v474 = vpack.c.b16 %v382, %v380
      %v475 = vpack.c.b16 %v383, %v381
      %v476 = vpack.c.b16 %v386, %v384
      %v477 = vpack.c.b16 %v387, %v385
      %v478 = vpack.c.b16 %v390, %v388
      %v479 = vpack.c.b16 %v391, %v389
      %v480 = vpack.c.b16 %v394, %v392
      %v481 = vpack.c.b16 %v395, %v393
      %v482 = vpack.c.b16 %v398, %v396
      %v483 = vpack.c.b16 %v399, %v397
      %v484 = vpack.c.b16 %v402, %v400
      %v485 = vpack.c.b16 %v403, %v401
      %v486 = vpack.c.b16 %v406, %v404
      %v487 = vpack.c.b16 %v407, %v405
      %v488 = vpack.c.b16 %v410, %v408
      %v489 = vpack.c.b16 %v411, %v409
      %v490 = vpack.c.b16 %v414, %v412
      %v491 = vpack.c.b16 %v415, %v413
      %v492 = vpack.c.b16 %v418, %v416
      %v493 = vpack.c.b16 %v419, %v417
      %v494 = vpack.c.b16 %v422, %v420
      %v495 = vpack.c.b16 %v423, %v421
      %v496 = vpack.c.b16 %v426, %v424
      %v497 = vpack.c.b16 %v427, %v425
      %v498 = vpack.c.b16 %v430, %v428
      %v499 = vpack.c.b16 %v431, %v429
      %v500 = vpack.c.b16 %v434, %v432
      %v501 = vpack.c.b16 %v435, %v433
      %v502 = vpack.c.b16 %v438, %v436
      %v503 = vpack.c.b16 %v439, %v437
      %v504 = vpack.c.b16 %v442, %v440
      %v505 = vpack.c.b16 %v443, %v441
      %v506 = vpack.c.b16 %v446, %v444
      %v507 = vpack.c.b16 %v447, %v445
      %v508 = vpack.c.b16 %v450, %v448
      %v509 = vpack.c.b16 %v451, %v449
      %v510 = vpack.c.b16 %v454, %v452
      %v511 = vpack.c.b16 %v455, %v453
      %v512 = vpack.c.b16 %v458, %v456
      %v513 = vpack.c.b16 %v459, %v457
      %v514 = vpack.c.b16 %v462, %v460
      %v515 = vpack.c.b16 %v463, %v461
      %v516 = vpack.c.b16 %v466, %v464
      %v517 = vpack.c.b16 %v467, %v465
      %v600 = vunpack.c.l.b16 %v279
      %v601 = vunpack.c.l.b16 %v280
      %v602 = vunpack.c.l.b16 %v281
      %v603 = vunpack.c.l.b16 %v282
      %v604 = vunpack.c.l.b16 %v283
      %v605 = vunpack.c.l.b16 %v284
      %v606 = vunpack.c.l.b16 %v285
      %v607 = vunpack.c.l.b16 %v286
      %v608 = vunpack.c.l.b16 %v287
      %v609 = vunpack.c.l.b16 %v288
      %v610 = vunpack.c.l.b16 %v289
      %v611 = vunpack.c.l.b16 %v290
      %v612 = vunpack.c.l.b16 %v291
      %v613 = vunpack.c.l.b16 %v292
      %v614 = vunpack.c.l.b16 %v293
      %v615 = vunpack.c.l.b16 %v294
      %v616 = vunpack.c.l.b16 %v295
      %v617 = vunpack.c.l.b16 %v296
      %v618 = vunpack.c.l.b16 %v297
      %v619 = vunpack.c.l.b16 %v298
      %v620 = vunpack.c.l.b16 %v299
      %v621 = vunpack.c.l.b16 %v300
      %v622 = vunpack.c.l.b16 %v301
      %v623 = vunpack.c.l.b16 %v302
      %v624 = vunpack.c.l.b16 %v303
      %v625 = vunpack.c.l.b16 %v304
      %v626 = vunpack.c.l.b16 %v305
      %v627 = vunpack.c.l.b16 %v306
      %v628 = vunpack.c.l.b16 %v307
      %v629 = vunpack.c.l.b16 %v308
      %v630 = vunpack.c.l.b16 %v309
      %v631 = vunpack.c.l.b16 %v310
      %v632 = vpack.c.b16 %v601, %v600
      %v633 = vpack.c.b16 %v603, %v602
      %v634 = vpack.c.b16 %v605, %v604
      %v635 = vpack.c.b16 %v607, %v606
      %v636 = vpack.c.b16 %v609, %v608
      %v637 = vpack.c.b16 %v611, %v610
      %v638 = vpack.c.b16 %v613, %v612
      %v639 = vpack.c.b16 %v615, %v614
      %v640 = vpack.c.b16 %v617, %v616
      %v641 = vpack.c.b16 %v619, %v618
      %v642 = vpack.c.b16 %v621, %v620
      %v643 = vpack.c.b16 %v623, %v622
      %v644 = vpack.c.b16 %v625, %v624
      %v645 = vpack.c.b16 %v627, %v626
      %v646 = vpack.c.b16 %v629, %v628
      %v647 = vpack.c.b16 %v631, %v630
      %664 = vmatprep.subr.bf16.mxu0 0
      %665 = vmatpush1.bf16.msra.mxu0 %v632
      %666 = vmatprep.subr.bf16.mxu0 0
      %667 = vmatpush1.bf16.msra.mxu0 %v633
      %668 = vmatprep.subr.bf16.mxu0 0
      %669 = vmatpush1.bf16.msra.mxu0 %v634
      %670 = vmatprep.subr.bf16.mxu0 0
      %671 = vmatpush1.bf16.msra.mxu0 %v635
      %672 = vmatprep.subr.bf16.mxu0 0
      %673 = vmatpush1.bf16.msra.mxu0 %v636
      %674 = vmatprep.subr.bf16.mxu0 0
      %675 = vmatpush1.bf16.msra.mxu0 %v637
      %676 = vmatprep.subr.bf16.mxu0 0
      %677 = vmatpush1.bf16.msra.mxu0 %v638
      %678 = vmatprep.subr.bf16.mxu0 0
      %679 = vmatpush1.bf16.msra.mxu0 %v639
      %680 = vmatprep.subr.bf16.mxu0 0
      %681 = vmatpush1.bf16.msra.mxu0 %v640
      %682 = vmatprep.subr.bf16.mxu0 0
      %683 = vmatpush1.bf16.msra.mxu0 %v641
      %684 = vmatprep.subr.bf16.mxu0 0
      %685 = vmatpush1.bf16.msra.mxu0 %v642
      %686 = vmatprep.subr.bf16.mxu0 0
      %687 = vmatpush1.bf16.msra.mxu0 %v643
      %688 = vmatprep.subr.bf16.mxu0 0
      %689 = vmatpush1.bf16.msra.mxu0 %v644
      %690 = vmatprep.subr.bf16.mxu0 0
      %691 = vmatpush1.bf16.msra.mxu0 %v645
      %692 = vmatprep.subr.bf16.mxu0 0
      %693 = vmatpush1.bf16.msra.mxu0 %v646
      %694 = vmatprep.subr.bf16.mxu0 0
      %695 = vmatpush1.bf16.msra.mxu0 %v647
      %696 = vmatprep.mubr.bf16.mxu0 %v469
      %697 = vmatmul.mubr.bf16.gmra.mrb[0].mxu0 %v468
      %v698 = vpop.f32.mrb[0].mxu0
      %v699 = vadd.f32 %v316, %v698
      %v700 = vpop.f32.mrb[0].mxu0
      %v701 = vpop.f32.mrb[0].mxu0
      %v702 = vadd.f32 %v316, %v701
      %v703 = vpop.f32.mrb[0].mxu0
      %704 = vmatprep.mubr.bf16.mxu0 %v471
      %705 = vmatmul.mubr.bf16.gmra.mrb[0].mxu0 %v470
      %v706 = vpop.f32.mrb[0].mxu0
      %v707 = vadd.f32 %v316, %v706
      %v708 = vpop.f32.mrb[0].mxu0
      %v709 = vpop.f32.mrb[0].mxu0
      %v710 = vadd.f32 %v316, %v709
      %v711 = vpop.f32.mrb[0].mxu0
      %712 = vmatprep.mubr.bf16.mxu0 %v473
      %713 = vmatmul.mubr.bf16.gmra.mrb[0].mxu0 %v472
      %v714 = vpop.f32.mrb[0].mxu0
      %v715 = vadd.f32 %v316, %v714
      %v716 = vpop.f32.mrb[0].mxu0
      %v717 = vpop.f32.mrb[0].mxu0
      %v718 = vadd.f32 %v316, %v717
      %v719 = vpop.f32.mrb[0].mxu0
      %720 = vmatprep.mubr.bf16.mxu0 %v475
      %721 = vmatmul.mubr.bf16.gmra.mrb[0].mxu0 %v474
      %v722 = vpop.f32.mrb[0].mxu0
      %v723 = vadd.f32 %v316, %v722
      %v724 = vpop.f32.mrb[0].mxu0
      %v725 = vpop.f32.mrb[0].mxu0
      %v726 = vadd.f32 %v316, %v725
      %v727 = vpop.f32.mrb[0].mxu0
      %728 = vmatprep.mubr.bf16.mxu0 %v477
      %729 = vmatmul.mubr.bf16.gmra.mrb[0].mxu0 %v476
      %v730 = vpop.f32.mrb[0].mxu0
      %v731 = vadd.f32 %v316, %v730
      %v732 = vpop.f32.mrb[0].mxu0
      %v733 = vpop.f32.mrb[0].mxu0
      %v734 = vadd.f32 %v316, %v733
      %v735 = vpop.f32.mrb[0].mxu0
      %736 = vmatprep.mubr.bf16.mxu0 %v479
      %737 = vmatmul.mubr.bf16.gmra.mrb[0].mxu0 %v478
      %v738 = vpop.f32.mrb[0].mxu0
      %v739 = vadd.f32 %v316, %v738
      %v740 = vpop.f32.mrb[0].mxu0
      %v741 = vpop.f32.mrb[0].mxu0
      %v742 = vadd.f32 %v316, %v741
      %v743 = vpop.f32.mrb[0].mxu0
      %744 = vmatprep.mubr.bf16.mxu0 %v481
      %745 = vmatmul.mubr.bf16.gmra.mrb[0].mxu0 %v480
      %v746 = vpop.f32.mrb[0].mxu0
      %v747 = vadd.f32 %v316, %v746
      %v748 = vpop.f32.mrb[0].mxu0
      %v749 = vpop.f32.mrb[0].mxu0
      %v750 = vadd.f32 %v316, %v749
      %v751 = vpop.f32.mrb[0].mxu0
      %752 = vmatprep.mubr.bf16.mxu0 %v483
      %753 = vmatmul.mubr.bf16.gmra.mrb[0].mxu0 %v482
      %v754 = vpop.f32.mrb[0].mxu0
      %v755 = vadd.f32 %v316, %v754
      %v756 = vpop.f32.mrb[0].mxu0
      %v757 = vpop.f32.mrb[0].mxu0
      %v758 = vadd.f32 %v316, %v757
      %v759 = vpop.f32.mrb[0].mxu0
      %760 = vmatprep.mubr.bf16.mxu0 %v485
      %761 = vmatmul.mubr.bf16.gmra.mrb[0].mxu0 %v484
      %v762 = vpop.f32.mrb[0].mxu0
      %v763 = vadd.f32 %v316, %v762
      %v764 = vpop.f32.mrb[0].mxu0
      %v765 = vpop.f32.mrb[0].mxu0
      %v766 = vadd.f32 %v316, %v765
      %v767 = vpop.f32.mrb[0].mxu0
      %768 = vmatprep.mubr.bf16.mxu0 %v487
      %769 = vmatmul.mubr.bf16.gmra.mrb[0].mxu0 %v486
      %v770 = vpop.f32.mrb[0].mxu0
      %v771 = vadd.f32 %v316, %v770
      %v772 = vpop.f32.mrb[0].mxu0
      %v773 = vpop.f32.mrb[0].mxu0
      %v774 = vadd.f32 %v316, %v773
      %v775 = vpop.f32.mrb[0].mxu0
      %776 = vmatprep.mubr.bf16.mxu0 %v489
      %777 = vmatmul.mubr.bf16.gmra.mrb[0].mxu0 %v488
      %v778 = vpop.f32.mrb[0].mxu0
      %v779 = vadd.f32 %v316, %v778
      %v780 = vpop.f32.mrb[0].mxu0
      %v781 = vpop.f32.mrb[0].mxu0
      %v782 = vadd.f32 %v316, %v781
      %v783 = vpop.f32.mrb[0].mxu0
      %784 = vmatprep.mubr.bf16.mxu0 %v491
      %785 = vmatmul.mubr.bf16.gmra.mrb[0].mxu0 %v490
      %v786 = vpop.f32.mrb[0].mxu0
      %v787 = vadd.f32 %v316, %v786
      %v788 = vpop.f32.mrb[0].mxu0
      %v789 = vpop.f32.mrb[0].mxu0
      %v790 = vadd.f32 %v316, %v789
      %v791 = vpop.f32.mrb[0].mxu0
      %792 = vmatprep.mubr.bf16.mxu0 %v493
      %793 = vmatmul.mubr.bf16.gmra.mrb[0].mxu0 %v492
      %v794 = vpop.f32.mrb[0].mxu0
      %v795 = vadd.f32 %v316, %v794
      %v796 = vpop.f32.mrb[0].mxu0
      %v797 = vpop.f32.mrb[0].mxu0
      %v798 = vadd.f32 %v316, %v797
      %v799 = vpop.f32.mrb[0].mxu0
      %800 = vmatprep.mubr.bf16.mxu0 %v495
      %801 = vmatmul.mubr.bf16.gmra.mrb[0].mxu0 %v494
      %v802 = vpop.f32.mrb[0].mxu0
      %v803 = vadd.f32 %v316, %v802
      %v804 = vpop.f32.mrb[0].mxu0
      %v805 = vpop.f32.mrb[0].mxu0
      %v806 = vadd.f32 %v316, %v805
      %v807 = vpop.f32.mrb[0].mxu0
      %808 = vmatprep.mubr.bf16.mxu0 %v497
      %809 = vmatmul.mubr.bf16.gmra.mrb[0].mxu0 %v496
      %v810 = vpop.f32.mrb[0].mxu0
      %v811 = vadd.f32 %v316, %v810
      %v812 = vpop.f32.mrb[0].mxu0
      %v813 = vpop.f32.mrb[0].mxu0
      %v814 = vadd.f32 %v316, %v813
      %v815 = vpop.f32.mrb[0].mxu0
      %816 = vmatprep.mubr.bf16.mxu0 %v499
      %817 = vmatmul.mubr.bf16.gmra.mrb[0].mxu0 %v498
      %v818 = vpop.f32.mrb[0].mxu0
      %v819 = vadd.f32 %v316, %v818
      %v820 = vpop.f32.mrb[0].mxu0
      %v821 = vpop.f32.mrb[0].mxu0
      %v822 = vadd.f32 %v316, %v821
      %v823 = vpop.f32.mrb[0].mxu0
      %824 = vmatprep.mubr.bf16.mxu0 %v501
      %825 = vmatmul.mubr.bf16.gmra.mrb[0].mxu0 %v500
      %v826 = vpop.f32.mrb[0].mxu0
      %v827 = vadd.f32 %v316, %v826
      %v828 = vpop.f32.mrb[0].mxu0
      %v829 = vpop.f32.mrb[0].mxu0
      %v830 = vadd.f32 %v316, %v829
      %v831 = vpop.f32.mrb[0].mxu0
      %832 = vmatprep.mubr.bf16.mxu0 %v503
      %833 = vmatmul.mubr.bf16.gmra.mrb[0].mxu0 %v502
      %v834 = vpop.f32.mrb[0].mxu0
      %v835 = vadd.f32 %v316, %v834
      %v836 = vpop.f32.mrb[0].mxu0
      %v837 = vpop.f32.mrb[0].mxu0
      %v838 = vadd.f32 %v316, %v837
      %v839 = vpop.f32.mrb[0].mxu0
      %840 = vmatprep.mubr.bf16.mxu0 %v505
      %841 = vmatmul.mubr.bf16.gmra.mrb[0].mxu0 %v504
      %v842 = vpop.f32.mrb[0].mxu0
      %v843 = vadd.f32 %v316, %v842
      %v844 = vpop.f32.mrb[0].mxu0
      %v845 = vpop.f32.mrb[0].mxu0
      %v846 = vadd.f32 %v316, %v845
      %v847 = vpop.f32.mrb[0].mxu0
      %848 = vmatprep.mubr.bf16.mxu0 %v507
      %849 = vmatmul.mubr.bf16.gmra.mrb[0].mxu0 %v506
      %v850 = vpop.f32.mrb[0].mxu0
      %v851 = vadd.f32 %v316, %v850
      %v852 = vpop.f32.mrb[0].mxu0
      %v853 = vpop.f32.mrb[0].mxu0
      %v854 = vadd.f32 %v316, %v853
      %v855 = vpop.f32.mrb[0].mxu0
      %856 = vmatprep.mubr.bf16.mxu0 %v509
      %857 = vmatmul.mubr.bf16.gmra.mrb[0].mxu0 %v508
      %v858 = vpop.f32.mrb[0].mxu0
      %v859 = vadd.f32 %v316, %v858
      %v860 = vpop.f32.mrb[0].mxu0
      %v861 = vpop.f32.mrb[0].mxu0
      %v862 = vadd.f32 %v316, %v861
      %v863 = vpop.f32.mrb[0].mxu0
      %864 = vmatprep.mubr.bf16.mxu0 %v511
      %865 = vmatmul.mubr.bf16.gmra.mrb[0].mxu0 %v510
      %v866 = vpop.f32.mrb[0].mxu0
      %v867 = vadd.f32 %v316, %v866
      %v868 = vpop.f32.mrb[0].mxu0
      %v869 = vpop.f32.mrb[0].mxu0
      %v870 = vadd.f32 %v316, %v869
      %v871 = vpop.f32.mrb[0].mxu0
      %872 = vmatprep.mubr.bf16.mxu0 %v513
      %873 = vmatmul.mubr.bf16.gmra.mrb[0].mxu0 %v512
      %v874 = vpop.f32.mrb[0].mxu0
      %v875 = vadd.f32 %v316, %v874
      %v876 = vpop.f32.mrb[0].mxu0
      %v877 = vpop.f32.mrb[0].mxu0
      %v878 = vadd.f32 %v316, %v877
      %v879 = vpop.f32.mrb[0].mxu0
      %880 = vmatprep.mubr.bf16.mxu0 %v515
      %881 = vmatmul.mubr.bf16.gmra.mrb[0].mxu0 %v514
      %v882 = vpop.f32.mrb[0].mxu0
      %v883 = vadd.f32 %v316, %v882
      %v884 = vpop.f32.mrb[0].mxu0
      %v885 = vpop.f32.mrb[0].mxu0
      %v886 = vadd.f32 %v316, %v885
      %v887 = vpop.f32.mrb[0].mxu0
      %888 = vmatprep.mubr.bf16.mxu0 %v517
      %889 = vmatmul.mubr.bf16.gmra.mrb[0].mxu0 %v516
      %v890 = vpop.f32.mrb[0].mxu0
      %v891 = vadd.f32 %v316, %v890
      %v892 = vpop.f32.mrb[0].mxu0
      %v893 = vpop.f32.mrb[0].mxu0
      %v894 = vadd.f32 %v316, %v893
      %v895 = vpop.f32.mrb[0].mxu0
      %896 = vdwg.mxu0
      %v897 = vmax.f32 %v699, 0.0
      %v898 = vmax.f32 %v702, 0.0
      %v899 = vmax.f32 %v707, 0.0
      %v900 = vmax.f32 %v710, 0.0
      %v901 = vmax.f32 %v715, 0.0
      %v902 = vmax.f32 %v718, 0.0
      %v903 = vmax.f32 %v723, 0.0
      %v904 = vmax.f32 %v726, 0.0
      %v905 = vmax.f32 %v731, 0.0
      %v906 = vmax.f32 %v734, 0.0
      %v907 = vmax.f32 %v739, 0.0
      %v908 = vmax.f32 %v742, 0.0
      %v909 = vmax.f32 %v747, 0.0
      %v910 = vmax.f32 %v750, 0.0
      %v911 = vmax.f32 %v755, 0.0
      %v912 = vmax.f32 %v758, 0.0
      %v913 = vmax.f32 %v763, 0.0
      %v914 = vmax.f32 %v766, 0.0
      %v915 = vmax.f32 %v771, 0.0
      %v916 = vmax.f32 %v774, 0.0
      %v917 = vmax.f32 %v779, 0.0
      %v918 = vmax.f32 %v782, 0.0
      %v919 = vmax.f32 %v787, 0.0
      %v920 = vmax.f32 %v790, 0.0
      %v921 = vmax.f32 %v795, 0.0
      %v922 = vmax.f32 %v798, 0.0
      %v923 = vmax.f32 %v803, 0.0
      %v924 = vmax.f32 %v806, 0.0
      %v925 = vmax.f32 %v811, 0.0
      %v926 = vmax.f32 %v814, 0.0
      %v927 = vmax.f32 %v819, 0.0
      %v928 = vmax.f32 %v822, 0.0
      %v929 = vmax.f32 %v827, 0.0
      %v930 = vmax.f32 %v830, 0.0
      %v931 = vmax.f32 %v835, 0.0
      %v932 = vmax.f32 %v838, 0.0
      %v933 = vmax.f32 %v843, 0.0
      %v934 = vmax.f32 %v846, 0.0
      %v935 = vmax.f32 %v851, 0.0
      %v936 = vmax.f32 %v854, 0.0
      %v937 = vmax.f32 %v859, 0.0
      %v938 = vmax.f32 %v862, 0.0
      %v939 = vmax.f32 %v867, 0.0
      %v940 = vmax.f32 %v870, 0.0
      %v941 = vmax.f32 %v875, 0.0
      %v942 = vmax.f32 %v878, 0.0
      %v943 = vmax.f32 %v883, 0.0
      %v944 = vmax.f32 %v886, 0.0
      %v945 = vmax.f32 %v891, 0.0
      %v946 = vmax.f32 %v894, 0.0
      %947 = vst [vmem:[%s226] sm:$0xff] %v897
      %948 = vst [vmem:[%s226 + $0x8] sm:$0xff] %v898
      %949 = vst [vmem:[%s226 + $0x10] sm:$0xff] %v899
      %950 = vst [vmem:[%s226 + $0x18] sm:$0xff] %v900
      %951 = vst [vmem:[%s226 + $0x20] sm:$0xff] %v901
      %952 = vst [vmem:[%s226 + $0x28] sm:$0xff] %v902
      %953 = vst [vmem:[%s226 + $0x30] sm:$0xff] %v903
      %954 = vst [vmem:[%s226 + $0x38] sm:$0xff] %v904
      %955 = vst [vmem:[%s226 + $0x40] sm:$0xff] %v905
      %956 = vst [vmem:[%s226 + $0x48] sm:$0xff] %v906
      %957 = vst [vmem:[%s226 + $0x50] sm:$0xff] %v907
      %958 = vst [vmem:[%s226 + $0x58] sm:$0xff] %v908
      %959 = vst [vmem:[%s226 + $0x60] sm:$0xff] %v909
      %960 = vst [vmem:[%s226 + $0x68] sm:$0xff] %v910
      %961 = vst [vmem:[%s226 + $0x70] sm:$0xff] %v911
      %962 = vst [vmem:[%s226 + $0x78] sm:$0xff] %v912
      %963 = vst [vmem:[%s226 + $0x80] sm:$0xff] %v913
      %964 = vst [vmem:[%s226 + $0x88] sm:$0xff] %v914
      %965 = vst [vmem:[%s226 + $0x90] sm:$0xff] %v915
      %966 = vst [vmem:[%s226 + $0x98] sm:$0xff] %v916
      %967 = vst [vmem:[%s226 + $0xa0] sm:$0xff] %v917
      %968 = vst [vmem:[%s226 + $0xa8] sm:$0xff] %v918
      %969 = vst [vmem:[%s226 + $0xb0] sm:$0xff] %v919
      %970 = vst [vmem:[%s226 + $0xb8] sm:$0xff] %v920
      %971 = vst [vmem:[%s226 + $0xc0] sm:$0xff] %v921
      %972 = vst [vmem:[%s226 + $0xc8] sm:$0xff] %v922
      %973 = vst [vmem:[%s226 + $0xd0] sm:$0xff] %v923
      %974 = vst [vmem:[%s226 + $0xd8] sm:$0xff] %v924
      %975 = vst [vmem:[%s226 + $0xe0] sm:$0xff] %v925
      %976 = vst [vmem:[%s226 + $0xe8] sm:$0xff] %v926
      %977 = vst [vmem:[%s226 + $0xf0] sm:$0xff] %v927
      %978 = vst [vmem:[%s226 + $0xf8] sm:$0xff] %v928
      %979 = vst [vmem:[%s226 + $0x100] sm:$0xff] %v929
      %980 = vst [vmem:[%s226 + $0x108] sm:$0xff] %v930
      %981 = vst [vmem:[%s226 + $0x110] sm:$0xff] %v931
      %982 = vst [vmem:[%s226 + $0x118] sm:$0xff] %v932
      %983 = vst [vmem:[%s226 + $0x120] sm:$0xff] %v933
      %984 = vst [vmem:[%s226 + $0x128] sm:$0xff] %v934
      %985 = vst [vmem:[%s226 + $0x130] sm:$0xff] %v935
      %986 = vst [vmem:[%s226 + $0x138] sm:$0xff] %v936
      %987 = vst [vmem:[%s226 + $0x140] sm:$0xff] %v937
      %988 = vst [vmem:[%s226 + $0x148] sm:$0xff] %v938
      %989 = vst [vmem:[%s226 + $0x150] sm:$0xff] %v939
      %990 = vst [vmem:[%s226 + $0x158] sm:$0xff] %v940
      %991 = vst [vmem:[%s226 + $0x160] sm:$0xff] %v941
      %992 = vst [vmem:[%s226 + $0x168] sm:$0xff] %v942
      %993 = vst [vmem:[%s226 + $0x170] sm:$0xff] %v943
      %994 = vst [vmem:[%s226 + $0x178] sm:$0xff] %v944
      %995 = vst [vmem:[%s226 + $0x180] sm:$0xff] %v945
      %996 = vst [vmem:[%s226 + $0x188] sm:$0xff] %v946
      %s997 = smul.u32 50, %s18
      %p998 = scmp.lt.s32.totalorder %s997, 99
      %s999 = scalar_select %p998, %s997, 99
      %p1000 = scmp.lt.s32.totalorder %s19, 0
      %s1001 = scalar_select %p1000, %s19, 0
      %s1002 = sadd.s32 %s1001, %s999
      %s1003 = smul.addr %s1002, 8
      %s1004 = scalar_lea.vmem %s3, %s1003
      // Predicated region
      $region33: #{dueling_cnn_dqn_forward.5} parent=31 // pred_check
        %p1005 = pneg %p124
      $region34: #{dueling_cnn_dqn_forward.5} parent=31 // pred_check_branch
        %1007 = sbr.rel (%p1005) target = $region36
      $region35: #{dueling_cnn_dqn_forward.5} parent=31 // pred_region
        %s1008 = smul.u32 50, %s18
      $region36: #{dueling_cnn_dqn_forward.5} parent=31 // pred_fallthru
        _
    $region32: #{dueling_cnn_dqn_forward.5} parent=5 // pred_fallthru
      _
    %p1009 = scmp.le.s32.totalorder 2, %s9
    // Predicated region
    $region37: #{dueling_cnn_dqn_forward.5} parent=5 // pred_check
      %p1010 = pneg %p1009
    $region38: #{dueling_cnn_dqn_forward.5} parent=5 // pred_check_branch
      %1012 = sbr.rel (%p1010) target = $region40
    $region39: #{dueling_cnn_dqn_forward.5} parent=5 // pred_region
      %s1013 = ssub.s32 %s9, 2
      // Predicated region
      $region41: #{dueling_cnn_dqn_forward.5} parent=39 // pred_check
        %p1014 = pneg %p130
      $region42: #{dueling_cnn_dqn_forward.5} parent=39 // pred_check_branch
        %1016 = sbr.rel (%p1014) target = $region44
      $region43: #{dueling_cnn_dqn_forward.5} parent=39 // pred_region
        %s1017 = smul.u32 50, %s20
        %p1018 = scmp.lt.s32.totalorder %s1017, 99
        %s1019 = scalar_select %p1018, %s1017, 99
        %p1020 = scmp.lt.s32.totalorder %s21, 0
        %s1021 = scalar_select %p1020, %s21, 0
        %s1022 = sadd.s32 %s1021, %s1019
        %s1023 = smul.addr %s1022, 8
        %s1024 = scalar_lea.vmem %s3, %s1023
      $region44: #{dueling_cnn_dqn_forward.5} parent=39 // pred_fallthru
        _
    $region40: #{dueling_cnn_dqn_forward.5} parent=5 // pred_fallthru
      _
  $region6: #{dueling_cnn_dqn_forward.5} parent=0 // loop_footer
    %s13 = sadd.s32 1, %s9
  $region7: #{dueling_cnn_dqn_forward.5} parent=0 // loop_footer_branch
    %8 = sbr.rel target = $region3
  $region8: #{dueling_cnn_dqn_forward.5} parent=0 // loop_exit
    _

// kernel: dueling_cnn_dqn_forward.6
$region0: #{dueling_cnn_dqn_forward.6}
  #allocation0 [shape = 'u32[]', space=smem, size = 0x4, offset = 0x4, fixed_abs, tag = 'smem constant byte address 0x4 - core index']
  #allocation1 [shape = 'u32[144,128]{1,0:T(1,128)}', space=vmem, size = 0x12000, scoped, tag = 'internal scratch']
  %s0 = inlined_call_operand.vmem [shape: bf16[176,2048], index: 0, kind: input, shape index: {}]
  %s1 = inlined_call_operand.vmem [shape: bf16[2048,128], index: 1, kind: input, shape index: {}]
  %s2 = inlined_call_operand.vmem [shape: f32[1,128], index: 2, kind: input, shape index: {}]
  %s3 = inlined_call_operand.vmem [shape: f32[176,128], index: 3, kind: output, shape index: {}]
  %s4 = sld [smem:[#allocation0]]
  $region22: #{dueling_cnn_dqn_forward.6} parent=0
    _
  %s6 = ssub.s32 1, %s4
  %s7 = scalar_select 0, %s6, %s4
  // Predicated region
  $region2: #{dueling_cnn_dqn_forward.6} parent=0 // pred_check
    _
  $region3: #{dueling_cnn_dqn_forward.6} parent=0 // pred_check_branch
    %9 = sbr.rel (0) target = $region5
  $region4: #{dueling_cnn_dqn_forward.6} parent=0 // pred_region
    _
  $region5: #{dueling_cnn_dqn_forward.6} parent=0 // pred_fallthru
    _
  // Predicated region
  $region6: #{dueling_cnn_dqn_forward.6} parent=0 // pred_check
    _
  $region7: #{dueling_cnn_dqn_forward.6} parent=0 // pred_check_branch
    %11 = sbr.rel (0) target = $region9
  $region8: #{dueling_cnn_dqn_forward.6} parent=0 // pred_region
    _
  $region9: #{dueling_cnn_dqn_forward.6} parent=0 // pred_fallthru
    _
  // Predicated region
  $region10: #{dueling_cnn_dqn_forward.6} parent=0 // pred_check
    _
  $region11: #{dueling_cnn_dqn_forward.6} parent=0 // pred_check_branch
    %13 = sbr.rel (0) target = $region13
  $region12: #{dueling_cnn_dqn_forward.6} parent=0 // pred_region
    _
  $region13: #{dueling_cnn_dqn_forward.6} parent=0 // pred_fallthru
    _
  %v15 = vld [vmem:[%s0] sm:$0xff]
  %v16 = vld [vmem:[%s0 + $0x8] sm:$0xff]
  %v17 = vld [vmem:[%s0 + $0x10] sm:$0xff]
  %v18 = vld [vmem:[%s0 + $0x18] sm:$0xff]
  %v19 = vld [vmem:[%s0 + $0x20] sm:$0xff]
  %v20 = vld [vmem:[%s0 + $0x28] sm:$0xff]
  %v21 = vld [vmem:[%s0 + $0x30] sm:$0xff]
  %v22 = vld [vmem:[%s0 + $0x38] sm:$0xff]
  %v23 = vld [vmem:[%s0 + $0x40] sm:$0xff]
  %v24 = vld [vmem:[%s0 + $0x48] sm:$0xff]
  %v25 = vld [vmem:[%s0 + $0x50] sm:$0xff]
  %v26 = vld [vmem:[%s0 + $0x58] sm:$0xff]
  %v27 = vld [vmem:[%s0 + $0x60] sm:$0xff]
  %v28 = vld [vmem:[%s0 + $0x68] sm:$0xff]
  %v29 = vld [vmem:[%s0 + $0x70] sm:$0xff]
  %v30 = vld [vmem:[%s0 + $0x78] sm:$0xff]
  %v31 = vld [vmem:[%s0 + $0x80] sm:$0xff]
  %v32 = vld [vmem:[%s0 + $0x88] sm:$0xff]
  %v33 = vld [vmem:[%s0 + $0x90] sm:$0xff]
  %v34 = vld [vmem:[%s0 + $0x98] sm:$0xff]
  %v35 = vld [vmem:[%s0 + $0xa0] sm:$0xff]
  %v36 = vld [vmem:[%s0 + $0xa8] sm:$0xff]
  %v37 = vld [vmem:[%s0 + $0xb0] sm:$0xff]
  %v38 = vld [vmem:[%s0 + $0xb8] sm:$0xff]
  %v39 = vld [vmem:[%s0 + $0xc0] sm:$0xff]
  %v40 = vld [vmem:[%s0 + $0xc8] sm:$0xff]
  %v41 = vld [vmem:[%s0 + $0xd0] sm:$0xff]
  %v42 = vld [vmem:[%s0 + $0xd8] sm:$0xff]
  %v43 = vld [vmem:[%s0 + $0xe0] sm:$0xff]
  %v44 = vld [vmem:[%s0 + $0xe8] sm:$0xff]
  %v45 = vld [vmem:[%s0 + $0xf0] sm:$0xff]
  %v46 = vld [vmem:[%s0 + $0xf8] sm:$0xff]
  %v47 = vld [vmem:[%s0 + $0x100] sm:$0xff]
  %v48 = vld [vmem:[%s0 + $0x108] sm:$0xff]
  %v49 = vld [vmem:[%s0 + $0x110] sm:$0xff]
  %v50 = vld [vmem:[%s0 + $0x118] sm:$0xff]
  %v51 = vld [vmem:[%s0 + $0x120] sm:$0xff]
  %v52 = vld [vmem:[%s0 + $0x128] sm:$0xff]
  %v53 = vld [vmem:[%s0 + $0x130] sm:$0xff]
  %v54 = vld [vmem:[%s0 + $0x138] sm:$0xff]
  %v55 = vld [vmem:[%s0 + $0x140] sm:$0xff]
  %v56 = vld [vmem:[%s0 + $0x148] sm:$0xff]
  %v57 = vld [vmem:[%s0 + $0x150] sm:$0xff]
  %v58 = vld [vmem:[%s0 + $0x158] sm:$0xff]
  %v59 = vld [vmem:[%s0 + $0x160] sm:$0xff]
  %v60 = vld [vmem:[%s0 + $0x168] sm:$0xff]
  %v61 = vld [vmem:[%s0 + $0x170] sm:$0xff]
  %v62 = vld [vmem:[%s0 + $0x178] sm:$0xff]
  %v63 = vld [vmem:[%s0 + $0x180] sm:$0xff]
  %v64 = vld [vmem:[%s0 + $0x188] sm:$0xff]
  %v65 = vld [vmem:[%s0 + $0x190] sm:$0xff]
  %v66 = vld [vmem:[%s0 + $0x198] sm:$0xff]
  %v67 = vld [vmem:[%s0 + $0x1a0] sm:$0xff]
  %v68 = vld [vmem:[%s0 + $0x1a8] sm:$0xff]
  %v69 = vld [vmem:[%s0 + $0x1b0] sm:$0xff]
  %v70 = vld [vmem:[%s0 + $0x1b8] sm:$0xff]
  %v71 = vld [vmem:[%s0 + $0x1c0] sm:$0xff]
  %v72 = vld [vmem:[%s0 + $0x1c8] sm:$0xff]
  %v73 = vld [vmem:[%s0 + $0x1d0] sm:$0xff]
  %v74 = vld [vmem:[%s0 + $0x1d8] sm:$0xff]
  %v75 = vld [vmem:[%s0 + $0x1e0] sm:$0xff]
  %v76 = vld [vmem:[%s0 + $0x1e8] sm:$0xff]
  %v77 = vld [vmem:[%s0 + $0x1f0] sm:$0xff]
  %v78 = vld [vmem:[%s0 + $0x1f8] sm:$0xff]
  %v79 = vld [vmem:[%s0 + $0x200] sm:$0xff]
  %v80 = vld [vmem:[%s0 + $0x208] sm:$0xff]
  %v81 = vld [vmem:[%s0 + $0x210] sm:$0xff]
  %v82 = vld [vmem:[%s0 + $0x218] sm:$0xff]
  %v83 = vld [vmem:[%s0 + $0x220] sm:$0xff]
  %v84 = vld [vmem:[%s0 + $0x228] sm:$0xff]
  %v85 = vld [vmem:[%s0 + $0x230] sm:$0xff]
  %v86 = vld [vmem:[%s0 + $0x238] sm:$0xff]
  %v87 = vld [vmem:[%s0 + $0x240] sm:$0xff]
  %v88 = vld [vmem:[%s0 + $0x248] sm:$0xff]
  %v89 = vld [vmem:[%s0 + $0x250] sm:$0xff]
  %v90 = vld [vmem:[%s0 + $0x258] sm:$0xff]
  %v91 = vld [vmem:[%s0 + $0x260] sm:$0xff]
  %v92 = vld [vmem:[%s0 + $0x268] sm:$0xff]
  %v93 = vld [vmem:[%s0 + $0x270] sm:$0xff]
  %v94 = vld [vmem:[%s0 + $0x278] sm:$0xff]
  %v95 = vld [vmem:[%s0 + $0x280] sm:$0xff]
  %v96 = vld [vmem:[%s0 + $0x288] sm:$0xff]
  %v97 = vld [vmem:[%s0 + $0x290] sm:$0xff]
  %v98 = vld [vmem:[%s0 + $0x298] sm:$0xff]
  %v99 = vld [vmem:[%s0 + $0x2a0] sm:$0xff]
  %v100 = vld [vmem:[%s0 + $0x2a8] sm:$0xff]
  %v101 = vld [vmem:[%s0 + $0x2b0] sm:$0xff]
  %v102 = vld [vmem:[%s0 + $0x2b8] sm:$0xff]
  %v103 = vld [vmem:[%s0 + $0x2c0] sm:$0xff]
  %v104 = vld [vmem:[%s0 + $0x2c8] sm:$0xff]
  %v105 = vld [vmem:[%s0 + $0x2d0] sm:$0xff]
  %v106 = vld [vmem:[%s0 + $0x2d8] sm:$0xff]
  %v107 = vld [vmem:[%s0 + $0x2e0] sm:$0xff]
  %v108 = vld [vmem:[%s0 + $0x2e8] sm:$0xff]
  %v109 = vld [vmem:[%s0 + $0x2f0] sm:$0xff]
  %v110 = vld [vmem:[%s0 + $0x2f8] sm:$0xff]
  %v111 = vld [vmem:[%s0 + $0x300] sm:$0xff]
  %v112 = vld [vmem:[%s0 + $0x308] sm:$0xff]
  %v113 = vld [vmem:[%s0 + $0x310] sm:$0xff]
  %v114 = vld [vmem:[%s0 + $0x318] sm:$0xff]
  %v115 = vld [vmem:[%s0 + $0x320] sm:$0xff]
  %v116 = vld [vmem:[%s0 + $0x328] sm:$0xff]
  %v117 = vld [vmem:[%s0 + $0x330] sm:$0xff]
  %v118 = vld [vmem:[%s0 + $0x338] sm:$0xff]
  %v119 = vld [vmem:[%s0 + $0x340] sm:$0xff]
  %v120 = vld [vmem:[%s0 + $0x348] sm:$0xff]
  %v121 = vld [vmem:[%s0 + $0x350] sm:$0xff]
  %v122 = vld [vmem:[%s0 + $0x358] sm:$0xff]
  %v123 = vld [vmem:[%s0 + $0x360] sm:$0xff]
  %v124 = vld [vmem:[%s0 + $0x368] sm:$0xff]
  %v125 = vld [vmem:[%s0 + $0x370] sm:$0xff]
  %v126 = vld [vmem:[%s0 + $0x378] sm:$0xff]
  %v127 = vld [vmem:[%s0 + $0x380] sm:$0xff]
  %v128 = vld [vmem:[%s0 + $0x388] sm:$0xff]
  %v129 = vld [vmem:[%s0 + $0x390] sm:$0xff]
  %v130 = vld [vmem:[%s0 + $0x398] sm:$0xff]
  %v131 = vld [vmem:[%s0 + $0x3a0] sm:$0xff]
  %v132 = vld [vmem:[%s0 + $0x3a8] sm:$0xff]
  %v133 = vld [vmem:[%s0 + $0x3b0] sm:$0xff]
  %v134 = vld [vmem:[%s0 + $0x3b8] sm:$0xff]
  %v135 = vld [vmem:[%s0 + $0x3c0] sm:$0xff]
  %v136 = vld [vmem:[%s0 + $0x3c8] sm:$0xff]
  %v137 = vld [vmem:[%s0 + $0x3d0] sm:$0xff]
  %v138 = vld [vmem:[%s0 + $0x3d8] sm:$0xff]
  %v139 = vld [vmem:[%s0 + $0x3e0] sm:$0xff]
  %v140 = vld [vmem:[%s0 + $0x3e8] sm:$0xff]
  %v141 = vld [vmem:[%s0 + $0x3f0] sm:$0xff]
  %v142 = vld [vmem:[%s0 + $0x3f8] sm:$0xff]
  %v143 = vld [vmem:[%s0 + $0x400] sm:$0xff]
  %v144 = vld [vmem:[%s0 + $0x408] sm:$0xff]
  %v145 = vld [vmem:[%s0 + $0x410] sm:$0xff]
  %v146 = vld [vmem:[%s0 + $0x418] sm:$0xff]
  %v147 = vld [vmem:[%s0 + $0x420] sm:$0xff]
  %v148 = vld [vmem:[%s0 + $0x428] sm:$0xff]
  %v149 = vld [vmem:[%s0 + $0x430] sm:$0xff]
  %v150 = vld [vmem:[%s0 + $0x438] sm:$0xff]
  %v151 = vld [vmem:[%s0 + $0x440] sm:$0xff]
  %v152 = vld [vmem:[%s0 + $0x448] sm:$0xff]
  %v153 = vld [vmem:[%s0 + $0x450] sm:$0xff]
  %v154 = vld [vmem:[%s0 + $0x458] sm:$0xff]
  %v155 = vld [vmem:[%s0 + $0x460] sm:$0xff]
  %v156 = vld [vmem:[%s0 + $0x468] sm:$0xff]
  %v157 = vld [vmem:[%s0 + $0x470] sm:$0xff]
  %v158 = vld [vmem:[%s0 + $0x478] sm:$0xff]
  %v159 = vld [vmem:[%s0 + $0x480] sm:$0xff]
  %v160 = vld [vmem:[%s0 + $0x488] sm:$0xff]
  %v161 = vld [vmem:[%s0 + $0x490] sm:$0xff]
  %v162 = vld [vmem:[%s0 + $0x498] sm:$0xff]
  %v163 = vld [vmem:[%s0 + $0x4a0] sm:$0xff]
  %v164 = vld [vmem:[%s0 + $0x4a8] sm:$0xff]
  %v165 = vld [vmem:[%s0 + $0x4b0] sm:$0xff]
  %v166 = vld [vmem:[%s0 + $0x4b8] sm:$0xff]
  %v167 = vld [vmem:[%s0 + $0x4c0] sm:$0xff]
  %v168 = vld [vmem:[%s0 + $0x4c8] sm:$0xff]
  %v169 = vld [vmem:[%s0 + $0x4d0] sm:$0xff]
  %v170 = vld [vmem:[%s0 + $0x4d8] sm:$0xff]
  %v171 = vld [vmem:[%s0 + $0x4e0] sm:$0xff]
  %v172 = vld [vmem:[%s0 + $0x4e8] sm:$0xff]
  %v173 = vld [vmem:[%s0 + $0x4f0] sm:$0xff]
  %v174 = vld [vmem:[%s0 + $0x4f8] sm:$0xff]
  %v175 = vld [vmem:[%s0 + $0x500] sm:$0xff]
  %v176 = vld [vmem:[%s0 + $0x508] sm:$0xff]
  %v177 = vld [vmem:[%s0 + $0x510] sm:$0xff]
  %v178 = vld [vmem:[%s0 + $0x518] sm:$0xff]
  %v179 = vld [vmem:[%s0 + $0x520] sm:$0xff]
  %v180 = vld [vmem:[%s0 + $0x528] sm:$0xff]
  %v181 = vld [vmem:[%s0 + $0x530] sm:$0xff]
  %v182 = vld [vmem:[%s0 + $0x538] sm:$0xff]
  %v183 = vld [vmem:[%s0 + $0x540] sm:$0xff]
  %v184 = vld [vmem:[%s0 + $0x548] sm:$0xff]
  %v185 = vld [vmem:[%s0 + $0x550] sm:$0xff]
  %v186 = vld [vmem:[%s0 + $0x558] sm:$0xff]
  %v187 = vld [vmem:[%s0 + $0x560] sm:$0xff]
  %v188 = vld [vmem:[%s0 + $0x568] sm:$0xff]
  %v189 = vld [vmem:[%s0 + $0x570] sm:$0xff]
  %v190 = vld [vmem:[%s0 + $0x578] sm:$0xff]
  %v191 = vld [vmem:[%s1] sm:$0xf]
  %v192 = vld [vmem:[%s1 + $0x4] sm:$0xf]
  %v193 = vld [vmem:[%s1 + $0x8] sm:$0xf]
  %v194 = vld [vmem:[%s1 + $0xc] sm:$0xf]
  %v195 = vld [vmem:[%s1 + $0x10] sm:$0xf]
  %v196 = vld [vmem:[%s1 + $0x14] sm:$0xf]
  %v197 = vld [vmem:[%s1 + $0x18] sm:$0xf]
  %v198 = vld [vmem:[%s1 + $0x1c] sm:$0xf]
  %v199 = vld [vmem:[%s1 + $0x20] sm:$0xf]
  %v200 = vld [vmem:[%s1 + $0x24] sm:$0xf]
  %v201 = vld [vmem:[%s1 + $0x28] sm:$0xf]
  %v202 = vld [vmem:[%s1 + $0x2c] sm:$0xf]
  %v203 = vld [vmem:[%s1 + $0x30] sm:$0xf]
  %v204 = vld [vmem:[%s1 + $0x34] sm:$0xf]
  %v205 = vld [vmem:[%s1 + $0x38] sm:$0xf]
  %v206 = vld [vmem:[%s1 + $0x3c] sm:$0xf]
  %v207 = vld [vmem:[%s1 + $0x40] sm:$0xf]
  %v208 = vld [vmem:[%s1 + $0x44] sm:$0xf]
  %v209 = vld [vmem:[%s1 + $0x48] sm:$0xf]
  %v210 = vld [vmem:[%s1 + $0x4c] sm:$0xf]
  %v211 = vld [vmem:[%s1 + $0x50] sm:$0xf]
  %v212 = vld [vmem:[%s1 + $0x54] sm:$0xf]
  %v213 = vld [vmem:[%s1 + $0x58] sm:$0xf]
  %v214 = vld [vmem:[%s1 + $0x5c] sm:$0xf]
  %v215 = vld [vmem:[%s1 + $0x60] sm:$0xf]
  %v216 = vld [vmem:[%s1 + $0x64] sm:$0xf]
  %v217 = vld [vmem:[%s1 + $0x68] sm:$0xf]
  %v218 = vld [vmem:[%s1 + $0x6c] sm:$0xf]
  %v219 = vld [vmem:[%s1 + $0x70] sm:$0xf]
  %v220 = vld [vmem:[%s1 + $0x74] sm:$0xf]
  %v221 = vld [vmem:[%s1 + $0x78] sm:$0xf]
  %v222 = vld [vmem:[%s1 + $0x7c] sm:$0xf]
  %v223 = vld [vmem:[%s1 + $0x80] sm:$0xf]
  %v224 = vld [vmem:[%s1 + $0x84] sm:$0xf]
  %v225 = vld [vmem:[%s1 + $0x88] sm:$0xf]
  %v226 = vld [vmem:[%s1 + $0x8c] sm:$0xf]
  %v227 = vld [vmem:[%s1 + $0x90] sm:$0xf]
  %v228 = vld [vmem:[%s1 + $0x94] sm:$0xf]
  %v229 = vld [vmem:[%s1 + $0x98] sm:$0xf]
  %v230 = vld [vmem:[%s1 + $0x9c] sm:$0xf]
  %v231 = vld [vmem:[%s1 + $0xa0] sm:$0xf]
  %v232 = vld [vmem:[%s1 + $0xa4] sm:$0xf]
  %v233 = vld [vmem:[%s1 + $0xa8] sm:$0xf]
  %v234 = vld [vmem:[%s1 + $0xac] sm:$0xf]
  %v235 = vld [vmem:[%s1 + $0xb0] sm:$0xf]
  %v236 = vld [vmem:[%s1 + $0xb4] sm:$0xf]
  %v237 = vld [vmem:[%s1 + $0xb8] sm:$0xf]
  %v238 = vld [vmem:[%s1 + $0xbc] sm:$0xf]
  %v239 = vld [vmem:[%s1 + $0xc0] sm:$0xf]
  %v240 = vld [vmem:[%s1 + $0xc4] sm:$0xf]
  %v241 = vld [vmem:[%s1 + $0xc8] sm:$0xf]
  %v242 = vld [vmem:[%s1 + $0xcc] sm:$0xf]
  %v243 = vld [vmem:[%s1 + $0xd0] sm:$0xf]
  %v244 = vld [vmem:[%s1 + $0xd4] sm:$0xf]
  %v245 = vld [vmem:[%s1 + $0xd8] sm:$0xf]
  %v246 = vld [vmem:[%s1 + $0xdc] sm:$0xf]
  %v247 = vld [vmem:[%s1 + $0xe0] sm:$0xf]
  %v248 = vld [vmem:[%s1 + $0xe4] sm:$0xf]
  %v249 = vld [vmem:[%s1 + $0xe8] sm:$0xf]
  %v250 = vld [vmem:[%s1 + $0xec] sm:$0xf]
  %v251 = vld [vmem:[%s1 + $0xf0] sm:$0xf]
  %v252 = vld [vmem:[%s1 + $0xf4] sm:$0xf]
  %v253 = vld [vmem:[%s1 + $0xf8] sm:$0xf]
  %v254 = vld [vmem:[%s1 + $0xfc] sm:$0xf]
  %v255 = vld [vmem:[%s1 + $0x100] sm:$0xf]
  %v256 = vld [vmem:[%s1 + $0x104] sm:$0xf]
  %v257 = vld [vmem:[%s1 + $0x108] sm:$0xf]
  %v258 = vld [vmem:[%s1 + $0x10c] sm:$0xf]
  %v259 = vld [vmem:[%s1 + $0x110] sm:$0xf]
  %v260 = vld [vmem:[%s1 + $0x114] sm:$0xf]
  %v261 = vld [vmem:[%s1 + $0x118] sm:$0xf]
  %v262 = vld [vmem:[%s1 + $0x11c] sm:$0xf]
  %v263 = vld [vmem:[%s1 + $0x120] sm:$0xf]
  %v264 = vld [vmem:[%s1 + $0x124] sm:$0xf]
  %v265 = vld [vmem:[%s1 + $0x128] sm:$0xf]
  %v266 = vld [vmem:[%s1 + $0x12c] sm:$0xf]
  %v267 = vld [vmem:[%s1 + $0x130] sm:$0xf]
  %v268 = vld [vmem:[%s1 + $0x134] sm:$0xf]
  %v269 = vld [vmem:[%s1 + $0x138] sm:$0xf]
  %v270 = vld [vmem:[%s1 + $0x13c] sm:$0xf]
  %v271 = vld [vmem:[%s1 + $0x140] sm:$0xf]
  %v272 = vld [vmem:[%s1 + $0x144] sm:$0xf]
  %v273 = vld [vmem:[%s1 + $0x148] sm:$0xf]
  %v274 = vld [vmem:[%s1 + $0x14c] sm:$0xf]
  %v275 = vld [vmem:[%s1 + $0x150] sm:$0xf]
  %v276 = vld [vmem:[%s1 + $0x154] sm:$0xf]
  %v277 = vld [vmem:[%s1 + $0x158] sm:$0xf]
  %v278 = vld [vmem:[%s1 + $0x15c] sm:$0xf]
  %v279 = vld [vmem:[%s1 + $0x160] sm:$0xf]
  %v280 = vld [vmem:[%s1 + $0x164] sm:$0xf]
  %v281 = vld [vmem:[%s1 + $0x168] sm:$0xf]
  %v282 = vld [vmem:[%s1 + $0x16c] sm:$0xf]
  %v283 = vld [vmem:[%s1 + $0x170] sm:$0xf]
  %v284 = vld [vmem:[%s1 + $0x174] sm:$0xf]
  %v285 = vld [vmem:[%s1 + $0x178] sm:$0xf]
  %v286 = vld [vmem:[%s1 + $0x17c] sm:$0xf]
  %v287 = vld [vmem:[%s1 + $0x180] sm:$0xf]
  %v288 = vld [vmem:[%s1 + $0x184] sm:$0xf]
  %v289 = vld [vmem:[%s1 + $0x188] sm:$0xf]
  %v290 = vld [vmem:[%s1 + $0x18c] sm:$0xf]
  %v291 = vld [vmem:[%s1 + $0x190] sm:$0xf]
  %v292 = vld [vmem:[%s1 + $0x194] sm:$0xf]
  %v293 = vld [vmem:[%s1 + $0x198] sm:$0xf]
  %v294 = vld [vmem:[%s1 + $0x19c] sm:$0xf]
  %v295 = vld [vmem:[%s1 + $0x1a0] sm:$0xf]
  %v296 = vld [vmem:[%s1 + $0x1a4] sm:$0xf]
  %v297 = vld [vmem:[%s1 + $0x1a8] sm:$0xf]
  %v298 = vld [vmem:[%s1 + $0x1ac] sm:$0xf]
  %v299 = vld [vmem:[%s1 + $0x1b0] sm:$0xf]
  %v300 = vld [vmem:[%s1 + $0x1b4] sm:$0xf]
  %v301 = vld [vmem:[%s1 + $0x1b8] sm:$0xf]
  %v302 = vld [vmem:[%s1 + $0x1bc] sm:$0xf]
  %v303 = vld [vmem:[%s1 + $0x1c0] sm:$0xf]
  %v304 = vld [vmem:[%s1 + $0x1c4] sm:$0xf]
  %v305 = vld [vmem:[%s1 + $0x1c8] sm:$0xf]
  %v306 = vld [vmem:[%s1 + $0x1cc] sm:$0xf]
  %v307 = vld [vmem:[%s1 + $0x1d0] sm:$0xf]
  %v308 = vld [vmem:[%s1 + $0x1d4] sm:$0xf]
  %v309 = vld [vmem:[%s1 + $0x1d8] sm:$0xf]
  %v310 = vld [vmem:[%s1 + $0x1dc] sm:$0xf]
  %v311 = vld [vmem:[%s1 + $0x1e0] sm:$0xf]
  %v312 = vld [vmem:[%s1 + $0x1e4] sm:$0xf]
  %v313 = vld [vmem:[%s1 + $0x1e8] sm:$0xf]
  %v314 = vld [vmem:[%s1 + $0x1ec] sm:$0xf]
  %v315 = vld [vmem:[%s1 + $0x1f0] sm:$0xf]
  %v316 = vld [vmem:[%s1 + $0x1f4] sm:$0xf]
  %v317 = vld [vmem:[%s1 + $0x1f8] sm:$0xf]
  %v318 = vld [vmem:[%s1 + $0x1fc] sm:$0xf]
  %v319 = vld [vmem:[%s1 + $0x200] sm:$0xf]
  %v320 = vld [vmem:[%s1 + $0x204] sm:$0xf]
  %v321 = vld [vmem:[%s1 + $0x208] sm:$0xf]
  %v322 = vld [vmem:[%s1 + $0x20c] sm:$0xf]
  %v323 = vld [vmem:[%s1 + $0x210] sm:$0xf]
  %v324 = vld [vmem:[%s1 + $0x214] sm:$0xf]
  %v325 = vld [vmem:[%s1 + $0x218] sm:$0xf]
  %v326 = vld [vmem:[%s1 + $0x21c] sm:$0xf]
  %v327 = vld [vmem:[%s1 + $0x220] sm:$0xf]
  %v328 = vld [vmem:[%s1 + $0x224] sm:$0xf]
  %v329 = vld [vmem:[%s1 + $0x228] sm:$0xf]
  %v330 = vld [vmem:[%s1 + $0x22c] sm:$0xf]
  %v331 = vld [vmem:[%s1 + $0x230] sm:$0xf]
  %v332 = vld [vmem:[%s1 + $0x234] sm:$0xf]
  %v333 = vld [vmem:[%s1 + $0x238] sm:$0xf]
  %v334 = vld [vmem:[%s1 + $0x23c] sm:$0xf]
  %v335 = vld [vmem:[%s1 + $0x240] sm:$0xf]
  %v336 = vld [vmem:[%s1 + $0x244] sm:$0xf]
  %v337 = vld [vmem:[%s1 + $0x248] sm:$0xf]
  %v338 = vld [vmem:[%s1 + $0x24c] sm:$0xf]
  %v339 = vld [vmem:[%s1 + $0x250] sm:$0xf]
  %v340 = vld [vmem:[%s1 + $0x254] sm:$0xf]
  %v341 = vld [vmem:[%s1 + $0x258] sm:$0xf]
  %v342 = vld [vmem:[%s1 + $0x25c] sm:$0xf]
  %v343 = vld [vmem:[%s1 + $0x260] sm:$0xf]
  %v344 = vld [vmem:[%s1 + $0x264] sm:$0xf]
  %v345 = vld [vmem:[%s1 + $0x268] sm:$0xf]
  %v346 = vld [vmem:[%s1 + $0x26c] sm:$0xf]
  %v347 = vld [vmem:[%s1 + $0x270] sm:$0xf]
  %v348 = vld [vmem:[%s1 + $0x274] sm:$0xf]
  %v349 = vld [vmem:[%s1 + $0x278] sm:$0xf]
  %v350 = vld [vmem:[%s1 + $0x27c] sm:$0xf]
  %v351 = vld [vmem:[%s1 + $0x280] sm:$0xf]
  %v352 = vld [vmem:[%s1 + $0x284] sm:$0xf]
  %v353 = vld [vmem:[%s1 + $0x288] sm:$0xf]
  %v354 = vld [vmem:[%s1 + $0x28c] sm:$0xf]
  %v355 = vld [vmem:[%s1 + $0x290] sm:$0xf]
  %v356 = vld [vmem:[%s1 + $0x294] sm:$0xf]
  %v357 = vld [vmem:[%s1 + $0x298] sm:$0xf]
  %v358 = vld [vmem:[%s1 + $0x29c] sm:$0xf]
  %v359 = vld [vmem:[%s1 + $0x2a0] sm:$0xf]
  %v360 = vld [vmem:[%s1 + $0x2a4] sm:$0xf]
  %v361 = vld [vmem:[%s1 + $0x2a8] sm:$0xf]
  %v362 = vld [vmem:[%s1 + $0x2ac] sm:$0xf]
  %v363 = vld [vmem:[%s1 + $0x2b0] sm:$0xf]
  %v364 = vld [vmem:[%s1 + $0x2b4] sm:$0xf]
  %v365 = vld [vmem:[%s1 + $0x2b8] sm:$0xf]
  %v366 = vld [vmem:[%s1 + $0x2bc] sm:$0xf]
  %v367 = vld [vmem:[%s1 + $0x2c0] sm:$0xf]
  %v368 = vld [vmem:[%s1 + $0x2c4] sm:$0xf]
  %v369 = vld [vmem:[%s1 + $0x2c8] sm:$0xf]
  %v370 = vld [vmem:[%s1 + $0x2cc] sm:$0xf]
  %v371 = vld [vmem:[%s1 + $0x2d0] sm:$0xf]
  %v372 = vld [vmem:[%s1 + $0x2d4] sm:$0xf]
  %v373 = vld [vmem:[%s1 + $0x2d8] sm:$0xf]
  %v374 = vld [vmem:[%s1 + $0x2dc] sm:$0xf]
  %v375 = vld [vmem:[%s1 + $0x2e0] sm:$0xf]
  %v376 = vld [vmem:[%s1 + $0x2e4] sm:$0xf]
  %v377 = vld [vmem:[%s1 + $0x2e8] sm:$0xf]
  %v378 = vld [vmem:[%s1 + $0x2ec] sm:$0xf]
  %v379 = vld [vmem:[%s1 + $0x2f0] sm:$0xf]
  %v380 = vld [vmem:[%s1 + $0x2f4] sm:$0xf]
  %v381 = vld [vmem:[%s1 + $0x2f8] sm:$0xf]
  %v382 = vld [vmem:[%s1 + $0x2fc] sm:$0xf]
  %v383 = vld [vmem:[%s1 + $0x300] sm:$0xf]
  %v384 = vld [vmem:[%s1 + $0x304] sm:$0xf]
  %v385 = vld [vmem:[%s1 + $0x308] sm:$0xf]
  %v386 = vld [vmem:[%s1 + $0x30c] sm:$0xf]
  %v387 = vld [vmem:[%s1 + $0x310] sm:$0xf]
  %v388 = vld [vmem:[%s1 + $0x314] sm:$0xf]
  %v389 = vld [vmem:[%s1 + $0x318] sm:$0xf]
  %v390 = vld [vmem:[%s1 + $0x31c] sm:$0xf]
  %v391 = vld [vmem:[%s1 + $0x320] sm:$0xf]
  %v392 = vld [vmem:[%s1 + $0x324] sm:$0xf]
  %v393 = vld [vmem:[%s1 + $0x328] sm:$0xf]
  %v394 = vld [vmem:[%s1 + $0x32c] sm:$0xf]
  %v395 = vld [vmem:[%s1 + $0x330] sm:$0xf]
  %v396 = vld [vmem:[%s1 + $0x334] sm:$0xf]
  %v397 = vld [vmem:[%s1 + $0x338] sm:$0xf]
  %v398 = vld [vmem:[%s1 + $0x33c] sm:$0xf]
  %v399 = vld [vmem:[%s1 + $0x340] sm:$0xf]
  %v400 = vld [vmem:[%s1 + $0x344] sm:$0xf]
  %v401 = vld [vmem:[%s1 + $0x348] sm:$0xf]
  %v402 = vld [vmem:[%s1 + $0x34c] sm:$0xf]
  %v403 = vld [vmem:[%s1 + $0x350] sm:$0xf]
  %v404 = vld [vmem:[%s1 + $0x354] sm:$0xf]
  %v405 = vld [vmem:[%s1 + $0x358] sm:$0xf]
  %v406 = vld [vmem:[%s1 + $0x35c] sm:$0xf]
  %v407 = vld [vmem:[%s1 + $0x360] sm:$0xf]
  %v408 = vld [vmem:[%s1 + $0x364] sm:$0xf]
  %v409 = vld [vmem:[%s1 + $0x368] sm:$0xf]
  %v410 = vld [vmem:[%s1 + $0x36c] sm:$0xf]
  %v411 = vld [vmem:[%s1 + $0x370] sm:$0xf]
  %v412 = vld [vmem:[%s1 + $0x374] sm:$0xf]
  %v413 = vld [vmem:[%s1 + $0x378] sm:$0xf]
  %v414 = vld [vmem:[%s1 + $0x37c] sm:$0xf]
  %v415 = vld [vmem:[%s1 + $0x380] sm:$0xf]
  %v416 = vld [vmem:[%s1 + $0x384] sm:$0xf]
  %v417 = vld [vmem:[%s1 + $0x388] sm:$0xf]
  %v418 = vld [vmem:[%s1 + $0x38c] sm:$0xf]
  %v419 = vld [vmem:[%s1 + $0x390] sm:$0xf]
  %v420 = vld [vmem:[%s1 + $0x394] sm:$0xf]
  %v421 = vld [vmem:[%s1 + $0x398] sm:$0xf]
  %v422 = vld [vmem:[%s1 + $0x39c] sm:$0xf]
  %v423 = vld [vmem:[%s1 + $0x3a0] sm:$0xf]
  %v424 = vld [vmem:[%s1 + $0x3a4] sm:$0xf]
  %v425 = vld [vmem:[%s1 + $0x3a8] sm:$0xf]
  %v426 = vld [vmem:[%s1 + $0x3ac] sm:$0xf]
  %v427 = vld [vmem:[%s1 + $0x3b0] sm:$0xf]
  %v428 = vld [vmem:[%s1 + $0x3b4] sm:$0xf]
  %v429 = vld [vmem:[%s1 + $0x3b8] sm:$0xf]
  %v430 = vld [vmem:[%s1 + $0x3bc] sm:$0xf]
  %v431 = vld [vmem:[%s1 + $0x3c0] sm:$0xf]
  %v432 = vld [vmem:[%s1 + $0x3c4] sm:$0xf]
  %v433 = vld [vmem:[%s1 + $0x3c8] sm:$0xf]
  %v434 = vld [vmem:[%s1 + $0x3cc] sm:$0xf]
  %v435 = vld [vmem:[%s1 + $0x3d0] sm:$0xf]
  %v436 = vld [vmem:[%s1 + $0x3d4] sm:$0xf]
  %v437 = vld [vmem:[%s1 + $0x3d8] sm:$0xf]
  %v438 = vld [vmem:[%s1 + $0x3dc] sm:$0xf]
  %v439 = vld [vmem:[%s1 + $0x3e0] sm:$0xf]
  %v440 = vld [vmem:[%s1 + $0x3e4] sm:$0xf]
  %v441 = vld [vmem:[%s1 + $0x3e8] sm:$0xf]
  %v442 = vld [vmem:[%s1 + $0x3ec] sm:$0xf]
  %v443 = vld [vmem:[%s1 + $0x3f0] sm:$0xf]
  %v444 = vld [vmem:[%s1 + $0x3f4] sm:$0xf]
  %v445 = vld [vmem:[%s1 + $0x3f8] sm:$0xf]
  %v446 = vld [vmem:[%s1 + $0x3fc] sm:$0xf]
  %v447 = vld [vmem:[%s2] sm:$0x1]
  %v449 = vlaneseq
  %v450 = vshrl.u32 %v449, 7
  %v451 = vsub.s32 0, %v450
  %v452 = vrot.slane %v447, %v451
  %v630 = vunpack.c.l.b16 %v15
  %v631 = vunpack.c.h.b16 %v15
  %v632 = vunpack.c.l.b16 %v16
  %v633 = vunpack.c.h.b16 %v16
  %v634 = vunpack.c.l.b16 %v17
  %v635 = vunpack.c.h.b16 %v17
  %v636 = vunpack.c.l.b16 %v18
  %v637 = vunpack.c.h.b16 %v18
  %v638 = vunpack.c.l.b16 %v19
  %v639 = vunpack.c.h.b16 %v19
  %v640 = vunpack.c.l.b16 %v20
  %v641 = vunpack.c.h.b16 %v20
  %v642 = vunpack.c.l.b16 %v21
  %v643 = vunpack.c.h.b16 %v21
  %v644 = vunpack.c.l.b16 %v22
  %v645 = vunpack.c.h.b16 %v22
  %v646 = vunpack.c.l.b16 %v23
  %v647 = vunpack.c.h.b16 %v23
  %v648 = vunpack.c.l.b16 %v24
  %v649 = vunpack.c.h.b16 %v24
  %v650 = vunpack.c.l.b16 %v25
  %v651 = vunpack.c.h.b16 %v25
  %v652 = vunpack.c.l.b16 %v26
  %v653 = vunpack.c.h.b16 %v26
  %v654 = vunpack.c.l.b16 %v27
  %v655 = vunpack.c.h.b16 %v27
  %v656 = vunpack.c.l.b16 %v28
  %v657 = vunpack.c.h.b16 %v28
  %v658 = vunpack.c.l.b16 %v29
  %v659 = vunpack.c.h.b16 %v29
  %v660 = vunpack.c.l.b16 %v30
  %v661 = vunpack.c.h.b16 %v30
  %v662 = vunpack.c.l.b16 %v31
  %v663 = vunpack.c.h.b16 %v31
  %v664 = vunpack.c.l.b16 %v32
  %v665 = vunpack.c.h.b16 %v32
  %v666 = vunpack.c.l.b16 %v33
  %v667 = vunpack.c.h.b16 %v33
  %v668 = vunpack.c.l.b16 %v34
  %v669 = vunpack.c.h.b16 %v34
  %v670 = vunpack.c.l.b16 %v35
  %v671 = vunpack.c.h.b16 %v35
  %v672 = vunpack.c.l.b16 %v36
  %v673 = vunpack.c.h.b16 %v36
  %v674 = vunpack.c.l.b16 %v37
  %v675 = vunpack.c.h.b16 %v37
  %v676 = vunpack.c.l.b16 %v38
  %v677 = vunpack.c.h.b16 %v38
  %v678 = vunpack.c.l.b16 %v39
  %v679 = vunpack.c.h.b16 %v39
  %v680 = vunpack.c.l.b16 %v40
  %v681 = vunpack.c.h.b16 %v40
  %v682 = vunpack.c.l.b16 %v41
  %v683 = vunpack.c.h.b16 %v41
  %v684 = vunpack.c.l.b16 %v42
  %v685 = vunpack.c.h.b16 %v42
  %v686 = vunpack.c.l.b16 %v43
  %v687 = vunpack.c.h.b16 %v43
  %v688 = vunpack.c.l.b16 %v44
  %v689 = vunpack.c.h.b16 %v44
  %v690 = vunpack.c.l.b16 %v45
  %v691 = vunpack.c.h.b16 %v45
  %v692 = vunpack.c.l.b16 %v46
  %v693 = vunpack.c.h.b16 %v46
  %v694 = vunpack.c.l.b16 %v47
  %v695 = vunpack.c.h.b16 %v47
  %v696 = vunpack.c.l.b16 %v48
  %v697 = vunpack.c.h.b16 %v48
  %v698 = vunpack.c.l.b16 %v49
  %v699 = vunpack.c.h.b16 %v49
  %v700 = vunpack.c.l.b16 %v50
  %v701 = vunpack.c.h.b16 %v50
  %v702 = vunpack.c.l.b16 %v51
  %v703 = vunpack.c.h.b16 %v51
  %v704 = vunpack.c.l.b16 %v52
  %v705 = vunpack.c.h.b16 %v52
  %v706 = vunpack.c.l.b16 %v53
  %v707 = vunpack.c.h.b16 %v53
  %v708 = vunpack.c.l.b16 %v54
  %v709 = vunpack.c.h.b16 %v54
  %v710 = vunpack.c.l.b16 %v55
  %v711 = vunpack.c.h.b16 %v55
  %v712 = vunpack.c.l.b16 %v56
  %v713 = vunpack.c.h.b16 %v56
  %v714 = vunpack.c.l.b16 %v57
  %v715 = vunpack.c.h.b16 %v57
  %v716 = vunpack.c.l.b16 %v58
  %v717 = vunpack.c.h.b16 %v58
  %v718 = vunpack.c.l.b16 %v59
  %v719 = vunpack.c.h.b16 %v59
  %v720 = vunpack.c.l.b16 %v60
  %v721 = vunpack.c.h.b16 %v60
  %v722 = vunpack.c.l.b16 %v61
  %v723 = vunpack.c.h.b16 %v61
  %v724 = vunpack.c.l.b16 %v62
  %v725 = vunpack.c.h.b16 %v62
  %v726 = vunpack.c.l.b16 %v63
  %v727 = vunpack.c.h.b16 %v63
  %v728 = vunpack.c.l.b16 %v64
  %v729 = vunpack.c.h.b16 %v64
  %v730 = vunpack.c.l.b16 %v65
  %v731 = vunpack.c.h.b16 %v65
  %v732 = vunpack.c.l.b16 %v66
  %v733 = vunpack.c.h.b16 %v66
  %v734 = vunpack.c.l.b16 %v67
  %v735 = vunpack.c.h.b16 %v67
  %v736 = vunpack.c.l.b16 %v68
  %v737 = vunpack.c.h.b16 %v68
  %v738 = vunpack.c.l.b16 %v69
  %v739 = vunpack.c.h.b16 %v69
  %v740 = vunpack.c.l.b16 %v70
  %v741 = vunpack.c.h.b16 %v70
  %v742 = vunpack.c.l.b16 %v71
  %v743 = vunpack.c.h.b16 %v71
  %v744 = vunpack.c.l.b16 %v72
  %v745 = vunpack.c.h.b16 %v72
  %v746 = vunpack.c.l.b16 %v73
  %v747 = vunpack.c.h.b16 %v73
  %v748 = vunpack.c.l.b16 %v74
  %v749 = vunpack.c.h.b16 %v74
  %v750 = vunpack.c.l.b16 %v75
  %v751 = vunpack.c.h.b16 %v75
  %v752 = vunpack.c.l.b16 %v76
  %v753 = vunpack.c.h.b16 %v76
  %v754 = vunpack.c.l.b16 %v77
  %v755 = vunpack.c.h.b16 %v77
  %v756 = vunpack.c.l.b16 %v78
  %v757 = vunpack.c.h.b16 %v78
  %v758 = vunpack.c.l.b16 %v79
  %v759 = vunpack.c.h.b16 %v79
  %v760 = vunpack.c.l.b16 %v80
  %v761 = vunpack.c.h.b16 %v80
  %v762 = vunpack.c.l.b16 %v81
  %v763 = vunpack.c.h.b16 %v81
  %v764 = vunpack.c.l.b16 %v82
  %v765 = vunpack.c.h.b16 %v82
  %v766 = vunpack.c.l.b16 %v83
  %v767 = vunpack.c.h.b16 %v83
  %v768 = vunpack.c.l.b16 %v84
  %v769 = vunpack.c.h.b16 %v84
  %v770 = vunpack.c.l.b16 %v85
  %v771 = vunpack.c.h.b16 %v85
  %v772 = vunpack.c.l.b16 %v86
  %v773 = vunpack.c.h.b16 %v86
  %v774 = vunpack.c.l.b16 %v87
  %v775 = vunpack.c.h.b16 %v87
  %v776 = vunpack.c.l.b16 %v88
  %v777 = vunpack.c.h.b16 %v88
  %v778 = vunpack.c.l.b16 %v89
  %v779 = vunpack.c.h.b16 %v89
  %v780 = vunpack.c.l.b16 %v90
  %v781 = vunpack.c.h.b16 %v90
  %v782 = vunpack.c.l.b16 %v91
  %v783 = vunpack.c.h.b16 %v91
  %v784 = vunpack.c.l.b16 %v92
  %v785 = vunpack.c.h.b16 %v92
  %v786 = vunpack.c.l.b16 %v93
  %v787 = vunpack.c.h.b16 %v93
  %v788 = vunpack.c.l.b16 %v94
  %v789 = vunpack.c.h.b16 %v94
  %v790 = vunpack.c.l.b16 %v95
  %v791 = vunpack.c.h.b16 %v95
  %v792 = vunpack.c.l.b16 %v96
  %v793 = vunpack.c.h.b16 %v96
  %v794 = vunpack.c.l.b16 %v97
  %v795 = vunpack.c.h.b16 %v97
  %v796 = vunpack.c.l.b16 %v98
  %v797 = vunpack.c.h.b16 %v98
  %v798 = vunpack.c.l.b16 %v99
  %v799 = vunpack.c.h.b16 %v99
  %v800 = vunpack.c.l.b16 %v100
  %v801 = vunpack.c.h.b16 %v100
  %v802 = vunpack.c.l.b16 %v101
  %v803 = vunpack.c.h.b16 %v101
  %v804 = vunpack.c.l.b16 %v102
  %v805 = vunpack.c.h.b16 %v102
  %v806 = vunpack.c.l.b16 %v103
  %v807 = vunpack.c.h.b16 %v103
  %v808 = vunpack.c.l.b16 %v104
  %v809 = vunpack.c.h.b16 %v104
  %v810 = vunpack.c.l.b16 %v105
  %v811 = vunpack.c.h.b16 %v105
  %v812 = vunpack.c.l.b16 %v106
  %v813 = vunpack.c.h.b16 %v106
  %v814 = vunpack.c.l.b16 %v107
  %v815 = vunpack.c.h.b16 %v107
  %v816 = vunpack.c.l.b16 %v108
  %v817 = vunpack.c.h.b16 %v108
  %v818 = vunpack.c.l.b16 %v109
  %v819 = vunpack.c.h.b16 %v109
  %v820 = vunpack.c.l.b16 %v110
  %v821 = vunpack.c.h.b16 %v110
  %v822 = vunpack.c.l.b16 %v111
  %v823 = vunpack.c.h.b16 %v111
  %v824 = vunpack.c.l.b16 %v112
  %v825 = vunpack.c.h.b16 %v112
  %v826 = vunpack.c.l.b16 %v113
  %v827 = vunpack.c.h.b16 %v113
  %v828 = vunpack.c.l.b16 %v114
  %v829 = vunpack.c.h.b16 %v114
  %v830 = vunpack.c.l.b16 %v115
  %v831 = vunpack.c.h.b16 %v115
  %v832 = vunpack.c.l.b16 %v116
  %v833 = vunpack.c.h.b16 %v116
  %v834 = vunpack.c.l.b16 %v117
  %v835 = vunpack.c.h.b16 %v117
  %v836 = vunpack.c.l.b16 %v118
  %v837 = vunpack.c.h.b16 %v118
  %v838 = vunpack.c.l.b16 %v119
  %v839 = vunpack.c.h.b16 %v119
  %v840 = vunpack.c.l.b16 %v120
  %v841 = vunpack.c.h.b16 %v120
  %v842 = vunpack.c.l.b16 %v121
  %v843 = vunpack.c.h.b16 %v121
  %v844 = vunpack.c.l.b16 %v122
  %v845 = vunpack.c.h.b16 %v122
  %v846 = vunpack.c.l.b16 %v123
  %v847 = vunpack.c.h.b16 %v123
  %v848 = vunpack.c.l.b16 %v124
  %v849 = vunpack.c.h.b16 %v124
  %v850 = vunpack.c.l.b16 %v125
  %v851 = vunpack.c.h.b16 %v125
  %v852 = vunpack.c.l.b16 %v126
  %v853 = vunpack.c.h.b16 %v126
  %v854 = vunpack.c.l.b16 %v127
  %v855 = vunpack.c.h.b16 %v127
  %v856 = vunpack.c.l.b16 %v128
  %v857 = vunpack.c.h.b16 %v128
  %v858 = vunpack.c.l.b16 %v129
  %v859 = vunpack.c.h.b16 %v129
  %v860 = vunpack.c.l.b16 %v130
  %v861 = vunpack.c.h.b16 %v130
  %v862 = vunpack.c.l.b16 %v131
  %v863 = vunpack.c.h.b16 %v131
  %v864 = vunpack.c.l.b16 %v132
  %v865 = vunpack.c.h.b16 %v132
  %v866 = vunpack.c.l.b16 %v133
  %v867 = vunpack.c.h.b16 %v133
  %v868 = vunpack.c.l.b16 %v134
  %v869 = vunpack.c.h.b16 %v134
  %v870 = vunpack.c.l.b16 %v135
  %v871 = vunpack.c.h.b16 %v135
  %v872 = vunpack.c.l.b16 %v136
  %v873 = vunpack.c.h.b16 %v136
  %v874 = vunpack.c.l.b16 %v137
  %v875 = vunpack.c.h.b16 %v137
  %v876 = vunpack.c.l.b16 %v138
  %v877 = vunpack.c.h.b16 %v138
  %v878 = vunpack.c.l.b16 %v139
  %v879 = vunpack.c.h.b16 %v139
  %v880 = vunpack.c.l.b16 %v140
  %v881 = vunpack.c.h.b16 %v140
  %v882 = vunpack.c.l.b16 %v141
  %v883 = vunpack.c.h.b16 %v141
  %v884 = vunpack.c.l.b16 %v142
  %v885 = vunpack.c.h.b16 %v142
  %v886 = vunpack.c.l.b16 %v143
  %v887 = vunpack.c.h.b16 %v143
  %v888 = vunpack.c.l.b16 %v144
  %v889 = vunpack.c.h.b16 %v144
  %v890 = vunpack.c.l.b16 %v145
  %v891 = vunpack.c.h.b16 %v145
  %v892 = vunpack.c.l.b16 %v146
  %v893 = vunpack.c.h.b16 %v146
  %v894 = vunpack.c.l.b16 %v147
  %v895 = vunpack.c.h.b16 %v147
  %v896 = vunpack.c.l.b16 %v148
  %v897 = vunpack.c.h.b16 %v148
  %v898 = vunpack.c.l.b16 %v149
  %v899 = vunpack.c.h.b16 %v149
  %v900 = vunpack.c.l.b16 %v150
  %v901 = vunpack.c.h.b16 %v150
  %v902 = vunpack.c.l.b16 %v151
  %v903 = vunpack.c.h.b16 %v151
  %v904 = vunpack.c.l.b16 %v152
  %v905 = vunpack.c.h.b16 %v152
  %v906 = vunpack.c.l.b16 %v153
  %v907 = vunpack.c.h.b16 %v153
  %v908 = vunpack.c.l.b16 %v154
  %v909 = vunpack.c.h.b16 %v154
  %v910 = vunpack.c.l.b16 %v155
  %v911 = vunpack.c.h.b16 %v155
  %v912 = vunpack.c.l.b16 %v156
  %v913 = vunpack.c.h.b16 %v156
  %v914 = vunpack.c.l.b16 %v157
  %v915 = vunpack.c.h.b16 %v157
  %v916 = vunpack.c.l.b16 %v158
  %v917 = vunpack.c.h.b16 %v158
  %v918 = vunpack.c.l.b16 %v159
  %v919 = vunpack.c.h.b16 %v159
  %v920 = vunpack.c.l.b16 %v160
  %v921 = vunpack.c.h.b16 %v160
  %v922 = vunpack.c.l.b16 %v161
  %v923 = vunpack.c.h.b16 %v161
  %v924 = vunpack.c.l.b16 %v162
  %v925 = vunpack.c.h.b16 %v162
  %v926 = vunpack.c.l.b16 %v163
  %v927 = vunpack.c.h.b16 %v163
  %v928 = vunpack.c.l.b16 %v164
  %v929 = vunpack.c.h.b16 %v164
  %v930 = vunpack.c.l.b16 %v165
  %v931 = vunpack.c.h.b16 %v165
  %v932 = vunpack.c.l.b16 %v166
  %v933 = vunpack.c.h.b16 %v166
  %v934 = vunpack.c.l.b16 %v167
  %v935 = vunpack.c.h.b16 %v167
  %v936 = vunpack.c.l.b16 %v168
  %v937 = vunpack.c.h.b16 %v168
  %v938 = vunpack.c.l.b16 %v169
  %v939 = vunpack.c.h.b16 %v169
  %v940 = vunpack.c.l.b16 %v170
  %v941 = vunpack.c.h.b16 %v170
  %v942 = vunpack.c.l.b16 %v171
  %v943 = vunpack.c.h.b16 %v171
  %v944 = vunpack.c.l.b16 %v172
  %v945 = vunpack.c.h.b16 %v172
  %v946 = vunpack.c.l.b16 %v173
  %v947 = vunpack.c.h.b16 %v173
  %v948 = vunpack.c.l.b16 %v174
  %v949 = vunpack.c.h.b16 %v174
  %v950 = vunpack.c.l.b16 %v175
  %v951 = vunpack.c.h.b16 %v175
  %v952 = vunpack.c.l.b16 %v176
  %v953 = vunpack.c.h.b16 %v176
  %v954 = vunpack.c.l.b16 %v177
  %v955 = vunpack.c.h.b16 %v177
  %v956 = vunpack.c.l.b16 %v178
  %v957 = vunpack.c.h.b16 %v178
  %v958 = vunpack.c.l.b16 %v179
  %v959 = vunpack.c.h.b16 %v179
  %v960 = vunpack.c.l.b16 %v180
  %v961 = vunpack.c.h.b16 %v180
  %v962 = vunpack.c.l.b16 %v181
  %v963 = vunpack.c.h.b16 %v181
  %v964 = vunpack.c.l.b16 %v182
  %v965 = vunpack.c.h.b16 %v182
  %v966 = vunpack.c.l.b16 %v183
  %v967 = vunpack.c.h.b16 %v183
  %v968 = vunpack.c.l.b16 %v184
  %v969 = vunpack.c.h.b16 %v184
  %v970 = vunpack.c.l.b16 %v185
  %v971 = vunpack.c.h.b16 %v185
  %v972 = vunpack.c.l.b16 %v186
  %v973 = vunpack.c.h.b16 %v186
  %v974 = vunpack.c.l.b16 %v187
  %v975 = vunpack.c.h.b16 %v187
  %v976 = vunpack.c.l.b16 %v188
  %v977 = vunpack.c.h.b16 %v188
  %v978 = vunpack.c.l.b16 %v189
  %v979 = vunpack.c.h.b16 %v189
  %v980 = vunpack.c.l.b16 %v190
  %v981 = vunpack.c.h.b16 %v190
  %v982 = vpack.c.b16 %v646, %v630
  %v983 = vpack.c.b16 %v647, %v631
  %v984 = vpack.c.b16 %v648, %v632
  %v985 = vpack.c.b16 %v649, %v633
  %v986 = vpack.c.b16 %v650, %v634
  %v987 = vpack.c.b16 %v651, %v635
  %v988 = vpack.c.b16 %v652, %v636
  %v989 = vpack.c.b16 %v653, %v637
  %v990 = vpack.c.b16 %v654, %v638
  %v991 = vpack.c.b16 %v655, %v639
  %v992 = vpack.c.b16 %v656, %v640
  %v993 = vpack.c.b16 %v657, %v641
  %v994 = vpack.c.b16 %v658, %v642
  %v995 = vpack.c.b16 %v659, %v643
  %v996 = vpack.c.b16 %v660, %v644
  %v997 = vpack.c.b16 %v661, %v645
  %v998 = vpack.c.b16 %v678, %v662
  %v999 = vpack.c.b16 %v679, %v663
  %v1000 = vpack.c.b16 %v680, %v664
  %v1001 = vpack.c.b16 %v681, %v665
  %v1002 = vpack.c.b16 %v682, %v666
  %v1003 = vpack.c.b16 %v683, %v667
  %v1004 = vpack.c.b16 %v684, %v668
  %v1005 = vpack.c.b16 %v685, %v669
  %v1006 = vpack.c.b16 %v686, %v670
  %v1007 = vpack.c.b16 %v687, %v671
  %v1008 = vpack.c.b16 %v688, %v672
  %v1009 = vpack.c.b16 %v689, %v673
  %v1010 = vpack.c.b16 %v690, %v674
  %v1011 = vpack.c.b16 %v691, %v675
  %v1012 = vpack.c.b16 %v692, %v676
  %v1013 = vpack.c.b16 %v693, %v677
  %v1014 = vpack.c.b16 %v710, %v694
  %v1015 = vpack.c.b16 %v711, %v695
  %v1016 = vpack.c.b16 %v712, %v696
  %v1017 = vpack.c.b16 %v713, %v697
  %v1018 = vpack.c.b16 %v714, %v698
  %v1019 = vpack.c.b16 %v715, %v699
  %v1020 = vpack.c.b16 %v716, %v700
  %v1021 = vpack.c.b16 %v717, %v701
  %v1022 = vpack.c.b16 %v718, %v702
  %v1023 = vpack.c.b16 %v719, %v703
  %v1024 = vpack.c.b16 %v720, %v704
  %v1025 = vpack.c.b16 %v721, %v705
  %v1026 = vpack.c.b16 %v722, %v706
  %v1027 = vpack.c.b16 %v723, %v707
  %v1028 = vpack.c.b16 %v724, %v708
  %v1029 = vpack.c.b16 %v725, %v709
  %v1030 = vpack.c.b16 %v742, %v726
  %v1031 = vpack.c.b16 %v743, %v727
  %v1032 = vpack.c.b16 %v744, %v728
  %v1033 = vpack.c.b16 %v745, %v729
  %v1034 = vpack.c.b16 %v746, %v730
  %v1035 = vpack.c.b16 %v747, %v731
  %v1036 = vpack.c.b16 %v748, %v732
  %v1037 = vpack.c.b16 %v749, %v733
  %v1038 = vpack.c.b16 %v750, %v734
  %v1039 = vpack.c.b16 %v751, %v735
  %v1040 = vpack.c.b16 %v752, %v736
  %v1041 = vpack.c.b16 %v753, %v737
  %v1042 = vpack.c.b16 %v754, %v738
  %v1043 = vpack.c.b16 %v755, %v739
  %v1044 = vpack.c.b16 %v756, %v740
  %v1045 = vpack.c.b16 %v757, %v741
  %v1046 = vpack.c.b16 %v774, %v758
  %v1047 = vpack.c.b16 %v775, %v759
  %v1048 = vpack.c.b16 %v776, %v760
  %v1049 = vpack.c.b16 %v777, %v761
  %v1050 = vpack.c.b16 %v778, %v762
  %v1051 = vpack.c.b16 %v779, %v763
  %v1052 = vpack.c.b16 %v780, %v764
  %v1053 = vpack.c.b16 %v781, %v765
  %v1054 = vpack.c.b16 %v782, %v766
  %v1055 = vpack.c.b16 %v783, %v767
  %v1056 = vpack.c.b16 %v784, %v768
  %v1057 = vpack.c.b16 %v785, %v769
  %v1058 = vpack.c.b16 %v786, %v770
  %v1059 = vpack.c.b16 %v787, %v771
  %v1060 = vpack.c.b16 %v788, %v772
  %v1061 = vpack.c.b16 %v789, %v773
  %v1062 = vpack.c.b16 %v806, %v790
  %v1063 = vpack.c.b16 %v807, %v791
  %v1064 = vpack.c.b16 %v808, %v792
  %v1065 = vpack.c.b16 %v809, %v793
  %v1066 = vpack.c.b16 %v810, %v794
  %v1067 = vpack.c.b16 %v811, %v795
  %v1068 = vpack.c.b16 %v812, %v796
  %v1069 = vpack.c.b16 %v813, %v797
  %v1070 = vpack.c.b16 %v814, %v798
  %v1071 = vpack.c.b16 %v815, %v799
  %v1072 = vpack.c.b16 %v816, %v800
  %v1073 = vpack.c.b16 %v817, %v801
  %v1074 = vpack.c.b16 %v818, %v802
  %v1075 = vpack.c.b16 %v819, %v803
  %v1076 = vpack.c.b16 %v820, %v804
  %v1077 = vpack.c.b16 %v821, %v805
  %v1078 = vpack.c.b16 %v838, %v822
  %v1079 = vpack.c.b16 %v839, %v823
  %v1080 = vpack.c.b16 %v840, %v824
  %v1081 = vpack.c.b16 %v841, %v825
  %v1082 = vpack.c.b16 %v842, %v826
  %v1083 = vpack.c.b16 %v843, %v827
  %v1084 = vpack.c.b16 %v844, %v828
  %v1085 = vpack.c.b16 %v845, %v829
  %v1086 = vpack.c.b16 %v846, %v830
  %v1087 = vpack.c.b16 %v847, %v831
  %v1088 = vpack.c.b16 %v848, %v832
  %v1089 = vpack.c.b16 %v849, %v833
  %v1090 = vpack.c.b16 %v850, %v834
  %v1091 = vpack.c.b16 %v851, %v835
  %v1092 = vpack.c.b16 %v852, %v836
  %v1093 = vpack.c.b16 %v853, %v837
  %v1094 = vpack.c.b16 %v870, %v854
  %v1095 = vpack.c.b16 %v871, %v855
  %v1096 = vpack.c.b16 %v872, %v856
  %v1097 = vpack.c.b16 %v873, %v857
  %v1098 = vpack.c.b16 %v874, %v858
  %v1099 = vpack.c.b16 %v875, %v859
  %v1100 = vpack.c.b16 %v876, %v860
  %v1101 = vpack.c.b16 %v877, %v861
  %v1102 = vpack.c.b16 %v878, %v862
  %v1103 = vpack.c.b16 %v879, %v863
  %v1104 = vpack.c.b16 %v880, %v864
  %v1105 = vpack.c.b16 %v881, %v865
  %v1106 = vpack.c.b16 %v882, %v866
  %v1107 = vpack.c.b16 %v883, %v867
  %v1108 = vpack.c.b16 %v884, %v868
  %v1109 = vpack.c.b16 %v885, %v869
  %v1110 = vpack.c.b16 %v902, %v886
  %v1111 = vpack.c.b16 %v903, %v887
  %v1112 = vpack.c.b16 %v904, %v888
  %v1113 = vpack.c.b16 %v905, %v889
  %v1114 = vpack.c.b16 %v906, %v890
  %v1115 = vpack.c.b16 %v907, %v891
  %v1116 = vpack.c.b16 %v908, %v892
  %v1117 = vpack.c.b16 %v909, %v893
  %v1118 = vpack.c.b16 %v910, %v894
  %v1119 = vpack.c.b16 %v911, %v895
  %v1120 = vpack.c.b16 %v912, %v896
  %v1121 = vpack.c.b16 %v913, %v897
  %v1122 = vpack.c.b16 %v914, %v898
  %v1123 = vpack.c.b16 %v915, %v899
  %v1124 = vpack.c.b16 %v916, %v900
  %v1125 = vpack.c.b16 %v917, %v901
  %v1126 = vpack.c.b16 %v934, %v918
  %v1127 = vpack.c.b16 %v935, %v919
  %v1128 = vpack.c.b16 %v936, %v920
  %v1129 = vpack.c.b16 %v937, %v921
  %v1130 = vpack.c.b16 %v938, %v922
  %v1131 = vpack.c.b16 %v939, %v923
  %v1132 = vpack.c.b16 %v940, %v924
  %v1133 = vpack.c.b16 %v941, %v925
  %v1134 = vpack.c.b16 %v942, %v926
  %v1135 = vpack.c.b16 %v943, %v927
  %v1136 = vpack.c.b16 %v944, %v928
  %v1137 = vpack.c.b16 %v945, %v929
  %v1138 = vpack.c.b16 %v946, %v930
  %v1139 = vpack.c.b16 %v947, %v931
  %v1140 = vpack.c.b16 %v948, %v932
  %v1141 = vpack.c.b16 %v949, %v933
  %v1142 = vpack.c.b16 %v966, %v950
  %v1143 = vpack.c.b16 %v967, %v951
  %v1144 = vpack.c.b16 %v968, %v952
  %v1145 = vpack.c.b16 %v969, %v953
  %v1146 = vpack.c.b16 %v970, %v954
  %v1147 = vpack.c.b16 %v971, %v955
  %v1148 = vpack.c.b16 %v972, %v956
  %v1149 = vpack.c.b16 %v973, %v957
  %v1150 = vpack.c.b16 %v974, %v958
  %v1151 = vpack.c.b16 %v975, %v959
  %v1152 = vpack.c.b16 %v976, %v960
  %v1153 = vpack.c.b16 %v977, %v961
  %v1154 = vpack.c.b16 %v978, %v962
  %v1155 = vpack.c.b16 %v979, %v963
  %v1156 = vpack.c.b16 %v980, %v964
  %v1157 = vpack.c.b16 %v981, %v965
  %v1590 = vunpack.c.l.b16 %v191
  %v1591 = vunpack.c.l.b16 %v192
  %v1592 = vunpack.c.l.b16 %v193
  %v1593 = vunpack.c.l.b16 %v194
  %v1594 = vunpack.c.l.b16 %v195
  %v1595 = vunpack.c.l.b16 %v196
  %v1596 = vunpack.c.l.b16 %v197
  %v1597 = vunpack.c.l.b16 %v198
  %v1598 = vunpack.c.l.b16 %v199
  %v1599 = vunpack.c.l.b16 %v200
  %v1600 = vunpack.c.l.b16 %v201
  %v1601 = vunpack.c.l.b16 %v202
  %v1602 = vunpack.c.l.b16 %v203
  %v1603 = vunpack.c.l.b16 %v204
  %v1604 = vunpack.c.l.b16 %v205
  %v1605 = vunpack.c.l.b16 %v206
  %v1606 = vunpack.c.l.b16 %v207
  %v1607 = vunpack.c.l.b16 %v208
  %v1608 = vunpack.c.l.b16 %v209
  %v1609 = vunpack.c.l.b16 %v210
  %v1610 = vunpack.c.l.b16 %v211
  %v1611 = vunpack.c.l.b16 %v212
  %v1612 = vunpack.c.l.b16 %v213
  %v1613 = vunpack.c.l.b16 %v214
  %v1614 = vunpack.c.l.b16 %v215
  %v1615 = vunpack.c.l.b16 %v216
  %v1616 = vunpack.c.l.b16 %v217
  %v1617 = vunpack.c.l.b16 %v218
  %v1618 = vunpack.c.l.b16 %v219
  %v1619 = vunpack.c.l.b16 %v220
  %v1620 = vunpack.c.l.b16 %v221
  %v1621 = vunpack.c.l.b16 %v222
  %v1622 = vunpack.c.l.b16 %v223
  %v1623 = vunpack.c.l.b16 %v224
  %v1624 = vunpack.c.l.b16 %v225
  %v1625 = vunpack.c.l.b16 %v226
  %v1626 = vunpack.c.l.b16 %v227
  %v1627 = vunpack.c.l.b16 %v228
  %v1628 = vunpack.c.l.b16 %v229
  %v1629 = vunpack.c.l.b16 %v230
  %v1630 = vunpack.c.l.b16 %v231
  %v1631 = vunpack.c.l.b16 %v232
  %v1632 = vunpack.c.l.b16 %v233
  %v1633 = vunpack.c.l.b16 %v234
  %v1634 = vunpack.c.l.b16 %v235
  %v1635 = vunpack.c.l.b16 %v236
  %v1636 = vunpack.c.l.b16 %v237
  %v1637 = vunpack.c.l.b16 %v238
  %v1638 = vunpack.c.l.b16 %v239
  %v1639 = vunpack.c.l.b16 %v240
  %v1640 = vunpack.c.l.b16 %v241
  %v1641 = vunpack.c.l.b16 %v242
  %v1642 = vunpack.c.l.b16 %v243
  %v1643 = vunpack.c.l.b16 %v244
  %v1644 = vunpack.c.l.b16 %v245
  %v1645 = vunpack.c.l.b16 %v246
  %v1646 = vunpack.c.l.b16 %v247
  %v1647 = vunpack.c.l.b16 %v248
  %v1648 = vunpack.c.l.b16 %v249
  %v1649 = vunpack.c.l.b16 %v250
  %v1650 = vunpack.c.l.b16 %v251
  %v1651 = vunpack.c.l.b16 %v252
  %v1652 = vunpack.c.l.b16 %v253
  %v1653 = vunpack.c.l.b16 %v254
  %v1654 = vunpack.c.l.b16 %v255
  %v1655 = vunpack.c.l.b16 %v256
  %v1656 = vunpack.c.l.b16 %v257
  %v1657 = vunpack.c.l.b16 %v258
  %v1658 = vunpack.c.l.b16 %v259
  %v1659 = vunpack.c.l.b16 %v260
  %v1660 = vunpack.c.l.b16 %v261
  %v1661 = vunpack.c.l.b16 %v262
  %v1662 = vunpack.c.l.b16 %v263
  %v1663 = vunpack.c.l.b16 %v264
  %v1664 = vunpack.c.l.b16 %v265
  %v1665 = vunpack.c.l.b16 %v266
  %v1666 = vunpack.c.l.b16 %v267
  %v1667 = vunpack.c.l.b16 %v268
  %v1668 = vunpack.c.l.b16 %v269
  %v1669 = vunpack.c.l.b16 %v270
  %v1670 = vunpack.c.l.b16 %v271
  %v1671 = vunpack.c.l.b16 %v272
  %v1672 = vunpack.c.l.b16 %v273
  %v1673 = vunpack.c.l.b16 %v274
  %v1674 = vunpack.c.l.b16 %v275
  %v1675 = vunpack.c.l.b16 %v276
  %v1676 = vunpack.c.l.b16 %v277
  %v1677 = vunpack.c.l.b16 %v278
  %v1678 = vunpack.c.l.b16 %v279
  %v1679 = vunpack.c.l.b16 %v280
  %v1680 = vunpack.c.l.b16 %v281
  %v1681 = vunpack.c.l.b16 %v282
  %v1682 = vunpack.c.l.b16 %v283
  %v1683 = vunpack.c.l.b16 %v284
  %v1684 = vunpack.c.l.b16 %v285
  %v1685 = vunpack.c.l.b16 %v286
  %v1686 = vunpack.c.l.b16 %v287
  %v1687 = vunpack.c.l.b16 %v288
  %v1688 = vunpack.c.l.b16 %v289
  %v1689 = vunpack.c.l.b16 %v290
  %v1690 = vunpack.c.l.b16 %v291
  %v1691 = vunpack.c.l.b16 %v292
  %v1692 = vunpack.c.l.b16 %v293
  %v1693 = vunpack.c.l.b16 %v294
  %v1694 = vunpack.c.l.b16 %v295
  %v1695 = vunpack.c.l.b16 %v296
  %v1696 = vunpack.c.l.b16 %v297
  %v1697 = vunpack.c.l.b16 %v298
  %v1698 = vunpack.c.l.b16 %v299
  %v1699 = vunpack.c.l.b16 %v300
  %v1700 = vunpack.c.l.b16 %v301
  %v1701 = vunpack.c.l.b16 %v302
  %v1702 = vunpack.c.l.b16 %v303
  %v1703 = vunpack.c.l.b16 %v304
  %v1704 = vunpack.c.l.b16 %v305
  %v1705 = vunpack.c.l.b16 %v306
  %v1706 = vunpack.c.l.b16 %v307
  %v1707 = vunpack.c.l.b16 %v308
  %v1708 = vunpack.c.l.b16 %v309
  %v1709 = vunpack.c.l.b16 %v310
  %v1710 = vunpack.c.l.b16 %v311
  %v1711 = vunpack.c.l.b16 %v312
  %v1712 = vunpack.c.l.b16 %v313
  %v1713 = vunpack.c.l.b16 %v314
  %v1714 = vunpack.c.l.b16 %v315
  %v1715 = vunpack.c.l.b16 %v316
  %v1716 = vunpack.c.l.b16 %v317
  %v1717 = vunpack.c.l.b16 %v318
  %v1718 = vunpack.c.l.b16 %v319
  %v1719 = vunpack.c.l.b16 %v320
  %v1720 = vunpack.c.l.b16 %v321
  %v1721 = vunpack.c.l.b16 %v322
  %v1722 = vunpack.c.l.b16 %v323
  %v1723 = vunpack.c.l.b16 %v324
  %v1724 = vunpack.c.l.b16 %v325
  %v1725 = vunpack.c.l.b16 %v326
  %v1726 = vunpack.c.l.b16 %v327
  %v1727 = vunpack.c.l.b16 %v328
  %v1728 = vunpack.c.l.b16 %v329
  %v1729 = vunpack.c.l.b16 %v330
  %v1730 = vunpack.c.l.b16 %v331
  %v1731 = vunpack.c.l.b16 %v332
  %v1732 = vunpack.c.l.b16 %v333
  %v1733 = vunpack.c.l.b16 %v334
  %v1734 = vunpack.c.l.b16 %v335
  %v1735 = vunpack.c.l.b16 %v336
  %v1736 = vunpack.c.l.b16 %v337
  %v1737 = vunpack.c.l.b16 %v338
  %v1738 = vunpack.c.l.b16 %v339
  %v1739 = vunpack.c.l.b16 %v340
  %v1740 = vunpack.c.l.b16 %v341
  %v1741 = vunpack.c.l.b16 %v342
  %v1742 = vunpack.c.l.b16 %v343
  %v1743 = vunpack.c.l.b16 %v344
  %v1744 = vunpack.c.l.b16 %v345
  %v1745 = vunpack.c.l.b16 %v346
  %v1746 = vunpack.c.l.b16 %v347
  %v1747 = vunpack.c.l.b16 %v348
  %v1748 = vunpack.c.l.b16 %v349
  %v1749 = vunpack.c.l.b16 %v350
  %v1750 = vunpack.c.l.b16 %v351
  %v1751 = vunpack.c.l.b16 %v352
  %v1752 = vunpack.c.l.b16 %v353
  %v1753 = vunpack.c.l.b16 %v354
  %v1754 = vunpack.c.l.b16 %v355
  %v1755 = vunpack.c.l.b16 %v356
  %v1756 = vunpack.c.l.b16 %v357
  %v1757 = vunpack.c.l.b16 %v358
  %v1758 = vunpack.c.l.b16 %v359
  %v1759 = vunpack.c.l.b16 %v360
  %v1760 = vunpack.c.l.b16 %v361
  %v1761 = vunpack.c.l.b16 %v362
  %v1762 = vunpack.c.l.b16 %v363
  %v1763 = vunpack.c.l.b16 %v364
  %v1764 = vunpack.c.l.b16 %v365
  %v1765 = vunpack.c.l.b16 %v366
  %v1766 = vunpack.c.l.b16 %v367
  %v1767 = vunpack.c.l.b16 %v368
  %v1768 = vunpack.c.l.b16 %v369
  %v1769 = vunpack.c.l.b16 %v370
  %v1770 = vunpack.c.l.b16 %v371
  %v1771 = vunpack.c.l.b16 %v372
  %v1772 = vunpack.c.l.b16 %v373
  %v1773 = vunpack.c.l.b16 %v374
  %v1774 = vunpack.c.l.b16 %v375
  %v1775 = vunpack.c.l.b16 %v376
  %v1776 = vunpack.c.l.b16 %v377
  %v1777 = vunpack.c.l.b16 %v378
  %v1778 = vunpack.c.l.b16 %v379
  %v1779 = vunpack.c.l.b16 %v380
  %v1780 = vunpack.c.l.b16 %v381
  %v1781 = vunpack.c.l.b16 %v382
  %v1782 = vunpack.c.l.b16 %v383
  %v1783 = vunpack.c.l.b16 %v384
  %v1784 = vunpack.c.l.b16 %v385
  %v1785 = vunpack.c.l.b16 %v386
  %v1786 = vunpack.c.l.b16 %v387
  %v1787 = vunpack.c.l.b16 %v388
  %v1788 = vunpack.c.l.b16 %v389
  %v1789 = vunpack.c.l.b16 %v390
  %v1790 = vunpack.c.l.b16 %v391
  %v1791 = vunpack.c.l.b16 %v392
  %v1792 = vunpack.c.l.b16 %v393
  %v1793 = vunpack.c.l.b16 %v394
  %v1794 = vunpack.c.l.b16 %v395
  %v1795 = vunpack.c.l.b16 %v396
  %v1796 = vunpack.c.l.b16 %v397
  %v1797 = vunpack.c.l.b16 %v398
  %v1798 = vunpack.c.l.b16 %v399
  %v1799 = vunpack.c.l.b16 %v400
  %v1800 = vunpack.c.l.b16 %v401
  %v1801 = vunpack.c.l.b16 %v402
  %v1802 = vunpack.c.l.b16 %v403
  %v1803 = vunpack.c.l.b16 %v404
  %v1804 = vunpack.c.l.b16 %v405
  %v1805 = vunpack.c.l.b16 %v406
  %v1806 = vunpack.c.l.b16 %v407
  %v1807 = vunpack.c.l.b16 %v408
  %v1808 = vunpack.c.l.b16 %v409
  %v1809 = vunpack.c.l.b16 %v410
  %v1810 = vunpack.c.l.b16 %v411
  %v1811 = vunpack.c.l.b16 %v412
  %v1812 = vunpack.c.l.b16 %v413
  %v1813 = vunpack.c.l.b16 %v414
  %v1814 = vunpack.c.l.b16 %v415
  %v1815 = vunpack.c.l.b16 %v416
  %v1816 = vunpack.c.l.b16 %v417
  %v1817 = vunpack.c.l.b16 %v418
  %v1818 = vunpack.c.l.b16 %v419
  %v1819 = vunpack.c.l.b16 %v420
  %v1820 = vunpack.c.l.b16 %v421
  %v1821 = vunpack.c.l.b16 %v422
  %v1822 = vunpack.c.l.b16 %v423
  %v1823 = vunpack.c.l.b16 %v424
  %v1824 = vunpack.c.l.b16 %v425
  %v1825 = vunpack.c.l.b16 %v426
  %v1826 = vunpack.c.l.b16 %v427
  %v1827 = vunpack.c.l.b16 %v428
  %v1828 = vunpack.c.l.b16 %v429
  %v1829 = vunpack.c.l.b16 %v430
  %v1830 = vunpack.c.l.b16 %v431
  %v1831 = vunpack.c.l.b16 %v432
  %v1832 = vunpack.c.l.b16 %v433
  %v1833 = vunpack.c.l.b16 %v434
  %v1834 = vunpack.c.l.b16 %v435
  %v1835 = vunpack.c.l.b16 %v436
  %v1836 = vunpack.c.l.b16 %v437
  %v1837 = vunpack.c.l.b16 %v438
  %v1838 = vunpack.c.l.b16 %v439
  %v1839 = vunpack.c.l.b16 %v440
  %v1840 = vunpack.c.l.b16 %v441
  %v1841 = vunpack.c.l.b16 %v442
  %v1842 = vunpack.c.l.b16 %v443
  %v1843 = vunpack.c.l.b16 %v444
  %v1844 = vunpack.c.l.b16 %v445
  %v1845 = vunpack.c.l.b16 %v446
  %v1846 = vpack.c.b16 %v1591, %v1590
  %v1847 = vpack.c.b16 %v1593, %v1592
  %v1848 = vpack.c.b16 %v1595, %v1594
  %v1849 = vpack.c.b16 %v1597, %v1596
  %v1850 = vpack.c.b16 %v1599, %v1598
  %v1851 = vpack.c.b16 %v1601, %v1600
  %v1852 = vpack.c.b16 %v1603, %v1602
  %v1853 = vpack.c.b16 %v1605, %v1604
  %v1854 = vpack.c.b16 %v1607, %v1606
  %v1855 = vpack.c.b16 %v1609, %v1608
  %v1856 = vpack.c.b16 %v1611, %v1610
  %v1857 = vpack.c.b16 %v1613, %v1612
  %v1858 = vpack.c.b16 %v1615, %v1614
  %v1859 = vpack.c.b16 %v1617, %v1616
  %v1860 = vpack.c.b16 %v1619, %v1618
  %v1861 = vpack.c.b16 %v1621, %v1620
  %v1862 = vpack.c.b16 %v1623, %v1622
  %v1863 = vpack.c.b16 %v1625, %v1624
  %v1864 = vpack.c.b16 %v1627, %v1626
  %v1865 = vpack.c.b16 %v1629, %v1628
  %v1866 = vpack.c.b16 %v1631, %v1630
  %v1867 = vpack.c.b16 %v1633, %v1632
  %v1868 = vpack.c.b16 %v1635, %v1634
  %v1869 = vpack.c.b16 %v1637, %v1636
  %v1870 = vpack.c.b16 %v1639, %v1638
  %v1871 = vpack.c.b16 %v1641, %v1640
  %v1872 = vpack.c.b16 %v1643, %v1642
  %v1873 = vpack.c.b16 %v1645, %v1644
  %v1874 = vpack.c.b16 %v1647, %v1646
  %v1875 = vpack.c.b16 %v1649, %v1648
  %v1876 = vpack.c.b16 %v1651, %v1650
  %v1877 = vpack.c.b16 %v1653, %v1652
  %v1878 = vpack.c.b16 %v1655, %v1654
  %v1879 = vpack.c.b16 %v1657, %v1656
  %v1880 = vpack.c.b16 %v1659, %v1658
  %v1881 = vpack.c.b16 %v1661, %v1660
  %v1882 = vpack.c.b16 %v1663, %v1662
  %v1883 = vpack.c.b16 %v1665, %v1664
  %v1884 = vpack.c.b16 %v1667, %v1666
  %v1885 = vpack.c.b16 %v1669, %v1668
  %v1886 = vpack.c.b16 %v1671, %v1670
  %v1887 = vpack.c.b16 %v1673, %v1672
  %v1888 = vpack.c.b16 %v1675, %v1674
  %v1889 = vpack.c.b16 %v1677, %v1676
  %v1890 = vpack.c.b16 %v1679, %v1678
  %v1891 = vpack.c.b16 %v1681, %v1680
  %v1892 = vpack.c.b16 %v1683, %v1682
  %v1893 = vpack.c.b16 %v1685, %v1684
  %v1894 = vpack.c.b16 %v1687, %v1686
  %v1895 = vpack.c.b16 %v1689, %v1688
  %v1896 = vpack.c.b16 %v1691, %v1690
  %v1897 = vpack.c.b16 %v1693, %v1692
  %v1898 = vpack.c.b16 %v1695, %v1694
  %v1899 = vpack.c.b16 %v1697, %v1696
  %v1900 = vpack.c.b16 %v1699, %v1698
  %v1901 = vpack.c.b16 %v1701, %v1700
  %v1902 = vpack.c.b16 %v1703, %v1702
  %v1903 = vpack.c.b16 %v1705, %v1704
  %v1904 = vpack.c.b16 %v1707, %v1706
  %v1905 = vpack.c.b16 %v1709, %v1708
  %v1906 = vpack.c.b16 %v1711, %v1710
  %v1907 = vpack.c.b16 %v1713, %v1712
  %v1908 = vpack.c.b16 %v1715, %v1714
  %v1909 = vpack.c.b16 %v1717, %v1716
  %v1910 = vpack.c.b16 %v1719, %v1718
  %v1911 = vpack.c.b16 %v1721, %v1720
  %v1912 = vpack.c.b16 %v1723, %v1722
  %v1913 = vpack.c.b16 %v1725, %v1724
  %v1914 = vpack.c.b16 %v1727, %v1726
  %v1915 = vpack.c.b16 %v1729, %v1728
  %v1916 = vpack.c.b16 %v1731, %v1730
  %v1917 = vpack.c.b16 %v1733, %v1732
  %v1918 = vpack.c.b16 %v1735, %v1734
  %v1919 = vpack.c.b16 %v1737, %v1736
  %v1920 = vpack.c.b16 %v1739, %v1738
  %v1921 = vpack.c.b16 %v1741, %v1740
  %v1922 = vpack.c.b16 %v1743, %v1742
  %v1923 = vpack.c.b16 %v1745, %v1744
  %v1924 = vpack.c.b16 %v1747, %v1746
  %v1925 = vpack.c.b16 %v1749, %v1748
  %v1926 = vpack.c.b16 %v1751, %v1750
  %v1927 = vpack.c.b16 %v1753, %v1752
  %v1928 = vpack.c.b16 %v1755, %v1754
  %v1929 = vpack.c.b16 %v1757, %v1756
  %v1930 = vpack.c.b16 %v1759, %v1758
  %v1931 = vpack.c.b16 %v1761, %v1760
  %v1932 = vpack.c.b16 %v1763, %v1762
  %v1933 = vpack.c.b16 %v1765, %v1764
  %v1934 = vpack.c.b16 %v1767, %v1766
  %v1935 = vpack.c.b16 %v1769, %v1768
  %v1936 = vpack.c.b16 %v1771, %v1770
  %v1937 = vpack.c.b16 %v1773, %v1772
  %v1938 = vpack.c.b16 %v1775, %v1774
  %v1939 = vpack.c.b16 %v1777, %v1776
  %v1940 = vpack.c.b16 %v1779, %v1778
  %v1941 = vpack.c.b16 %v1781, %v1780
  %v1942 = vpack.c.b16 %v1783, %v1782
  %v1943 = vpack.c.b16 %v1785, %v1784
  %v1944 = vpack.c.b16 %v1787, %v1786
  %v1945 = vpack.c.b16 %v1789, %v1788
  %v1946 = vpack.c.b16 %v1791, %v1790
  %v1947 = vpack.c.b16 %v1793, %v1792
  %v1948 = vpack.c.b16 %v1795, %v1794
  %v1949 = vpack.c.b16 %v1797, %v1796
  %v1950 = vpack.c.b16 %v1799, %v1798
  %v1951 = vpack.c.b16 %v1801, %v1800
  %v1952 = vpack.c.b16 %v1803, %v1802
  %v1953 = vpack.c.b16 %v1805, %v1804
  %v1954 = vpack.c.b16 %v1807, %v1806
  %v1955 = vpack.c.b16 %v1809, %v1808
  %v1956 = vpack.c.b16 %v1811, %v1810
  %v1957 = vpack.c.b16 %v1813, %v1812
  %v1958 = vpack.c.b16 %v1815, %v1814
  %v1959 = vpack.c.b16 %v1817, %v1816
  %v1960 = vpack.c.b16 %v1819, %v1818
  %v1961 = vpack.c.b16 %v1821, %v1820
  %v1962 = vpack.c.b16 %v1823, %v1822
  %v1963 = vpack.c.b16 %v1825, %v1824
  %v1964 = vpack.c.b16 %v1827, %v1826
  %v1965 = vpack.c.b16 %v1829, %v1828
  %v1966 = vpack.c.b16 %v1831, %v1830
  %v1967 = vpack.c.b16 %v1833, %v1832
  %v1968 = vpack.c.b16 %v1835, %v1834
  %v1969 = vpack.c.b16 %v1837, %v1836
  %v1970 = vpack.c.b16 %v1839, %v1838
  %v1971 = vpack.c.b16 %v1841, %v1840
  %v1972 = vpack.c.b16 %v1843, %v1842
  %v1973 = vpack.c.b16 %v1845, %v1844
  %2102 = vmatprep.subr.bf16.mxu0 0
  %2103 = vmatpush1.bf16.msra.mxu0 %v1846
  %2104 = vmatprep.subr.bf16.mxu0 0
  %2105 = vmatpush1.bf16.msra.mxu0 %v1847
  %2106 = vmatprep.subr.bf16.mxu0 0
  %2107 = vmatpush1.bf16.msra.mxu0 %v1848
  %2108 = vmatprep.subr.bf16.mxu0 0
  %2109 = vmatpush1.bf16.msra.mxu0 %v1849
  %2110 = vmatprep.subr.bf16.mxu0 0
  %2111 = vmatpush1.bf16.msra.mxu0 %v1850
  %2112 = vmatprep.subr.bf16.mxu0 0
  %2113 = vmatpush1.bf16.msra.mxu0 %v1851
  %2114 = vmatprep.subr.bf16.mxu0 0
  %2115 = vmatpush1.bf16.msra.mxu0 %v1852
  %2116 = vmatprep.subr.bf16.mxu0 0
  %2117 = vmatpush1.bf16.msra.mxu0 %v1853
  %2118 = vmatprep.subr.bf16.mxu0 0
  %2119 = vmatpush1.bf16.msra.mxu0 %v1854
  %2120 = vmatprep.subr.bf16.mxu0 0
  %2121 = vmatpush1.bf16.msra.mxu0 %v1855
  %2122 = vmatprep.subr.bf16.mxu0 0
  %2123 = vmatpush1.bf16.msra.mxu0 %v1856
  %2124 = vmatprep.subr.bf16.mxu0 0
  %2125 = vmatpush1.bf16.msra.mxu0 %v1857
  %2126 = vmatprep.subr.bf16.mxu0 0
  %2127 = vmatpush1.bf16.msra.mxu0 %v1858
  %2128 = vmatprep.subr.bf16.mxu0 0
  %2129 = vmatpush1.bf16.msra.mxu0 %v1859
  %2130 = vmatprep.subr.bf16.mxu0 0
  %2131 = vmatpush1.bf16.msra.mxu0 %v1860
  %2132 = vmatprep.subr.bf16.mxu0 0
  %2133 = vmatpush1.bf16.msra.mxu0 %v1861
  %2134 = vmatprep.mubr.bf16.mxu0 %v983
  %2135 = vmatmul.mubr.bf16.gmra.mrb[0].mxu0 %v982
  %v2136 = vpop.f32.mrb[0].mxu0
  %v2137 = vadd.f32 %v452, %v2136
  %v2138 = vpop.f32.mrb[0].mxu0
  %v2139 = vpop.f32.mrb[0].mxu0
  %v2140 = vadd.f32 %v452, %v2139
  %v2141 = vpop.f32.mrb[0].mxu0
  %2142 = vmatprep.mubr.bf16.mxu0 %v999
  %2143 = vmatmul.mubr.bf16.gmra.mrb[0].mxu0 %v998
  %v2144 = vpop.f32.mrb[0].mxu0
  %v2145 = vadd.f32 %v452, %v2144
  %v2146 = vpop.f32.mrb[0].mxu0
  %v2147 = vpop.f32.mrb[0].mxu0
  %v2148 = vadd.f32 %v452, %v2147
  %v2149 = vpop.f32.mrb[0].mxu0
  %2150 = vmatprep.mubr.bf16.mxu0 %v1015
  %2151 = vmatmul.mubr.bf16.gmra.mrb[0].mxu0 %v1014
  %v2152 = vpop.f32.mrb[0].mxu0
  %v2153 = vadd.f32 %v452, %v2152
  %v2154 = vpop.f32.mrb[0].mxu0
  %v2155 = vpop.f32.mrb[0].mxu0
  %v2156 = vadd.f32 %v452, %v2155
  %v2157 = vpop.f32.mrb[0].mxu0
  %2158 = vmatprep.mubr.bf16.mxu0 %v1031
  %2159 = vmatmul.mubr.bf16.gmra.mrb[0].mxu0 %v1030
  %v2160 = vpop.f32.mrb[0].mxu0
  %v2161 = vadd.f32 %v452, %v2160
  %v2162 = vpop.f32.mrb[0].mxu0
  %v2163 = vpop.f32.mrb[0].mxu0
  %v2164 = vadd.f32 %v452, %v2163
  %v2165 = vpop.f32.mrb[0].mxu0
  %2166 = vmatprep.mubr.bf16.mxu0 %v1047
  %2167 = vmatmul.mubr.bf16.gmra.mrb[0].mxu0 %v1046
  %v2168 = vpop.f32.mrb[0].mxu0
  %v2169 = vadd.f32 %v452, %v2168
  %v2170 = vpop.f32.mrb[0].mxu0
  %v2171 = vpop.f32.mrb[0].mxu0
  %v2172 = vadd.f32 %v452, %v2171
  %v2173 = vpop.f32.mrb[0].mxu0
  %2174 = vmatprep.mubr.bf16.mxu0 %v1063
  %2175 = vmatmul.mubr.bf16.gmra.mrb[0].mxu0 %v1062
  %v2176 = vpop.f32.mrb[0].mxu0
  %v2177 = vadd.f32 %v452, %v2176
  %v2178 = vpop.f32.mrb[0].mxu0
  %v2179 = vpop.f32.mrb[0].mxu0
  %v2180 = vadd.f32 %v452, %v2179
  %v2181 = vpop.f32.mrb[0].mxu0
  %2182 = vmatprep.mubr.bf16.mxu0 %v1079
  %2183 = vmatmul.mubr.bf16.gmra.mrb[0].mxu0 %v1078
  %v2184 = vpop.f32.mrb[0].mxu0
  %v2185 = vadd.f32 %v452, %v2184
  %v2186 = vpop.f32.mrb[0].mxu0
  %v2187 = vpop.f32.mrb[0].mxu0
  %v2188 = vadd.f32 %v452, %v2187
  %v2189 = vpop.f32.mrb[0].mxu0
  %2190 = vmatprep.mubr.bf16.mxu0 %v1095
  %2191 = vmatmul.mubr.bf16.gmra.mrb[0].mxu0 %v1094
  %v2192 = vpop.f32.mrb[0].mxu0
  %v2193 = vadd.f32 %v452, %v2192
  %v2194 = vpop.f32.mrb[0].mxu0
  %v2195 = vpop.f32.mrb[0].mxu0
  %v2196 = vadd.f32 %v452, %v2195
  %v2197 = vpop.f32.mrb[0].mxu0
  %2198 = vmatprep.mubr.bf16.mxu0 %v1111
  %2199 = vmatmul.mubr.bf16.gmra.mrb[0].mxu0 %v1110
  %v2200 = vpop.f32.mrb[0].mxu0
  %v2201 = vadd.f32 %v452, %v2200
  %v2202 = vpop.f32.mrb[0].mxu0
  %v2203 = vpop.f32.mrb[0].mxu0
  %v2204 = vadd.f32 %v452, %v2203
  %v2205 = vpop.f32.mrb[0].mxu0
  %2206 = vmatprep.mubr.bf16.mxu0 %v1127
  %2207 = vmatmul.mubr.bf16.gmra.mrb[0].mxu0 %v1126
  %v2208 = vpop.f32.mrb[0].mxu0
  %v2209 = vadd.f32 %v452, %v2208
  %v2210 = vpop.f32.mrb[0].mxu0
  %v2211 = vpop.f32.mrb[0].mxu0
  %v2212 = vadd.f32 %v452, %v2211
  %v2213 = vpop.f32.mrb[0].mxu0
  %2214 = vmatprep.mubr.bf16.mxu0 %v1143
  %2215 = vmatmul.mubr.bf16.gmra.mrb[0].mxu0 %v1142
  %v2216 = vpop.f32.mrb[0].mxu0
  %v2217 = vadd.f32 %v452, %v2216
  %v2218 = vpop.f32.mrb[0].mxu0
  %v2219 = vpop.f32.mrb[0].mxu0
  %v2220 = vadd.f32 %v452, %v2219
  %v2221 = vpop.f32.mrb[0].mxu0
  %2222 = vdwg.mxu0
  %2223 = vmatprep.subr.bf16.mxu0 0
  %2224 = vmatpush1.bf16.msra.mxu0 %v1862
  %2225 = vmatprep.subr.bf16.mxu0 0
  %2226 = vmatpush1.bf16.msra.mxu0 %v1863
  %2227 = vmatprep.subr.bf16.mxu0 0
  %2228 = vmatpush1.bf16.msra.mxu0 %v1864
  %2229 = vmatprep.subr.bf16.mxu0 0
  %2230 = vmatpush1.bf16.msra.mxu0 %v1865
  %2231 = vmatprep.subr.bf16.mxu0 0
  %2232 = vmatpush1.bf16.msra.mxu0 %v1866
  %2233 = vmatprep.subr.bf16.mxu0 0
  %2234 = vmatpush1.bf16.msra.mxu0 %v1867
  %2235 = vmatprep.subr.bf16.mxu0 0
  %2236 = vmatpush1.bf16.msra.mxu0 %v1868
  %2237 = vmatprep.subr.bf16.mxu0 0
  %2238 = vmatpush1.bf16.msra.mxu0 %v1869
  %2239 = vmatprep.subr.bf16.mxu0 0
  %2240 = vmatpush1.bf16.msra.mxu0 %v1870
  %2241 = vmatprep.subr.bf16.mxu0 0
  %2242 = vmatpush1.bf16.msra.mxu0 %v1871
  %2243 = vmatprep.subr.bf16.mxu0 0
  %2244 = vmatpush1.bf16.msra.mxu0 %v1872
  %2245 = vmatprep.subr.bf16.mxu0 0
  %2246 = vmatpush1.bf16.msra.mxu0 %v1873
  %2247 = vmatprep.subr.bf16.mxu0 0
  %2248 = vmatpush1.bf16.msra.mxu0 %v1874
  %2249 = vmatprep.subr.bf16.mxu0 0
  %2250 = vmatpush1.bf16.msra.mxu0 %v1875
  %2251 = vmatprep.subr.bf16.mxu0 0
  %2252 = vmatpush1.bf16.msra.mxu0 %v1876
  %2253 = vmatprep.subr.bf16.mxu0 0
  %2254 = vmatpush1.bf16.msra.mxu0 %v1877
  %2255 = vmatprep.mubr.bf16.mxu0 %v985
  %2256 = vmatmul.mubr.bf16.gmra.mrb[0].mxu0 %v984
  %v2257 = vpop.f32.mrb[0].mxu0
  %v2258 = vadd.f32 %v2137, %v2257
  %v2259 = vpop.f32.mrb[0].mxu0
  %v2260 = vpop.f32.mrb[0].mxu0
  %v2261 = vadd.f32 %v2140, %v2260
  %v2262 = vpop.f32.mrb[0].mxu0
  %2263 = vmatprep.mubr.bf16.mxu0 %v1001
  %2264 = vmatmul.mubr.bf16.gmra.mrb[0].mxu0 %v1000
  %v2265 = vpop.f32.mrb[0].mxu0
  %v2266 = vadd.f32 %v2145, %v2265
  %v2267 = vpop.f32.mrb[0].mxu0
  %v2268 = vpop.f32.mrb[0].mxu0
  %v2269 = vadd.f32 %v2148, %v2268
  %v2270 = vpop.f32.mrb[0].mxu0
  %2271 = vmatprep.mubr.bf16.mxu0 %v1017
  %2272 = vmatmul.mubr.bf16.gmra.mrb[0].mxu0 %v1016
  %v2273 = vpop.f32.mrb[0].mxu0
  %v2274 = vadd.f32 %v2153, %v2273
  %v2275 = vpop.f32.mrb[0].mxu0
  %v2276 = vpop.f32.mrb[0].mxu0
  %v2277 = vadd.f32 %v2156, %v2276
  %v2278 = vpop.f32.mrb[0].mxu0
  %2279 = vmatprep.mubr.bf16.mxu0 %v1033
  %2280 = vmatmul.mubr.bf16.gmra.mrb[0].mxu0 %v1032
  %v2281 = vpop.f32.mrb[0].mxu0
  %v2282 = vadd.f32 %v2161, %v2281
  %v2283 = vpop.f32.mrb[0].mxu0
  %v2284 = vpop.f32.mrb[0].mxu0
  %v2285 = vadd.f32 %v2164, %v2284
  %v2286 = vpop.f32.mrb[0].mxu0
  %2287 = vmatprep.mubr.bf16.mxu0 %v1049
  %2288 = vmatmul.mubr.bf16.gmra.mrb[0].mxu0 %v1048
  %v2289 = vpop.f32.mrb[0].mxu0
  %v2290 = vadd.f32 %v2169, %v2289
  %v2291 = vpop.f32.mrb[0].mxu0
  %v2292 = vpop.f32.mrb[0].mxu0
  %v2293 = vadd.f32 %v2172, %v2292
  %v2294 = vpop.f32.mrb[0].mxu0
  %2295 = vmatprep.mubr.bf16.mxu0 %v1065
  %2296 = vmatmul.mubr.bf16.gmra.mrb[0].mxu0 %v1064
  %v2297 = vpop.f32.mrb[0].mxu0
  %v2298 = vadd.f32 %v2177, %v2297
  %v2299 = vpop.f32.mrb[0].mxu0
  %v2300 = vpop.f32.mrb[0].mxu0
  %v2301 = vadd.f32 %v2180, %v2300
  %v2302 = vpop.f32.mrb[0].mxu0
  %2303 = vmatprep.mubr.bf16.mxu0 %v1081
  %2304 = vmatmul.mubr.bf16.gmra.mrb[0].mxu0 %v1080
  %v2305 = vpop.f32.mrb[0].mxu0
  %v2306 = vadd.f32 %v2185, %v2305
  %v2307 = vpop.f32.mrb[0].mxu0
  %v2308 = vpop.f32.mrb[0].mxu0
  %v2309 = vadd.f32 %v2188, %v2308
  %v2310 = vpop.f32.mrb[0].mxu0
  %2311 = vmatprep.mubr.bf16.mxu0 %v1097
  %2312 = vmatmul.mubr.bf16.gmra.mrb[0].mxu0 %v1096
  %v2313 = vpop.f32.mrb[0].mxu0
  %v2314 = vadd.f32 %v2193, %v2313
  %v2315 = vpop.f32.mrb[0].mxu0
  %v2316 = vpop.f32.mrb[0].mxu0
  %v2317 = vadd.f32 %v2196, %v2316
  %v2318 = vpop.f32.mrb[0].mxu0
  %2319 = vmatprep.mubr.bf16.mxu0 %v1113
  %2320 = vmatmul.mubr.bf16.gmra.mrb[0].mxu0 %v1112
  %v2321 = vpop.f32.mrb[0].mxu0
  %v2322 = vadd.f32 %v2201, %v2321
  %v2323 = vpop.f32.mrb[0].mxu0
  %v2324 = vpop.f32.mrb[0].mxu0
  %v2325 = vadd.f32 %v2204, %v2324
  %v2326 = vpop.f32.mrb[0].mxu0
  %2327 = vmatprep.mubr.bf16.mxu0 %v1129
  %2328 = vmatmul.mubr.bf16.gmra.mrb[0].mxu0 %v1128
  %v2329 = vpop.f32.mrb[0].mxu0
  %v2330 = vadd.f32 %v2209, %v2329
  %v2331 = vpop.f32.mrb[0].mxu0
  %v2332 = vpop.f32.mrb[0].mxu0
  %v2333 = vadd.f32 %v2212, %v2332
  %v2334 = vpop.f32.mrb[0].mxu0
  %2335 = vmatprep.mubr.bf16.mxu0 %v1145
  %2336 = vmatmul.mubr.bf16.gmra.mrb[0].mxu0 %v1144
  %v2337 = vpop.f32.mrb[0].mxu0
  %v2338 = vadd.f32 %v2217, %v2337
  %v2339 = vpop.f32.mrb[0].mxu0
  %v2340 = vpop.f32.mrb[0].mxu0
  %v2341 = vadd.f32 %v2220, %v2340
  %v2342 = vpop.f32.mrb[0].mxu0
  %2343 = vdwg.mxu0
  %2344 = vmatprep.subr.bf16.mxu0 0
  %2345 = vmatpush1.bf16.msra.mxu0 %v1878
  %2346 = vmatprep.subr.bf16.mxu0 0
  %2347 = vmatpush1.bf16.msra.mxu0 %v1879
  %2348 = vmatprep.subr.bf16.mxu0 0
  %2349 = vmatpush1.bf16.msra.mxu0 %v1880
  %2350 = vmatprep.subr.bf16.mxu0 0
  %2351 = vmatpush1.bf16.msra.mxu0 %v1881
  %2352 = vmatprep.subr.bf16.mxu0 0
  %2353 = vmatpush1.bf16.msra.mxu0 %v1882
  %2354 = vmatprep.subr.bf16.mxu0 0
  %2355 = vmatpush1.bf16.msra.mxu0 %v1883
  %2356 = vmatprep.subr.bf16.mxu0 0
  %2357 = vmatpush1.bf16.msra.mxu0 %v1884
  %2358 = vmatprep.subr.bf16.mxu0 0
  %2359 = vmatpush1.bf16.msra.mxu0 %v1885
  %2360 = vmatprep.subr.bf16.mxu0 0
  %2361 = vmatpush1.bf16.msra.mxu0 %v1886
  %2362 = vmatprep.subr.bf16.mxu0 0
  %2363 = vmatpush1.bf16.msra.mxu0 %v1887
  %2364 = vmatprep.subr.bf16.mxu0 0
  %2365 = vmatpush1.bf16.msra.mxu0 %v1888
  %2366 = vmatprep.subr.bf16.mxu0 0
  %2367 = vmatpush1.bf16.msra.mxu0 %v1889
  %2368 = vmatprep.subr.bf16.mxu0 0
  %2369 = vmatpush1.bf16.msra.mxu0 %v1890
  %2370 = vmatprep.subr.bf16.mxu0 0
  %2371 = vmatpush1.bf16.msra.mxu0 %v1891
  %2372 = vmatprep.subr.bf16.mxu0 0
  %2373 = vmatpush1.bf16.msra.mxu0 %v1892
  %2374 = vmatprep.subr.bf16.mxu0 0
  %2375 = vmatpush1.bf16.msra.mxu0 %v1893
  %2376 = vmatprep.mubr.bf16.mxu0 %v987
  %2377 = vmatmul.mubr.bf16.gmra.mrb[0].mxu0 %v986
  %v2378 = vpop.f32.mrb[0].mxu0
  %v2379 = vadd.f32 %v2258, %v2378
  %v2380 = vpop.f32.mrb[0].mxu0
  %v2381 = vpop.f32.mrb[0].mxu0
  %v2382 = vadd.f32 %v2261, %v2381
  %v2383 = vpop.f32.mrb[0].mxu0
  %2384 = vmatprep.mubr.bf16.mxu0 %v1003
  %2385 = vmatmul.mubr.bf16.gmra.mrb[0].mxu0 %v1002
  %v2386 = vpop.f32.mrb[0].mxu0
  %v2387 = vadd.f32 %v2266, %v2386
  %v2388 = vpop.f32.mrb[0].mxu0
  %v2389 = vpop.f32.mrb[0].mxu0
  %v2390 = vadd.f32 %v2269, %v2389
  %v2391 = vpop.f32.mrb[0].mxu0
  %2392 = vmatprep.mubr.bf16.mxu0 %v1019
  %2393 = vmatmul.mubr.bf16.gmra.mrb[0].mxu0 %v1018
  %v2394 = vpop.f32.mrb[0].mxu0
  %v2395 = vadd.f32 %v2274, %v2394
  %v2396 = vpop.f32.mrb[0].mxu0
  %v2397 = vpop.f32.mrb[0].mxu0
  %v2398 = vadd.f32 %v2277, %v2397
  %v2399 = vpop.f32.mrb[0].mxu0
  %2400 = vmatprep.mubr.bf16.mxu0 %v1035
  %2401 = vmatmul.mubr.bf16.gmra.mrb[0].mxu0 %v1034
  %v2402 = vpop.f32.mrb[0].mxu0
  %v2403 = vadd.f32 %v2282, %v2402
  %v2404 = vpop.f32.mrb[0].mxu0
  %v2405 = vpop.f32.mrb[0].mxu0
  %v2406 = vadd.f32 %v2285, %v2405
  %v2407 = vpop.f32.mrb[0].mxu0
  %2408 = vmatprep.mubr.bf16.mxu0 %v1051
  %2409 = vmatmul.mubr.bf16.gmra.mrb[0].mxu0 %v1050
  %v2410 = vpop.f32.mrb[0].mxu0
  %v2411 = vadd.f32 %v2290, %v2410
  %v2412 = vpop.f32.mrb[0].mxu0
  %v2413 = vpop.f32.mrb[0].mxu0
  %v2414 = vadd.f32 %v2293, %v2413
  %v2415 = vpop.f32.mrb[0].mxu0
  %2416 = vmatprep.mubr.bf16.mxu0 %v1067
  %2417 = vmatmul.mubr.bf16.gmra.mrb[0].mxu0 %v1066
  %v2418 = vpop.f32.mrb[0].mxu0
  %v2419 = vadd.f32 %v2298, %v2418
  %v2420 = vpop.f32.mrb[0].mxu0
  %v2421 = vpop.f32.mrb[0].mxu0
  %v2422 = vadd.f32 %v2301, %v2421
  %v2423 = vpop.f32.mrb[0].mxu0
  %2424 = vmatprep.mubr.bf16.mxu0 %v1083
  %2425 = vmatmul.mubr.bf16.gmra.mrb[0].mxu0 %v1082
  %v2426 = vpop.f32.mrb[0].mxu0
  %v2427 = vadd.f32 %v2306, %v2426
  %v2428 = vpop.f32.mrb[0].mxu0
  %v2429 = vpop.f32.mrb[0].mxu0
  %v2430 = vadd.f32 %v2309, %v2429
  %v2431 = vpop.f32.mrb[0].mxu0
  %2432 = vmatprep.mubr.bf16.mxu0 %v1099
  %2433 = vmatmul.mubr.bf16.gmra.mrb[0].mxu0 %v1098
  %v2434 = vpop.f32.mrb[0].mxu0
  %v2435 = vadd.f32 %v2314, %v2434
  %v2436 = vpop.f32.mrb[0].mxu0
  %v2437 = vpop.f32.mrb[0].mxu0
  %v2438 = vadd.f32 %v2317, %v2437
  %v2439 = vpop.f32.mrb[0].mxu0
  %2440 = vmatprep.mubr.bf16.mxu0 %v1115
  %2441 = vmatmul.mubr.bf16.gmra.mrb[0].mxu0 %v1114
  %v2442 = vpop.f32.mrb[0].mxu0
  %v2443 = vadd.f32 %v2322, %v2442
  %v2444 = vpop.f32.mrb[0].mxu0
  %v2445 = vpop.f32.mrb[0].mxu0
  %v2446 = vadd.f32 %v2325, %v2445
  %v2447 = vpop.f32.mrb[0].mxu0
  %2448 = vmatprep.mubr.bf16.mxu0 %v1131
  %2449 = vmatmul.mubr.bf16.gmra.mrb[0].mxu0 %v1130
  %v2450 = vpop.f32.mrb[0].mxu0
  %v2451 = vadd.f32 %v2330, %v2450
  %v2452 = vpop.f32.mrb[0].mxu0
  %v2453 = vpop.f32.mrb[0].mxu0
  %v2454 = vadd.f32 %v2333, %v2453
  %v2455 = vpop.f32.mrb[0].mxu0
  %2456 = vmatprep.mubr.bf16.mxu0 %v1147
  %2457 = vmatmul.mubr.bf16.gmra.mrb[0].mxu0 %v1146
  %v2458 = vpop.f32.mrb[0].mxu0
  %v2459 = vadd.f32 %v2338, %v2458
  %v2460 = vpop.f32.mrb[0].mxu0
  %v2461 = vpop.f32.mrb[0].mxu0
  %v2462 = vadd.f32 %v2341, %v2461
  %v2463 = vpop.f32.mrb[0].mxu0
  %2464 = vdwg.mxu0
  %2465 = vmatprep.subr.bf16.mxu0 0
  %2466 = vmatpush1.bf16.msra.mxu0 %v1894
  %2467 = vmatprep.subr.bf16.mxu0 0
  %2468 = vmatpush1.bf16.msra.mxu0 %v1895
  %2469 = vmatprep.subr.bf16.mxu0 0
  %2470 = vmatpush1.bf16.msra.mxu0 %v1896
  %2471 = vmatprep.subr.bf16.mxu0 0
  %2472 = vmatpush1.bf16.msra.mxu0 %v1897
  %2473 = vmatprep.subr.bf16.mxu0 0
  %2474 = vmatpush1.bf16.msra.mxu0 %v1898
  %2475 = vmatprep.subr.bf16.mxu0 0
  %2476 = vmatpush1.bf16.msra.mxu0 %v1899
  %2477 = vmatprep.subr.bf16.mxu0 0
  %2478 = vmatpush1.bf16.msra.mxu0 %v1900
  %2479 = vmatprep.subr.bf16.mxu0 0
  %2480 = vmatpush1.bf16.msra.mxu0 %v1901
  %2481 = vmatprep.subr.bf16.mxu0 0
  %2482 = vmatpush1.bf16.msra.mxu0 %v1902
  %2483 = vmatprep.subr.bf16.mxu0 0
  %2484 = vmatpush1.bf16.msra.mxu0 %v1903
  %2485 = vmatprep.subr.bf16.mxu0 0
  %2486 = vmatpush1.bf16.msra.mxu0 %v1904
  %2487 = vmatprep.subr.bf16.mxu0 0
  %2488 = vmatpush1.bf16.msra.mxu0 %v1905
  %2489 = vmatprep.subr.bf16.mxu0 0
  %2490 = vmatpush1.bf16.msra.mxu0 %v1906
  %2491 = vmatprep.subr.bf16.mxu0 0
  %2492 = vmatpush1.bf16.msra.mxu0 %v1907
  %2493 = vmatprep.subr.bf16.mxu0 0
  %2494 = vmatpush1.bf16.msra.mxu0 %v1908
  %2495 = vmatprep.subr.bf16.mxu0 0
  %2496 = vmatpush1.bf16.msra.mxu0 %v1909
  %2497 = vmatprep.mubr.bf16.mxu0 %v989
  %2498 = vmatmul.mubr.bf16.gmra.mrb[0].mxu0 %v988
  %v2499 = vpop.f32.mrb[0].mxu0
  %v2500 = vadd.f32 %v2379, %v2499
  %v2501 = vpop.f32.mrb[0].mxu0
  %v2502 = vpop.f32.mrb[0].mxu0
  %v2503 = vadd.f32 %v2382, %v2502
  %v2504 = vpop.f32.mrb[0].mxu0
  %2505 = vmatprep.mubr.bf16.mxu0 %v1005
  %2506 = vmatmul.mubr.bf16.gmra.mrb[0].mxu0 %v1004
  %v2507 = vpop.f32.mrb[0].mxu0
  %v2508 = vadd.f32 %v2387, %v2507
  %v2509 = vpop.f32.mrb[0].mxu0
  %v2510 = vpop.f32.mrb[0].mxu0
  %v2511 = vadd.f32 %v2390, %v2510
  %v2512 = vpop.f32.mrb[0].mxu0
  %2513 = vmatprep.mubr.bf16.mxu0 %v1021
  %2514 = vmatmul.mubr.bf16.gmra.mrb[0].mxu0 %v1020
  %v2515 = vpop.f32.mrb[0].mxu0
  %v2516 = vadd.f32 %v2395, %v2515
  %v2517 = vpop.f32.mrb[0].mxu0
  %v2518 = vpop.f32.mrb[0].mxu0
  %v2519 = vadd.f32 %v2398, %v2518
  %v2520 = vpop.f32.mrb[0].mxu0
  %2521 = vmatprep.mubr.bf16.mxu0 %v1037
  %2522 = vmatmul.mubr.bf16.gmra.mrb[0].mxu0 %v1036
  %v2523 = vpop.f32.mrb[0].mxu0
  %v2524 = vadd.f32 %v2403, %v2523
  %v2525 = vpop.f32.mrb[0].mxu0
  %v2526 = vpop.f32.mrb[0].mxu0
  %v2527 = vadd.f32 %v2406, %v2526
  %v2528 = vpop.f32.mrb[0].mxu0
  %2529 = vmatprep.mubr.bf16.mxu0 %v1053
  %2530 = vmatmul.mubr.bf16.gmra.mrb[0].mxu0 %v1052
  %v2531 = vpop.f32.mrb[0].mxu0
  %v2532 = vadd.f32 %v2411, %v2531
  %v2533 = vpop.f32.mrb[0].mxu0
  %v2534 = vpop.f32.mrb[0].mxu0
  %v2535 = vadd.f32 %v2414, %v2534
  %v2536 = vpop.f32.mrb[0].mxu0
  %2537 = vmatprep.mubr.bf16.mxu0 %v1069
  %2538 = vmatmul.mubr.bf16.gmra.mrb[0].mxu0 %v1068
  %v2539 = vpop.f32.mrb[0].mxu0
  %v2540 = vadd.f32 %v2419, %v2539
  %v2541 = vpop.f32.mrb[0].mxu0
  %v2542 = vpop.f32.mrb[0].mxu0
  %v2543 = vadd.f32 %v2422, %v2542
  %v2544 = vpop.f32.mrb[0].mxu0
  %2545 = vmatprep.mubr.bf16.mxu0 %v1085
  %2546 = vmatmul.mubr.bf16.gmra.mrb[0].mxu0 %v1084
  %v2547 = vpop.f32.mrb[0].mxu0
  %v2548 = vadd.f32 %v2427, %v2547
  %v2549 = vpop.f32.mrb[0].mxu0
  %v2550 = vpop.f32.mrb[0].mxu0
  %v2551 = vadd.f32 %v2430, %v2550
  %v2552 = vpop.f32.mrb[0].mxu0
  %2553 = vmatprep.mubr.bf16.mxu0 %v1101
  %2554 = vmatmul.mubr.bf16.gmra.mrb[0].mxu0 %v1100
  %v2555 = vpop.f32.mrb[0].mxu0
  %v2556 = vadd.f32 %v2435, %v2555
  %v2557 = vpop.f32.mrb[0].mxu0
  %v2558 = vpop.f32.mrb[0].mxu0
  %v2559 = vadd.f32 %v2438, %v2558
  %v2560 = vpop.f32.mrb[0].mxu0
  %2561 = vmatprep.mubr.bf16.mxu0 %v1117
  %2562 = vmatmul.mubr.bf16.gmra.mrb[0].mxu0 %v1116
  %v2563 = vpop.f32.mrb[0].mxu0
  %v2564 = vadd.f32 %v2443, %v2563
  %v2565 = vpop.f32.mrb[0].mxu0
  %v2566 = vpop.f32.mrb[0].mxu0
  %v2567 = vadd.f32 %v2446, %v2566
  %v2568 = vpop.f32.mrb[0].mxu0
  %2569 = vmatprep.mubr.bf16.mxu0 %v1133
  %2570 = vmatmul.mubr.bf16.gmra.mrb[0].mxu0 %v1132
  %v2571 = vpop.f32.mrb[0].mxu0
  %v2572 = vadd.f32 %v2451, %v2571
  %v2573 = vpop.f32.mrb[0].mxu0
  %v2574 = vpop.f32.mrb[0].mxu0
  %v2575 = vadd.f32 %v2454, %v2574
  %v2576 = vpop.f32.mrb[0].mxu0
  %2577 = vmatprep.mubr.bf16.mxu0 %v1149
  %2578 = vmatmul.mubr.bf16.gmra.mrb[0].mxu0 %v1148
  %v2579 = vpop.f32.mrb[0].mxu0
  %v2580 = vadd.f32 %v2459, %v2579
  %v2581 = vpop.f32.mrb[0].mxu0
  %v2582 = vpop.f32.mrb[0].mxu0
  %v2583 = vadd.f32 %v2462, %v2582
  %v2584 = vpop.f32.mrb[0].mxu0
  %2585 = vdwg.mxu0
  %2586 = vmatprep.subr.bf16.mxu0 0
  %2587 = vmatpush1.bf16.msra.mxu0 %v1910
  %2588 = vmatprep.subr.bf16.mxu0 0
  %2589 = vmatpush1.bf16.msra.mxu0 %v1911
  %2590 = vmatprep.subr.bf16.mxu0 0
  %2591 = vmatpush1.bf16.msra.mxu0 %v1912
  %2592 = vmatprep.subr.bf16.mxu0 0
  %2593 = vmatpush1.bf16.msra.mxu0 %v1913
  %2594 = vmatprep.subr.bf16.mxu0 0
  %2595 = vmatpush1.bf16.msra.mxu0 %v1914
  %2596 = vmatprep.subr.bf16.mxu0 0
  %2597 = vmatpush1.bf16.msra.mxu0 %v1915
  %2598 = vmatprep.subr.bf16.mxu0 0
  %2599 = vmatpush1.bf16.msra.mxu0 %v1916
  %2600 = vmatprep.subr.bf16.mxu0 0
  %2601 = vmatpush1.bf16.msra.mxu0 %v1917
  %2602 = vmatprep.subr.bf16.mxu0 0
  %2603 = vmatpush1.bf16.msra.mxu0 %v1918
  %2604 = vmatprep.subr.bf16.mxu0 0
  %2605 = vmatpush1.bf16.msra.mxu0 %v1919
  %2606 = vmatprep.subr.bf16.mxu0 0
  %2607 = vmatpush1.bf16.msra.mxu0 %v1920
  %2608 = vmatprep.subr.bf16.mxu0 0
  %2609 = vmatpush1.bf16.msra.mxu0 %v1921
  %2610 = vmatprep.subr.bf16.mxu0 0
  %2611 = vmatpush1.bf16.msra.mxu0 %v1922
  %2612 = vmatprep.subr.bf16.mxu0 0
  %2613 = vmatpush1.bf16.msra.mxu0 %v1923
  %2614 = vmatprep.subr.bf16.mxu0 0
  %2615 = vmatpush1.bf16.msra.mxu0 %v1924
  %2616 = vmatprep.subr.bf16.mxu0 0
  %2617 = vmatpush1.bf16.msra.mxu0 %v1925
  %2618 = vmatprep.mubr.bf16.mxu0 %v991
  %2619 = vmatmul.mubr.bf16.gmra.mrb[0].mxu0 %v990
  %v2620 = vpop.f32.mrb[0].mxu0
  %v2621 = vadd.f32 %v2500, %v2620
  %v2622 = vpop.f32.mrb[0].mxu0
  %v2623 = vpop.f32.mrb[0].mxu0
  %v2624 = vadd.f32 %v2503, %v2623
  %v2625 = vpop.f32.mrb[0].mxu0
  %2626 = vmatprep.mubr.bf16.mxu0 %v1007
  %2627 = vmatmul.mubr.bf16.gmra.mrb[0].mxu0 %v1006
  %v2628 = vpop.f32.mrb[0].mxu0
  %v2629 = vadd.f32 %v2508, %v2628
  %v2630 = vpop.f32.mrb[0].mxu0
  %v2631 = vpop.f32.mrb[0].mxu0
  %v2632 = vadd.f32 %v2511, %v2631
  %v2633 = vpop.f32.mrb[0].mxu0
  %2634 = vmatprep.mubr.bf16.mxu0 %v1023
  %2635 = vmatmul.mubr.bf16.gmra.mrb[0].mxu0 %v1022
  %v2636 = vpop.f32.mrb[0].mxu0
  %v2637 = vadd.f32 %v2516, %v2636
  %v2638 = vpop.f32.mrb[0].mxu0
  %v2639 = vpop.f32.mrb[0].mxu0
  %v2640 = vadd.f32 %v2519, %v2639
  %v2641 = vpop.f32.mrb[0].mxu0
  %2642 = vmatprep.mubr.bf16.mxu0 %v1039
  %2643 = vmatmul.mubr.bf16.gmra.mrb[0].mxu0 %v1038
  %v2644 = vpop.f32.mrb[0].mxu0
  %v2645 = vadd.f32 %v2524, %v2644
  %v2646 = vpop.f32.mrb[0].mxu0
  %v2647 = vpop.f32.mrb[0].mxu0
  %v2648 = vadd.f32 %v2527, %v2647
  %v2649 = vpop.f32.mrb[0].mxu0
  %2650 = vmatprep.mubr.bf16.mxu0 %v1055
  %2651 = vmatmul.mubr.bf16.gmra.mrb[0].mxu0 %v1054
  %v2652 = vpop.f32.mrb[0].mxu0
  %v2653 = vadd.f32 %v2532, %v2652
  %v2654 = vpop.f32.mrb[0].mxu0
  %v2655 = vpop.f32.mrb[0].mxu0
  %v2656 = vadd.f32 %v2535, %v2655
  %v2657 = vpop.f32.mrb[0].mxu0
  %2658 = vmatprep.mubr.bf16.mxu0 %v1071
  %2659 = vmatmul.mubr.bf16.gmra.mrb[0].mxu0 %v1070
  %v2660 = vpop.f32.mrb[0].mxu0
  %v2661 = vadd.f32 %v2540, %v2660
  %v2662 = vpop.f32.mrb[0].mxu0
  %v2663 = vpop.f32.mrb[0].mxu0
  %v2664 = vadd.f32 %v2543, %v2663
  %v2665 = vpop.f32.mrb[0].mxu0
  %2666 = vmatprep.mubr.bf16.mxu0 %v1087
  %2667 = vmatmul.mubr.bf16.gmra.mrb[0].mxu0 %v1086
  %v2668 = vpop.f32.mrb[0].mxu0
  %v2669 = vadd.f32 %v2548, %v2668
  %v2670 = vpop.f32.mrb[0].mxu0
  %v2671 = vpop.f32.mrb[0].mxu0
  %v2672 = vadd.f32 %v2551, %v2671
  %v2673 = vpop.f32.mrb[0].mxu0
  %2674 = vmatprep.mubr.bf16.mxu0 %v1103
  %2675 = vmatmul.mubr.bf16.gmra.mrb[0].mxu0 %v1102
  %v2676 = vpop.f32.mrb[0].mxu0
  %v2677 = vadd.f32 %v2556, %v2676
  %v2678 = vpop.f32.mrb[0].mxu0
  %v2679 = vpop.f32.mrb[0].mxu0
  %v2680 = vadd.f32 %v2559, %v2679
  %v2681 = vpop.f32.mrb[0].mxu0
  %2682 = vmatprep.mubr.bf16.mxu0 %v1119
  %2683 = vmatmul.mubr.bf16.gmra.mrb[0].mxu0 %v1118
  %v2684 = vpop.f32.mrb[0].mxu0
  %v2685 = vadd.f32 %v2564, %v2684
  %v2686 = vpop.f32.mrb[0].mxu0
  %v2687 = vpop.f32.mrb[0].mxu0
  %v2688 = vadd.f32 %v2567, %v2687
  %v2689 = vpop.f32.mrb[0].mxu0
  %2690 = vmatprep.mubr.bf16.mxu0 %v1135
  %2691 = vmatmul.mubr.bf16.gmra.mrb[0].mxu0 %v1134
  %v2692 = vpop.f32.mrb[0].mxu0
  %v2693 = vadd.f32 %v2572, %v2692
  %v2694 = vpop.f32.mrb[0].mxu0
  %v2695 = vpop.f32.mrb[0].mxu0
  %v2696 = vadd.f32 %v2575, %v2695
  %v2697 = vpop.f32.mrb[0].mxu0
  %2698 = vmatprep.mubr.bf16.mxu0 %v1151
  %2699 = vmatmul.mubr.bf16.gmra.mrb[0].mxu0 %v1150
  %v2700 = vpop.f32.mrb[0].mxu0
  %v2701 = vadd.f32 %v2580, %v2700
  %v2702 = vpop.f32.mrb[0].mxu0
  %v2703 = vpop.f32.mrb[0].mxu0
  %v2704 = vadd.f32 %v2583, %v2703
  %v2705 = vpop.f32.mrb[0].mxu0
  %2706 = vdwg.mxu0
  %2707 = vmatprep.subr.bf16.mxu0 0
  %2708 = vmatpush1.bf16.msra.mxu0 %v1926
  %2709 = vmatprep.subr.bf16.mxu0 0
  %2710 = vmatpush1.bf16.msra.mxu0 %v1927
  %2711 = vmatprep.subr.bf16.mxu0 0
  %2712 = vmatpush1.bf16.msra.mxu0 %v1928
  %2713 = vmatprep.subr.bf16.mxu0 0
  %2714 = vmatpush1.bf16.msra.mxu0 %v1929
  %2715 = vmatprep.subr.bf16.mxu0 0
  %2716 = vmatpush1.bf16.msra.mxu0 %v1930
  %2717 = vmatprep.subr.bf16.mxu0 0
  %2718 = vmatpush1.bf16.msra.mxu0 %v1931
  %2719 = vmatprep.subr.bf16.mxu0 0
  %2720 = vmatpush1.bf16.msra.mxu0 %v1932
  %2721 = vmatprep.subr.bf16.mxu0 0
  %2722 = vmatpush1.bf16.msra.mxu0 %v1933
  %2723 = vmatprep.subr.bf16.mxu0 0
  %2724 = vmatpush1.bf16.msra.mxu0 %v1934
  %2725 = vmatprep.subr.bf16.mxu0 0
  %2726 = vmatpush1.bf16.msra.mxu0 %v1935
  %2727 = vmatprep.subr.bf16.mxu0 0
  %2728 = vmatpush1.bf16.msra.mxu0 %v1936
  %2729 = vmatprep.subr.bf16.mxu0 0
  %2730 = vmatpush1.bf16.msra.mxu0 %v1937
  %2731 = vmatprep.subr.bf16.mxu0 0
  %2732 = vmatpush1.bf16.msra.mxu0 %v1938
  %2733 = vmatprep.subr.bf16.mxu0 0
  %2734 = vmatpush1.bf16.msra.mxu0 %v1939
  %2735 = vmatprep.subr.bf16.mxu0 0
  %2736 = vmatpush1.bf16.msra.mxu0 %v1940
  %2737 = vmatprep.subr.bf16.mxu0 0
  %2738 = vmatpush1.bf16.msra.mxu0 %v1941
  %2739 = vmatprep.mubr.bf16.mxu0 %v993
  %2740 = vmatmul.mubr.bf16.gmra.mrb[0].mxu0 %v992
  %v2741 = vpop.f32.mrb[0].mxu0
  %v2742 = vadd.f32 %v2621, %v2741
  %v2743 = vpop.f32.mrb[0].mxu0
  %v2744 = vpop.f32.mrb[0].mxu0
  %v2745 = vadd.f32 %v2624, %v2744
  %v2746 = vpop.f32.mrb[0].mxu0
  %2747 = vmatprep.mubr.bf16.mxu0 %v1009
  %2748 = vmatmul.mubr.bf16.gmra.mrb[0].mxu0 %v1008
  %v2749 = vpop.f32.mrb[0].mxu0
  %v2750 = vadd.f32 %v2629, %v2749
  %v2751 = vpop.f32.mrb[0].mxu0
  %v2752 = vpop.f32.mrb[0].mxu0
  %v2753 = vadd.f32 %v2632, %v2752
  %v2754 = vpop.f32.mrb[0].mxu0
  %2755 = vmatprep.mubr.bf16.mxu0 %v1025
  %2756 = vmatmul.mubr.bf16.gmra.mrb[0].mxu0 %v1024
  %v2757 = vpop.f32.mrb[0].mxu0
  %v2758 = vadd.f32 %v2637, %v2757
  %v2759 = vpop.f32.mrb[0].mxu0
  %v2760 = vpop.f32.mrb[0].mxu0
  %v2761 = vadd.f32 %v2640, %v2760
  %v2762 = vpop.f32.mrb[0].mxu0
  %2763 = vmatprep.mubr.bf16.mxu0 %v1041
  %2764 = vmatmul.mubr.bf16.gmra.mrb[0].mxu0 %v1040
  %v2765 = vpop.f32.mrb[0].mxu0
  %v2766 = vadd.f32 %v2645, %v2765
  %v2767 = vpop.f32.mrb[0].mxu0
  %v2768 = vpop.f32.mrb[0].mxu0
  %v2769 = vadd.f32 %v2648, %v2768
  %v2770 = vpop.f32.mrb[0].mxu0
  %2771 = vmatprep.mubr.bf16.mxu0 %v1057
  %2772 = vmatmul.mubr.bf16.gmra.mrb[0].mxu0 %v1056
  %v2773 = vpop.f32.mrb[0].mxu0
  %v2774 = vadd.f32 %v2653, %v2773
  %v2775 = vpop.f32.mrb[0].mxu0
  %v2776 = vpop.f32.mrb[0].mxu0
  %v2777 = vadd.f32 %v2656, %v2776
  %v2778 = vpop.f32.mrb[0].mxu0
  %2779 = vmatprep.mubr.bf16.mxu0 %v1073
  %2780 = vmatmul.mubr.bf16.gmra.mrb[0].mxu0 %v1072
  %v2781 = vpop.f32.mrb[0].mxu0
  %v2782 = vadd.f32 %v2661, %v2781
  %v2783 = vpop.f32.mrb[0].mxu0
  %v2784 = vpop.f32.mrb[0].mxu0
  %v2785 = vadd.f32 %v2664, %v2784
  %v2786 = vpop.f32.mrb[0].mxu0
  %2787 = vmatprep.mubr.bf16.mxu0 %v1089
  %2788 = vmatmul.mubr.bf16.gmra.mrb[0].mxu0 %v1088
  %v2789 = vpop.f32.mrb[0].mxu0
  %v2790 = vadd.f32 %v2669, %v2789
  %v2791 = vpop.f32.mrb[0].mxu0
  %v2792 = vpop.f32.mrb[0].mxu0
  %v2793 = vadd.f32 %v2672, %v2792
  %v2794 = vpop.f32.mrb[0].mxu0
  %2795 = vmatprep.mubr.bf16.mxu0 %v1105
  %2796 = vmatmul.mubr.bf16.gmra.mrb[0].mxu0 %v1104
  %v2797 = vpop.f32.mrb[0].mxu0
  %v2798 = vadd.f32 %v2677, %v2797
  %v2799 = vpop.f32.mrb[0].mxu0
  %v2800 = vpop.f32.mrb[0].mxu0
  %v2801 = vadd.f32 %v2680, %v2800
  %v2802 = vpop.f32.mrb[0].mxu0
  %2803 = vmatprep.mubr.bf16.mxu0 %v1121
  %2804 = vmatmul.mubr.bf16.gmra.mrb[0].mxu0 %v1120
  %v2805 = vpop.f32.mrb[0].mxu0
  %v2806 = vadd.f32 %v2685, %v2805
  %v2807 = vpop.f32.mrb[0].mxu0
  %v2808 = vpop.f32.mrb[0].mxu0
  %v2809 = vadd.f32 %v2688, %v2808
  %v2810 = vpop.f32.mrb[0].mxu0
  %2811 = vmatprep.mubr.bf16.mxu0 %v1137
  %2812 = vmatmul.mubr.bf16.gmra.mrb[0].mxu0 %v1136
  %v2813 = vpop.f32.mrb[0].mxu0
  %v2814 = vadd.f32 %v2693, %v2813
  %v2815 = vpop.f32.mrb[0].mxu0
  %v2816 = vpop.f32.mrb[0].mxu0
  %v2817 = vadd.f32 %v2696, %v2816
  %v2818 = vpop.f32.mrb[0].mxu0
  %2819 = vmatprep.mubr.bf16.mxu0 %v1153
  %2820 = vmatmul.mubr.bf16.gmra.mrb[0].mxu0 %v1152
  %v2821 = vpop.f32.mrb[0].mxu0
  %v2822 = vadd.f32 %v2701, %v2821
  %v2823 = vpop.f32.mrb[0].mxu0
  %v2824 = vpop.f32.mrb[0].mxu0
  %v2825 = vadd.f32 %v2704, %v2824
  %v2826 = vpop.f32.mrb[0].mxu0
  %2827 = vdwg.mxu0
  %2828 = vmatprep.subr.bf16.mxu0 0
  %2829 = vmatpush1.bf16.msra.mxu0 %v1942
  %2830 = vmatprep.subr.bf16.mxu0 0
  %2831 = vmatpush1.bf16.msra.mxu0 %v1943
  %2832 = vmatprep.subr.bf16.mxu0 0
  %2833 = vmatpush1.bf16.msra.mxu0 %v1944
  %2834 = vmatprep.subr.bf16.mxu0 0
  %2835 = vmatpush1.bf16.msra.mxu0 %v1945
  %2836 = vmatprep.subr.bf16.mxu0 0
  %2837 = vmatpush1.bf16.msra.mxu0 %v1946
  %2838 = vmatprep.subr.bf16.mxu0 0
  %2839 = vmatpush1.bf16.msra.mxu0 %v1947
  %2840 = vmatprep.subr.bf16.mxu0 0
  %2841 = vmatpush1.bf16.msra.mxu0 %v1948
  %2842 = vmatprep.subr.bf16.mxu0 0
  %2843 = vmatpush1.bf16.msra.mxu0 %v1949
  %2844 = vmatprep.subr.bf16.mxu0 0
  %2845 = vmatpush1.bf16.msra.mxu0 %v1950
  %2846 = vmatprep.subr.bf16.mxu0 0
  %2847 = vmatpush1.bf16.msra.mxu0 %v1951
  %2848 = vmatprep.subr.bf16.mxu0 0
  %2849 = vmatpush1.bf16.msra.mxu0 %v1952
  %2850 = vmatprep.subr.bf16.mxu0 0
  %2851 = vmatpush1.bf16.msra.mxu0 %v1953
  %2852 = vmatprep.subr.bf16.mxu0 0
  %2853 = vmatpush1.bf16.msra.mxu0 %v1954
  %2854 = vmatprep.subr.bf16.mxu0 0
  %2855 = vmatpush1.bf16.msra.mxu0 %v1955
  %2856 = vmatprep.subr.bf16.mxu0 0
  %2857 = vmatpush1.bf16.msra.mxu0 %v1956
  %2858 = vmatprep.subr.bf16.mxu0 0
  %2859 = vmatpush1.bf16.msra.mxu0 %v1957
  %2860 = vmatprep.mubr.bf16.mxu0 %v995
  %2861 = vmatmul.mubr.bf16.gmra.mrb[0].mxu0 %v994
  %v2862 = vpop.f32.mrb[0].mxu0
  %v2863 = vadd.f32 %v2742, %v2862
  %v2864 = vpop.f32.mrb[0].mxu0
  %v2865 = vpop.f32.mrb[0].mxu0
  %v2866 = vadd.f32 %v2745, %v2865
  %v2867 = vpop.f32.mrb[0].mxu0
  %2868 = vmatprep.mubr.bf16.mxu0 %v1011
  %2869 = vmatmul.mubr.bf16.gmra.mrb[0].mxu0 %v1010
  %v2870 = vpop.f32.mrb[0].mxu0
  %v2871 = vadd.f32 %v2750, %v2870
  %v2872 = vpop.f32.mrb[0].mxu0
  %v2873 = vpop.f32.mrb[0].mxu0
  %v2874 = vadd.f32 %v2753, %v2873
  %v2875 = vpop.f32.mrb[0].mxu0
  %2876 = vmatprep.mubr.bf16.mxu0 %v1027
  %2877 = vmatmul.mubr.bf16.gmra.mrb[0].mxu0 %v1026
  %v2878 = vpop.f32.mrb[0].mxu0
  %v2879 = vadd.f32 %v2758, %v2878
  %v2880 = vpop.f32.mrb[0].mxu0
  %v2881 = vpop.f32.mrb[0].mxu0
  %v2882 = vadd.f32 %v2761, %v2881
  %v2883 = vpop.f32.mrb[0].mxu0
  %2884 = vmatprep.mubr.bf16.mxu0 %v1043
  %2885 = vmatmul.mubr.bf16.gmra.mrb[0].mxu0 %v1042
  %v2886 = vpop.f32.mrb[0].mxu0
  %v2887 = vadd.f32 %v2766, %v2886
  %v2888 = vpop.f32.mrb[0].mxu0
  %v2889 = vpop.f32.mrb[0].mxu0
  %v2890 = vadd.f32 %v2769, %v2889
  %v2891 = vpop.f32.mrb[0].mxu0
  %2892 = vmatprep.mubr.bf16.mxu0 %v1059
  %2893 = vmatmul.mubr.bf16.gmra.mrb[0].mxu0 %v1058
  %v2894 = vpop.f32.mrb[0].mxu0
  %v2895 = vadd.f32 %v2774, %v2894
  %v2896 = vpop.f32.mrb[0].mxu0
  %v2897 = vpop.f32.mrb[0].mxu0
  %v2898 = vadd.f32 %v2777, %v2897
  %v2899 = vpop.f32.mrb[0].mxu0
  %2900 = vmatprep.mubr.bf16.mxu0 %v1075
  %2901 = vmatmul.mubr.bf16.gmra.mrb[0].mxu0 %v1074
  %v2902 = vpop.f32.mrb[0].mxu0
  %v2903 = vadd.f32 %v2782, %v2902
  %v2904 = vpop.f32.mrb[0].mxu0
  %v2905 = vpop.f32.mrb[0].mxu0
  %v2906 = vadd.f32 %v2785, %v2905
  %v2907 = vpop.f32.mrb[0].mxu0
  %2908 = vmatprep.mubr.bf16.mxu0 %v1091
  %2909 = vmatmul.mubr.bf16.gmra.mrb[0].mxu0 %v1090
  %v2910 = vpop.f32.mrb[0].mxu0
  %v2911 = vadd.f32 %v2790, %v2910
  %v2912 = vpop.f32.mrb[0].mxu0
  %v2913 = vpop.f32.mrb[0].mxu0
  %v2914 = vadd.f32 %v2793, %v2913
  %v2915 = vpop.f32.mrb[0].mxu0
  %2916 = vmatprep.mubr.bf16.mxu0 %v1107
  %2917 = vmatmul.mubr.bf16.gmra.mrb[0].mxu0 %v1106
  %v2918 = vpop.f32.mrb[0].mxu0
  %v2919 = vadd.f32 %v2798, %v2918
  %v2920 = vpop.f32.mrb[0].mxu0
  %v2921 = vpop.f32.mrb[0].mxu0
  %v2922 = vadd.f32 %v2801, %v2921
  %v2923 = vpop.f32.mrb[0].mxu0
  %2924 = vmatprep.mubr.bf16.mxu0 %v1123
  %2925 = vmatmul.mubr.bf16.gmra.mrb[0].mxu0 %v1122
  %v2926 = vpop.f32.mrb[0].mxu0
  %v2927 = vadd.f32 %v2806, %v2926
  %v2928 = vpop.f32.mrb[0].mxu0
  %v2929 = vpop.f32.mrb[0].mxu0
  %v2930 = vadd.f32 %v2809, %v2929
  %v2931 = vpop.f32.mrb[0].mxu0
  %2932 = vmatprep.mubr.bf16.mxu0 %v1139
  %2933 = vmatmul.mubr.bf16.gmra.mrb[0].mxu0 %v1138
  %v2934 = vpop.f32.mrb[0].mxu0
  %v2935 = vadd.f32 %v2814, %v2934
  %v2936 = vpop.f32.mrb[0].mxu0
  %v2937 = vpop.f32.mrb[0].mxu0
  %v2938 = vadd.f32 %v2817, %v2937
  %v2939 = vpop.f32.mrb[0].mxu0
  %2940 = vmatprep.mubr.bf16.mxu0 %v1155
  %2941 = vmatmul.mubr.bf16.gmra.mrb[0].mxu0 %v1154
  %v2942 = vpop.f32.mrb[0].mxu0
  %v2943 = vadd.f32 %v2822, %v2942
  %v2944 = vpop.f32.mrb[0].mxu0
  %v2945 = vpop.f32.mrb[0].mxu0
  %v2946 = vadd.f32 %v2825, %v2945
  %v2947 = vpop.f32.mrb[0].mxu0
  %2948 = vdwg.mxu0
  %2949 = vmatprep.subr.bf16.mxu0 0
  %2950 = vmatpush1.bf16.msra.mxu0 %v1958
  %2951 = vmatprep.subr.bf16.mxu0 0
  %2952 = vmatpush1.bf16.msra.mxu0 %v1959
  %2953 = vmatprep.subr.bf16.mxu0 0
  %2954 = vmatpush1.bf16.msra.mxu0 %v1960
  %2955 = vmatprep.subr.bf16.mxu0 0
  %2956 = vmatpush1.bf16.msra.mxu0 %v1961
  %2957 = vmatprep.subr.bf16.mxu0 0
  %2958 = vmatpush1.bf16.msra.mxu0 %v1962
  %2959 = vmatprep.subr.bf16.mxu0 0
  %2960 = vmatpush1.bf16.msra.mxu0 %v1963
  %2961 = vmatprep.subr.bf16.mxu0 0
  %2962 = vmatpush1.bf16.msra.mxu0 %v1964
  %2963 = vmatprep.subr.bf16.mxu0 0
  %2964 = vmatpush1.bf16.msra.mxu0 %v1965
  %2965 = vmatprep.subr.bf16.mxu0 0
  %2966 = vmatpush1.bf16.msra.mxu0 %v1966
  %2967 = vmatprep.subr.bf16.mxu0 0
  %2968 = vmatpush1.bf16.msra.mxu0 %v1967
  %2969 = vmatprep.subr.bf16.mxu0 0
  %2970 = vmatpush1.bf16.msra.mxu0 %v1968
  %2971 = vmatprep.subr.bf16.mxu0 0
  %2972 = vmatpush1.bf16.msra.mxu0 %v1969
  %2973 = vmatprep.subr.bf16.mxu0 0
  %2974 = vmatpush1.bf16.msra.mxu0 %v1970
  %2975 = vmatprep.subr.bf16.mxu0 0
  %2976 = vmatpush1.bf16.msra.mxu0 %v1971
  %2977 = vmatprep.subr.bf16.mxu0 0
  %2978 = vmatpush1.bf16.msra.mxu0 %v1972
  %2979 = vmatprep.subr.bf16.mxu0 0
  %2980 = vmatpush1.bf16.msra.mxu0 %v1973
  %2981 = vmatprep.mubr.bf16.mxu0 %v997
  %2982 = vmatmul.mubr.bf16.gmra.mrb[0].mxu0 %v996
  %v2983 = vpop.f32.mrb[0].mxu0
  %v2984 = vadd.f32 %v2863, %v2983
  %v2985 = vpop.f32.mrb[0].mxu0
  %v2986 = vpop.f32.mrb[0].mxu0
  %v2987 = vadd.f32 %v2866, %v2986
  %v2988 = vpop.f32.mrb[0].mxu0
  %2989 = vmatprep.mubr.bf16.mxu0 %v1013
  %2990 = vmatmul.mubr.bf16.gmra.mrb[0].mxu0 %v1012
  %v2991 = vpop.f32.mrb[0].mxu0
  %v2992 = vadd.f32 %v2871, %v2991
  %v2993 = vpop.f32.mrb[0].mxu0
  %v2994 = vpop.f32.mrb[0].mxu0
  %v2995 = vadd.f32 %v2874, %v2994
  %v2996 = vpop.f32.mrb[0].mxu0
  %2997 = vmatprep.mubr.bf16.mxu0 %v1029
  %2998 = vmatmul.mubr.bf16.gmra.mrb[0].mxu0 %v1028
  %v2999 = vpop.f32.mrb[0].mxu0
  %v3000 = vadd.f32 %v2879, %v2999
  %v3001 = vpop.f32.mrb[0].mxu0
  %v3002 = vpop.f32.mrb[0].mxu0
  %v3003 = vadd.f32 %v2882, %v3002
  %v3004 = vpop.f32.mrb[0].mxu0
  %3005 = vmatprep.mubr.bf16.mxu0 %v1045
  %3006 = vmatmul.mubr.bf16.gmra.mrb[0].mxu0 %v1044
  %v3007 = vpop.f32.mrb[0].mxu0
  %v3008 = vadd.f32 %v2887, %v3007
  %v3009 = vpop.f32.mrb[0].mxu0
  %v3010 = vpop.f32.mrb[0].mxu0
  %v3011 = vadd.f32 %v2890, %v3010
  %v3012 = vpop.f32.mrb[0].mxu0
  %3013 = vmatprep.mubr.bf16.mxu0 %v1061
  %3014 = vmatmul.mubr.bf16.gmra.mrb[0].mxu0 %v1060
  %v3015 = vpop.f32.mrb[0].mxu0
  %v3016 = vadd.f32 %v2895, %v3015
  %v3017 = vpop.f32.mrb[0].mxu0
  %v3018 = vpop.f32.mrb[0].mxu0
  %v3019 = vadd.f32 %v2898, %v3018
  %v3020 = vpop.f32.mrb[0].mxu0
  %3021 = vmatprep.mubr.bf16.mxu0 %v1077
  %3022 = vmatmul.mubr.bf16.gmra.mrb[0].mxu0 %v1076
  %v3023 = vpop.f32.mrb[0].mxu0
  %v3024 = vadd.f32 %v2903, %v3023
  %v3025 = vpop.f32.mrb[0].mxu0
  %v3026 = vpop.f32.mrb[0].mxu0
  %v3027 = vadd.f32 %v2906, %v3026
  %v3028 = vpop.f32.mrb[0].mxu0
  %3029 = vmatprep.mubr.bf16.mxu0 %v1093
  %3030 = vmatmul.mubr.bf16.gmra.mrb[0].mxu0 %v1092
  %v3031 = vpop.f32.mrb[0].mxu0
  %v3032 = vadd.f32 %v2911, %v3031
  %v3033 = vpop.f32.mrb[0].mxu0
  %v3034 = vpop.f32.mrb[0].mxu0
  %v3035 = vadd.f32 %v2914, %v3034
  %v3036 = vpop.f32.mrb[0].mxu0
  %3037 = vmatprep.mubr.bf16.mxu0 %v1109
  %3038 = vmatmul.mubr.bf16.gmra.mrb[0].mxu0 %v1108
  %v3039 = vpop.f32.mrb[0].mxu0
  %v3040 = vadd.f32 %v2919, %v3039
  %v3041 = vpop.f32.mrb[0].mxu0
  %v3042 = vpop.f32.mrb[0].mxu0
  %v3043 = vadd.f32 %v2922, %v3042
  %v3044 = vpop.f32.mrb[0].mxu0
  %3045 = vmatprep.mubr.bf16.mxu0 %v1125
  %3046 = vmatmul.mubr.bf16.gmra.mrb[0].mxu0 %v1124
  %v3047 = vpop.f32.mrb[0].mxu0
  %v3048 = vadd.f32 %v2927, %v3047
  %v3049 = vpop.f32.mrb[0].mxu0
  %v3050 = vpop.f32.mrb[0].mxu0
  %v3051 = vadd.f32 %v2930, %v3050
  %v3052 = vpop.f32.mrb[0].mxu0
  %3053 = vmatprep.mubr.bf16.mxu0 %v1141
  %3054 = vmatmul.mubr.bf16.gmra.mrb[0].mxu0 %v1140
  %v3055 = vpop.f32.mrb[0].mxu0
  %v3056 = vadd.f32 %v2935, %v3055
  %v3057 = vpop.f32.mrb[0].mxu0
  %v3058 = vpop.f32.mrb[0].mxu0
  %v3059 = vadd.f32 %v2938, %v3058
  %v3060 = vpop.f32.mrb[0].mxu0
  %3061 = vmatprep.mubr.bf16.mxu0 %v1157
  %3062 = vmatmul.mubr.bf16.gmra.mrb[0].mxu0 %v1156
  %v3063 = vpop.f32.mrb[0].mxu0
  %v3064 = vadd.f32 %v2943, %v3063
  %v3065 = vpop.f32.mrb[0].mxu0
  %v3066 = vpop.f32.mrb[0].mxu0
  %v3067 = vadd.f32 %v2946, %v3066
  %v3068 = vpop.f32.mrb[0].mxu0
  %3069 = vdwg.mxu0
  %v3070 = vmax.f32 %v2984, 0.0
  %v3071 = vmax.f32 %v2987, 0.0
  %v3072 = vmax.f32 %v2992, 0.0
  %v3073 = vmax.f32 %v2995, 0.0
  %v3074 = vmax.f32 %v3000, 0.0
  %v3075 = vmax.f32 %v3003, 0.0
  %v3076 = vmax.f32 %v3008, 0.0
  %v3077 = vmax.f32 %v3011, 0.0
  %v3078 = vmax.f32 %v3016, 0.0
  %v3079 = vmax.f32 %v3019, 0.0
  %v3080 = vmax.f32 %v3024, 0.0
  %v3081 = vmax.f32 %v3027, 0.0
  %v3082 = vmax.f32 %v3032, 0.0
  %v3083 = vmax.f32 %v3035, 0.0
  %v3084 = vmax.f32 %v3040, 0.0
  %v3085 = vmax.f32 %v3043, 0.0
  %v3086 = vmax.f32 %v3048, 0.0
  %v3087 = vmax.f32 %v3051, 0.0
  %v3088 = vmax.f32 %v3056, 0.0
  %v3089 = vmax.f32 %v3059, 0.0
  %v3090 = vmax.f32 %v3064, 0.0
  %v3091 = vmax.f32 %v3067, 0.0
  %3092 = vst [vmem:[%s3] sm:$0xff] %v3070
  %3093 = vst [vmem:[%s3 + $0x8] sm:$0xff] %v3071
  %3094 = vst [vmem:[%s3 + $0x10] sm:$0xff] %v3072
  %3095 = vst [vmem:[%s3 + $0x18] sm:$0xff] %v3073
  %3096 = vst [vmem:[%s3 + $0x20] sm:$0xff] %v3074
  %3097 = vst [vmem:[%s3 + $0x28] sm:$0xff] %v3075
  %3098 = vst [vmem:[%s3 + $0x30] sm:$0xff] %v3076
  %3099 = vst [vmem:[%s3 + $0x38] sm:$0xff] %v3077
  %3100 = vst [vmem:[%s3 + $0x40] sm:$0xff] %v3078
  %3101 = vst [vmem:[%s3 + $0x48] sm:$0xff] %v3079
  %3102 = vst [vmem:[%s3 + $0x50] sm:$0xff] %v3080
  %3103 = vst [vmem:[%s3 + $0x58] sm:$0xff] %v3081
  %3104 = vst [vmem:[%s3 + $0x60] sm:$0xff] %v3082
  %3105 = vst [vmem:[%s3 + $0x68] sm:$0xff] %v3083
  %3106 = vst [vmem:[%s3 + $0x70] sm:$0xff] %v3084
  %3107 = vst [vmem:[%s3 + $0x78] sm:$0xff] %v3085
  %3108 = vst [vmem:[%s3 + $0x80] sm:$0xff] %v3086
  %3109 = vst [vmem:[%s3 + $0x88] sm:$0xff] %v3087
  %3110 = vst [vmem:[%s3 + $0x90] sm:$0xff] %v3088
  %3111 = vst [vmem:[%s3 + $0x98] sm:$0xff] %v3089
  %3112 = vst [vmem:[%s3 + $0xa0] sm:$0xff] %v3090
  %3113 = vst [vmem:[%s3 + $0xa8] sm:$0xff] %v3091
  // Predicated region
  $region14: #{dueling_cnn_dqn_forward.6} parent=0 // pred_check
    _
  $region15: #{dueling_cnn_dqn_forward.6} parent=0 // pred_check_branch
    %3115 = sbr.rel (0) target = $region17
  $region16: #{dueling_cnn_dqn_forward.6} parent=0 // pred_region
    _
  $region17: #{dueling_cnn_dqn_forward.6} parent=0 // pred_fallthru
    _
  // Predicated region
  $region18: #{dueling_cnn_dqn_forward.6} parent=0 // pred_check
    _
  $region19: #{dueling_cnn_dqn_forward.6} parent=0 // pred_check_branch
    %3117 = sbr.rel (0) target = $region21
  $region20: #{dueling_cnn_dqn_forward.6} parent=0 // pred_region
    _
  $region21: #{dueling_cnn_dqn_forward.6} parent=0 // pred_fallthru
    _

// kernel: dueling_cnn_dqn_forward.7
$region0: #{dueling_cnn_dqn_forward.7}
  #allocation0 [shape = 'u32[]', space=smem, size = 0x4, offset = 0x4, fixed_abs, tag = 'smem constant byte address 0x4 - core index']
  #allocation1 [shape = 'u32[144,128]{1,0:T(1,128)}', space=vmem, size = 0x12000, scoped, tag = 'internal scratch']
  %s0 = inlined_call_operand.vmem [shape: bf16[112,1152], index: 0, kind: input, shape index: {}]
  %s1 = inlined_call_operand.vmem [shape: bf16[1152,128], index: 1, kind: input, shape index: {}]
  %s2 = inlined_call_operand.vmem [shape: f32[1,128], index: 2, kind: input, shape index: {}]
  %s3 = inlined_call_operand.vmem [shape: f32[112,128], index: 3, kind: output, shape index: {}]
  %s4 = sld [smem:[#allocation0]]
  $region22: #{dueling_cnn_dqn_forward.7} parent=0
    _
  %s6 = ssub.s32 1, %s4
  %s7 = scalar_select 0, %s6, %s4
  // Predicated region
  $region2: #{dueling_cnn_dqn_forward.7} parent=0 // pred_check
    _
  $region3: #{dueling_cnn_dqn_forward.7} parent=0 // pred_check_branch
    %9 = sbr.rel (0) target = $region5
  $region4: #{dueling_cnn_dqn_forward.7} parent=0 // pred_region
    _
  $region5: #{dueling_cnn_dqn_forward.7} parent=0 // pred_fallthru
    _
  // Predicated region
  $region6: #{dueling_cnn_dqn_forward.7} parent=0 // pred_check
    _
  $region7: #{dueling_cnn_dqn_forward.7} parent=0 // pred_check_branch
    %11 = sbr.rel (0) target = $region9
  $region8: #{dueling_cnn_dqn_forward.7} parent=0 // pred_region
    _
  $region9: #{dueling_cnn_dqn_forward.7} parent=0 // pred_fallthru
    _
  // Predicated region
  $region10: #{dueling_cnn_dqn_forward.7} parent=0 // pred_check
    _
  $region11: #{dueling_cnn_dqn_forward.7} parent=0 // pred_check_branch
    %13 = sbr.rel (0) target = $region13
  $region12: #{dueling_cnn_dqn_forward.7} parent=0 // pred_region
    _
  $region13: #{dueling_cnn_dqn_forward.7} parent=0 // pred_fallthru
    _
  %v15 = vld [vmem:[%s0] sm:$0xff]
  %v16 = vld [vmem:[%s0 + $0x8] sm:$0xff]
  %v17 = vld [vmem:[%s0 + $0x10] sm:$0xff]
  %v18 = vld [vmem:[%s0 + $0x18] sm:$0xff]
  %v19 = vld [vmem:[%s0 + $0x20] sm:$0xf]
  %v20 = vld [vmem:[%s0 + $0x24] sm:$0xff]
  %v21 = vld [vmem:[%s0 + $0x2c] sm:$0xff]
  %v22 = vld [vmem:[%s0 + $0x34] sm:$0xff]
  %v23 = vld [vmem:[%s0 + $0x3c] sm:$0xff]
  %v24 = vld [vmem:[%s0 + $0x44] sm:$0xf]
  %v25 = vld [vmem:[%s0 + $0x48] sm:$0xff]
  %v26 = vld [vmem:[%s0 + $0x50] sm:$0xff]
  %v27 = vld [vmem:[%s0 + $0x58] sm:$0xff]
  %v28 = vld [vmem:[%s0 + $0x60] sm:$0xff]
  %v29 = vld [vmem:[%s0 + $0x68] sm:$0xf]
  %v30 = vld [vmem:[%s0 + $0x6c] sm:$0xff]
  %v31 = vld [vmem:[%s0 + $0x74] sm:$0xff]
  %v32 = vld [vmem:[%s0 + $0x7c] sm:$0xff]
  %v33 = vld [vmem:[%s0 + $0x84] sm:$0xff]
  %v34 = vld [vmem:[%s0 + $0x8c] sm:$0xf]
  %v35 = vld [vmem:[%s0 + $0x90] sm:$0xff]
  %v36 = vld [vmem:[%s0 + $0x98] sm:$0xff]
  %v37 = vld [vmem:[%s0 + $0xa0] sm:$0xff]
  %v38 = vld [vmem:[%s0 + $0xa8] sm:$0xff]
  %v39 = vld [vmem:[%s0 + $0xb0] sm:$0xf]
  %v40 = vld [vmem:[%s0 + $0xb4] sm:$0xff]
  %v41 = vld [vmem:[%s0 + $0xbc] sm:$0xff]
  %v42 = vld [vmem:[%s0 + $0xc4] sm:$0xff]
  %v43 = vld [vmem:[%s0 + $0xcc] sm:$0xff]
  %v44 = vld [vmem:[%s0 + $0xd4] sm:$0xf]
  %v45 = vld [vmem:[%s0 + $0xd8] sm:$0xff]
  %v46 = vld [vmem:[%s0 + $0xe0] sm:$0xff]
  %v47 = vld [vmem:[%s0 + $0xe8] sm:$0xff]
  %v48 = vld [vmem:[%s0 + $0xf0] sm:$0xff]
  %v49 = vld [vmem:[%s0 + $0xf8] sm:$0xf]
  %v50 = vld [vmem:[%s0 + $0xfc] sm:$0xff]
  %v51 = vld [vmem:[%s0 + $0x104] sm:$0xff]
  %v52 = vld [vmem:[%s0 + $0x10c] sm:$0xff]
  %v53 = vld [vmem:[%s0 + $0x114] sm:$0xff]
  %v54 = vld [vmem:[%s0 + $0x11c] sm:$0xf]
  %v55 = vld [vmem:[%s0 + $0x120] sm:$0xff]
  %v56 = vld [vmem:[%s0 + $0x128] sm:$0xff]
  %v57 = vld [vmem:[%s0 + $0x130] sm:$0xff]
  %v58 = vld [vmem:[%s0 + $0x138] sm:$0xff]
  %v59 = vld [vmem:[%s0 + $0x140] sm:$0xf]
  %v60 = vld [vmem:[%s0 + $0x144] sm:$0xff]
  %v61 = vld [vmem:[%s0 + $0x14c] sm:$0xff]
  %v62 = vld [vmem:[%s0 + $0x154] sm:$0xff]
  %v63 = vld [vmem:[%s0 + $0x15c] sm:$0xff]
  %v64 = vld [vmem:[%s0 + $0x164] sm:$0xf]
  %v65 = vld [vmem:[%s0 + $0x168] sm:$0xff]
  %v66 = vld [vmem:[%s0 + $0x170] sm:$0xff]
  %v67 = vld [vmem:[%s0 + $0x178] sm:$0xff]
  %v68 = vld [vmem:[%s0 + $0x180] sm:$0xff]
  %v69 = vld [vmem:[%s0 + $0x188] sm:$0xf]
  %v70 = vld [vmem:[%s0 + $0x18c] sm:$0xff]
  %v71 = vld [vmem:[%s0 + $0x194] sm:$0xff]
  %v72 = vld [vmem:[%s0 + $0x19c] sm:$0xff]
  %v73 = vld [vmem:[%s0 + $0x1a4] sm:$0xff]
  %v74 = vld [vmem:[%s0 + $0x1ac] sm:$0xf]
  %v75 = vld [vmem:[%s0 + $0x1b0] sm:$0xff]
  %v76 = vld [vmem:[%s0 + $0x1b8] sm:$0xff]
  %v77 = vld [vmem:[%s0 + $0x1c0] sm:$0xff]
  %v78 = vld [vmem:[%s0 + $0x1c8] sm:$0xff]
  %v79 = vld [vmem:[%s0 + $0x1d0] sm:$0xf]
  %v80 = vld [vmem:[%s0 + $0x1d4] sm:$0xff]
  %v81 = vld [vmem:[%s0 + $0x1dc] sm:$0xff]
  %v82 = vld [vmem:[%s0 + $0x1e4] sm:$0xff]
  %v83 = vld [vmem:[%s0 + $0x1ec] sm:$0xff]
  %v84 = vld [vmem:[%s0 + $0x1f4] sm:$0xf]
  %v85 = vld [vmem:[%s1] sm:$0xf]
  %v86 = vld [vmem:[%s1 + $0x4] sm:$0xf]
  %v87 = vld [vmem:[%s1 + $0x8] sm:$0xf]
  %v88 = vld [vmem:[%s1 + $0xc] sm:$0xf]
  %v89 = vld [vmem:[%s1 + $0x10] sm:$0xf]
  %v90 = vld [vmem:[%s1 + $0x14] sm:$0xf]
  %v91 = vld [vmem:[%s1 + $0x18] sm:$0xf]
  %v92 = vld [vmem:[%s1 + $0x1c] sm:$0xf]
  %v93 = vld [vmem:[%s1 + $0x20] sm:$0xf]
  %v94 = vld [vmem:[%s1 + $0x24] sm:$0xf]
  %v95 = vld [vmem:[%s1 + $0x28] sm:$0xf]
  %v96 = vld [vmem:[%s1 + $0x2c] sm:$0xf]
  %v97 = vld [vmem:[%s1 + $0x30] sm:$0xf]
  %v98 = vld [vmem:[%s1 + $0x34] sm:$0xf]
  %v99 = vld [vmem:[%s1 + $0x38] sm:$0xf]
  %v100 = vld [vmem:[%s1 + $0x3c] sm:$0xf]
  %v101 = vld [vmem:[%s1 + $0x40] sm:$0xf]
  %v102 = vld [vmem:[%s1 + $0x44] sm:$0xf]
  %v103 = vld [vmem:[%s1 + $0x48] sm:$0xf]
  %v104 = vld [vmem:[%s1 + $0x4c] sm:$0xf]
  %v105 = vld [vmem:[%s1 + $0x50] sm:$0xf]
  %v106 = vld [vmem:[%s1 + $0x54] sm:$0xf]
  %v107 = vld [vmem:[%s1 + $0x58] sm:$0xf]
  %v108 = vld [vmem:[%s1 + $0x5c] sm:$0xf]
  %v109 = vld [vmem:[%s1 + $0x60] sm:$0xf]
  %v110 = vld [vmem:[%s1 + $0x64] sm:$0xf]
  %v111 = vld [vmem:[%s1 + $0x68] sm:$0xf]
  %v112 = vld [vmem:[%s1 + $0x6c] sm:$0xf]
  %v113 = vld [vmem:[%s1 + $0x70] sm:$0xf]
  %v114 = vld [vmem:[%s1 + $0x74] sm:$0xf]
  %v115 = vld [vmem:[%s1 + $0x78] sm:$0xf]
  %v116 = vld [vmem:[%s1 + $0x7c] sm:$0xf]
  %v117 = vld [vmem:[%s1 + $0x80] sm:$0xf]
  %v118 = vld [vmem:[%s1 + $0x84] sm:$0xf]
  %v119 = vld [vmem:[%s1 + $0x88] sm:$0xf]
  %v120 = vld [vmem:[%s1 + $0x8c] sm:$0xf]
  %v121 = vld [vmem:[%s1 + $0x90] sm:$0xf]
  %v122 = vld [vmem:[%s1 + $0x94] sm:$0xf]
  %v123 = vld [vmem:[%s1 + $0x98] sm:$0xf]
  %v124 = vld [vmem:[%s1 + $0x9c] sm:$0xf]
  %v125 = vld [vmem:[%s1 + $0xa0] sm:$0xf]
  %v126 = vld [vmem:[%s1 + $0xa4] sm:$0xf]
  %v127 = vld [vmem:[%s1 + $0xa8] sm:$0xf]
  %v128 = vld [vmem:[%s1 + $0xac] sm:$0xf]
  %v129 = vld [vmem:[%s1 + $0xb0] sm:$0xf]
  %v130 = vld [vmem:[%s1 + $0xb4] sm:$0xf]
  %v131 = vld [vmem:[%s1 + $0xb8] sm:$0xf]
  %v132 = vld [vmem:[%s1 + $0xbc] sm:$0xf]
  %v133 = vld [vmem:[%s1 + $0xc0] sm:$0xf]
  %v134 = vld [vmem:[%s1 + $0xc4] sm:$0xf]
  %v135 = vld [vmem:[%s1 + $0xc8] sm:$0xf]
  %v136 = vld [vmem:[%s1 + $0xcc] sm:$0xf]
  %v137 = vld [vmem:[%s1 + $0xd0] sm:$0xf]
  %v138 = vld [vmem:[%s1 + $0xd4] sm:$0xf]
  %v139 = vld [vmem:[%s1 + $0xd8] sm:$0xf]
  %v140 = vld [vmem:[%s1 + $0xdc] sm:$0xf]
  %v141 = vld [vmem:[%s1 + $0xe0] sm:$0xf]
  %v142 = vld [vmem:[%s1 + $0xe4] sm:$0xf]
  %v143 = vld [vmem:[%s1 + $0xe8] sm:$0xf]
  %v144 = vld [vmem:[%s1 + $0xec] sm:$0xf]
  %v145 = vld [vmem:[%s1 + $0xf0] sm:$0xf]
  %v146 = vld [vmem:[%s1 + $0xf4] sm:$0xf]
  %v147 = vld [vmem:[%s1 + $0xf8] sm:$0xf]
  %v148 = vld [vmem:[%s1 + $0xfc] sm:$0xf]
  %v149 = vld [vmem:[%s1 + $0x100] sm:$0xf]
  %v150 = vld [vmem:[%s1 + $0x104] sm:$0xf]
  %v151 = vld [vmem:[%s1 + $0x108] sm:$0xf]
  %v152 = vld [vmem:[%s1 + $0x10c] sm:$0xf]
  %v153 = vld [vmem:[%s1 + $0x110] sm:$0xf]
  %v154 = vld [vmem:[%s1 + $0x114] sm:$0xf]
  %v155 = vld [vmem:[%s1 + $0x118] sm:$0xf]
  %v156 = vld [vmem:[%s1 + $0x11c] sm:$0xf]
  %v157 = vld [vmem:[%s1 + $0x120] sm:$0xf]
  %v158 = vld [vmem:[%s1 + $0x124] sm:$0xf]
  %v159 = vld [vmem:[%s1 + $0x128] sm:$0xf]
  %v160 = vld [vmem:[%s1 + $0x12c] sm:$0xf]
  %v161 = vld [vmem:[%s1 + $0x130] sm:$0xf]
  %v162 = vld [vmem:[%s1 + $0x134] sm:$0xf]
  %v163 = vld [vmem:[%s1 + $0x138] sm:$0xf]
  %v164 = vld [vmem:[%s1 + $0x13c] sm:$0xf]
  %v165 = vld [vmem:[%s1 + $0x140] sm:$0xf]
  %v166 = vld [vmem:[%s1 + $0x144] sm:$0xf]
  %v167 = vld [vmem:[%s1 + $0x148] sm:$0xf]
  %v168 = vld [vmem:[%s1 + $0x14c] sm:$0xf]
  %v169 = vld [vmem:[%s1 + $0x150] sm:$0xf]
  %v170 = vld [vmem:[%s1 + $0x154] sm:$0xf]
  %v171 = vld [vmem:[%s1 + $0x158] sm:$0xf]
  %v172 = vld [vmem:[%s1 + $0x15c] sm:$0xf]
  %v173 = vld [vmem:[%s1 + $0x160] sm:$0xf]
  %v174 = vld [vmem:[%s1 + $0x164] sm:$0xf]
  %v175 = vld [vmem:[%s1 + $0x168] sm:$0xf]
  %v176 = vld [vmem:[%s1 + $0x16c] sm:$0xf]
  %v177 = vld [vmem:[%s1 + $0x170] sm:$0xf]
  %v178 = vld [vmem:[%s1 + $0x174] sm:$0xf]
  %v179 = vld [vmem:[%s1 + $0x178] sm:$0xf]
  %v180 = vld [vmem:[%s1 + $0x17c] sm:$0xf]
  %v181 = vld [vmem:[%s1 + $0x180] sm:$0xf]
  %v182 = vld [vmem:[%s1 + $0x184] sm:$0xf]
  %v183 = vld [vmem:[%s1 + $0x188] sm:$0xf]
  %v184 = vld [vmem:[%s1 + $0x18c] sm:$0xf]
  %v185 = vld [vmem:[%s1 + $0x190] sm:$0xf]
  %v186 = vld [vmem:[%s1 + $0x194] sm:$0xf]
  %v187 = vld [vmem:[%s1 + $0x198] sm:$0xf]
  %v188 = vld [vmem:[%s1 + $0x19c] sm:$0xf]
  %v189 = vld [vmem:[%s1 + $0x1a0] sm:$0xf]
  %v190 = vld [vmem:[%s1 + $0x1a4] sm:$0xf]
  %v191 = vld [vmem:[%s1 + $0x1a8] sm:$0xf]
  %v192 = vld [vmem:[%s1 + $0x1ac] sm:$0xf]
  %v193 = vld [vmem:[%s1 + $0x1b0] sm:$0xf]
  %v194 = vld [vmem:[%s1 + $0x1b4] sm:$0xf]
  %v195 = vld [vmem:[%s1 + $0x1b8] sm:$0xf]
  %v196 = vld [vmem:[%s1 + $0x1bc] sm:$0xf]
  %v197 = vld [vmem:[%s1 + $0x1c0] sm:$0xf]
  %v198 = vld [vmem:[%s1 + $0x1c4] sm:$0xf]
  %v199 = vld [vmem:[%s1 + $0x1c8] sm:$0xf]
  %v200 = vld [vmem:[%s1 + $0x1cc] sm:$0xf]
  %v201 = vld [vmem:[%s1 + $0x1d0] sm:$0xf]
  %v202 = vld [vmem:[%s1 + $0x1d4] sm:$0xf]
  %v203 = vld [vmem:[%s1 + $0x1d8] sm:$0xf]
  %v204 = vld [vmem:[%s1 + $0x1dc] sm:$0xf]
  %v205 = vld [vmem:[%s1 + $0x1e0] sm:$0xf]
  %v206 = vld [vmem:[%s1 + $0x1e4] sm:$0xf]
  %v207 = vld [vmem:[%s1 + $0x1e8] sm:$0xf]
  %v208 = vld [vmem:[%s1 + $0x1ec] sm:$0xf]
  %v209 = vld [vmem:[%s1 + $0x1f0] sm:$0xf]
  %v210 = vld [vmem:[%s1 + $0x1f4] sm:$0xf]
  %v211 = vld [vmem:[%s1 + $0x1f8] sm:$0xf]
  %v212 = vld [vmem:[%s1 + $0x1fc] sm:$0xf]
  %v213 = vld [vmem:[%s1 + $0x200] sm:$0xf]
  %v214 = vld [vmem:[%s1 + $0x204] sm:$0xf]
  %v215 = vld [vmem:[%s1 + $0x208] sm:$0xf]
  %v216 = vld [vmem:[%s1 + $0x20c] sm:$0xf]
  %v217 = vld [vmem:[%s1 + $0x210] sm:$0xf]
  %v218 = vld [vmem:[%s1 + $0x214] sm:$0xf]
  %v219 = vld [vmem:[%s1 + $0x218] sm:$0xf]
  %v220 = vld [vmem:[%s1 + $0x21c] sm:$0xf]
  %v221 = vld [vmem:[%s1 + $0x220] sm:$0xf]
  %v222 = vld [vmem:[%s1 + $0x224] sm:$0xf]
  %v223 = vld [vmem:[%s1 + $0x228] sm:$0xf]
  %v224 = vld [vmem:[%s1 + $0x22c] sm:$0xf]
  %v225 = vld [vmem:[%s1 + $0x230] sm:$0xf]
  %v226 = vld [vmem:[%s1 + $0x234] sm:$0xf]
  %v227 = vld [vmem:[%s1 + $0x238] sm:$0xf]
  %v228 = vld [vmem:[%s1 + $0x23c] sm:$0xf]
  %v229 = vld [vmem:[%s2] sm:$0x1]
  %v231 = vlaneseq
  %v232 = vshrl.u32 %v231, 7
  %v233 = vsub.s32 0, %v232
  %v234 = vrot.slane %v229, %v233
  %v306 = vunpack.c.l.b16 %v15
  %v307 = vunpack.c.h.b16 %v15
  %v308 = vunpack.c.l.b16 %v16
  %v309 = vunpack.c.h.b16 %v16
  %v310 = vunpack.c.l.b16 %v17
  %v311 = vunpack.c.h.b16 %v17
  %v312 = vunpack.c.l.b16 %v18
  %v313 = vunpack.c.h.b16 %v18
  %v314 = vunpack.c.l.b16 %v19
  %v315 = vunpack.c.l.b16 %v20
  %v316 = vunpack.c.h.b16 %v20
  %v317 = vunpack.c.l.b16 %v21
  %v318 = vunpack.c.h.b16 %v21
  %v319 = vunpack.c.l.b16 %v22
  %v320 = vunpack.c.h.b16 %v22
  %v321 = vunpack.c.l.b16 %v23
  %v322 = vunpack.c.h.b16 %v23
  %v323 = vunpack.c.l.b16 %v24
  %v324 = vunpack.c.l.b16 %v25
  %v325 = vunpack.c.h.b16 %v25
  %v326 = vunpack.c.l.b16 %v26
  %v327 = vunpack.c.h.b16 %v26
  %v328 = vunpack.c.l.b16 %v27
  %v329 = vunpack.c.h.b16 %v27
  %v330 = vunpack.c.l.b16 %v28
  %v331 = vunpack.c.h.b16 %v28
  %v332 = vunpack.c.l.b16 %v29
  %v333 = vunpack.c.l.b16 %v30
  %v334 = vunpack.c.h.b16 %v30
  %v335 = vunpack.c.l.b16 %v31
  %v336 = vunpack.c.h.b16 %v31
  %v337 = vunpack.c.l.b16 %v32
  %v338 = vunpack.c.h.b16 %v32
  %v339 = vunpack.c.l.b16 %v33
  %v340 = vunpack.c.h.b16 %v33
  %v341 = vunpack.c.l.b16 %v34
  %v342 = vunpack.c.l.b16 %v35
  %v343 = vunpack.c.h.b16 %v35
  %v344 = vunpack.c.l.b16 %v36
  %v345 = vunpack.c.h.b16 %v36
  %v346 = vunpack.c.l.b16 %v37
  %v347 = vunpack.c.h.b16 %v37
  %v348 = vunpack.c.l.b16 %v38
  %v349 = vunpack.c.h.b16 %v38
  %v350 = vunpack.c.l.b16 %v39
  %v351 = vunpack.c.l.b16 %v40
  %v352 = vunpack.c.h.b16 %v40
  %v353 = vunpack.c.l.b16 %v41
  %v354 = vunpack.c.h.b16 %v41
  %v355 = vunpack.c.l.b16 %v42
  %v356 = vunpack.c.h.b16 %v42
  %v357 = vunpack.c.l.b16 %v43
  %v358 = vunpack.c.h.b16 %v43
  %v359 = vunpack.c.l.b16 %v44
  %v360 = vunpack.c.l.b16 %v45
  %v361 = vunpack.c.h.b16 %v45
  %v362 = vunpack.c.l.b16 %v46
  %v363 = vunpack.c.h.b16 %v46
  %v364 = vunpack.c.l.b16 %v47
  %v365 = vunpack.c.h.b16 %v47
  %v366 = vunpack.c.l.b16 %v48
  %v367 = vunpack.c.h.b16 %v48
  %v368 = vunpack.c.l.b16 %v49
  %v369 = vunpack.c.l.b16 %v50
  %v370 = vunpack.c.h.b16 %v50
  %v371 = vunpack.c.l.b16 %v51
  %v372 = vunpack.c.h.b16 %v51
  %v373 = vunpack.c.l.b16 %v52
  %v374 = vunpack.c.h.b16 %v52
  %v375 = vunpack.c.l.b16 %v53
  %v376 = vunpack.c.h.b16 %v53
  %v377 = vunpack.c.l.b16 %v54
  %v378 = vunpack.c.l.b16 %v55
  %v379 = vunpack.c.h.b16 %v55
  %v380 = vunpack.c.l.b16 %v56
  %v381 = vunpack.c.h.b16 %v56
  %v382 = vunpack.c.l.b16 %v57
  %v383 = vunpack.c.h.b16 %v57
  %v384 = vunpack.c.l.b16 %v58
  %v385 = vunpack.c.h.b16 %v58
  %v386 = vunpack.c.l.b16 %v59
  %v387 = vunpack.c.l.b16 %v60
  %v388 = vunpack.c.h.b16 %v60
  %v389 = vunpack.c.l.b16 %v61
  %v390 = vunpack.c.h.b16 %v61
  %v391 = vunpack.c.l.b16 %v62
  %v392 = vunpack.c.h.b16 %v62
  %v393 = vunpack.c.l.b16 %v63
  %v394 = vunpack.c.h.b16 %v63
  %v395 = vunpack.c.l.b16 %v64
  %v396 = vunpack.c.l.b16 %v65
  %v397 = vunpack.c.h.b16 %v65
  %v398 = vunpack.c.l.b16 %v66
  %v399 = vunpack.c.h.b16 %v66
  %v400 = vunpack.c.l.b16 %v67
  %v401 = vunpack.c.h.b16 %v67
  %v402 = vunpack.c.l.b16 %v68
  %v403 = vunpack.c.h.b16 %v68
  %v404 = vunpack.c.l.b16 %v69
  %v405 = vunpack.c.l.b16 %v70
  %v406 = vunpack.c.h.b16 %v70
  %v407 = vunpack.c.l.b16 %v71
  %v408 = vunpack.c.h.b16 %v71
  %v409 = vunpack.c.l.b16 %v72
  %v410 = vunpack.c.h.b16 %v72
  %v411 = vunpack.c.l.b16 %v73
  %v412 = vunpack.c.h.b16 %v73
  %v413 = vunpack.c.l.b16 %v74
  %v414 = vunpack.c.l.b16 %v75
  %v415 = vunpack.c.h.b16 %v75
  %v416 = vunpack.c.l.b16 %v76
  %v417 = vunpack.c.h.b16 %v76
  %v418 = vunpack.c.l.b16 %v77
  %v419 = vunpack.c.h.b16 %v77
  %v420 = vunpack.c.l.b16 %v78
  %v421 = vunpack.c.h.b16 %v78
  %v422 = vunpack.c.l.b16 %v79
  %v423 = vunpack.c.l.b16 %v80
  %v424 = vunpack.c.h.b16 %v80
  %v425 = vunpack.c.l.b16 %v81
  %v426 = vunpack.c.h.b16 %v81
  %v427 = vunpack.c.l.b16 %v82
  %v428 = vunpack.c.h.b16 %v82
  %v429 = vunpack.c.l.b16 %v83
  %v430 = vunpack.c.h.b16 %v83
  %v431 = vunpack.c.l.b16 %v84
  %v432 = vpack.c.b16 %v315, %v306
  %v433 = vpack.c.b16 %v316, %v307
  %v434 = vpack.c.b16 %v317, %v308
  %v435 = vpack.c.b16 %v318, %v309
  %v436 = vpack.c.b16 %v319, %v310
  %v437 = vpack.c.b16 %v320, %v311
  %v438 = vpack.c.b16 %v321, %v312
  %v439 = vpack.c.b16 %v322, %v313
  %v440 = vpack.c.b16 %v323, %v314
  %v441 = vpack.c.b16 %v333, %v324
  %v442 = vpack.c.b16 %v334, %v325
  %v443 = vpack.c.b16 %v335, %v326
  %v444 = vpack.c.b16 %v336, %v327
  %v445 = vpack.c.b16 %v337, %v328
  %v446 = vpack.c.b16 %v338, %v329
  %v447 = vpack.c.b16 %v339, %v330
  %v448 = vpack.c.b16 %v340, %v331
  %v449 = vpack.c.b16 %v341, %v332
  %v450 = vpack.c.b16 %v351, %v342
  %v451 = vpack.c.b16 %v352, %v343
  %v452 = vpack.c.b16 %v353, %v344
  %v453 = vpack.c.b16 %v354, %v345
  %v454 = vpack.c.b16 %v355, %v346
  %v455 = vpack.c.b16 %v356, %v347
  %v456 = vpack.c.b16 %v357, %v348
  %v457 = vpack.c.b16 %v358, %v349
  %v458 = vpack.c.b16 %v359, %v350
  %v459 = vpack.c.b16 %v369, %v360
  %v460 = vpack.c.b16 %v370, %v361
  %v461 = vpack.c.b16 %v371, %v362
  %v462 = vpack.c.b16 %v372, %v363
  %v463 = vpack.c.b16 %v373, %v364
  %v464 = vpack.c.b16 %v374, %v365
  %v465 = vpack.c.b16 %v375, %v366
  %v466 = vpack.c.b16 %v376, %v367
  %v467 = vpack.c.b16 %v377, %v368
  %v468 = vpack.c.b16 %v387, %v378
  %v469 = vpack.c.b16 %v388, %v379
  %v470 = vpack.c.b16 %v389, %v380
  %v471 = vpack.c.b16 %v390, %v381
  %v472 = vpack.c.b16 %v391, %v382
  %v473 = vpack.c.b16 %v392, %v383
  %v474 = vpack.c.b16 %v393, %v384
  %v475 = vpack.c.b16 %v394, %v385
  %v476 = vpack.c.b16 %v395, %v386
  %v477 = vpack.c.b16 %v405, %v396
  %v478 = vpack.c.b16 %v406, %v397
  %v479 = vpack.c.b16 %v407, %v398
  %v480 = vpack.c.b16 %v408, %v399
  %v481 = vpack.c.b16 %v409, %v400
  %v482 = vpack.c.b16 %v410, %v401
  %v483 = vpack.c.b16 %v411, %v402
  %v484 = vpack.c.b16 %v412, %v403
  %v485 = vpack.c.b16 %v413, %v404
  %v486 = vpack.c.b16 %v423, %v414
  %v487 = vpack.c.b16 %v424, %v415
  %v488 = vpack.c.b16 %v425, %v416
  %v489 = vpack.c.b16 %v426, %v417
  %v490 = vpack.c.b16 %v427, %v418
  %v491 = vpack.c.b16 %v428, %v419
  %v492 = vpack.c.b16 %v429, %v420
  %v493 = vpack.c.b16 %v430, %v421
  %v494 = vpack.c.b16 %v431, %v422
  %v702 = vunpack.c.l.b16 %v85
  %v703 = vunpack.c.l.b16 %v86
  %v704 = vunpack.c.l.b16 %v87
  %v705 = vunpack.c.l.b16 %v88
  %v706 = vunpack.c.l.b16 %v89
  %v707 = vunpack.c.l.b16 %v90
  %v708 = vunpack.c.l.b16 %v91
  %v709 = vunpack.c.l.b16 %v92
  %v710 = vunpack.c.l.b16 %v93
  %v711 = vunpack.c.l.b16 %v94
  %v712 = vunpack.c.l.b16 %v95
  %v713 = vunpack.c.l.b16 %v96
  %v714 = vunpack.c.l.b16 %v97
  %v715 = vunpack.c.l.b16 %v98
  %v716 = vunpack.c.l.b16 %v99
  %v717 = vunpack.c.l.b16 %v100
  %v718 = vunpack.c.l.b16 %v101
  %v719 = vunpack.c.l.b16 %v102
  %v720 = vunpack.c.l.b16 %v103
  %v721 = vunpack.c.l.b16 %v104
  %v722 = vunpack.c.l.b16 %v105
  %v723 = vunpack.c.l.b16 %v106
  %v724 = vunpack.c.l.b16 %v107
  %v725 = vunpack.c.l.b16 %v108
  %v726 = vunpack.c.l.b16 %v109
  %v727 = vunpack.c.l.b16 %v110
  %v728 = vunpack.c.l.b16 %v111
  %v729 = vunpack.c.l.b16 %v112
  %v730 = vunpack.c.l.b16 %v113
  %v731 = vunpack.c.l.b16 %v114
  %v732 = vunpack.c.l.b16 %v115
  %v733 = vunpack.c.l.b16 %v116
  %v734 = vunpack.c.l.b16 %v117
  %v735 = vunpack.c.l.b16 %v118
  %v736 = vunpack.c.l.b16 %v119
  %v737 = vunpack.c.l.b16 %v120
  %v738 = vunpack.c.l.b16 %v121
  %v739 = vunpack.c.l.b16 %v122
  %v740 = vunpack.c.l.b16 %v123
  %v741 = vunpack.c.l.b16 %v124
  %v742 = vunpack.c.l.b16 %v125
  %v743 = vunpack.c.l.b16 %v126
  %v744 = vunpack.c.l.b16 %v127
  %v745 = vunpack.c.l.b16 %v128
  %v746 = vunpack.c.l.b16 %v129
  %v747 = vunpack.c.l.b16 %v130
  %v748 = vunpack.c.l.b16 %v131
  %v749 = vunpack.c.l.b16 %v132
  %v750 = vunpack.c.l.b16 %v133
  %v751 = vunpack.c.l.b16 %v134
  %v752 = vunpack.c.l.b16 %v135
  %v753 = vunpack.c.l.b16 %v136
  %v754 = vunpack.c.l.b16 %v137
  %v755 = vunpack.c.l.b16 %v138
  %v756 = vunpack.c.l.b16 %v139
  %v757 = vunpack.c.l.b16 %v140
  %v758 = vunpack.c.l.b16 %v141
  %v759 = vunpack.c.l.b16 %v142
  %v760 = vunpack.c.l.b16 %v143
  %v761 = vunpack.c.l.b16 %v144
  %v762 = vunpack.c.l.b16 %v145
  %v763 = vunpack.c.l.b16 %v146
  %v764 = vunpack.c.l.b16 %v147
  %v765 = vunpack.c.l.b16 %v148
  %v766 = vunpack.c.l.b16 %v149
  %v767 = vunpack.c.l.b16 %v150
  %v768 = vunpack.c.l.b16 %v151
  %v769 = vunpack.c.l.b16 %v152
  %v770 = vunpack.c.l.b16 %v153
  %v771 = vunpack.c.l.b16 %v154
  %v772 = vunpack.c.l.b16 %v155
  %v773 = vunpack.c.l.b16 %v156
  %v774 = vunpack.c.l.b16 %v157
  %v775 = vunpack.c.l.b16 %v158
  %v776 = vunpack.c.l.b16 %v159
  %v777 = vunpack.c.l.b16 %v160
  %v778 = vunpack.c.l.b16 %v161
  %v779 = vunpack.c.l.b16 %v162
  %v780 = vunpack.c.l.b16 %v163
  %v781 = vunpack.c.l.b16 %v164
  %v782 = vunpack.c.l.b16 %v165
  %v783 = vunpack.c.l.b16 %v166
  %v784 = vunpack.c.l.b16 %v167
  %v785 = vunpack.c.l.b16 %v168
  %v786 = vunpack.c.l.b16 %v169
  %v787 = vunpack.c.l.b16 %v170
  %v788 = vunpack.c.l.b16 %v171
  %v789 = vunpack.c.l.b16 %v172
  %v790 = vunpack.c.l.b16 %v173
  %v791 = vunpack.c.l.b16 %v174
  %v792 = vunpack.c.l.b16 %v175
  %v793 = vunpack.c.l.b16 %v176
  %v794 = vunpack.c.l.b16 %v177
  %v795 = vunpack.c.l.b16 %v178
  %v796 = vunpack.c.l.b16 %v179
  %v797 = vunpack.c.l.b16 %v180
  %v798 = vunpack.c.l.b16 %v181
  %v799 = vunpack.c.l.b16 %v182
  %v800 = vunpack.c.l.b16 %v183
  %v801 = vunpack.c.l.b16 %v184
  %v802 = vunpack.c.l.b16 %v185
  %v803 = vunpack.c.l.b16 %v186
  %v804 = vunpack.c.l.b16 %v187
  %v805 = vunpack.c.l.b16 %v188
  %v806 = vunpack.c.l.b16 %v189
  %v807 = vunpack.c.l.b16 %v190
  %v808 = vunpack.c.l.b16 %v191
  %v809 = vunpack.c.l.b16 %v192
  %v810 = vunpack.c.l.b16 %v193
  %v811 = vunpack.c.l.b16 %v194
  %v812 = vunpack.c.l.b16 %v195
  %v813 = vunpack.c.l.b16 %v196
  %v814 = vunpack.c.l.b16 %v197
  %v815 = vunpack.c.l.b16 %v198
  %v816 = vunpack.c.l.b16 %v199
  %v817 = vunpack.c.l.b16 %v200
  %v818 = vunpack.c.l.b16 %v201
  %v819 = vunpack.c.l.b16 %v202
  %v820 = vunpack.c.l.b16 %v203
  %v821 = vunpack.c.l.b16 %v204
  %v822 = vunpack.c.l.b16 %v205
  %v823 = vunpack.c.l.b16 %v206
  %v824 = vunpack.c.l.b16 %v207
  %v825 = vunpack.c.l.b16 %v208
  %v826 = vunpack.c.l.b16 %v209
  %v827 = vunpack.c.l.b16 %v210
  %v828 = vunpack.c.l.b16 %v211
  %v829 = vunpack.c.l.b16 %v212
  %v830 = vunpack.c.l.b16 %v213
  %v831 = vunpack.c.l.b16 %v214
  %v832 = vunpack.c.l.b16 %v215
  %v833 = vunpack.c.l.b16 %v216
  %v834 = vunpack.c.l.b16 %v217
  %v835 = vunpack.c.l.b16 %v218
  %v836 = vunpack.c.l.b16 %v219
  %v837 = vunpack.c.l.b16 %v220
  %v838 = vunpack.c.l.b16 %v221
  %v839 = vunpack.c.l.b16 %v222
  %v840 = vunpack.c.l.b16 %v223
  %v841 = vunpack.c.l.b16 %v224
  %v842 = vunpack.c.l.b16 %v225
  %v843 = vunpack.c.l.b16 %v226
  %v844 = vunpack.c.l.b16 %v227
  %v845 = vunpack.c.l.b16 %v228
  %v846 = vpack.c.b16 %v703, %v702
  %v847 = vpack.c.b16 %v705, %v704
  %v848 = vpack.c.b16 %v707, %v706
  %v849 = vpack.c.b16 %v709, %v708
  %v850 = vpack.c.b16 %v711, %v710
  %v851 = vpack.c.b16 %v713, %v712
  %v852 = vpack.c.b16 %v715, %v714
  %v853 = vpack.c.b16 %v717, %v716
  %v854 = vpack.c.b16 %v719, %v718
  %v855 = vpack.c.b16 %v721, %v720
  %v856 = vpack.c.b16 %v723, %v722
  %v857 = vpack.c.b16 %v725, %v724
  %v858 = vpack.c.b16 %v727, %v726
  %v859 = vpack.c.b16 %v729, %v728
  %v860 = vpack.c.b16 %v731, %v730
  %v861 = vpack.c.b16 %v733, %v732
  %v862 = vpack.c.b16 %v735, %v734
  %v863 = vpack.c.b16 %v737, %v736
  %v864 = vpack.c.b16 %v739, %v738
  %v865 = vpack.c.b16 %v741, %v740
  %v866 = vpack.c.b16 %v743, %v742
  %v867 = vpack.c.b16 %v745, %v744
  %v868 = vpack.c.b16 %v747, %v746
  %v869 = vpack.c.b16 %v749, %v748
  %v870 = vpack.c.b16 %v751, %v750
  %v871 = vpack.c.b16 %v753, %v752
  %v872 = vpack.c.b16 %v755, %v754
  %v873 = vpack.c.b16 %v757, %v756
  %v874 = vpack.c.b16 %v759, %v758
  %v875 = vpack.c.b16 %v761, %v760
  %v876 = vpack.c.b16 %v763, %v762
  %v877 = vpack.c.b16 %v765, %v764
  %v878 = vpack.c.b16 %v767, %v766
  %v879 = vpack.c.b16 %v769, %v768
  %v880 = vpack.c.b16 %v771, %v770
  %v881 = vpack.c.b16 %v773, %v772
  %v882 = vpack.c.b16 %v775, %v774
  %v883 = vpack.c.b16 %v777, %v776
  %v884 = vpack.c.b16 %v779, %v778
  %v885 = vpack.c.b16 %v781, %v780
  %v886 = vpack.c.b16 %v783, %v782
  %v887 = vpack.c.b16 %v785, %v784
  %v888 = vpack.c.b16 %v787, %v786
  %v889 = vpack.c.b16 %v789, %v788
  %v890 = vpack.c.b16 %v791, %v790
  %v891 = vpack.c.b16 %v793, %v792
  %v892 = vpack.c.b16 %v795, %v794
  %v893 = vpack.c.b16 %v797, %v796
  %v894 = vpack.c.b16 %v799, %v798
  %v895 = vpack.c.b16 %v801, %v800
  %v896 = vpack.c.b16 %v803, %v802
  %v897 = vpack.c.b16 %v805, %v804
  %v898 = vpack.c.b16 %v807, %v806
  %v899 = vpack.c.b16 %v809, %v808
  %v900 = vpack.c.b16 %v811, %v810
  %v901 = vpack.c.b16 %v813, %v812
  %v902 = vpack.c.b16 %v815, %v814
  %v903 = vpack.c.b16 %v817, %v816
  %v904 = vpack.c.b16 %v819, %v818
  %v905 = vpack.c.b16 %v821, %v820
  %v906 = vpack.c.b16 %v823, %v822
  %v907 = vpack.c.b16 %v825, %v824
  %v908 = vpack.c.b16 %v827, %v826
  %v909 = vpack.c.b16 %v829, %v828
  %v910 = vpack.c.b16 %v831, %v830
  %v911 = vpack.c.b16 %v833, %v832
  %v912 = vpack.c.b16 %v835, %v834
  %v913 = vpack.c.b16 %v837, %v836
  %v914 = vpack.c.b16 %v839, %v838
  %v915 = vpack.c.b16 %v841, %v840
  %v916 = vpack.c.b16 %v843, %v842
  %v917 = vpack.c.b16 %v845, %v844
  %990 = vmatprep.subr.bf16.mxu0 0
  %991 = vmatpush1.bf16.msra.mxu0 %v846
  %992 = vmatprep.subr.bf16.mxu0 0
  %993 = vmatpush1.bf16.msra.mxu0 %v847
  %994 = vmatprep.subr.bf16.mxu0 0
  %995 = vmatpush1.bf16.msra.mxu0 %v848
  %996 = vmatprep.subr.bf16.mxu0 0
  %997 = vmatpush1.bf16.msra.mxu0 %v849
  %998 = vmatprep.subr.bf16.mxu0 0
  %999 = vmatpush1.bf16.msra.mxu0 %v850
  %1000 = vmatprep.subr.bf16.mxu0 0
  %1001 = vmatpush1.bf16.msra.mxu0 %v851
  %1002 = vmatprep.subr.bf16.mxu0 0
  %1003 = vmatpush1.bf16.msra.mxu0 %v852
  %1004 = vmatprep.subr.bf16.mxu0 0
  %1005 = vmatpush1.bf16.msra.mxu0 %v853
  %1006 = vmatprep.subr.bf16.mxu0 0
  %1007 = vmatpush1.bf16.msra.mxu0 %v854
  %1008 = vmatprep.subr.bf16.mxu0 0
  %1009 = vmatpush1.bf16.msra.mxu0 %v855
  %1010 = vmatprep.subr.bf16.mxu0 0
  %1011 = vmatpush1.bf16.msra.mxu0 %v856
  %1012 = vmatprep.subr.bf16.mxu0 0
  %1013 = vmatpush1.bf16.msra.mxu0 %v857
  %1014 = vmatprep.subr.bf16.mxu0 0
  %1015 = vmatpush1.bf16.msra.mxu0 %v858
  %1016 = vmatprep.subr.bf16.mxu0 0
  %1017 = vmatpush1.bf16.msra.mxu0 %v859
  %1018 = vmatprep.subr.bf16.mxu0 0
  %1019 = vmatpush1.bf16.msra.mxu0 %v860
  %1020 = vmatprep.subr.bf16.mxu0 0
  %1021 = vmatpush1.bf16.msra.mxu0 %v861
  %1022 = vmatprep.mubr.bf16.mxu0 %v433
  %1023 = vmatmul.mubr.bf16.gmra.mrb[0].mxu0 %v432
  %v1024 = vpop.f32.mrb[0].mxu0
  %v1025 = vadd.f32 %v234, %v1024
  %v1026 = vpop.f32.mrb[0].mxu0
  %v1027 = vpop.f32.mrb[0].mxu0
  %v1028 = vadd.f32 %v234, %v1027
  %v1029 = vpop.f32.mrb[0].mxu0
  %1030 = vmatprep.mubr.bf16.mxu0 %v442
  %1031 = vmatmul.mubr.bf16.gmra.mrb[0].mxu0 %v441
  %v1032 = vpop.f32.mrb[0].mxu0
  %v1033 = vadd.f32 %v234, %v1032
  %v1034 = vpop.f32.mrb[0].mxu0
  %v1035 = vpop.f32.mrb[0].mxu0
  %v1036 = vadd.f32 %v234, %v1035
  %v1037 = vpop.f32.mrb[0].mxu0
  %1038 = vmatprep.mubr.bf16.mxu0 %v451
  %1039 = vmatmul.mubr.bf16.gmra.mrb[0].mxu0 %v450
  %v1040 = vpop.f32.mrb[0].mxu0
  %v1041 = vadd.f32 %v234, %v1040
  %v1042 = vpop.f32.mrb[0].mxu0
  %v1043 = vpop.f32.mrb[0].mxu0
  %v1044 = vadd.f32 %v234, %v1043
  %v1045 = vpop.f32.mrb[0].mxu0
  %1046 = vmatprep.mubr.bf16.mxu0 %v460
  %1047 = vmatmul.mubr.bf16.gmra.mrb[0].mxu0 %v459
  %v1048 = vpop.f32.mrb[0].mxu0
  %v1049 = vadd.f32 %v234, %v1048
  %v1050 = vpop.f32.mrb[0].mxu0
  %v1051 = vpop.f32.mrb[0].mxu0
  %v1052 = vadd.f32 %v234, %v1051
  %v1053 = vpop.f32.mrb[0].mxu0
  %1054 = vmatprep.mubr.bf16.mxu0 %v469
  %1055 = vmatmul.mubr.bf16.gmra.mrb[0].mxu0 %v468
  %v1056 = vpop.f32.mrb[0].mxu0
  %v1057 = vadd.f32 %v234, %v1056
  %v1058 = vpop.f32.mrb[0].mxu0
  %v1059 = vpop.f32.mrb[0].mxu0
  %v1060 = vadd.f32 %v234, %v1059
  %v1061 = vpop.f32.mrb[0].mxu0
  %1062 = vmatprep.mubr.bf16.mxu0 %v478
  %1063 = vmatmul.mubr.bf16.gmra.mrb[0].mxu0 %v477
  %v1064 = vpop.f32.mrb[0].mxu0
  %v1065 = vadd.f32 %v234, %v1064
  %v1066 = vpop.f32.mrb[0].mxu0
  %v1067 = vpop.f32.mrb[0].mxu0
  %v1068 = vadd.f32 %v234, %v1067
  %v1069 = vpop.f32.mrb[0].mxu0
  %1070 = vmatprep.mubr.bf16.mxu0 %v487
  %1071 = vmatmul.mubr.bf16.gmra.mrb[0].mxu0 %v486
  %v1072 = vpop.f32.mrb[0].mxu0
  %v1073 = vadd.f32 %v234, %v1072
  %v1074 = vpop.f32.mrb[0].mxu0
  %v1075 = vpop.f32.mrb[0].mxu0
  %v1076 = vadd.f32 %v234, %v1075
  %v1077 = vpop.f32.mrb[0].mxu0
  %1078 = vdwg.mxu0
  %1079 = vmatprep.subr.bf16.mxu0 0
  %1080 = vmatpush1.bf16.msra.mxu0 %v862
  %1081 = vmatprep.subr.bf16.mxu0 0
  %1082 = vmatpush1.bf16.msra.mxu0 %v863
  %1083 = vmatprep.subr.bf16.mxu0 0
  %1084 = vmatpush1.bf16.msra.mxu0 %v864
  %1085 = vmatprep.subr.bf16.mxu0 0
  %1086 = vmatpush1.bf16.msra.mxu0 %v865
  %1087 = vmatprep.subr.bf16.mxu0 0
  %1088 = vmatpush1.bf16.msra.mxu0 %v866
  %1089 = vmatprep.subr.bf16.mxu0 0
  %1090 = vmatpush1.bf16.msra.mxu0 %v867
  %1091 = vmatprep.subr.bf16.mxu0 0
  %1092 = vmatpush1.bf16.msra.mxu0 %v868
  %1093 = vmatprep.subr.bf16.mxu0 0
  %1094 = vmatpush1.bf16.msra.mxu0 %v869
  %1095 = vmatprep.subr.bf16.mxu0 0
  %1096 = vmatpush1.bf16.msra.mxu0 %v870
  %1097 = vmatprep.subr.bf16.mxu0 0
  %1098 = vmatpush1.bf16.msra.mxu0 %v871
  %1099 = vmatprep.subr.bf16.mxu0 0
  %1100 = vmatpush1.bf16.msra.mxu0 %v872
  %1101 = vmatprep.subr.bf16.mxu0 0
  %1102 = vmatpush1.bf16.msra.mxu0 %v873
  %1103 = vmatprep.subr.bf16.mxu0 0
  %1104 = vmatpush1.bf16.msra.mxu0 %v874
  %1105 = vmatprep.subr.bf16.mxu0 0
  %1106 = vmatpush1.bf16.msra.mxu0 %v875
  %1107 = vmatprep.subr.bf16.mxu0 0
  %1108 = vmatpush1.bf16.msra.mxu0 %v876
  %1109 = vmatprep.subr.bf16.mxu0 0
  %1110 = vmatpush1.bf16.msra.mxu0 %v877
  %1111 = vmatprep.mubr.bf16.mxu0 %v435
  %1112 = vmatmul.mubr.bf16.gmra.mrb[0].mxu0 %v434
  %v1113 = vpop.f32.mrb[0].mxu0
  %v1114 = vadd.f32 %v1025, %v1113
  %v1115 = vpop.f32.mrb[0].mxu0
  %v1116 = vpop.f32.mrb[0].mxu0
  %v1117 = vadd.f32 %v1028, %v1116
  %v1118 = vpop.f32.mrb[0].mxu0
  %1119 = vmatprep.mubr.bf16.mxu0 %v444
  %1120 = vmatmul.mubr.bf16.gmra.mrb[0].mxu0 %v443
  %v1121 = vpop.f32.mrb[0].mxu0
  %v1122 = vadd.f32 %v1033, %v1121
  %v1123 = vpop.f32.mrb[0].mxu0
  %v1124 = vpop.f32.mrb[0].mxu0
  %v1125 = vadd.f32 %v1036, %v1124
  %v1126 = vpop.f32.mrb[0].mxu0
  %1127 = vmatprep.mubr.bf16.mxu0 %v453
  %1128 = vmatmul.mubr.bf16.gmra.mrb[0].mxu0 %v452
  %v1129 = vpop.f32.mrb[0].mxu0
  %v1130 = vadd.f32 %v1041, %v1129
  %v1131 = vpop.f32.mrb[0].mxu0
  %v1132 = vpop.f32.mrb[0].mxu0
  %v1133 = vadd.f32 %v1044, %v1132
  %v1134 = vpop.f32.mrb[0].mxu0
  %1135 = vmatprep.mubr.bf16.mxu0 %v462
  %1136 = vmatmul.mubr.bf16.gmra.mrb[0].mxu0 %v461
  %v1137 = vpop.f32.mrb[0].mxu0
  %v1138 = vadd.f32 %v1049, %v1137
  %v1139 = vpop.f32.mrb[0].mxu0
  %v1140 = vpop.f32.mrb[0].mxu0
  %v1141 = vadd.f32 %v1052, %v1140
  %v1142 = vpop.f32.mrb[0].mxu0
  %1143 = vmatprep.mubr.bf16.mxu0 %v471
  %1144 = vmatmul.mubr.bf16.gmra.mrb[0].mxu0 %v470
  %v1145 = vpop.f32.mrb[0].mxu0
  %v1146 = vadd.f32 %v1057, %v1145
  %v1147 = vpop.f32.mrb[0].mxu0
  %v1148 = vpop.f32.mrb[0].mxu0
  %v1149 = vadd.f32 %v1060, %v1148
  %v1150 = vpop.f32.mrb[0].mxu0
  %1151 = vmatprep.mubr.bf16.mxu0 %v480
  %1152 = vmatmul.mubr.bf16.gmra.mrb[0].mxu0 %v479
  %v1153 = vpop.f32.mrb[0].mxu0
  %v1154 = vadd.f32 %v1065, %v1153
  %v1155 = vpop.f32.mrb[0].mxu0
  %v1156 = vpop.f32.mrb[0].mxu0
  %v1157 = vadd.f32 %v1068, %v1156
  %v1158 = vpop.f32.mrb[0].mxu0
  %1159 = vmatprep.mubr.bf16.mxu0 %v489
  %1160 = vmatmul.mubr.bf16.gmra.mrb[0].mxu0 %v488
  %v1161 = vpop.f32.mrb[0].mxu0
  %v1162 = vadd.f32 %v1073, %v1161
  %v1163 = vpop.f32.mrb[0].mxu0
  %v1164 = vpop.f32.mrb[0].mxu0
  %v1165 = vadd.f32 %v1076, %v1164
  %v1166 = vpop.f32.mrb[0].mxu0
  %1167 = vdwg.mxu0
  %1168 = vmatprep.subr.bf16.mxu0 0
  %1169 = vmatpush1.bf16.msra.mxu0 %v878
  %1170 = vmatprep.subr.bf16.mxu0 0
  %1171 = vmatpush1.bf16.msra.mxu0 %v879
  %1172 = vmatprep.subr.bf16.mxu0 0
  %1173 = vmatpush1.bf16.msra.mxu0 %v880
  %1174 = vmatprep.subr.bf16.mxu0 0
  %1175 = vmatpush1.bf16.msra.mxu0 %v881
  %1176 = vmatprep.subr.bf16.mxu0 0
  %1177 = vmatpush1.bf16.msra.mxu0 %v882
  %1178 = vmatprep.subr.bf16.mxu0 0
  %1179 = vmatpush1.bf16.msra.mxu0 %v883
  %1180 = vmatprep.subr.bf16.mxu0 0
  %1181 = vmatpush1.bf16.msra.mxu0 %v884
  %1182 = vmatprep.subr.bf16.mxu0 0
  %1183 = vmatpush1.bf16.msra.mxu0 %v885
  %1184 = vmatprep.subr.bf16.mxu0 0
  %1185 = vmatpush1.bf16.msra.mxu0 %v886
  %1186 = vmatprep.subr.bf16.mxu0 0
  %1187 = vmatpush1.bf16.msra.mxu0 %v887
  %1188 = vmatprep.subr.bf16.mxu0 0
  %1189 = vmatpush1.bf16.msra.mxu0 %v888
  %1190 = vmatprep.subr.bf16.mxu0 0
  %1191 = vmatpush1.bf16.msra.mxu0 %v889
  %1192 = vmatprep.subr.bf16.mxu0 0
  %1193 = vmatpush1.bf16.msra.mxu0 %v890
  %1194 = vmatprep.subr.bf16.mxu0 0
  %1195 = vmatpush1.bf16.msra.mxu0 %v891
  %1196 = vmatprep.subr.bf16.mxu0 0
  %1197 = vmatpush1.bf16.msra.mxu0 %v892
  %1198 = vmatprep.subr.bf16.mxu0 0
  %1199 = vmatpush1.bf16.msra.mxu0 %v893
  %1200 = vmatprep.mubr.bf16.mxu0 %v437
  %1201 = vmatmul.mubr.bf16.gmra.mrb[0].mxu0 %v436
  %v1202 = vpop.f32.mrb[0].mxu0
  %v1203 = vadd.f32 %v1114, %v1202
  %v1204 = vpop.f32.mrb[0].mxu0
  %v1205 = vpop.f32.mrb[0].mxu0
  %v1206 = vadd.f32 %v1117, %v1205
  %v1207 = vpop.f32.mrb[0].mxu0
  %1208 = vmatprep.mubr.bf16.mxu0 %v446
  %1209 = vmatmul.mubr.bf16.gmra.mrb[0].mxu0 %v445
  %v1210 = vpop.f32.mrb[0].mxu0
  %v1211 = vadd.f32 %v1122, %v1210
  %v1212 = vpop.f32.mrb[0].mxu0
  %v1213 = vpop.f32.mrb[0].mxu0
  %v1214 = vadd.f32 %v1125, %v1213
  %v1215 = vpop.f32.mrb[0].mxu0
  %1216 = vmatprep.mubr.bf16.mxu0 %v455
  %1217 = vmatmul.mubr.bf16.gmra.mrb[0].mxu0 %v454
  %v1218 = vpop.f32.mrb[0].mxu0
  %v1219 = vadd.f32 %v1130, %v1218
  %v1220 = vpop.f32.mrb[0].mxu0
  %v1221 = vpop.f32.mrb[0].mxu0
  %v1222 = vadd.f32 %v1133, %v1221
  %v1223 = vpop.f32.mrb[0].mxu0
  %1224 = vmatprep.mubr.bf16.mxu0 %v464
  %1225 = vmatmul.mubr.bf16.gmra.mrb[0].mxu0 %v463
  %v1226 = vpop.f32.mrb[0].mxu0
  %v1227 = vadd.f32 %v1138, %v1226
  %v1228 = vpop.f32.mrb[0].mxu0
  %v1229 = vpop.f32.mrb[0].mxu0
  %v1230 = vadd.f32 %v1141, %v1229
  %v1231 = vpop.f32.mrb[0].mxu0
  %1232 = vmatprep.mubr.bf16.mxu0 %v473
  %1233 = vmatmul.mubr.bf16.gmra.mrb[0].mxu0 %v472
  %v1234 = vpop.f32.mrb[0].mxu0
  %v1235 = vadd.f32 %v1146, %v1234
  %v1236 = vpop.f32.mrb[0].mxu0
  %v1237 = vpop.f32.mrb[0].mxu0
  %v1238 = vadd.f32 %v1149, %v1237
  %v1239 = vpop.f32.mrb[0].mxu0
  %1240 = vmatprep.mubr.bf16.mxu0 %v482
  %1241 = vmatmul.mubr.bf16.gmra.mrb[0].mxu0 %v481
  %v1242 = vpop.f32.mrb[0].mxu0
  %v1243 = vadd.f32 %v1154, %v1242
  %v1244 = vpop.f32.mrb[0].mxu0
  %v1245 = vpop.f32.mrb[0].mxu0
  %v1246 = vadd.f32 %v1157, %v1245
  %v1247 = vpop.f32.mrb[0].mxu0
  %1248 = vmatprep.mubr.bf16.mxu0 %v491
  %1249 = vmatmul.mubr.bf16.gmra.mrb[0].mxu0 %v490
  %v1250 = vpop.f32.mrb[0].mxu0
  %v1251 = vadd.f32 %v1162, %v1250
  %v1252 = vpop.f32.mrb[0].mxu0
  %v1253 = vpop.f32.mrb[0].mxu0
  %v1254 = vadd.f32 %v1165, %v1253
  %v1255 = vpop.f32.mrb[0].mxu0
  %1256 = vdwg.mxu0
  %1257 = vmatprep.subr.bf16.mxu0 0
  %1258 = vmatpush1.bf16.msra.mxu0 %v894
  %1259 = vmatprep.subr.bf16.mxu0 0
  %1260 = vmatpush1.bf16.msra.mxu0 %v895
  %1261 = vmatprep.subr.bf16.mxu0 0
  %1262 = vmatpush1.bf16.msra.mxu0 %v896
  %1263 = vmatprep.subr.bf16.mxu0 0
  %1264 = vmatpush1.bf16.msra.mxu0 %v897
  %1265 = vmatprep.subr.bf16.mxu0 0
  %1266 = vmatpush1.bf16.msra.mxu0 %v898
  %1267 = vmatprep.subr.bf16.mxu0 0
  %1268 = vmatpush1.bf16.msra.mxu0 %v899
  %1269 = vmatprep.subr.bf16.mxu0 0
  %1270 = vmatpush1.bf16.msra.mxu0 %v900
  %1271 = vmatprep.subr.bf16.mxu0 0
  %1272 = vmatpush1.bf16.msra.mxu0 %v901
  %1273 = vmatprep.subr.bf16.mxu0 0
  %1274 = vmatpush1.bf16.msra.mxu0 %v902
  %1275 = vmatprep.subr.bf16.mxu0 0
  %1276 = vmatpush1.bf16.msra.mxu0 %v903
  %1277 = vmatprep.subr.bf16.mxu0 0
  %1278 = vmatpush1.bf16.msra.mxu0 %v904
  %1279 = vmatprep.subr.bf16.mxu0 0
  %1280 = vmatpush1.bf16.msra.mxu0 %v905
  %1281 = vmatprep.subr.bf16.mxu0 0
  %1282 = vmatpush1.bf16.msra.mxu0 %v906
  %1283 = vmatprep.subr.bf16.mxu0 0
  %1284 = vmatpush1.bf16.msra.mxu0 %v907
  %1285 = vmatprep.subr.bf16.mxu0 0
  %1286 = vmatpush1.bf16.msra.mxu0 %v908
  %1287 = vmatprep.subr.bf16.mxu0 0
  %1288 = vmatpush1.bf16.msra.mxu0 %v909
  %1289 = vmatprep.mubr.bf16.mxu0 %v439
  %1290 = vmatmul.mubr.bf16.gmra.mrb[0].mxu0 %v438
  %v1291 = vpop.f32.mrb[0].mxu0
  %v1292 = vadd.f32 %v1203, %v1291
  %v1293 = vpop.f32.mrb[0].mxu0
  %v1294 = vpop.f32.mrb[0].mxu0
  %v1295 = vadd.f32 %v1206, %v1294
  %v1296 = vpop.f32.mrb[0].mxu0
  %1297 = vmatprep.mubr.bf16.mxu0 %v448
  %1298 = vmatmul.mubr.bf16.gmra.mrb[0].mxu0 %v447
  %v1299 = vpop.f32.mrb[0].mxu0
  %v1300 = vadd.f32 %v1211, %v1299
  %v1301 = vpop.f32.mrb[0].mxu0
  %v1302 = vpop.f32.mrb[0].mxu0
  %v1303 = vadd.f32 %v1214, %v1302
  %v1304 = vpop.f32.mrb[0].mxu0
  %1305 = vmatprep.mubr.bf16.mxu0 %v457
  %1306 = vmatmul.mubr.bf16.gmra.mrb[0].mxu0 %v456
  %v1307 = vpop.f32.mrb[0].mxu0
  %v1308 = vadd.f32 %v1219, %v1307
  %v1309 = vpop.f32.mrb[0].mxu0
  %v1310 = vpop.f32.mrb[0].mxu0
  %v1311 = vadd.f32 %v1222, %v1310
  %v1312 = vpop.f32.mrb[0].mxu0
  %1313 = vmatprep.mubr.bf16.mxu0 %v466
  %1314 = vmatmul.mubr.bf16.gmra.mrb[0].mxu0 %v465
  %v1315 = vpop.f32.mrb[0].mxu0
  %v1316 = vadd.f32 %v1227, %v1315
  %v1317 = vpop.f32.mrb[0].mxu0
  %v1318 = vpop.f32.mrb[0].mxu0
  %v1319 = vadd.f32 %v1230, %v1318
  %v1320 = vpop.f32.mrb[0].mxu0
  %1321 = vmatprep.mubr.bf16.mxu0 %v475
  %1322 = vmatmul.mubr.bf16.gmra.mrb[0].mxu0 %v474
  %v1323 = vpop.f32.mrb[0].mxu0
  %v1324 = vadd.f32 %v1235, %v1323
  %v1325 = vpop.f32.mrb[0].mxu0
  %v1326 = vpop.f32.mrb[0].mxu0
  %v1327 = vadd.f32 %v1238, %v1326
  %v1328 = vpop.f32.mrb[0].mxu0
  %1329 = vmatprep.mubr.bf16.mxu0 %v484
  %1330 = vmatmul.mubr.bf16.gmra.mrb[0].mxu0 %v483
  %v1331 = vpop.f32.mrb[0].mxu0
  %v1332 = vadd.f32 %v1243, %v1331
  %v1333 = vpop.f32.mrb[0].mxu0
  %v1334 = vpop.f32.mrb[0].mxu0
  %v1335 = vadd.f32 %v1246, %v1334
  %v1336 = vpop.f32.mrb[0].mxu0
  %1337 = vmatprep.mubr.bf16.mxu0 %v493
  %1338 = vmatmul.mubr.bf16.gmra.mrb[0].mxu0 %v492
  %v1339 = vpop.f32.mrb[0].mxu0
  %v1340 = vadd.f32 %v1251, %v1339
  %v1341 = vpop.f32.mrb[0].mxu0
  %v1342 = vpop.f32.mrb[0].mxu0
  %v1343 = vadd.f32 %v1254, %v1342
  %v1344 = vpop.f32.mrb[0].mxu0
  %1345 = vdwg.mxu0
  %1346 = vmatprep.subr.bf16.mxu0 0
  %1347 = vmatpush1.bf16.msra.mxu0 %v910
  %1348 = vmatprep.subr.bf16.mxu0 0
  %1349 = vmatpush1.bf16.msra.mxu0 %v911
  %1350 = vmatprep.subr.bf16.mxu0 0
  %1351 = vmatpush1.bf16.msra.mxu0 %v912
  %1352 = vmatprep.subr.bf16.mxu0 0
  %1353 = vmatpush1.bf16.msra.mxu0 %v913
  %1354 = vmatprep.subr.bf16.mxu0 0
  %1355 = vmatpush1.bf16.msra.mxu0 %v914
  %1356 = vmatprep.subr.bf16.mxu0 0
  %1357 = vmatpush1.bf16.msra.mxu0 %v915
  %1358 = vmatprep.subr.bf16.mxu0 0
  %1359 = vmatpush1.bf16.msra.mxu0 %v916
  %1360 = vmatprep.subr.bf16.mxu0 0
  %1361 = vmatpush1.bf16.msra.mxu0 %v917
  %1362 = vmatprep.subr.bf16.mxu0 0
  %1363 = vmatpush1.bf16.msra.mxu0 0
  %1364 = vmatprep.subr.bf16.mxu0 0
  %1365 = vmatpush1.bf16.msra.mxu0 0
  %1366 = vmatprep.subr.bf16.mxu0 0
  %1367 = vmatpush1.bf16.msra.mxu0 0
  %1368 = vmatprep.subr.bf16.mxu0 0
  %1369 = vmatpush1.bf16.msra.mxu0 0
  %1370 = vmatprep.subr.bf16.mxu0 0
  %1371 = vmatpush1.bf16.msra.mxu0 0
  %1372 = vmatprep.subr.bf16.mxu0 0
  %1373 = vmatpush1.bf16.msra.mxu0 0
  %1374 = vmatprep.subr.bf16.mxu0 0
  %1375 = vmatpush1.bf16.msra.mxu0 0
  %1376 = vmatprep.subr.bf16.mxu0 0
  %1377 = vmatpush1.bf16.msra.mxu0 0
  %1378 = vmatprep.mubr.bf16.mxu0 0
  %1379 = vmatmul.mubr.bf16.gmra.mrb[0].mxu0 %v440
  %v1380 = vpop.f32.mrb[0].mxu0
  %v1381 = vadd.f32 %v1292, %v1380
  %v1382 = vpop.f32.mrb[0].mxu0
  %v1383 = vpop.f32.mrb[0].mxu0
  %v1384 = vadd.f32 %v1295, %v1383
  %v1385 = vpop.f32.mrb[0].mxu0
  %1386 = vmatprep.mubr.bf16.mxu0 0
  %1387 = vmatmul.mubr.bf16.gmra.mrb[0].mxu0 %v449
  %v1388 = vpop.f32.mrb[0].mxu0
  %v1389 = vadd.f32 %v1300, %v1388
  %v1390 = vpop.f32.mrb[0].mxu0
  %v1391 = vpop.f32.mrb[0].mxu0
  %v1392 = vadd.f32 %v1303, %v1391
  %v1393 = vpop.f32.mrb[0].mxu0
  %1394 = vmatprep.mubr.bf16.mxu0 0
  %1395 = vmatmul.mubr.bf16.gmra.mrb[0].mxu0 %v458
  %v1396 = vpop.f32.mrb[0].mxu0
  %v1397 = vadd.f32 %v1308, %v1396
  %v1398 = vpop.f32.mrb[0].mxu0
  %v1399 = vpop.f32.mrb[0].mxu0
  %v1400 = vadd.f32 %v1311, %v1399
  %v1401 = vpop.f32.mrb[0].mxu0
  %1402 = vmatprep.mubr.bf16.mxu0 0
  %1403 = vmatmul.mubr.bf16.gmra.mrb[0].mxu0 %v467
  %v1404 = vpop.f32.mrb[0].mxu0
  %v1405 = vadd.f32 %v1316, %v1404
  %v1406 = vpop.f32.mrb[0].mxu0
  %v1407 = vpop.f32.mrb[0].mxu0
  %v1408 = vadd.f32 %v1319, %v1407
  %v1409 = vpop.f32.mrb[0].mxu0
  %1410 = vmatprep.mubr.bf16.mxu0 0
  %1411 = vmatmul.mubr.bf16.gmra.mrb[0].mxu0 %v476
  %v1412 = vpop.f32.mrb[0].mxu0
  %v1413 = vadd.f32 %v1324, %v1412
  %v1414 = vpop.f32.mrb[0].mxu0
  %v1415 = vpop.f32.mrb[0].mxu0
  %v1416 = vadd.f32 %v1327, %v1415
  %v1417 = vpop.f32.mrb[0].mxu0
  %1418 = vmatprep.mubr.bf16.mxu0 0
  %1419 = vmatmul.mubr.bf16.gmra.mrb[0].mxu0 %v485
  %v1420 = vpop.f32.mrb[0].mxu0
  %v1421 = vadd.f32 %v1332, %v1420
  %v1422 = vpop.f32.mrb[0].mxu0
  %v1423 = vpop.f32.mrb[0].mxu0
  %v1424 = vadd.f32 %v1335, %v1423
  %v1425 = vpop.f32.mrb[0].mxu0
  %1426 = vmatprep.mubr.bf16.mxu0 0
  %1427 = vmatmul.mubr.bf16.gmra.mrb[0].mxu0 %v494
  %v1428 = vpop.f32.mrb[0].mxu0
  %v1429 = vadd.f32 %v1340, %v1428
  %v1430 = vpop.f32.mrb[0].mxu0
  %v1431 = vpop.f32.mrb[0].mxu0
  %v1432 = vadd.f32 %v1343, %v1431
  %v1433 = vpop.f32.mrb[0].mxu0
  %1434 = vdwg.mxu0
  %v1435 = vmax.f32 %v1381, 0.0
  %v1436 = vmax.f32 %v1384, 0.0
  %v1437 = vmax.f32 %v1389, 0.0
  %v1438 = vmax.f32 %v1392, 0.0
  %v1439 = vmax.f32 %v1397, 0.0
  %v1440 = vmax.f32 %v1400, 0.0
  %v1441 = vmax.f32 %v1405, 0.0
  %v1442 = vmax.f32 %v1408, 0.0
  %v1443 = vmax.f32 %v1413, 0.0
  %v1444 = vmax.f32 %v1416, 0.0
  %v1445 = vmax.f32 %v1421, 0.0
  %v1446 = vmax.f32 %v1424, 0.0
  %v1447 = vmax.f32 %v1429, 0.0
  %v1448 = vmax.f32 %v1432, 0.0
  %1449 = vst [vmem:[%s3] sm:$0xff] %v1435
  %1450 = vst [vmem:[%s3 + $0x8] sm:$0xff] %v1436
  %1451 = vst [vmem:[%s3 + $0x10] sm:$0xff] %v1437
  %1452 = vst [vmem:[%s3 + $0x18] sm:$0xff] %v1438
  %1453 = vst [vmem:[%s3 + $0x20] sm:$0xff] %v1439
  %1454 = vst [vmem:[%s3 + $0x28] sm:$0xff] %v1440
  %1455 = vst [vmem:[%s3 + $0x30] sm:$0xff] %v1441
  %1456 = vst [vmem:[%s3 + $0x38] sm:$0xff] %v1442
  %1457 = vst [vmem:[%s3 + $0x40] sm:$0xff] %v1443
  %1458 = vst [vmem:[%s3 + $0x48] sm:$0xff] %v1444
  %1459 = vst [vmem:[%s3 + $0x50] sm:$0xff] %v1445
  %1460 = vst [vmem:[%s3 + $0x58] sm:$0xff] %v1446
  %1461 = vst [vmem:[%s3 + $0x60] sm:$0xff] %v1447
  %1462 = vst [vmem:[%s3 + $0x68] sm:$0xff] %v1448
  // Predicated region
  $region14: #{dueling_cnn_dqn_forward.7} parent=0 // pred_check
    _
  $region15: #{dueling_cnn_dqn_forward.7} parent=0 // pred_check_branch
    %1464 = sbr.rel (0) target = $region17
  $region16: #{dueling_cnn_dqn_forward.7} parent=0 // pred_region
    _
  $region17: #{dueling_cnn_dqn_forward.7} parent=0 // pred_fallthru
    _
  // Predicated region
  $region18: #{dueling_cnn_dqn_forward.7} parent=0 // pred_check
    _
  $region19: #{dueling_cnn_dqn_forward.7} parent=0 // pred_check_branch
    %1466 = sbr.rel (0) target = $region21
  $region20: #{dueling_cnn_dqn_forward.7} parent=0 // pred_region
    _
  $region21: #{dueling_cnn_dqn_forward.7} parent=0 // pred_fallthru
    _

// kernel: dueling_cnn_dqn_forward.9
$region0: #{dueling_cnn_dqn_forward.9}
  #allocation0 [shape = 'u32[]', space=smem, size = 0x4, offset = 0x4, fixed_abs, tag = 'smem constant byte address 0x4 - core index']
  #allocation1 [shape = 'u32[144,128]{1,0:T(1,128)}', space=vmem, size = 0x12000, scoped, tag = 'internal scratch']
  %s0 = inlined_call_operand.vmem [shape: bf16[16,1024], index: 0, kind: input, shape index: {}]
  %s1 = inlined_call_operand.vmem [shape: bf16[1024,128], index: 1, kind: input, shape index: {}]
  %s2 = inlined_call_operand.vmem [shape: f32[1,128], index: 2, kind: input, shape index: {}]
  %s3 = inlined_call_operand.vmem [shape: f32[16,128], index: 3, kind: output, shape index: {}]
  %s4 = sld [smem:[#allocation0]]
  $region22: #{dueling_cnn_dqn_forward.9} parent=0
    _
  %s6 = ssub.s32 1, %s4
  %s7 = scalar_select 0, %s6, %s4
  // Predicated region
  $region2: #{dueling_cnn_dqn_forward.9} parent=0 // pred_check
    _
  $region3: #{dueling_cnn_dqn_forward.9} parent=0 // pred_check_branch
    %9 = sbr.rel (0) target = $region5
  $region4: #{dueling_cnn_dqn_forward.9} parent=0 // pred_region
    _
  $region5: #{dueling_cnn_dqn_forward.9} parent=0 // pred_fallthru
    _
  // Predicated region
  $region6: #{dueling_cnn_dqn_forward.9} parent=0 // pred_check
    _
  $region7: #{dueling_cnn_dqn_forward.9} parent=0 // pred_check_branch
    %11 = sbr.rel (0) target = $region9
  $region8: #{dueling_cnn_dqn_forward.9} parent=0 // pred_region
    _
  $region9: #{dueling_cnn_dqn_forward.9} parent=0 // pred_fallthru
    _
  // Predicated region
  $region10: #{dueling_cnn_dqn_forward.9} parent=0 // pred_check
    _
  $region11: #{dueling_cnn_dqn_forward.9} parent=0 // pred_check_branch
    %13 = sbr.rel (0) target = $region13
  $region12: #{dueling_cnn_dqn_forward.9} parent=0 // pred_region
    _
  $region13: #{dueling_cnn_dqn_forward.9} parent=0 // pred_fallthru
    _
  %v15 = vld [vmem:[%s0] sm:$0xff]
  %v16 = vld [vmem:[%s0 + $0x8] sm:$0xff]
  %v17 = vld [vmem:[%s0 + $0x10] sm:$0xff]
  %v18 = vld [vmem:[%s0 + $0x18] sm:$0xff]
  %v19 = vld [vmem:[%s0 + $0x20] sm:$0xff]
  %v20 = vld [vmem:[%s0 + $0x28] sm:$0xff]
  %v21 = vld [vmem:[%s0 + $0x30] sm:$0xff]
  %v22 = vld [vmem:[%s0 + $0x38] sm:$0xff]
  %v23 = vld [vmem:[%s1] sm:$0xf]
  %v24 = vld [vmem:[%s1 + $0x4] sm:$0xf]
  %v25 = vld [vmem:[%s1 + $0x8] sm:$0xf]
  %v26 = vld [vmem:[%s1 + $0xc] sm:$0xf]
  %v27 = vld [vmem:[%s1 + $0x10] sm:$0xf]
  %v28 = vld [vmem:[%s1 + $0x14] sm:$0xf]
  %v29 = vld [vmem:[%s1 + $0x18] sm:$0xf]
  %v30 = vld [vmem:[%s1 + $0x1c] sm:$0xf]
  %v31 = vld [vmem:[%s1 + $0x20] sm:$0xf]
  %v32 = vld [vmem:[%s1 + $0x24] sm:$0xf]
  %v33 = vld [vmem:[%s1 + $0x28] sm:$0xf]
  %v34 = vld [vmem:[%s1 + $0x2c] sm:$0xf]
  %v35 = vld [vmem:[%s1 + $0x30] sm:$0xf]
  %v36 = vld [vmem:[%s1 + $0x34] sm:$0xf]
  %v37 = vld [vmem:[%s1 + $0x38] sm:$0xf]
  %v38 = vld [vmem:[%s1 + $0x3c] sm:$0xf]
  %v39 = vld [vmem:[%s1 + $0x40] sm:$0xf]
  %v40 = vld [vmem:[%s1 + $0x44] sm:$0xf]
  %v41 = vld [vmem:[%s1 + $0x48] sm:$0xf]
  %v42 = vld [vmem:[%s1 + $0x4c] sm:$0xf]
  %v43 = vld [vmem:[%s1 + $0x50] sm:$0xf]
  %v44 = vld [vmem:[%s1 + $0x54] sm:$0xf]
  %v45 = vld [vmem:[%s1 + $0x58] sm:$0xf]
  %v46 = vld [vmem:[%s1 + $0x5c] sm:$0xf]
  %v47 = vld [vmem:[%s1 + $0x60] sm:$0xf]
  %v48 = vld [vmem:[%s1 + $0x64] sm:$0xf]
  %v49 = vld [vmem:[%s1 + $0x68] sm:$0xf]
  %v50 = vld [vmem:[%s1 + $0x6c] sm:$0xf]
  %v51 = vld [vmem:[%s1 + $0x70] sm:$0xf]
  %v52 = vld [vmem:[%s1 + $0x74] sm:$0xf]
  %v53 = vld [vmem:[%s1 + $0x78] sm:$0xf]
  %v54 = vld [vmem:[%s1 + $0x7c] sm:$0xf]
  %v55 = vld [vmem:[%s1 + $0x80] sm:$0xf]
  %v56 = vld [vmem:[%s1 + $0x84] sm:$0xf]
  %v57 = vld [vmem:[%s1 + $0x88] sm:$0xf]
  %v58 = vld [vmem:[%s1 + $0x8c] sm:$0xf]
  %v59 = vld [vmem:[%s1 + $0x90] sm:$0xf]
  %v60 = vld [vmem:[%s1 + $0x94] sm:$0xf]
  %v61 = vld [vmem:[%s1 + $0x98] sm:$0xf]
  %v62 = vld [vmem:[%s1 + $0x9c] sm:$0xf]
  %v63 = vld [vmem:[%s1 + $0xa0] sm:$0xf]
  %v64 = vld [vmem:[%s1 + $0xa4] sm:$0xf]
  %v65 = vld [vmem:[%s1 + $0xa8] sm:$0xf]
  %v66 = vld [vmem:[%s1 + $0xac] sm:$0xf]
  %v67 = vld [vmem:[%s1 + $0xb0] sm:$0xf]
  %v68 = vld [vmem:[%s1 + $0xb4] sm:$0xf]
  %v69 = vld [vmem:[%s1 + $0xb8] sm:$0xf]
  %v70 = vld [vmem:[%s1 + $0xbc] sm:$0xf]
  %v71 = vld [vmem:[%s1 + $0xc0] sm:$0xf]
  %v72 = vld [vmem:[%s1 + $0xc4] sm:$0xf]
  %v73 = vld [vmem:[%s1 + $0xc8] sm:$0xf]
  %v74 = vld [vmem:[%s1 + $0xcc] sm:$0xf]
  %v75 = vld [vmem:[%s1 + $0xd0] sm:$0xf]
  %v76 = vld [vmem:[%s1 + $0xd4] sm:$0xf]
  %v77 = vld [vmem:[%s1 + $0xd8] sm:$0xf]
  %v78 = vld [vmem:[%s1 + $0xdc] sm:$0xf]
  %v79 = vld [vmem:[%s1 + $0xe0] sm:$0xf]
  %v80 = vld [vmem:[%s1 + $0xe4] sm:$0xf]
  %v81 = vld [vmem:[%s1 + $0xe8] sm:$0xf]
  %v82 = vld [vmem:[%s1 + $0xec] sm:$0xf]
  %v83 = vld [vmem:[%s1 + $0xf0] sm:$0xf]
  %v84 = vld [vmem:[%s1 + $0xf4] sm:$0xf]
  %v85 = vld [vmem:[%s1 + $0xf8] sm:$0xf]
  %v86 = vld [vmem:[%s1 + $0xfc] sm:$0xf]
  %v87 = vld [vmem:[%s1 + $0x100] sm:$0xf]
  %v88 = vld [vmem:[%s1 + $0x104] sm:$0xf]
  %v89 = vld [vmem:[%s1 + $0x108] sm:$0xf]
  %v90 = vld [vmem:[%s1 + $0x10c] sm:$0xf]
  %v91 = vld [vmem:[%s1 + $0x110] sm:$0xf]
  %v92 = vld [vmem:[%s1 + $0x114] sm:$0xf]
  %v93 = vld [vmem:[%s1 + $0x118] sm:$0xf]
  %v94 = vld [vmem:[%s1 + $0x11c] sm:$0xf]
  %v95 = vld [vmem:[%s1 + $0x120] sm:$0xf]
  %v96 = vld [vmem:[%s1 + $0x124] sm:$0xf]
  %v97 = vld [vmem:[%s1 + $0x128] sm:$0xf]
  %v98 = vld [vmem:[%s1 + $0x12c] sm:$0xf]
  %v99 = vld [vmem:[%s1 + $0x130] sm:$0xf]
  %v100 = vld [vmem:[%s1 + $0x134] sm:$0xf]
  %v101 = vld [vmem:[%s1 + $0x138] sm:$0xf]
  %v102 = vld [vmem:[%s1 + $0x13c] sm:$0xf]
  %v103 = vld [vmem:[%s1 + $0x140] sm:$0xf]
  %v104 = vld [vmem:[%s1 + $0x144] sm:$0xf]
  %v105 = vld [vmem:[%s1 + $0x148] sm:$0xf]
  %v106 = vld [vmem:[%s1 + $0x14c] sm:$0xf]
  %v107 = vld [vmem:[%s1 + $0x150] sm:$0xf]
  %v108 = vld [vmem:[%s1 + $0x154] sm:$0xf]
  %v109 = vld [vmem:[%s1 + $0x158] sm:$0xf]
  %v110 = vld [vmem:[%s1 + $0x15c] sm:$0xf]
  %v111 = vld [vmem:[%s1 + $0x160] sm:$0xf]
  %v112 = vld [vmem:[%s1 + $0x164] sm:$0xf]
  %v113 = vld [vmem:[%s1 + $0x168] sm:$0xf]
  %v114 = vld [vmem:[%s1 + $0x16c] sm:$0xf]
  %v115 = vld [vmem:[%s1 + $0x170] sm:$0xf]
  %v116 = vld [vmem:[%s1 + $0x174] sm:$0xf]
  %v117 = vld [vmem:[%s1 + $0x178] sm:$0xf]
  %v118 = vld [vmem:[%s1 + $0x17c] sm:$0xf]
  %v119 = vld [vmem:[%s1 + $0x180] sm:$0xf]
  %v120 = vld [vmem:[%s1 + $0x184] sm:$0xf]
  %v121 = vld [vmem:[%s1 + $0x188] sm:$0xf]
  %v122 = vld [vmem:[%s1 + $0x18c] sm:$0xf]
  %v123 = vld [vmem:[%s1 + $0x190] sm:$0xf]
  %v124 = vld [vmem:[%s1 + $0x194] sm:$0xf]
  %v125 = vld [vmem:[%s1 + $0x198] sm:$0xf]
  %v126 = vld [vmem:[%s1 + $0x19c] sm:$0xf]
  %v127 = vld [vmem:[%s1 + $0x1a0] sm:$0xf]
  %v128 = vld [vmem:[%s1 + $0x1a4] sm:$0xf]
  %v129 = vld [vmem:[%s1 + $0x1a8] sm:$0xf]
  %v130 = vld [vmem:[%s1 + $0x1ac] sm:$0xf]
  %v131 = vld [vmem:[%s1 + $0x1b0] sm:$0xf]
  %v132 = vld [vmem:[%s1 + $0x1b4] sm:$0xf]
  %v133 = vld [vmem:[%s1 + $0x1b8] sm:$0xf]
  %v134 = vld [vmem:[%s1 + $0x1bc] sm:$0xf]
  %v135 = vld [vmem:[%s1 + $0x1c0] sm:$0xf]
  %v136 = vld [vmem:[%s1 + $0x1c4] sm:$0xf]
  %v137 = vld [vmem:[%s1 + $0x1c8] sm:$0xf]
  %v138 = vld [vmem:[%s1 + $0x1cc] sm:$0xf]
  %v139 = vld [vmem:[%s1 + $0x1d0] sm:$0xf]
  %v140 = vld [vmem:[%s1 + $0x1d4] sm:$0xf]
  %v141 = vld [vmem:[%s1 + $0x1d8] sm:$0xf]
  %v142 = vld [vmem:[%s1 + $0x1dc] sm:$0xf]
  %v143 = vld [vmem:[%s1 + $0x1e0] sm:$0xf]
  %v144 = vld [vmem:[%s1 + $0x1e4] sm:$0xf]
  %v145 = vld [vmem:[%s1 + $0x1e8] sm:$0xf]
  %v146 = vld [vmem:[%s1 + $0x1ec] sm:$0xf]
  %v147 = vld [vmem:[%s1 + $0x1f0] sm:$0xf]
  %v148 = vld [vmem:[%s1 + $0x1f4] sm:$0xf]
  %v149 = vld [vmem:[%s1 + $0x1f8] sm:$0xf]
  %v150 = vld [vmem:[%s1 + $0x1fc] sm:$0xf]
  %v151 = vld [vmem:[%s2] sm:$0x1]
  %v153 = vlaneseq
  %v154 = vshrl.u32 %v153, 7
  %v155 = vsub.s32 0, %v154
  %v156 = vrot.slane %v151, %v155
  %v166 = vunpack.c.l.b16 %v15
  %v167 = vunpack.c.h.b16 %v15
  %v168 = vunpack.c.l.b16 %v16
  %v169 = vunpack.c.h.b16 %v16
  %v170 = vunpack.c.l.b16 %v17
  %v171 = vunpack.c.h.b16 %v17
  %v172 = vunpack.c.l.b16 %v18
  %v173 = vunpack.c.h.b16 %v18
  %v174 = vunpack.c.l.b16 %v19
  %v175 = vunpack.c.h.b16 %v19
  %v176 = vunpack.c.l.b16 %v20
  %v177 = vunpack.c.h.b16 %v20
  %v178 = vunpack.c.l.b16 %v21
  %v179 = vunpack.c.h.b16 %v21
  %v180 = vunpack.c.l.b16 %v22
  %v181 = vunpack.c.h.b16 %v22
  %v182 = vpack.c.b16 %v174, %v166
  %v183 = vpack.c.b16 %v175, %v167
  %v184 = vpack.c.b16 %v176, %v168
  %v185 = vpack.c.b16 %v177, %v169
  %v186 = vpack.c.b16 %v178, %v170
  %v187 = vpack.c.b16 %v179, %v171
  %v188 = vpack.c.b16 %v180, %v172
  %v189 = vpack.c.b16 %v181, %v173
  %v326 = vunpack.c.l.b16 %v23
  %v327 = vunpack.c.l.b16 %v24
  %v328 = vunpack.c.l.b16 %v25
  %v329 = vunpack.c.l.b16 %v26
  %v330 = vunpack.c.l.b16 %v27
  %v331 = vunpack.c.l.b16 %v28
  %v332 = vunpack.c.l.b16 %v29
  %v333 = vunpack.c.l.b16 %v30
  %v334 = vunpack.c.l.b16 %v31
  %v335 = vunpack.c.l.b16 %v32
  %v336 = vunpack.c.l.b16 %v33
  %v337 = vunpack.c.l.b16 %v34
  %v338 = vunpack.c.l.b16 %v35
  %v339 = vunpack.c.l.b16 %v36
  %v340 = vunpack.c.l.b16 %v37
  %v341 = vunpack.c.l.b16 %v38
  %v342 = vunpack.c.l.b16 %v39
  %v343 = vunpack.c.l.b16 %v40
  %v344 = vunpack.c.l.b16 %v41
  %v345 = vunpack.c.l.b16 %v42
  %v346 = vunpack.c.l.b16 %v43
  %v347 = vunpack.c.l.b16 %v44
  %v348 = vunpack.c.l.b16 %v45
  %v349 = vunpack.c.l.b16 %v46
  %v350 = vunpack.c.l.b16 %v47
  %v351 = vunpack.c.l.b16 %v48
  %v352 = vunpack.c.l.b16 %v49
  %v353 = vunpack.c.l.b16 %v50
  %v354 = vunpack.c.l.b16 %v51
  %v355 = vunpack.c.l.b16 %v52
  %v356 = vunpack.c.l.b16 %v53
  %v357 = vunpack.c.l.b16 %v54
  %v358 = vunpack.c.l.b16 %v55
  %v359 = vunpack.c.l.b16 %v56
  %v360 = vunpack.c.l.b16 %v57
  %v361 = vunpack.c.l.b16 %v58
  %v362 = vunpack.c.l.b16 %v59
  %v363 = vunpack.c.l.b16 %v60
  %v364 = vunpack.c.l.b16 %v61
  %v365 = vunpack.c.l.b16 %v62
  %v366 = vunpack.c.l.b16 %v63
  %v367 = vunpack.c.l.b16 %v64
  %v368 = vunpack.c.l.b16 %v65
  %v369 = vunpack.c.l.b16 %v66
  %v370 = vunpack.c.l.b16 %v67
  %v371 = vunpack.c.l.b16 %v68
  %v372 = vunpack.c.l.b16 %v69
  %v373 = vunpack.c.l.b16 %v70
  %v374 = vunpack.c.l.b16 %v71
  %v375 = vunpack.c.l.b16 %v72
  %v376 = vunpack.c.l.b16 %v73
  %v377 = vunpack.c.l.b16 %v74
  %v378 = vunpack.c.l.b16 %v75
  %v379 = vunpack.c.l.b16 %v76
  %v380 = vunpack.c.l.b16 %v77
  %v381 = vunpack.c.l.b16 %v78
  %v382 = vunpack.c.l.b16 %v79
  %v383 = vunpack.c.l.b16 %v80
  %v384 = vunpack.c.l.b16 %v81
  %v385 = vunpack.c.l.b16 %v82
  %v386 = vunpack.c.l.b16 %v83
  %v387 = vunpack.c.l.b16 %v84
  %v388 = vunpack.c.l.b16 %v85
  %v389 = vunpack.c.l.b16 %v86
  %v390 = vunpack.c.l.b16 %v87
  %v391 = vunpack.c.l.b16 %v88
  %v392 = vunpack.c.l.b16 %v89
  %v393 = vunpack.c.l.b16 %v90
  %v394 = vunpack.c.l.b16 %v91
  %v395 = vunpack.c.l.b16 %v92
  %v396 = vunpack.c.l.b16 %v93
  %v397 = vunpack.c.l.b16 %v94
  %v398 = vunpack.c.l.b16 %v95
  %v399 = vunpack.c.l.b16 %v96
  %v400 = vunpack.c.l.b16 %v97
  %v401 = vunpack.c.l.b16 %v98
  %v402 = vunpack.c.l.b16 %v99
  %v403 = vunpack.c.l.b16 %v100
  %v404 = vunpack.c.l.b16 %v101
  %v405 = vunpack.c.l.b16 %v102
  %v406 = vunpack.c.l.b16 %v103
  %v407 = vunpack.c.l.b16 %v104
  %v408 = vunpack.c.l.b16 %v105
  %v409 = vunpack.c.l.b16 %v106
  %v410 = vunpack.c.l.b16 %v107
  %v411 = vunpack.c.l.b16 %v108
  %v412 = vunpack.c.l.b16 %v109
  %v413 = vunpack.c.l.b16 %v110
  %v414 = vunpack.c.l.b16 %v111
  %v415 = vunpack.c.l.b16 %v112
  %v416 = vunpack.c.l.b16 %v113
  %v417 = vunpack.c.l.b16 %v114
  %v418 = vunpack.c.l.b16 %v115
  %v419 = vunpack.c.l.b16 %v116
  %v420 = vunpack.c.l.b16 %v117
  %v421 = vunpack.c.l.b16 %v118
  %v422 = vunpack.c.l.b16 %v119
  %v423 = vunpack.c.l.b16 %v120
  %v424 = vunpack.c.l.b16 %v121
  %v425 = vunpack.c.l.b16 %v122
  %v426 = vunpack.c.l.b16 %v123
  %v427 = vunpack.c.l.b16 %v124
  %v428 = vunpack.c.l.b16 %v125
  %v429 = vunpack.c.l.b16 %v126
  %v430 = vunpack.c.l.b16 %v127
  %v431 = vunpack.c.l.b16 %v128
  %v432 = vunpack.c.l.b16 %v129
  %v433 = vunpack.c.l.b16 %v130
  %v434 = vunpack.c.l.b16 %v131
  %v435 = vunpack.c.l.b16 %v132
  %v436 = vunpack.c.l.b16 %v133
  %v437 = vunpack.c.l.b16 %v134
  %v438 = vunpack.c.l.b16 %v135
  %v439 = vunpack.c.l.b16 %v136
  %v440 = vunpack.c.l.b16 %v137
  %v441 = vunpack.c.l.b16 %v138
  %v442 = vunpack.c.l.b16 %v139
  %v443 = vunpack.c.l.b16 %v140
  %v444 = vunpack.c.l.b16 %v141
  %v445 = vunpack.c.l.b16 %v142
  %v446 = vunpack.c.l.b16 %v143
  %v447 = vunpack.c.l.b16 %v144
  %v448 = vunpack.c.l.b16 %v145
  %v449 = vunpack.c.l.b16 %v146
  %v450 = vunpack.c.l.b16 %v147
  %v451 = vunpack.c.l.b16 %v148
  %v452 = vunpack.c.l.b16 %v149
  %v453 = vunpack.c.l.b16 %v150
  %v454 = vpack.c.b16 %v327, %v326
  %v455 = vpack.c.b16 %v329, %v328
  %v456 = vpack.c.b16 %v331, %v330
  %v457 = vpack.c.b16 %v333, %v332
  %v458 = vpack.c.b16 %v335, %v334
  %v459 = vpack.c.b16 %v337, %v336
  %v460 = vpack.c.b16 %v339, %v338
  %v461 = vpack.c.b16 %v341, %v340
  %v462 = vpack.c.b16 %v343, %v342
  %v463 = vpack.c.b16 %v345, %v344
  %v464 = vpack.c.b16 %v347, %v346
  %v465 = vpack.c.b16 %v349, %v348
  %v466 = vpack.c.b16 %v351, %v350
  %v467 = vpack.c.b16 %v353, %v352
  %v468 = vpack.c.b16 %v355, %v354
  %v469 = vpack.c.b16 %v357, %v356
  %v470 = vpack.c.b16 %v359, %v358
  %v471 = vpack.c.b16 %v361, %v360
  %v472 = vpack.c.b16 %v363, %v362
  %v473 = vpack.c.b16 %v365, %v364
  %v474 = vpack.c.b16 %v367, %v366
  %v475 = vpack.c.b16 %v369, %v368
  %v476 = vpack.c.b16 %v371, %v370
  %v477 = vpack.c.b16 %v373, %v372
  %v478 = vpack.c.b16 %v375, %v374
  %v479 = vpack.c.b16 %v377, %v376
  %v480 = vpack.c.b16 %v379, %v378
  %v481 = vpack.c.b16 %v381, %v380
  %v482 = vpack.c.b16 %v383, %v382
  %v483 = vpack.c.b16 %v385, %v384
  %v484 = vpack.c.b16 %v387, %v386
  %v485 = vpack.c.b16 %v389, %v388
  %v486 = vpack.c.b16 %v391, %v390
  %v487 = vpack.c.b16 %v393, %v392
  %v488 = vpack.c.b16 %v395, %v394
  %v489 = vpack.c.b16 %v397, %v396
  %v490 = vpack.c.b16 %v399, %v398
  %v491 = vpack.c.b16 %v401, %v400
  %v492 = vpack.c.b16 %v403, %v402
  %v493 = vpack.c.b16 %v405, %v404
  %v494 = vpack.c.b16 %v407, %v406
  %v495 = vpack.c.b16 %v409, %v408
  %v496 = vpack.c.b16 %v411, %v410
  %v497 = vpack.c.b16 %v413, %v412
  %v498 = vpack.c.b16 %v415, %v414
  %v499 = vpack.c.b16 %v417, %v416
  %v500 = vpack.c.b16 %v419, %v418
  %v501 = vpack.c.b16 %v421, %v420
  %v502 = vpack.c.b16 %v423, %v422
  %v503 = vpack.c.b16 %v425, %v424
  %v504 = vpack.c.b16 %v427, %v426
  %v505 = vpack.c.b16 %v429, %v428
  %v506 = vpack.c.b16 %v431, %v430
  %v507 = vpack.c.b16 %v433, %v432
  %v508 = vpack.c.b16 %v435, %v434
  %v509 = vpack.c.b16 %v437, %v436
  %v510 = vpack.c.b16 %v439, %v438
  %v511 = vpack.c.b16 %v441, %v440
  %v512 = vpack.c.b16 %v443, %v442
  %v513 = vpack.c.b16 %v445, %v444
  %v514 = vpack.c.b16 %v447, %v446
  %v515 = vpack.c.b16 %v449, %v448
  %v516 = vpack.c.b16 %v451, %v450
  %v517 = vpack.c.b16 %v453, %v452
  %582 = vmatprep.subr.bf16.mxu0 0
  %583 = vmatpush1.bf16.msra.mxu0 %v454
  %584 = vmatprep.subr.bf16.mxu0 0
  %585 = vmatpush1.bf16.msra.mxu0 %v455
  %586 = vmatprep.subr.bf16.mxu0 0
  %587 = vmatpush1.bf16.msra.mxu0 %v456
  %588 = vmatprep.subr.bf16.mxu0 0
  %589 = vmatpush1.bf16.msra.mxu0 %v457
  %590 = vmatprep.subr.bf16.mxu0 0
  %591 = vmatpush1.bf16.msra.mxu0 %v458
  %592 = vmatprep.subr.bf16.mxu0 0
  %593 = vmatpush1.bf16.msra.mxu0 %v459
  %594 = vmatprep.subr.bf16.mxu0 0
  %595 = vmatpush1.bf16.msra.mxu0 %v460
  %596 = vmatprep.subr.bf16.mxu0 0
  %597 = vmatpush1.bf16.msra.mxu0 %v461
  %598 = vmatprep.subr.bf16.mxu0 0
  %599 = vmatpush1.bf16.msra.mxu0 %v462
  %600 = vmatprep.subr.bf16.mxu0 0
  %601 = vmatpush1.bf16.msra.mxu0 %v463
  %602 = vmatprep.subr.bf16.mxu0 0
  %603 = vmatpush1.bf16.msra.mxu0 %v464
  %604 = vmatprep.subr.bf16.mxu0 0
  %605 = vmatpush1.bf16.msra.mxu0 %v465
  %606 = vmatprep.subr.bf16.mxu0 0
  %607 = vmatpush1.bf16.msra.mxu0 %v466
  %608 = vmatprep.subr.bf16.mxu0 0
  %609 = vmatpush1.bf16.msra.mxu0 %v467
  %610 = vmatprep.subr.bf16.mxu0 0
  %611 = vmatpush1.bf16.msra.mxu0 %v468
  %612 = vmatprep.subr.bf16.mxu0 0
  %613 = vmatpush1.bf16.msra.mxu0 %v469
  %614 = vmatprep.mubr.bf16.mxu0 %v183
  %615 = vmatmul.mubr.bf16.gmra.mrb[0].mxu0 %v182
  %v616 = vpop.f32.mrb[0].mxu0
  %v617 = vadd.f32 %v156, %v616
  %v618 = vpop.f32.mrb[0].mxu0
  %v619 = vpop.f32.mrb[0].mxu0
  %v620 = vadd.f32 %v156, %v619
  %v621 = vpop.f32.mrb[0].mxu0
  %622 = vdwg.mxu0
  %623 = vmatprep.subr.bf16.mxu0 0
  %624 = vmatpush1.bf16.msra.mxu0 %v470
  %625 = vmatprep.subr.bf16.mxu0 0
  %626 = vmatpush1.bf16.msra.mxu0 %v471
  %627 = vmatprep.subr.bf16.mxu0 0
  %628 = vmatpush1.bf16.msra.mxu0 %v472
  %629 = vmatprep.subr.bf16.mxu0 0
  %630 = vmatpush1.bf16.msra.mxu0 %v473
  %631 = vmatprep.subr.bf16.mxu0 0
  %632 = vmatpush1.bf16.msra.mxu0 %v474
  %633 = vmatprep.subr.bf16.mxu0 0
  %634 = vmatpush1.bf16.msra.mxu0 %v475
  %635 = vmatprep.subr.bf16.mxu0 0
  %636 = vmatpush1.bf16.msra.mxu0 %v476
  %637 = vmatprep.subr.bf16.mxu0 0
  %638 = vmatpush1.bf16.msra.mxu0 %v477
  %639 = vmatprep.subr.bf16.mxu0 0
  %640 = vmatpush1.bf16.msra.mxu0 %v478
  %641 = vmatprep.subr.bf16.mxu0 0
  %642 = vmatpush1.bf16.msra.mxu0 %v479
  %643 = vmatprep.subr.bf16.mxu0 0
  %644 = vmatpush1.bf16.msra.mxu0 %v480
  %645 = vmatprep.subr.bf16.mxu0 0
  %646 = vmatpush1.bf16.msra.mxu0 %v481
  %647 = vmatprep.subr.bf16.mxu0 0
  %648 = vmatpush1.bf16.msra.mxu0 %v482
  %649 = vmatprep.subr.bf16.mxu0 0
  %650 = vmatpush1.bf16.msra.mxu0 %v483
  %651 = vmatprep.subr.bf16.mxu0 0
  %652 = vmatpush1.bf16.msra.mxu0 %v484
  %653 = vmatprep.subr.bf16.mxu0 0
  %654 = vmatpush1.bf16.msra.mxu0 %v485
  %655 = vmatprep.mubr.bf16.mxu0 %v185
  %656 = vmatmul.mubr.bf16.gmra.mrb[0].mxu0 %v184
  %v657 = vpop.f32.mrb[0].mxu0
  %v658 = vadd.f32 %v617, %v657
  %v659 = vpop.f32.mrb[0].mxu0
  %v660 = vpop.f32.mrb[0].mxu0
  %v661 = vadd.f32 %v620, %v660
  %v662 = vpop.f32.mrb[0].mxu0
  %663 = vdwg.mxu0
  %664 = vmatprep.subr.bf16.mxu0 0
  %665 = vmatpush1.bf16.msra.mxu0 %v486
  %666 = vmatprep.subr.bf16.mxu0 0
  %667 = vmatpush1.bf16.msra.mxu0 %v487
  %668 = vmatprep.subr.bf16.mxu0 0
  %669 = vmatpush1.bf16.msra.mxu0 %v488
  %670 = vmatprep.subr.bf16.mxu0 0
  %671 = vmatpush1.bf16.msra.mxu0 %v489
  %672 = vmatprep.subr.bf16.mxu0 0
  %673 = vmatpush1.bf16.msra.mxu0 %v490
  %674 = vmatprep.subr.bf16.mxu0 0
  %675 = vmatpush1.bf16.msra.mxu0 %v491
  %676 = vmatprep.subr.bf16.mxu0 0
  %677 = vmatpush1.bf16.msra.mxu0 %v492
  %678 = vmatprep.subr.bf16.mxu0 0
  %679 = vmatpush1.bf16.msra.mxu0 %v493
  %680 = vmatprep.subr.bf16.mxu0 0
  %681 = vmatpush1.bf16.msra.mxu0 %v494
  %682 = vmatprep.subr.bf16.mxu0 0
  %683 = vmatpush1.bf16.msra.mxu0 %v495
  %684 = vmatprep.subr.bf16.mxu0 0
  %685 = vmatpush1.bf16.msra.mxu0 %v496
  %686 = vmatprep.subr.bf16.mxu0 0
  %687 = vmatpush1.bf16.msra.mxu0 %v497
  %688 = vmatprep.subr.bf16.mxu0 0
  %689 = vmatpush1.bf16.msra.mxu0 %v498
  %690 = vmatprep.subr.bf16.mxu0 0
  %691 = vmatpush1.bf16.msra.mxu0 %v499
  %692 = vmatprep.subr.bf16.mxu0 0
  %693 = vmatpush1.bf16.msra.mxu0 %v500
  %694 = vmatprep.subr.bf16.mxu0 0
  %695 = vmatpush1.bf16.msra.mxu0 %v501
  %696 = vmatprep.mubr.bf16.mxu0 %v187
  %697 = vmatmul.mubr.bf16.gmra.mrb[0].mxu0 %v186
  %v698 = vpop.f32.mrb[0].mxu0
  %v699 = vadd.f32 %v658, %v698
  %v700 = vpop.f32.mrb[0].mxu0
  %v701 = vpop.f32.mrb[0].mxu0
  %v702 = vadd.f32 %v661, %v701
  %v703 = vpop.f32.mrb[0].mxu0
  %704 = vdwg.mxu0
  %705 = vmatprep.subr.bf16.mxu0 0
  %706 = vmatpush1.bf16.msra.mxu0 %v502
  %707 = vmatprep.subr.bf16.mxu0 0
  %708 = vmatpush1.bf16.msra.mxu0 %v503
  %709 = vmatprep.subr.bf16.mxu0 0
  %710 = vmatpush1.bf16.msra.mxu0 %v504
  %711 = vmatprep.subr.bf16.mxu0 0
  %712 = vmatpush1.bf16.msra.mxu0 %v505
  %713 = vmatprep.subr.bf16.mxu0 0
  %714 = vmatpush1.bf16.msra.mxu0 %v506
  %715 = vmatprep.subr.bf16.mxu0 0
  %716 = vmatpush1.bf16.msra.mxu0 %v507
  %717 = vmatprep.subr.bf16.mxu0 0
  %718 = vmatpush1.bf16.msra.mxu0 %v508
  %719 = vmatprep.subr.bf16.mxu0 0
  %720 = vmatpush1.bf16.msra.mxu0 %v509
  %721 = vmatprep.subr.bf16.mxu0 0
  %722 = vmatpush1.bf16.msra.mxu0 %v510
  %723 = vmatprep.subr.bf16.mxu0 0
  %724 = vmatpush1.bf16.msra.mxu0 %v511
  %725 = vmatprep.subr.bf16.mxu0 0
  %726 = vmatpush1.bf16.msra.mxu0 %v512
  %727 = vmatprep.subr.bf16.mxu0 0
  %728 = vmatpush1.bf16.msra.mxu0 %v513
  %729 = vmatprep.subr.bf16.mxu0 0
  %730 = vmatpush1.bf16.msra.mxu0 %v514
  %731 = vmatprep.subr.bf16.mxu0 0
  %732 = vmatpush1.bf16.msra.mxu0 %v515
  %733 = vmatprep.subr.bf16.mxu0 0
  %734 = vmatpush1.bf16.msra.mxu0 %v516
  %735 = vmatprep.subr.bf16.mxu0 0
  %736 = vmatpush1.bf16.msra.mxu0 %v517
  %737 = vmatprep.mubr.bf16.mxu0 %v189
  %738 = vmatmul.mubr.bf16.gmra.mrb[0].mxu0 %v188
  %v739 = vpop.f32.mrb[0].mxu0
  %v740 = vadd.f32 %v699, %v739
  %v741 = vpop.f32.mrb[0].mxu0
  %v742 = vpop.f32.mrb[0].mxu0
  %v743 = vadd.f32 %v702, %v742
  %v744 = vpop.f32.mrb[0].mxu0
  %745 = vdwg.mxu0
  %v746 = vlaneseq
  %v747 = vand.u32 %v746, 127
  %vm748 = vcmp.ge.s32.totalorder %v747, 1
  %vm749 = vcmp.le.s32.totalorder %v747, 6
  %vm750 = vmand %vm748, %vm749
  %v751 = vsel %vm750, %v740, 0.0
  %v752 = vsel %vm750, %v743, 0.0
  %753 = vadd.xlane.f32.xlu0 %v751
  %v754 = vpop.xlane.xlu0 %753
  %755 = vadd.xlane.f32.xlu0 %v752
  %v756 = vpop.xlane.xlu0 %755
  %758 = vset.pattern.permute.xlu0 0
  %759 = vperm.xlu0 %758, %v740
  %v760 = vpop.permute.xlu0 %759
  %763 = vset.pattern.permute.xlu0 0
  %764 = vperm.xlu0 %763, %v743
  %v765 = vpop.permute.xlu0 %764
  %v767 = vadd.f32 %v760, %v751
  %v768 = vadd.f32 %v765, %v752
  %v769 = vmul.f32 %v754, 0.16666667
  %v770 = vmul.f32 %v756, 0.16666667
  %v771 = vsub.f32 %v767, %v769
  %v772 = vsub.f32 %v768, %v770
  %773 = vst [vmem:[%s3] sm:$0xff] %v771
  %774 = vst [vmem:[%s3 + $0x8] sm:$0xff] %v772
  // Predicated region
  $region14: #{dueling_cnn_dqn_forward.9} parent=0 // pred_check
    _
  $region15: #{dueling_cnn_dqn_forward.9} parent=0 // pred_check_branch
    %776 = sbr.rel (0) target = $region17
  $region16: #{dueling_cnn_dqn_forward.9} parent=0 // pred_region
    _
  $region17: #{dueling_cnn_dqn_forward.9} parent=0 // pred_fallthru
    _
  // Predicated region
  $region18: #{dueling_cnn_dqn_forward.9} parent=0 // pred_check
    _
  $region19: #{dueling_cnn_dqn_forward.9} parent=0 // pred_check_branch
    %778 = sbr.rel (0) target = $region21
  $region20: #{dueling_cnn_dqn_forward.9} parent=0 // pred_region
    _
  $region21: #{dueling_cnn_dqn_forward.9} parent=0 // pred_fallthru
    _

// kernel: dueling_cnn_dqn_forward.8
$region0: #{dueling_cnn_dqn_forward.8}
  #allocation0 [shape = 'u32[]', space=smem, size = 0x4, offset = 0x4, fixed_abs, tag = 'smem constant byte address 0x4 - core index']
  #allocation1 [shape = 'u32[144,128]{1,0:T(1,128)}', space=vmem, size = 0x12000, scoped, tag = 'internal scratch']
  %s0 = inlined_call_operand.vmem [shape: bf16[16,3200], index: 0, kind: input, shape index: {}]
  %s1 = inlined_call_operand.vmem [shape: bf16[3200,1024], index: 1, kind: input, shape index: {}]
  %s2 = inlined_call_operand.vmem [shape: f32[1,1024], index: 2, kind: input, shape index: {}]
  %s3 = inlined_call_operand.vmem [shape: f32[16,1024], index: 3, kind: output, shape index: {}]
  %s4 = sld [smem:[#allocation0]]
  $region102: #{dueling_cnn_dqn_forward.8} parent=0
    _
  %s6 = ssub.s32 1, %s4
  %s7 = scalar_select 0, %s6, %s4
  $region1: #{dueling_cnn_dqn_forward.8} parent=0
    #allocation2 [shape = 'u8[3276800]{0}', space=vmem, size = 0x320000, scoped, tag = 'input window, operand 1']
    #allocation3 [shape = 'u8[32768]{0}', space=vmem, size = 0x8000, scoped, tag = 'output window, operand 0']
    loop: start=0, step=1, limit=6
    $region2: #{dueling_cnn_dqn_forward.8} parent=1 // loop_pre_header
      _
    $region3: #{dueling_cnn_dqn_forward.8} parent=1 // loop_header
      %s9 = sphi 0, %s13
      %p10 = scmp.ge.s32.totalorder %s9, 6
      %s16 = sphi 0, %s28
      %s17 = sphi 0, %s24
      %s18 = sphi 0, %s16
      %s19 = sphi 0, %s17
      %s20 = sphi 0, %s18
      %s21 = sphi 0, %s19
      %s31 = sphi 0, %s33
      %s34 = sphi 0, %s31
      %s35 = sphi 0, %s34
      %s51 = sphi 0, %s35
      %s57 = sphi 0, %s59
      %s60 = sphi 0, %s57
      %s61 = sphi 0, %s60
      %s77 = sphi 0, %s61
      %s83 = sphi 0, %s85
      %s86 = sphi 0, %s83
      %s87 = sphi 0, %s86
      %s103 = sphi 0, %s87
      %s111 = sphi 0, %s113
      %s114 = sphi 0, %s111
      %s115 = sphi 0, %s114
      %s131 = sphi 0, %s115
    $region4: #{dueling_cnn_dqn_forward.8} parent=1 // loop_header_branch
      %12 = sbr.rel (%p10) target = $region8
    $region5: #{dueling_cnn_dqn_forward.8} parent=1 // loop_body
      %s14 = ssub.s32 %s9, 1
      %s15 = ssub.s32 %s9, 2
      %s22 = sadd.s32 1, %s17
      %p23 = scmp.ge.s32.totalorder %s22, 4
      %s24 = scalar_select %p23, 0, %s22
      %s25 = sadd.s32 1, %s16
      %s26 = scalar_select %p23, %s25, %s16
      %p27 = scmp.ge.s32.totalorder %s26, 1
      %s28 = scalar_select %p27, 0, %s26
      %s29 = ssub.s32 %s16, %s28
      %p30 = scmp.eq.s32.totalorder %s29, 0
      %s32 = sadd.s32 %s31, 1
      %s33 = scalar_select %p30, %s31, %s32
      %p36 = pneg %p30
      %p37 = scmp.eq.s32.totalorder %s9, 3
      %p38 = por %p36, %p37
      %p39 = scmp.ne.s32.totalorder %s31, %s34
      %p40 = scmp.eq.s32.totalorder %s9, 0
      %p41 = por %p39, %p40
      %p42 = scmp.ne.s32.totalorder %s31, %s34
      %p43 = scmp.eq.s32.totalorder %s14, 3
      %p44 = por %p42, %p43
      %p45 = scmp.ne.s32.totalorder %s34, %s35
      %p46 = scmp.eq.s32.totalorder %s14, 0
      %p47 = por %p45, %p46
      %p48 = scmp.ne.s32.totalorder %s34, %s35
      %p49 = scmp.eq.s32.totalorder %s15, 3
      %p50 = por %p48, %p49
      %p52 = scmp.ne.s32.totalorder %s35, %s51
      %p53 = scmp.eq.s32.totalorder %s15, 0
      %p54 = por %p52, %p53
      %s55 = ssub.s32 %s17, %s24
      %p56 = scmp.eq.s32.totalorder %s55, 0
      %s58 = sadd.s32 %s57, 1
      %s59 = scalar_select %p56, %s57, %s58
      %p62 = pneg %p56
      %p63 = scmp.eq.s32.totalorder %s9, 3
      %p64 = por %p62, %p63
      %p65 = scmp.ne.s32.totalorder %s57, %s60
      %p66 = scmp.eq.s32.totalorder %s9, 0
      %p67 = por %p65, %p66
      %p68 = scmp.ne.s32.totalorder %s57, %s60
      %p69 = scmp.eq.s32.totalorder %s14, 3
      %p70 = por %p68, %p69
      %p71 = scmp.ne.s32.totalorder %s60, %s61
      %p72 = scmp.eq.s32.totalorder %s14, 0
      %p73 = por %p71, %p72
      %p74 = scmp.ne.s32.totalorder %s60, %s61
      %p75 = scmp.eq.s32.totalorder %s15, 3
      %p76 = por %p74, %p75
      %p78 = scmp.ne.s32.totalorder %s61, %s77
      %p79 = scmp.eq.s32.totalorder %s15, 0
      %p80 = por %p78, %p79
      %s81 = ssub.s32 %s17, %s24
      %p82 = scmp.eq.s32.totalorder %s81, 0
      %s84 = sadd.s32 %s83, 1
      %s85 = scalar_select %p82, %s83, %s84
      %p88 = pneg %p82
      %p89 = scmp.eq.s32.totalorder %s9, 3
      %p90 = por %p88, %p89
      %p91 = scmp.ne.s32.totalorder %s83, %s86
      %p92 = scmp.eq.s32.totalorder %s9, 0
      %p93 = por %p91, %p92
      %p94 = scmp.ne.s32.totalorder %s83, %s86
      %p95 = scmp.eq.s32.totalorder %s14, 3
      %p96 = por %p94, %p95
      %p97 = scmp.ne.s32.totalorder %s86, %s87
      %p98 = scmp.eq.s32.totalorder %s14, 0
      %p99 = por %p97, %p98
      %p100 = scmp.ne.s32.totalorder %s86, %s87
      %p101 = scmp.eq.s32.totalorder %s15, 3
      %p102 = por %p100, %p101
      %p104 = scmp.ne.s32.totalorder %s87, %s103
      %p105 = scmp.eq.s32.totalorder %s15, 0
      %p106 = por %p104, %p105
      %s107 = ssub.s32 %s16, %s28
      %s108 = ssub.s32 %s17, %s24
      %s109 = sor.u32 %s107, %s108
      %p110 = scmp.eq.s32.totalorder %s109, 0
      %s112 = sadd.s32 %s111, 1
      %s113 = scalar_select %p110, %s111, %s112
      %p116 = pneg %p110
      %p117 = scmp.eq.s32.totalorder %s9, 3
      %p118 = por %p116, %p117
      %p119 = scmp.ne.s32.totalorder %s111, %s114
      %p120 = scmp.eq.s32.totalorder %s9, 0
      %p121 = por %p119, %p120
      %p122 = scmp.ne.s32.totalorder %s111, %s114
      %p123 = scmp.eq.s32.totalorder %s14, 3
      %p124 = por %p122, %p123
      %p125 = scmp.ne.s32.totalorder %s114, %s115
      %p126 = scmp.eq.s32.totalorder %s14, 0
      %p127 = por %p125, %p126
      %p128 = scmp.ne.s32.totalorder %s114, %s115
      %p129 = scmp.eq.s32.totalorder %s15, 3
      %p130 = por %p128, %p129
      %p132 = scmp.ne.s32.totalorder %s115, %s131
      %p133 = scmp.eq.s32.totalorder %s15, 0
      %p134 = por %p132, %p133
      %p135 = scmp.le.s32.totalorder 1, %s9
      %p136 = scmp.lt.s32.totalorder %s9, 5
      %p137 = pnand %p135, %p136
      %p138 = pneg %p137
      // Predicated region
      $region9: #{dueling_cnn_dqn_forward.8} parent=5 // pred_check
        _
      $region10: #{dueling_cnn_dqn_forward.8} parent=5 // pred_check_branch
        %140 = sbr.rel (%p137) target = $region12
      $region11: #{dueling_cnn_dqn_forward.8} parent=5 // pred_region
        %s141 = ssub.s32 %s9, 1
        // Predicated region
        $region13: #{dueling_cnn_dqn_forward.8} parent=11 // pred_check
          %p142 = pneg %p47
        $region14: #{dueling_cnn_dqn_forward.8} parent=11 // pred_check_branch
          %144 = sbr.rel (%p142) target = $region16
        $region15: #{dueling_cnn_dqn_forward.8} parent=11 // pred_region
          %s145 = smul.u32 2, %s18
          %p146 = scmp.lt.s32.totalorder %s145, 1
          %s147 = scalar_select %p146, %s145, 1
          %s148 = smul.addr %s147, 25
          %s149 = smul.addr %s148, 4
          %s150 = scalar_lea.vmem %s0, %s149
          %s151 = smul.u32 2, %s18
        $region16: #{dueling_cnn_dqn_forward.8} parent=11 // pred_fallthru
          _
      $region12: #{dueling_cnn_dqn_forward.8} parent=5 // pred_fallthru
        _
      %p152 = scmp.lt.s32.totalorder %s9, 4
      // Predicated region
      $region17: #{dueling_cnn_dqn_forward.8} parent=5 // pred_check
        %p153 = pneg %p152
      $region18: #{dueling_cnn_dqn_forward.8} parent=5 // pred_check_branch
        %155 = sbr.rel (%p153) target = $region20
      $region19: #{dueling_cnn_dqn_forward.8} parent=5 // pred_region
        // Predicated region
        $region21: #{dueling_cnn_dqn_forward.8} parent=19 // pred_check
          %p156 = pneg %p67
        $region22: #{dueling_cnn_dqn_forward.8} parent=19 // pred_check_branch
          %158 = sbr.rel (%p156) target = $region24
        $region23: #{dueling_cnn_dqn_forward.8} parent=19 // pred_region
          %s159 = sand.u32 %s57, 1
          %s160 = sand.u32 %s57, 1
          %s161 = smul.addr %s160, 3200
          %s162 = scalar_lea.vmem [#allocation2], %s161
          %s163 = smul.u32 2, %s17
          %s164 = smul.addr %s163, 4
          %s165 = scalar_lea.vmem %s1, %s164
          // Predicated region
          $region25: #{dueling_cnn_dqn_forward.8} parent=23 // pred_check
            _
          $region26: #{dueling_cnn_dqn_forward.8} parent=23 // pred_check_branch
            %167 = sbr.rel (0) target = $region28
          $region27: #{dueling_cnn_dqn_forward.8} parent=23 // pred_region
            // Predicated region
            $region29: #{dueling_cnn_dqn_forward.8} parent=27 // pred_check
              _
            $region30: #{dueling_cnn_dqn_forward.8} parent=27 // pred_check_branch
              %169 = sbr.rel (0) target = $region32
            $region31: #{dueling_cnn_dqn_forward.8} parent=27 // pred_region
              // Predicated region
              $region44: #{dueling_cnn_dqn_forward.8} parent=31 // pred_check
                _
              $region45: #{dueling_cnn_dqn_forward.8} parent=31 // pred_check_branch
                %982 = sbr.rel (0) target = $region47
              $region46: #{dueling_cnn_dqn_forward.8} parent=31 // pred_region
                loop: start=0, step=1, limit=1
                $region48: #{dueling_cnn_dqn_forward.8} parent=46 // loop_pre_header
                  _
                $region49: #{dueling_cnn_dqn_forward.8} parent=46 // loop_header
                  %s984 = sphi 0, %s988
                  %p985 = scmp.ge.s32.totalorder %s984, 1
                  %s989 = sphi %s165, %s165
                  %s990 = sphi %s162, %s162
                $region50: #{dueling_cnn_dqn_forward.8} parent=46 // loop_header_branch
                  %987 = sbr.rel (%p985) target = $region54
                $region51: #{dueling_cnn_dqn_forward.8} parent=46 // loop_body
                  %v991 = vld [vmem:[%s989] sm:$0xff]
                  %992 = vst [vmem:[%s990] sm:$0xff] %v991
                  %v993 = vld [vmem:[%s989 + $0x20] sm:$0xff]
                  %994 = vst [vmem:[%s990 + $0x8] sm:$0xff] %v993
                  %v995 = vld [vmem:[%s989 + $0x40] sm:$0xff]
                  %996 = vst [vmem:[%s990 + $0x10] sm:$0xff] %v995
                  %v997 = vld [vmem:[%s989 + $0x60] sm:$0xff]
                  %998 = vst [vmem:[%s990 + $0x18] sm:$0xff] %v997
                  %v999 = vld [vmem:[%s989 + $0x80] sm:$0xff]
                  %1000 = vst [vmem:[%s990 + $0x20] sm:$0xff] %v999
                  %v1001 = vld [vmem:[%s989 + $0xa0] sm:$0xff]
                  %1002 = vst [vmem:[%s990 + $0x28] sm:$0xff] %v1001
                  %v1003 = vld [vmem:[%s989 + $0xc0] sm:$0xff]
                  %1004 = vst [vmem:[%s990 + $0x30] sm:$0xff] %v1003
                  %v1005 = vld [vmem:[%s989 + $0xe0] sm:$0xff]
                  %1006 = vst [vmem:[%s990 + $0x38] sm:$0xff] %v1005
                  %v1007 = vld [vmem:[%s989 + $0x100] sm:$0xff]
                  %1008 = vst [vmem:[%s990 + $0x40] sm:$0xff] %v1007
                  %v1009 = vld [vmem:[%s989 + $0x120] sm:$0xff]
                  %1010 = vst [vmem:[%s990 + $0x48] sm:$0xff] %v1009
                  %v1011 = vld [vmem:[%s989 + $0x140] sm:$0xff]
                  %1012 = vst [vmem:[%s990 + $0x50] sm:$0xff] %v1011
                  %v1013 = vld [vmem:[%s989 + $0x160] sm:$0xff]
                  %1014 = vst [vmem:[%s990 + $0x58] sm:$0xff] %v1013
                  %v1015 = vld [vmem:[%s989 + $0x180] sm:$0xff]
                  %1016 = vst [vmem:[%s990 + $0x60] sm:$0xff] %v1015
                  %v1017 = vld [vmem:[%s989 + $0x1a0] sm:$0xff]
                  %1018 = vst [vmem:[%s990 + $0x68] sm:$0xff] %v1017
                  %v1019 = vld [vmem:[%s989 + $0x1c0] sm:$0xff]
                  %1020 = vst [vmem:[%s990 + $0x70] sm:$0xff] %v1019
                  %v1021 = vld [vmem:[%s989 + $0x1e0] sm:$0xff]
                  %1022 = vst [vmem:[%s990 + $0x78] sm:$0xff] %v1021
                  %v1023 = vld [vmem:[%s989 + $0x200] sm:$0xff]
                  %1024 = vst [vmem:[%s990 + $0x80] sm:$0xff] %v1023
                  %v1025 = vld [vmem:[%s989 + $0x220] sm:$0xff]
                  %1026 = vst [vmem:[%s990 + $0x88] sm:$0xff] %v1025
                  %v1027 = vld [vmem:[%s989 + $0x240] sm:$0xff]
                  %1028 = vst [vmem:[%s990 + $0x90] sm:$0xff] %v1027
                  %v1029 = vld [vmem:[%s989 + $0x260] sm:$0xff]
                  %1030 = vst [vmem:[%s990 + $0x98] sm:$0xff] %v1029
                  %v1031 = vld [vmem:[%s989 + $0x280] sm:$0xff]
                  %1032 = vst [vmem:[%s990 + $0xa0] sm:$0xff] %v1031
                  %v1033 = vld [vmem:[%s989 + $0x2a0] sm:$0xff]
                  %1034 = vst [vmem:[%s990 + $0xa8] sm:$0xff] %v1033
                  %v1035 = vld [vmem:[%s989 + $0x2c0] sm:$0xff]
                  %1036 = vst [vmem:[%s990 + $0xb0] sm:$0xff] %v1035
                  %v1037 = vld [vmem:[%s989 + $0x2e0] sm:$0xff]
                  %1038 = vst [vmem:[%s990 + $0xb8] sm:$0xff] %v1037
                  %v1039 = vld [vmem:[%s989 + $0x300] sm:$0xff]
                  %1040 = vst [vmem:[%s990 + $0xc0] sm:$0xff] %v1039
                  %v1041 = vld [vmem:[%s989 + $0x320] sm:$0xff]
                  %1042 = vst [vmem:[%s990 + $0xc8] sm:$0xff] %v1041
                  %v1043 = vld [vmem:[%s989 + $0x340] sm:$0xff]
                  %1044 = vst [vmem:[%s990 + $0xd0] sm:$0xff] %v1043
                  %v1045 = vld [vmem:[%s989 + $0x360] sm:$0xff]
                  %1046 = vst [vmem:[%s990 + $0xd8] sm:$0xff] %v1045
                  %v1047 = vld [vmem:[%s989 + $0x380] sm:$0xff]
                  %1048 = vst [vmem:[%s990 + $0xe0] sm:$0xff] %v1047
                  %v1049 = vld [vmem:[%s989 + $0x3a0] sm:$0xff]
                  %1050 = vst [vmem:[%s990 + $0xe8] sm:$0xff] %v1049
                  %v1051 = vld [vmem:[%s989 + $0x3c0] sm:$0xff]
                  %1052 = vst [vmem:[%s990 + $0xf0] sm:$0xff] %v1051
                  %v1053 = vld [vmem:[%s989 + $0x3e0] sm:$0xff]
                  %1054 = vst [vmem:[%s990 + $0xf8] sm:$0xff] %v1053
                  %v1055 = vld [vmem:[%s989 + $0x400] sm:$0xff]
                  %1056 = vst [vmem:[%s990 + $0x100] sm:$0xff] %v1055
                  %v1057 = vld [vmem:[%s989 + $0x420] sm:$0xff]
                  %1058 = vst [vmem:[%s990 + $0x108] sm:$0xff] %v1057
                  %v1059 = vld [vmem:[%s989 + $0x440] sm:$0xff]
                  %1060 = vst [vmem:[%s990 + $0x110] sm:$0xff] %v1059
                  %v1061 = vld [vmem:[%s989 + $0x460] sm:$0xff]
                  %1062 = vst [vmem:[%s990 + $0x118] sm:$0xff] %v1061
                  %v1063 = vld [vmem:[%s989 + $0x480] sm:$0xff]
                  %1064 = vst [vmem:[%s990 + $0x120] sm:$0xff] %v1063
                  %v1065 = vld [vmem:[%s989 + $0x4a0] sm:$0xff]
                  %1066 = vst [vmem:[%s990 + $0x128] sm:$0xff] %v1065
                  %v1067 = vld [vmem:[%s989 + $0x4c0] sm:$0xff]
                  %1068 = vst [vmem:[%s990 + $0x130] sm:$0xff] %v1067
                  %v1069 = vld [vmem:[%s989 + $0x4e0] sm:$0xff]
                  %1070 = vst [vmem:[%s990 + $0x138] sm:$0xff] %v1069
                  %v1071 = vld [vmem:[%s989 + $0x500] sm:$0xff]
                  %1072 = vst [vmem:[%s990 + $0x140] sm:$0xff] %v1071
                  %v1073 = vld [vmem:[%s989 + $0x520] sm:$0xff]
                  %1074 = vst [vmem:[%s990 + $0x148] sm:$0xff] %v1073
                  %v1075 = vld [vmem:[%s989 + $0x540] sm:$0xff]
                  %1076 = vst [vmem:[%s990 + $0x150] sm:$0xff] %v1075
                  %v1077 = vld [vmem:[%s989 + $0x560] sm:$0xff]
                  %1078 = vst [vmem:[%s990 + $0x158] sm:$0xff] %v1077
                  %v1079 = vld [vmem:[%s989 + $0x580] sm:$0xff]
                  %1080 = vst [vmem:[%s990 + $0x160] sm:$0xff] %v1079
                  %v1081 = vld [vmem:[%s989 + $0x5a0] sm:$0xff]
                  %1082 = vst [vmem:[%s990 + $0x168] sm:$0xff] %v1081
                  %v1083 = vld [vmem:[%s989 + $0x5c0] sm:$0xff]
                  %1084 = vst [vmem:[%s990 + $0x170] sm:$0xff] %v1083
                  %v1085 = vld [vmem:[%s989 + $0x5e0] sm:$0xff]
                  %1086 = vst [vmem:[%s990 + $0x178] sm:$0xff] %v1085
                  %v1087 = vld [vmem:[%s989 + $0x600] sm:$0xff]
                  %1088 = vst [vmem:[%s990 + $0x180] sm:$0xff] %v1087
                  %v1089 = vld [vmem:[%s989 + $0x620] sm:$0xff]
                  %1090 = vst [vmem:[%s990 + $0x188] sm:$0xff] %v1089
                  %v1091 = vld [vmem:[%s989 + $0x640] sm:$0xff]
                  %1092 = vst [vmem:[%s990 + $0x190] sm:$0xff] %v1091
                  %v1093 = vld [vmem:[%s989 + $0x660] sm:$0xff]
                  %1094 = vst [vmem:[%s990 + $0x198] sm:$0xff] %v1093
                  %v1095 = vld [vmem:[%s989 + $0x680] sm:$0xff]
                  %1096 = vst [vmem:[%s990 + $0x1a0] sm:$0xff] %v1095
                  %v1097 = vld [vmem:[%s989 + $0x6a0] sm:$0xff]
                  %1098 = vst [vmem:[%s990 + $0x1a8] sm:$0xff] %v1097
                  %v1099 = vld [vmem:[%s989 + $0x6c0] sm:$0xff]
                  %1100 = vst [vmem:[%s990 + $0x1b0] sm:$0xff] %v1099
                  %v1101 = vld [vmem:[%s989 + $0x6e0] sm:$0xff]
                  %1102 = vst [vmem:[%s990 + $0x1b8] sm:$0xff] %v1101
                  %v1103 = vld [vmem:[%s989 + $0x700] sm:$0xff]
                  %1104 = vst [vmem:[%s990 + $0x1c0] sm:$0xff] %v1103
                  %v1105 = vld [vmem:[%s989 + $0x720] sm:$0xff]
                  %1106 = vst [vmem:[%s990 + $0x1c8] sm:$0xff] %v1105
                  %v1107 = vld [vmem:[%s989 + $0x740] sm:$0xff]
                  %1108 = vst [vmem:[%s990 + $0x1d0] sm:$0xff] %v1107
                  %v1109 = vld [vmem:[%s989 + $0x760] sm:$0xff]
                  %1110 = vst [vmem:[%s990 + $0x1d8] sm:$0xff] %v1109
                  %v1111 = vld [vmem:[%s989 + $0x780] sm:$0xff]
                  %1112 = vst [vmem:[%s990 + $0x1e0] sm:$0xff] %v1111
                  %v1113 = vld [vmem:[%s989 + $0x7a0] sm:$0xff]
                  %1114 = vst [vmem:[%s990 + $0x1e8] sm:$0xff] %v1113
                  %v1115 = vld [vmem:[%s989 + $0x7c0] sm:$0xff]
                  %1116 = vst [vmem:[%s990 + $0x1f0] sm:$0xff] %v1115
                  %v1117 = vld [vmem:[%s989 + $0x7e0] sm:$0xff]
                  %1118 = vst [vmem:[%s990 + $0x1f8] sm:$0xff] %v1117
                  %v1119 = vld [vmem:[%s989 + $0x800] sm:$0xff]
                  %1120 = vst [vmem:[%s990 + $0x200] sm:$0xff] %v1119
                  %v1121 = vld [vmem:[%s989 + $0x820] sm:$0xff]
                  %1122 = vst [vmem:[%s990 + $0x208] sm:$0xff] %v1121
                  %v1123 = vld [vmem:[%s989 + $0x840] sm:$0xff]
                  %1124 = vst [vmem:[%s990 + $0x210] sm:$0xff] %v1123
                  %v1125 = vld [vmem:[%s989 + $0x860] sm:$0xff]
                  %1126 = vst [vmem:[%s990 + $0x218] sm:$0xff] %v1125
                  %v1127 = vld [vmem:[%s989 + $0x880] sm:$0xff]
                  %1128 = vst [vmem:[%s990 + $0x220] sm:$0xff] %v1127
                  %v1129 = vld [vmem:[%s989 + $0x8a0] sm:$0xff]
                  %1130 = vst [vmem:[%s990 + $0x228] sm:$0xff] %v1129
                  %v1131 = vld [vmem:[%s989 + $0x8c0] sm:$0xff]
                  %1132 = vst [vmem:[%s990 + $0x230] sm:$0xff] %v1131
                  %v1133 = vld [vmem:[%s989 + $0x8e0] sm:$0xff]
                  %1134 = vst [vmem:[%s990 + $0x238] sm:$0xff] %v1133
                  %v1135 = vld [vmem:[%s989 + $0x900] sm:$0xff]
                  %1136 = vst [vmem:[%s990 + $0x240] sm:$0xff] %v1135
                  %v1137 = vld [vmem:[%s989 + $0x920] sm:$0xff]
                  %1138 = vst [vmem:[%s990 + $0x248] sm:$0xff] %v1137
                  %v1139 = vld [vmem:[%s989 + $0x940] sm:$0xff]
                  %1140 = vst [vmem:[%s990 + $0x250] sm:$0xff] %v1139
                  %v1141 = vld [vmem:[%s989 + $0x960] sm:$0xff]
                  %1142 = vst [vmem:[%s990 + $0x258] sm:$0xff] %v1141
                  %v1143 = vld [vmem:[%s989 + $0x980] sm:$0xff]
                  %1144 = vst [vmem:[%s990 + $0x260] sm:$0xff] %v1143
                  %v1145 = vld [vmem:[%s989 + $0x9a0] sm:$0xff]
                  %1146 = vst [vmem:[%s990 + $0x268] sm:$0xff] %v1145
                  %v1147 = vld [vmem:[%s989 + $0x9c0] sm:$0xff]
                  %1148 = vst [vmem:[%s990 + $0x270] sm:$0xff] %v1147
                  %v1149 = vld [vmem:[%s989 + $0x9e0] sm:$0xff]
                  %1150 = vst [vmem:[%s990 + $0x278] sm:$0xff] %v1149
                  %v1151 = vld [vmem:[%s989 + $0xa00] sm:$0xff]
                  %1152 = vst [vmem:[%s990 + $0x280] sm:$0xff] %v1151
                  %v1153 = vld [vmem:[%s989 + $0xa20] sm:$0xff]
                  %1154 = vst [vmem:[%s990 + $0x288] sm:$0xff] %v1153
                  %v1155 = vld [vmem:[%s989 + $0xa40] sm:$0xff]
                  %1156 = vst [vmem:[%s990 + $0x290] sm:$0xff] %v1155
                  %v1157 = vld [vmem:[%s989 + $0xa60] sm:$0xff]
                  %1158 = vst [vmem:[%s990 + $0x298] sm:$0xff] %v1157
                  %v1159 = vld [vmem:[%s989 + $0xa80] sm:$0xff]
                  %1160 = vst [vmem:[%s990 + $0x2a0] sm:$0xff] %v1159
                  %v1161 = vld [vmem:[%s989 + $0xaa0] sm:$0xff]
                  %1162 = vst [vmem:[%s990 + $0x2a8] sm:$0xff] %v1161
                  %v1163 = vld [vmem:[%s989 + $0xac0] sm:$0xff]
                  %1164 = vst [vmem:[%s990 + $0x2b0] sm:$0xff] %v1163
                  %v1165 = vld [vmem:[%s989 + $0xae0] sm:$0xff]
                  %1166 = vst [vmem:[%s990 + $0x2b8] sm:$0xff] %v1165
                  %v1167 = vld [vmem:[%s989 + $0xb00] sm:$0xff]
                  %1168 = vst [vmem:[%s990 + $0x2c0] sm:$0xff] %v1167
                  %v1169 = vld [vmem:[%s989 + $0xb20] sm:$0xff]
                  %1170 = vst [vmem:[%s990 + $0x2c8] sm:$0xff] %v1169
                  %v1171 = vld [vmem:[%s989 + $0xb40] sm:$0xff]
                  %1172 = vst [vmem:[%s990 + $0x2d0] sm:$0xff] %v1171
                  %v1173 = vld [vmem:[%s989 + $0xb60] sm:$0xff]
                  %1174 = vst [vmem:[%s990 + $0x2d8] sm:$0xff] %v1173
                  %v1175 = vld [vmem:[%s989 + $0xb80] sm:$0xff]
                  %1176 = vst [vmem:[%s990 + $0x2e0] sm:$0xff] %v1175
                  %v1177 = vld [vmem:[%s989 + $0xba0] sm:$0xff]
                  %1178 = vst [vmem:[%s990 + $0x2e8] sm:$0xff] %v1177
                  %v1179 = vld [vmem:[%s989 + $0xbc0] sm:$0xff]
                  %1180 = vst [vmem:[%s990 + $0x2f0] sm:$0xff] %v1179
                  %v1181 = vld [vmem:[%s989 + $0xbe0] sm:$0xff]
                  %1182 = vst [vmem:[%s990 + $0x2f8] sm:$0xff] %v1181
                  %v1183 = vld [vmem:[%s989 + $0xc00] sm:$0xff]
                  %1184 = vst [vmem:[%s990 + $0x300] sm:$0xff] %v1183
                  %v1185 = vld [vmem:[%s989 + $0xc20] sm:$0xff]
                  %1186 = vst [vmem:[%s990 + $0x308] sm:$0xff] %v1185
                  %v1187 = vld [vmem:[%s989 + $0xc40] sm:$0xff]
                  %1188 = vst [vmem:[%s990 + $0x310] sm:$0xff] %v1187
                  %v1189 = vld [vmem:[%s989 + $0xc60] sm:$0xff]
                  %1190 = vst [vmem:[%s990 + $0x318] sm:$0xff] %v1189
                  %v1191 = vld [vmem:[%s989 + $0xc80] sm:$0xff]
                  %1192 = vst [vmem:[%s990 + $0x320] sm:$0xff] %v1191
                  %v1193 = vld [vmem:[%s989 + $0xca0] sm:$0xff]
                  %1194 = vst [vmem:[%s990 + $0x328] sm:$0xff] %v1193
                  %v1195 = vld [vmem:[%s989 + $0xcc0] sm:$0xff]
                  %1196 = vst [vmem:[%s990 + $0x330] sm:$0xff] %v1195
                  %v1197 = vld [vmem:[%s989 + $0xce0] sm:$0xff]
                  %1198 = vst [vmem:[%s990 + $0x338] sm:$0xff] %v1197
                  %v1199 = vld [vmem:[%s989 + $0xd00] sm:$0xff]
                  %1200 = vst [vmem:[%s990 + $0x340] sm:$0xff] %v1199
                  %v1201 = vld [vmem:[%s989 + $0xd20] sm:$0xff]
                  %1202 = vst [vmem:[%s990 + $0x348] sm:$0xff] %v1201
                  %v1203 = vld [vmem:[%s989 + $0xd40] sm:$0xff]
                  %1204 = vst [vmem:[%s990 + $0x350] sm:$0xff] %v1203
                  %v1205 = vld [vmem:[%s989 + $0xd60] sm:$0xff]
                  %1206 = vst [vmem:[%s990 + $0x358] sm:$0xff] %v1205
                  %v1207 = vld [vmem:[%s989 + $0xd80] sm:$0xff]
                  %1208 = vst [vmem:[%s990 + $0x360] sm:$0xff] %v1207
                  %v1209 = vld [vmem:[%s989 + $0xda0] sm:$0xff]
                  %1210 = vst [vmem:[%s990 + $0x368] sm:$0xff] %v1209
                  %v1211 = vld [vmem:[%s989 + $0xdc0] sm:$0xff]
                  %1212 = vst [vmem:[%s990 + $0x370] sm:$0xff] %v1211
                  %v1213 = vld [vmem:[%s989 + $0xde0] sm:$0xff]
                  %1214 = vst [vmem:[%s990 + $0x378] sm:$0xff] %v1213
                  %v1215 = vld [vmem:[%s989 + $0xe00] sm:$0xff]
                  %1216 = vst [vmem:[%s990 + $0x380] sm:$0xff] %v1215
                  %v1217 = vld [vmem:[%s989 + $0xe20] sm:$0xff]
                  %1218 = vst [vmem:[%s990 + $0x388] sm:$0xff] %v1217
                  %v1219 = vld [vmem:[%s989 + $0xe40] sm:$0xff]
                  %1220 = vst [vmem:[%s990 + $0x390] sm:$0xff] %v1219
                  %v1221 = vld [vmem:[%s989 + $0xe60] sm:$0xff]
                  %1222 = vst [vmem:[%s990 + $0x398] sm:$0xff] %v1221
                  %v1223 = vld [vmem:[%s989 + $0xe80] sm:$0xff]
                  %1224 = vst [vmem:[%s990 + $0x3a0] sm:$0xff] %v1223
                  %v1225 = vld [vmem:[%s989 + $0xea0] sm:$0xff]
                  %1226 = vst [vmem:[%s990 + $0x3a8] sm:$0xff] %v1225
                  %v1227 = vld [vmem:[%s989 + $0xec0] sm:$0xff]
                  %1228 = vst [vmem:[%s990 + $0x3b0] sm:$0xff] %v1227
                  %v1229 = vld [vmem:[%s989 + $0xee0] sm:$0xff]
                  %1230 = vst [vmem:[%s990 + $0x3b8] sm:$0xff] %v1229
                  %v1231 = vld [vmem:[%s989 + $0xf00] sm:$0xff]
                  %1232 = vst [vmem:[%s990 + $0x3c0] sm:$0xff] %v1231
                  %v1233 = vld [vmem:[%s989 + $0xf20] sm:$0xff]
                  %1234 = vst [vmem:[%s990 + $0x3c8] sm:$0xff] %v1233
                  %v1235 = vld [vmem:[%s989 + $0xf40] sm:$0xff]
                  %1236 = vst [vmem:[%s990 + $0x3d0] sm:$0xff] %v1235
                  %v1237 = vld [vmem:[%s989 + $0xf60] sm:$0xff]
                  %1238 = vst [vmem:[%s990 + $0x3d8] sm:$0xff] %v1237
                  %v1239 = vld [vmem:[%s989 + $0xf80] sm:$0xff]
                  %1240 = vst [vmem:[%s990 + $0x3e0] sm:$0xff] %v1239
                  %v1241 = vld [vmem:[%s989 + $0xfa0] sm:$0xff]
                  %1242 = vst [vmem:[%s990 + $0x3e8] sm:$0xff] %v1241
                  %v1243 = vld [vmem:[%s989 + $0xfc0] sm:$0xff]
                  %1244 = vst [vmem:[%s990 + $0x3f0] sm:$0xff] %v1243
                  %v1245 = vld [vmem:[%s989 + $0xfe0] sm:$0xff]
                  %1246 = vst [vmem:[%s990 + $0x3f8] sm:$0xff] %v1245
                  %v1247 = vld [vmem:[%s989 + $0x1000] sm:$0xff]
                  %1248 = vst [vmem:[%s990 + $0x400] sm:$0xff] %v1247
                  %v1249 = vld [vmem:[%s989 + $0x1020] sm:$0xff]
                  %1250 = vst [vmem:[%s990 + $0x408] sm:$0xff] %v1249
                  %v1251 = vld [vmem:[%s989 + $0x1040] sm:$0xff]
                  %1252 = vst [vmem:[%s990 + $0x410] sm:$0xff] %v1251
                  %v1253 = vld [vmem:[%s989 + $0x1060] sm:$0xff]
                  %1254 = vst [vmem:[%s990 + $0x418] sm:$0xff] %v1253
                  %v1255 = vld [vmem:[%s989 + $0x1080] sm:$0xff]
                  %1256 = vst [vmem:[%s990 + $0x420] sm:$0xff] %v1255
                  %v1257 = vld [vmem:[%s989 + $0x10a0] sm:$0xff]
                  %1258 = vst [vmem:[%s990 + $0x428] sm:$0xff] %v1257
                  %v1259 = vld [vmem:[%s989 + $0x10c0] sm:$0xff]
                  %1260 = vst [vmem:[%s990 + $0x430] sm:$0xff] %v1259
                  %v1261 = vld [vmem:[%s989 + $0x10e0] sm:$0xff]
                  %1262 = vst [vmem:[%s990 + $0x438] sm:$0xff] %v1261
                  %v1263 = vld [vmem:[%s989 + $0x1100] sm:$0xff]
                  %1264 = vst [vmem:[%s990 + $0x440] sm:$0xff] %v1263
                  %v1265 = vld [vmem:[%s989 + $0x1120] sm:$0xff]
                  %1266 = vst [vmem:[%s990 + $0x448] sm:$0xff] %v1265
                  %v1267 = vld [vmem:[%s989 + $0x1140] sm:$0xff]
                  %1268 = vst [vmem:[%s990 + $0x450] sm:$0xff] %v1267
                  %v1269 = vld [vmem:[%s989 + $0x1160] sm:$0xff]
                  %1270 = vst [vmem:[%s990 + $0x458] sm:$0xff] %v1269
                  %v1271 = vld [vmem:[%s989 + $0x1180] sm:$0xff]
                  %1272 = vst [vmem:[%s990 + $0x460] sm:$0xff] %v1271
                  %v1273 = vld [vmem:[%s989 + $0x11a0] sm:$0xff]
                  %1274 = vst [vmem:[%s990 + $0x468] sm:$0xff] %v1273
                  %v1275 = vld [vmem:[%s989 + $0x11c0] sm:$0xff]
                  %1276 = vst [vmem:[%s990 + $0x470] sm:$0xff] %v1275
                  %v1277 = vld [vmem:[%s989 + $0x11e0] sm:$0xff]
                  %1278 = vst [vmem:[%s990 + $0x478] sm:$0xff] %v1277
                  %v1279 = vld [vmem:[%s989 + $0x1200] sm:$0xff]
                  %1280 = vst [vmem:[%s990 + $0x480] sm:$0xff] %v1279
                  %v1281 = vld [vmem:[%s989 + $0x1220] sm:$0xff]
                  %1282 = vst [vmem:[%s990 + $0x488] sm:$0xff] %v1281
                  %v1283 = vld [vmem:[%s989 + $0x1240] sm:$0xff]
                  %1284 = vst [vmem:[%s990 + $0x490] sm:$0xff] %v1283
                  %v1285 = vld [vmem:[%s989 + $0x1260] sm:$0xff]
                  %1286 = vst [vmem:[%s990 + $0x498] sm:$0xff] %v1285
                  %v1287 = vld [vmem:[%s989 + $0x1280] sm:$0xff]
                  %1288 = vst [vmem:[%s990 + $0x4a0] sm:$0xff] %v1287
                  %v1289 = vld [vmem:[%s989 + $0x12a0] sm:$0xff]
                  %1290 = vst [vmem:[%s990 + $0x4a8] sm:$0xff] %v1289
                  %v1291 = vld [vmem:[%s989 + $0x12c0] sm:$0xff]
                  %1292 = vst [vmem:[%s990 + $0x4b0] sm:$0xff] %v1291
                  %v1293 = vld [vmem:[%s989 + $0x12e0] sm:$0xff]
                  %1294 = vst [vmem:[%s990 + $0x4b8] sm:$0xff] %v1293
                  %v1295 = vld [vmem:[%s989 + $0x1300] sm:$0xff]
                  %1296 = vst [vmem:[%s990 + $0x4c0] sm:$0xff] %v1295
                  %v1297 = vld [vmem:[%s989 + $0x1320] sm:$0xff]
                  %1298 = vst [vmem:[%s990 + $0x4c8] sm:$0xff] %v1297
                  %v1299 = vld [vmem:[%s989 + $0x1340] sm:$0xff]
                  %1300 = vst [vmem:[%s990 + $0x4d0] sm:$0xff] %v1299
                  %v1301 = vld [vmem:[%s989 + $0x1360] sm:$0xff]
                  %1302 = vst [vmem:[%s990 + $0x4d8] sm:$0xff] %v1301
                  %v1303 = vld [vmem:[%s989 + $0x1380] sm:$0xff]
                  %1304 = vst [vmem:[%s990 + $0x4e0] sm:$0xff] %v1303
                  %v1305 = vld [vmem:[%s989 + $0x13a0] sm:$0xff]
                  %1306 = vst [vmem:[%s990 + $0x4e8] sm:$0xff] %v1305
                  %v1307 = vld [vmem:[%s989 + $0x13c0] sm:$0xff]
                  %1308 = vst [vmem:[%s990 + $0x4f0] sm:$0xff] %v1307
                  %v1309 = vld [vmem:[%s989 + $0x13e0] sm:$0xff]
                  %1310 = vst [vmem:[%s990 + $0x4f8] sm:$0xff] %v1309
                  %v1311 = vld [vmem:[%s989 + $0x1400] sm:$0xff]
                  %1312 = vst [vmem:[%s990 + $0x500] sm:$0xff] %v1311
                  %v1313 = vld [vmem:[%s989 + $0x1420] sm:$0xff]
                  %1314 = vst [vmem:[%s990 + $0x508] sm:$0xff] %v1313
                  %v1315 = vld [vmem:[%s989 + $0x1440] sm:$0xff]
                  %1316 = vst [vmem:[%s990 + $0x510] sm:$0xff] %v1315
                  %v1317 = vld [vmem:[%s989 + $0x1460] sm:$0xff]
                  %1318 = vst [vmem:[%s990 + $0x518] sm:$0xff] %v1317
                  %v1319 = vld [vmem:[%s989 + $0x1480] sm:$0xff]
                  %1320 = vst [vmem:[%s990 + $0x520] sm:$0xff] %v1319
                  %v1321 = vld [vmem:[%s989 + $0x14a0] sm:$0xff]
                  %1322 = vst [vmem:[%s990 + $0x528] sm:$0xff] %v1321
                  %v1323 = vld [vmem:[%s989 + $0x14c0] sm:$0xff]
                  %1324 = vst [vmem:[%s990 + $0x530] sm:$0xff] %v1323
                  %v1325 = vld [vmem:[%s989 + $0x14e0] sm:$0xff]
                  %1326 = vst [vmem:[%s990 + $0x538] sm:$0xff] %v1325
                  %v1327 = vld [vmem:[%s989 + $0x1500] sm:$0xff]
                  %1328 = vst [vmem:[%s990 + $0x540] sm:$0xff] %v1327
                  %v1329 = vld [vmem:[%s989 + $0x1520] sm:$0xff]
                  %1330 = vst [vmem:[%s990 + $0x548] sm:$0xff] %v1329
                  %v1331 = vld [vmem:[%s989 + $0x1540] sm:$0xff]
                  %1332 = vst [vmem:[%s990 + $0x550] sm:$0xff] %v1331
                  %v1333 = vld [vmem:[%s989 + $0x1560] sm:$0xff]
                  %1334 = vst [vmem:[%s990 + $0x558] sm:$0xff] %v1333
                  %v1335 = vld [vmem:[%s989 + $0x1580] sm:$0xff]
                  %1336 = vst [vmem:[%s990 + $0x560] sm:$0xff] %v1335
                  %v1337 = vld [vmem:[%s989 + $0x15a0] sm:$0xff]
                  %1338 = vst [vmem:[%s990 + $0x568] sm:$0xff] %v1337
                  %v1339 = vld [vmem:[%s989 + $0x15c0] sm:$0xff]
                  %1340 = vst [vmem:[%s990 + $0x570] sm:$0xff] %v1339
                  %v1341 = vld [vmem:[%s989 + $0x15e0] sm:$0xff]
                  %1342 = vst [vmem:[%s990 + $0x578] sm:$0xff] %v1341
                  %v1343 = vld [vmem:[%s989 + $0x1600] sm:$0xff]
                  %1344 = vst [vmem:[%s990 + $0x580] sm:$0xff] %v1343
                  %v1345 = vld [vmem:[%s989 + $0x1620] sm:$0xff]
                  %1346 = vst [vmem:[%s990 + $0x588] sm:$0xff] %v1345
                  %v1347 = vld [vmem:[%s989 + $0x1640] sm:$0xff]
                  %1348 = vst [vmem:[%s990 + $0x590] sm:$0xff] %v1347
                  %v1349 = vld [vmem:[%s989 + $0x1660] sm:$0xff]
                  %1350 = vst [vmem:[%s990 + $0x598] sm:$0xff] %v1349
                  %v1351 = vld [vmem:[%s989 + $0x1680] sm:$0xff]
                  %1352 = vst [vmem:[%s990 + $0x5a0] sm:$0xff] %v1351
                  %v1353 = vld [vmem:[%s989 + $0x16a0] sm:$0xff]
                  %1354 = vst [vmem:[%s990 + $0x5a8] sm:$0xff] %v1353
                  %v1355 = vld [vmem:[%s989 + $0x16c0] sm:$0xff]
                  %1356 = vst [vmem:[%s990 + $0x5b0] sm:$0xff] %v1355
                  %v1357 = vld [vmem:[%s989 + $0x16e0] sm:$0xff]
                  %1358 = vst [vmem:[%s990 + $0x5b8] sm:$0xff] %v1357
                  %v1359 = vld [vmem:[%s989 + $0x1700] sm:$0xff]
                  %1360 = vst [vmem:[%s990 + $0x5c0] sm:$0xff] %v1359
                  %v1361 = vld [vmem:[%s989 + $0x1720] sm:$0xff]
                  %1362 = vst [vmem:[%s990 + $0x5c8] sm:$0xff] %v1361
                  %v1363 = vld [vmem:[%s989 + $0x1740] sm:$0xff]
                  %1364 = vst [vmem:[%s990 + $0x5d0] sm:$0xff] %v1363
                  %v1365 = vld [vmem:[%s989 + $0x1760] sm:$0xff]
                  %1366 = vst [vmem:[%s990 + $0x5d8] sm:$0xff] %v1365
                  %v1367 = vld [vmem:[%s989 + $0x1780] sm:$0xff]
                  %1368 = vst [vmem:[%s990 + $0x5e0] sm:$0xff] %v1367
                  %v1369 = vld [vmem:[%s989 + $0x17a0] sm:$0xff]
                  %1370 = vst [vmem:[%s990 + $0x5e8] sm:$0xff] %v1369
                  %v1371 = vld [vmem:[%s989 + $0x17c0] sm:$0xff]
                  %1372 = vst [vmem:[%s990 + $0x5f0] sm:$0xff] %v1371
                  %v1373 = vld [vmem:[%s989 + $0x17e0] sm:$0xff]
                  %1374 = vst [vmem:[%s990 + $0x5f8] sm:$0xff] %v1373
                  %v1375 = vld [vmem:[%s989 + $0x1800] sm:$0xff]
                  %1376 = vst [vmem:[%s990 + $0x600] sm:$0xff] %v1375
                  %v1377 = vld [vmem:[%s989 + $0x1820] sm:$0xff]
                  %1378 = vst [vmem:[%s990 + $0x608] sm:$0xff] %v1377
                  %v1379 = vld [vmem:[%s989 + $0x1840] sm:$0xff]
                  %1380 = vst [vmem:[%s990 + $0x610] sm:$0xff] %v1379
                  %v1381 = vld [vmem:[%s989 + $0x1860] sm:$0xff]
                  %1382 = vst [vmem:[%s990 + $0x618] sm:$0xff] %v1381
                  %v1383 = vld [vmem:[%s989 + $0x1880] sm:$0xff]
                  %1384 = vst [vmem:[%s990 + $0x620] sm:$0xff] %v1383
                  %v1385 = vld [vmem:[%s989 + $0x18a0] sm:$0xff]
                  %1386 = vst [vmem:[%s990 + $0x628] sm:$0xff] %v1385
                  %v1387 = vld [vmem:[%s989 + $0x18c0] sm:$0xff]
                  %1388 = vst [vmem:[%s990 + $0x630] sm:$0xff] %v1387
                  %v1389 = vld [vmem:[%s989 + $0x18e0] sm:$0xff]
                  %1390 = vst [vmem:[%s990 + $0x638] sm:$0xff] %v1389
                  %v1391 = vld [vmem:[%s989 + $0x1900] sm:$0xff]
                  %1392 = vst [vmem:[%s990 + $0x640] sm:$0xff] %v1391
                  %v1393 = vld [vmem:[%s989 + $0x1920] sm:$0xff]
                  %1394 = vst [vmem:[%s990 + $0x648] sm:$0xff] %v1393
                  %v1395 = vld [vmem:[%s989 + $0x1940] sm:$0xff]
                  %1396 = vst [vmem:[%s990 + $0x650] sm:$0xff] %v1395
                  %v1397 = vld [vmem:[%s989 + $0x1960] sm:$0xff]
                  %1398 = vst [vmem:[%s990 + $0x658] sm:$0xff] %v1397
                  %v1399 = vld [vmem:[%s989 + $0x1980] sm:$0xff]
                  %1400 = vst [vmem:[%s990 + $0x660] sm:$0xff] %v1399
                  %v1401 = vld [vmem:[%s989 + $0x19a0] sm:$0xff]
                  %1402 = vst [vmem:[%s990 + $0x668] sm:$0xff] %v1401
                  %v1403 = vld [vmem:[%s989 + $0x19c0] sm:$0xff]
                  %1404 = vst [vmem:[%s990 + $0x670] sm:$0xff] %v1403
                  %v1405 = vld [vmem:[%s989 + $0x19e0] sm:$0xff]
                  %1406 = vst [vmem:[%s990 + $0x678] sm:$0xff] %v1405
                  %v1407 = vld [vmem:[%s989 + $0x1a00] sm:$0xff]
                  %1408 = vst [vmem:[%s990 + $0x680] sm:$0xff] %v1407
                  %v1409 = vld [vmem:[%s989 + $0x1a20] sm:$0xff]
                  %1410 = vst [vmem:[%s990 + $0x688] sm:$0xff] %v1409
                  %v1411 = vld [vmem:[%s989 + $0x1a40] sm:$0xff]
                  %1412 = vst [vmem:[%s990 + $0x690] sm:$0xff] %v1411
                  %v1413 = vld [vmem:[%s989 + $0x1a60] sm:$0xff]
                  %1414 = vst [vmem:[%s990 + $0x698] sm:$0xff] %v1413
                  %v1415 = vld [vmem:[%s989 + $0x1a80] sm:$0xff]
                  %1416 = vst [vmem:[%s990 + $0x6a0] sm:$0xff] %v1415
                  %v1417 = vld [vmem:[%s989 + $0x1aa0] sm:$0xff]
                  %1418 = vst [vmem:[%s990 + $0x6a8] sm:$0xff] %v1417
                  %v1419 = vld [vmem:[%s989 + $0x1ac0] sm:$0xff]
                  %1420 = vst [vmem:[%s990 + $0x6b0] sm:$0xff] %v1419
                  %v1421 = vld [vmem:[%s989 + $0x1ae0] sm:$0xff]
                  %1422 = vst [vmem:[%s990 + $0x6b8] sm:$0xff] %v1421
                  %v1423 = vld [vmem:[%s989 + $0x1b00] sm:$0xff]
                  %1424 = vst [vmem:[%s990 + $0x6c0] sm:$0xff] %v1423
                  %v1425 = vld [vmem:[%s989 + $0x1b20] sm:$0xff]
                  %1426 = vst [vmem:[%s990 + $0x6c8] sm:$0xff] %v1425
                  %v1427 = vld [vmem:[%s989 + $0x1b40] sm:$0xff]
                  %1428 = vst [vmem:[%s990 + $0x6d0] sm:$0xff] %v1427
                  %v1429 = vld [vmem:[%s989 + $0x1b60] sm:$0xff]
                  %1430 = vst [vmem:[%s990 + $0x6d8] sm:$0xff] %v1429
                  %v1431 = vld [vmem:[%s989 + $0x1b80] sm:$0xff]
                  %1432 = vst [vmem:[%s990 + $0x6e0] sm:$0xff] %v1431
                  %v1433 = vld [vmem:[%s989 + $0x1ba0] sm:$0xff]
                  %1434 = vst [vmem:[%s990 + $0x6e8] sm:$0xff] %v1433
                  %v1435 = vld [vmem:[%s989 + $0x1bc0] sm:$0xff]
                  %1436 = vst [vmem:[%s990 + $0x6f0] sm:$0xff] %v1435
                  %v1437 = vld [vmem:[%s989 + $0x1be0] sm:$0xff]
                  %1438 = vst [vmem:[%s990 + $0x6f8] sm:$0xff] %v1437
                  %v1439 = vld [vmem:[%s989 + $0x1c00] sm:$0xff]
                  %1440 = vst [vmem:[%s990 + $0x700] sm:$0xff] %v1439
                  %v1441 = vld [vmem:[%s989 + $0x1c20] sm:$0xff]
                  %1442 = vst [vmem:[%s990 + $0x708] sm:$0xff] %v1441
                  %v1443 = vld [vmem:[%s989 + $0x1c40] sm:$0xff]
                  %1444 = vst [vmem:[%s990 + $0x710] sm:$0xff] %v1443
                  %v1445 = vld [vmem:[%s989 + $0x1c60] sm:$0xff]
                  %1446 = vst [vmem:[%s990 + $0x718] sm:$0xff] %v1445
                  %v1447 = vld [vmem:[%s989 + $0x1c80] sm:$0xff]
                  %1448 = vst [vmem:[%s990 + $0x720] sm:$0xff] %v1447
                  %v1449 = vld [vmem:[%s989 + $0x1ca0] sm:$0xff]
                  %1450 = vst [vmem:[%s990 + $0x728] sm:$0xff] %v1449
                  %v1451 = vld [vmem:[%s989 + $0x1cc0] sm:$0xff]
                  %1452 = vst [vmem:[%s990 + $0x730] sm:$0xff] %v1451
                  %v1453 = vld [vmem:[%s989 + $0x1ce0] sm:$0xff]
                  %1454 = vst [vmem:[%s990 + $0x738] sm:$0xff] %v1453
                  %v1455 = vld [vmem:[%s989 + $0x1d00] sm:$0xff]
                  %1456 = vst [vmem:[%s990 + $0x740] sm:$0xff] %v1455
                  %v1457 = vld [vmem:[%s989 + $0x1d20] sm:$0xff]
                  %1458 = vst [vmem:[%s990 + $0x748] sm:$0xff] %v1457
                  %v1459 = vld [vmem:[%s989 + $0x1d40] sm:$0xff]
                  %1460 = vst [vmem:[%s990 + $0x750] sm:$0xff] %v1459
                  %v1461 = vld [vmem:[%s989 + $0x1d60] sm:$0xff]
                  %1462 = vst [vmem:[%s990 + $0x758] sm:$0xff] %v1461
                  %v1463 = vld [vmem:[%s989 + $0x1d80] sm:$0xff]
                  %1464 = vst [vmem:[%s990 + $0x760] sm:$0xff] %v1463
                  %v1465 = vld [vmem:[%s989 + $0x1da0] sm:$0xff]
                  %1466 = vst [vmem:[%s990 + $0x768] sm:$0xff] %v1465
                  %v1467 = vld [vmem:[%s989 + $0x1dc0] sm:$0xff]
                  %1468 = vst [vmem:[%s990 + $0x770] sm:$0xff] %v1467
                  %v1469 = vld [vmem:[%s989 + $0x1de0] sm:$0xff]
                  %1470 = vst [vmem:[%s990 + $0x778] sm:$0xff] %v1469
                  %v1471 = vld [vmem:[%s989 + $0x1e00] sm:$0xff]
                  %1472 = vst [vmem:[%s990 + $0x780] sm:$0xff] %v1471
                  %v1473 = vld [vmem:[%s989 + $0x1e20] sm:$0xff]
                  %1474 = vst [vmem:[%s990 + $0x788] sm:$0xff] %v1473
                  %v1475 = vld [vmem:[%s989 + $0x1e40] sm:$0xff]
                  %1476 = vst [vmem:[%s990 + $0x790] sm:$0xff] %v1475
                  %v1477 = vld [vmem:[%s989 + $0x1e60] sm:$0xff]
                  %1478 = vst [vmem:[%s990 + $0x798] sm:$0xff] %v1477
                  %v1479 = vld [vmem:[%s989 + $0x1e80] sm:$0xff]
                  %1480 = vst [vmem:[%s990 + $0x7a0] sm:$0xff] %v1479
                  %v1481 = vld [vmem:[%s989 + $0x1ea0] sm:$0xff]
                  %1482 = vst [vmem:[%s990 + $0x7a8] sm:$0xff] %v1481
                  %v1483 = vld [vmem:[%s989 + $0x1ec0] sm:$0xff]
                  %1484 = vst [vmem:[%s990 + $0x7b0] sm:$0xff] %v1483
                  %v1485 = vld [vmem:[%s989 + $0x1ee0] sm:$0xff]
                  %1486 = vst [vmem:[%s990 + $0x7b8] sm:$0xff] %v1485
                  %v1487 = vld [vmem:[%s989 + $0x1f00] sm:$0xff]
                  %1488 = vst [vmem:[%s990 + $0x7c0] sm:$0xff] %v1487
                  %v1489 = vld [vmem:[%s989 + $0x1f20] sm:$0xff]
                  %1490 = vst [vmem:[%s990 + $0x7c8] sm:$0xff] %v1489
                  %v1491 = vld [vmem:[%s989 + $0x1f40] sm:$0xff]
                  %1492 = vst [vmem:[%s990 + $0x7d0] sm:$0xff] %v1491
                  %v1493 = vld [vmem:[%s989 + $0x1f60] sm:$0xff]
                  %1494 = vst [vmem:[%s990 + $0x7d8] sm:$0xff] %v1493
                  %v1495 = vld [vmem:[%s989 + $0x1f80] sm:$0xff]
                  %1496 = vst [vmem:[%s990 + $0x7e0] sm:$0xff] %v1495
                  %v1497 = vld [vmem:[%s989 + $0x1fa0] sm:$0xff]
                  %1498 = vst [vmem:[%s990 + $0x7e8] sm:$0xff] %v1497
                  %v1499 = vld [vmem:[%s989 + $0x1fc0] sm:$0xff]
                  %1500 = vst [vmem:[%s990 + $0x7f0] sm:$0xff] %v1499
                  %v1501 = vld [vmem:[%s989 + $0x1fe0] sm:$0xff]
                  %1502 = vst [vmem:[%s990 + $0x7f8] sm:$0xff] %v1501
                  %v1503 = vld [vmem:[%s989 + $0x2000] sm:$0xff]
                  %1504 = vst [vmem:[%s990 + $0x800] sm:$0xff] %v1503
                  %v1505 = vld [vmem:[%s989 + $0x2020] sm:$0xff]
                  %1506 = vst [vmem:[%s990 + $0x808] sm:$0xff] %v1505
                  %v1507 = vld [vmem:[%s989 + $0x2040] sm:$0xff]
                  %1508 = vst [vmem:[%s990 + $0x810] sm:$0xff] %v1507
                  %v1509 = vld [vmem:[%s989 + $0x2060] sm:$0xff]
                  %1510 = vst [vmem:[%s990 + $0x818] sm:$0xff] %v1509
                  %v1511 = vld [vmem:[%s989 + $0x2080] sm:$0xff]
                  %1512 = vst [vmem:[%s990 + $0x820] sm:$0xff] %v1511
                  %v1513 = vld [vmem:[%s989 + $0x20a0] sm:$0xff]
                  %1514 = vst [vmem:[%s990 + $0x828] sm:$0xff] %v1513
                  %v1515 = vld [vmem:[%s989 + $0x20c0] sm:$0xff]
                  %1516 = vst [vmem:[%s990 + $0x830] sm:$0xff] %v1515
                  %v1517 = vld [vmem:[%s989 + $0x20e0] sm:$0xff]
                  %1518 = vst [vmem:[%s990 + $0x838] sm:$0xff] %v1517
                  %v1519 = vld [vmem:[%s989 + $0x2100] sm:$0xff]
                  %1520 = vst [vmem:[%s990 + $0x840] sm:$0xff] %v1519
                  %v1521 = vld [vmem:[%s989 + $0x2120] sm:$0xff]
                  %1522 = vst [vmem:[%s990 + $0x848] sm:$0xff] %v1521
                  %v1523 = vld [vmem:[%s989 + $0x2140] sm:$0xff]
                  %1524 = vst [vmem:[%s990 + $0x850] sm:$0xff] %v1523
                  %v1525 = vld [vmem:[%s989 + $0x2160] sm:$0xff]
                  %1526 = vst [vmem:[%s990 + $0x858] sm:$0xff] %v1525
                  %v1527 = vld [vmem:[%s989 + $0x2180] sm:$0xff]
                  %1528 = vst [vmem:[%s990 + $0x860] sm:$0xff] %v1527
                  %v1529 = vld [vmem:[%s989 + $0x21a0] sm:$0xff]
                  %1530 = vst [vmem:[%s990 + $0x868] sm:$0xff] %v1529
                  %v1531 = vld [vmem:[%s989 + $0x21c0] sm:$0xff]
                  %1532 = vst [vmem:[%s990 + $0x870] sm:$0xff] %v1531
                  %v1533 = vld [vmem:[%s989 + $0x21e0] sm:$0xff]
                  %1534 = vst [vmem:[%s990 + $0x878] sm:$0xff] %v1533
                  %v1535 = vld [vmem:[%s989 + $0x2200] sm:$0xff]
                  %1536 = vst [vmem:[%s990 + $0x880] sm:$0xff] %v1535
                  %v1537 = vld [vmem:[%s989 + $0x2220] sm:$0xff]
                  %1538 = vst [vmem:[%s990 + $0x888] sm:$0xff] %v1537
                  %v1539 = vld [vmem:[%s989 + $0x2240] sm:$0xff]
                  %1540 = vst [vmem:[%s990 + $0x890] sm:$0xff] %v1539
                  %v1541 = vld [vmem:[%s989 + $0x2260] sm:$0xff]
                  %1542 = vst [vmem:[%s990 + $0x898] sm:$0xff] %v1541
                  %v1543 = vld [vmem:[%s989 + $0x2280] sm:$0xff]
                  %1544 = vst [vmem:[%s990 + $0x8a0] sm:$0xff] %v1543
                  %v1545 = vld [vmem:[%s989 + $0x22a0] sm:$0xff]
                  %1546 = vst [vmem:[%s990 + $0x8a8] sm:$0xff] %v1545
                  %v1547 = vld [vmem:[%s989 + $0x22c0] sm:$0xff]
                  %1548 = vst [vmem:[%s990 + $0x8b0] sm:$0xff] %v1547
                  %v1549 = vld [vmem:[%s989 + $0x22e0] sm:$0xff]
                  %1550 = vst [vmem:[%s990 + $0x8b8] sm:$0xff] %v1549
                  %v1551 = vld [vmem:[%s989 + $0x2300] sm:$0xff]
                  %1552 = vst [vmem:[%s990 + $0x8c0] sm:$0xff] %v1551
                  %v1553 = vld [vmem:[%s989 + $0x2320] sm:$0xff]
                  %1554 = vst [vmem:[%s990 + $0x8c8] sm:$0xff] %v1553
                  %v1555 = vld [vmem:[%s989 + $0x2340] sm:$0xff]
                  %1556 = vst [vmem:[%s990 + $0x8d0] sm:$0xff] %v1555
                  %v1557 = vld [vmem:[%s989 + $0x2360] sm:$0xff]
                  %1558 = vst [vmem:[%s990 + $0x8d8] sm:$0xff] %v1557
                  %v1559 = vld [vmem:[%s989 + $0x2380] sm:$0xff]
                  %1560 = vst [vmem:[%s990 + $0x8e0] sm:$0xff] %v1559
                  %v1561 = vld [vmem:[%s989 + $0x23a0] sm:$0xff]
                  %1562 = vst [vmem:[%s990 + $0x8e8] sm:$0xff] %v1561
                  %v1563 = vld [vmem:[%s989 + $0x23c0] sm:$0xff]
                  %1564 = vst [vmem:[%s990 + $0x8f0] sm:$0xff] %v1563
                  %v1565 = vld [vmem:[%s989 + $0x23e0] sm:$0xff]
                  %1566 = vst [vmem:[%s990 + $0x8f8] sm:$0xff] %v1565
                  %v1567 = vld [vmem:[%s989 + $0x2400] sm:$0xff]
                  %1568 = vst [vmem:[%s990 + $0x900] sm:$0xff] %v1567
                  %v1569 = vld [vmem:[%s989 + $0x2420] sm:$0xff]
                  %1570 = vst [vmem:[%s990 + $0x908] sm:$0xff] %v1569
                  %v1571 = vld [vmem:[%s989 + $0x2440] sm:$0xff]
                  %1572 = vst [vmem:[%s990 + $0x910] sm:$0xff] %v1571
                  %v1573 = vld [vmem:[%s989 + $0x2460] sm:$0xff]
                  %1574 = vst [vmem:[%s990 + $0x918] sm:$0xff] %v1573
                  %v1575 = vld [vmem:[%s989 + $0x2480] sm:$0xff]
                  %1576 = vst [vmem:[%s990 + $0x920] sm:$0xff] %v1575
                  %v1577 = vld [vmem:[%s989 + $0x24a0] sm:$0xff]
                  %1578 = vst [vmem:[%s990 + $0x928] sm:$0xff] %v1577
                  %v1579 = vld [vmem:[%s989 + $0x24c0] sm:$0xff]
                  %1580 = vst [vmem:[%s990 + $0x930] sm:$0xff] %v1579
                  %v1581 = vld [vmem:[%s989 + $0x24e0] sm:$0xff]
                  %1582 = vst [vmem:[%s990 + $0x938] sm:$0xff] %v1581
                  %v1583 = vld [vmem:[%s989 + $0x2500] sm:$0xff]
                  %1584 = vst [vmem:[%s990 + $0x940] sm:$0xff] %v1583
                  %v1585 = vld [vmem:[%s989 + $0x2520] sm:$0xff]
                  %1586 = vst [vmem:[%s990 + $0x948] sm:$0xff] %v1585
                  %v1587 = vld [vmem:[%s989 + $0x2540] sm:$0xff]
                  %1588 = vst [vmem:[%s990 + $0x950] sm:$0xff] %v1587
                  %v1589 = vld [vmem:[%s989 + $0x2560] sm:$0xff]
                  %1590 = vst [vmem:[%s990 + $0x958] sm:$0xff] %v1589
                  %v1591 = vld [vmem:[%s989 + $0x2580] sm:$0xff]
                  %1592 = vst [vmem:[%s990 + $0x960] sm:$0xff] %v1591
                  %v1593 = vld [vmem:[%s989 + $0x25a0] sm:$0xff]
                  %1594 = vst [vmem:[%s990 + $0x968] sm:$0xff] %v1593
                  %v1595 = vld [vmem:[%s989 + $0x25c0] sm:$0xff]
                  %1596 = vst [vmem:[%s990 + $0x970] sm:$0xff] %v1595
                  %v1597 = vld [vmem:[%s989 + $0x25e0] sm:$0xff]
                  %1598 = vst [vmem:[%s990 + $0x978] sm:$0xff] %v1597
                  %v1599 = vld [vmem:[%s989 + $0x2600] sm:$0xff]
                  %1600 = vst [vmem:[%s990 + $0x980] sm:$0xff] %v1599
                  %v1601 = vld [vmem:[%s989 + $0x2620] sm:$0xff]
                  %1602 = vst [vmem:[%s990 + $0x988] sm:$0xff] %v1601
                  %v1603 = vld [vmem:[%s989 + $0x2640] sm:$0xff]
                  %1604 = vst [vmem:[%s990 + $0x990] sm:$0xff] %v1603
                  %v1605 = vld [vmem:[%s989 + $0x2660] sm:$0xff]
                  %1606 = vst [vmem:[%s990 + $0x998] sm:$0xff] %v1605
                  %v1607 = vld [vmem:[%s989 + $0x2680] sm:$0xff]
                  %1608 = vst [vmem:[%s990 + $0x9a0] sm:$0xff] %v1607
                  %v1609 = vld [vmem:[%s989 + $0x26a0] sm:$0xff]
                  %1610 = vst [vmem:[%s990 + $0x9a8] sm:$0xff] %v1609
                  %v1611 = vld [vmem:[%s989 + $0x26c0] sm:$0xff]
                  %1612 = vst [vmem:[%s990 + $0x9b0] sm:$0xff] %v1611
                  %v1613 = vld [vmem:[%s989 + $0x26e0] sm:$0xff]
                  %1614 = vst [vmem:[%s990 + $0x9b8] sm:$0xff] %v1613
                  %v1615 = vld [vmem:[%s989 + $0x2700] sm:$0xff]
                  %1616 = vst [vmem:[%s990 + $0x9c0] sm:$0xff] %v1615
                  %v1617 = vld [vmem:[%s989 + $0x2720] sm:$0xff]
                  %1618 = vst [vmem:[%s990 + $0x9c8] sm:$0xff] %v1617
                  %v1619 = vld [vmem:[%s989 + $0x2740] sm:$0xff]
                  %1620 = vst [vmem:[%s990 + $0x9d0] sm:$0xff] %v1619
                  %v1621 = vld [vmem:[%s989 + $0x2760] sm:$0xff]
                  %1622 = vst [vmem:[%s990 + $0x9d8] sm:$0xff] %v1621
                  %v1623 = vld [vmem:[%s989 + $0x2780] sm:$0xff]
                  %1624 = vst [vmem:[%s990 + $0x9e0] sm:$0xff] %v1623
                  %v1625 = vld [vmem:[%s989 + $0x27a0] sm:$0xff]
                  %1626 = vst [vmem:[%s990 + $0x9e8] sm:$0xff] %v1625
                  %v1627 = vld [vmem:[%s989 + $0x27c0] sm:$0xff]
                  %1628 = vst [vmem:[%s990 + $0x9f0] sm:$0xff] %v1627
                  %v1629 = vld [vmem:[%s989 + $0x27e0] sm:$0xff]
                  %1630 = vst [vmem:[%s990 + $0x9f8] sm:$0xff] %v1629
                  %v1631 = vld [vmem:[%s989 + $0x2800] sm:$0xff]
                  %1632 = vst [vmem:[%s990 + $0xa00] sm:$0xff] %v1631
                  %v1633 = vld [vmem:[%s989 + $0x2820] sm:$0xff]
                  %1634 = vst [vmem:[%s990 + $0xa08] sm:$0xff] %v1633
                  %v1635 = vld [vmem:[%s989 + $0x2840] sm:$0xff]
                  %1636 = vst [vmem:[%s990 + $0xa10] sm:$0xff] %v1635
                  %v1637 = vld [vmem:[%s989 + $0x2860] sm:$0xff]
                  %1638 = vst [vmem:[%s990 + $0xa18] sm:$0xff] %v1637
                  %v1639 = vld [vmem:[%s989 + $0x2880] sm:$0xff]
                  %1640 = vst [vmem:[%s990 + $0xa20] sm:$0xff] %v1639
                  %v1641 = vld [vmem:[%s989 + $0x28a0] sm:$0xff]
                  %1642 = vst [vmem:[%s990 + $0xa28] sm:$0xff] %v1641
                  %v1643 = vld [vmem:[%s989 + $0x28c0] sm:$0xff]
                  %1644 = vst [vmem:[%s990 + $0xa30] sm:$0xff] %v1643
                  %v1645 = vld [vmem:[%s989 + $0x28e0] sm:$0xff]
                  %1646 = vst [vmem:[%s990 + $0xa38] sm:$0xff] %v1645
                  %v1647 = vld [vmem:[%s989 + $0x2900] sm:$0xff]
                  %1648 = vst [vmem:[%s990 + $0xa40] sm:$0xff] %v1647
                  %v1649 = vld [vmem:[%s989 + $0x2920] sm:$0xff]
                  %1650 = vst [vmem:[%s990 + $0xa48] sm:$0xff] %v1649
                  %v1651 = vld [vmem:[%s989 + $0x2940] sm:$0xff]
                  %1652 = vst [vmem:[%s990 + $0xa50] sm:$0xff] %v1651
                  %v1653 = vld [vmem:[%s989 + $0x2960] sm:$0xff]
                  %1654 = vst [vmem:[%s990 + $0xa58] sm:$0xff] %v1653
                  %v1655 = vld [vmem:[%s989 + $0x2980] sm:$0xff]
                  %1656 = vst [vmem:[%s990 + $0xa60] sm:$0xff] %v1655
                  %v1657 = vld [vmem:[%s989 + $0x29a0] sm:$0xff]
                  %1658 = vst [vmem:[%s990 + $0xa68] sm:$0xff] %v1657
                  %v1659 = vld [vmem:[%s989 + $0x29c0] sm:$0xff]
                  %1660 = vst [vmem:[%s990 + $0xa70] sm:$0xff] %v1659
                  %v1661 = vld [vmem:[%s989 + $0x29e0] sm:$0xff]
                  %1662 = vst [vmem:[%s990 + $0xa78] sm:$0xff] %v1661
                  %v1663 = vld [vmem:[%s989 + $0x2a00] sm:$0xff]
                  %1664 = vst [vmem:[%s990 + $0xa80] sm:$0xff] %v1663
                  %v1665 = vld [vmem:[%s989 + $0x2a20] sm:$0xff]
                  %1666 = vst [vmem:[%s990 + $0xa88] sm:$0xff] %v1665
                  %v1667 = vld [vmem:[%s989 + $0x2a40] sm:$0xff]
                  %1668 = vst [vmem:[%s990 + $0xa90] sm:$0xff] %v1667
                  %v1669 = vld [vmem:[%s989 + $0x2a60] sm:$0xff]
                  %1670 = vst [vmem:[%s990 + $0xa98] sm:$0xff] %v1669
                  %v1671 = vld [vmem:[%s989 + $0x2a80] sm:$0xff]
                  %1672 = vst [vmem:[%s990 + $0xaa0] sm:$0xff] %v1671
                  %v1673 = vld [vmem:[%s989 + $0x2aa0] sm:$0xff]
                  %1674 = vst [vmem:[%s990 + $0xaa8] sm:$0xff] %v1673
                  %v1675 = vld [vmem:[%s989 + $0x2ac0] sm:$0xff]
                  %1676 = vst [vmem:[%s990 + $0xab0] sm:$0xff] %v1675
                  %v1677 = vld [vmem:[%s989 + $0x2ae0] sm:$0xff]
                  %1678 = vst [vmem:[%s990 + $0xab8] sm:$0xff] %v1677
                  %v1679 = vld [vmem:[%s989 + $0x2b00] sm:$0xff]
                  %1680 = vst [vmem:[%s990 + $0xac0] sm:$0xff] %v1679
                  %v1681 = vld [vmem:[%s989 + $0x2b20] sm:$0xff]
                  %1682 = vst [vmem:[%s990 + $0xac8] sm:$0xff] %v1681
                  %v1683 = vld [vmem:[%s989 + $0x2b40] sm:$0xff]
                  %1684 = vst [vmem:[%s990 + $0xad0] sm:$0xff] %v1683
                  %v1685 = vld [vmem:[%s989 + $0x2b60] sm:$0xff]
                  %1686 = vst [vmem:[%s990 + $0xad8] sm:$0xff] %v1685
                  %v1687 = vld [vmem:[%s989 + $0x2b80] sm:$0xff]
                  %1688 = vst [vmem:[%s990 + $0xae0] sm:$0xff] %v1687
                  %v1689 = vld [vmem:[%s989 + $0x2ba0] sm:$0xff]
                  %1690 = vst [vmem:[%s990 + $0xae8] sm:$0xff] %v1689
                  %v1691 = vld [vmem:[%s989 + $0x2bc0] sm:$0xff]
                  %1692 = vst [vmem:[%s990 + $0xaf0] sm:$0xff] %v1691
                  %v1693 = vld [vmem:[%s989 + $0x2be0] sm:$0xff]
                  %1694 = vst [vmem:[%s990 + $0xaf8] sm:$0xff] %v1693
                  %v1695 = vld [vmem:[%s989 + $0x2c00] sm:$0xff]
                  %1696 = vst [vmem:[%s990 + $0xb00] sm:$0xff] %v1695
                  %v1697 = vld [vmem:[%s989 + $0x2c20] sm:$0xff]
                  %1698 = vst [vmem:[%s990 + $0xb08] sm:$0xff] %v1697
                  %v1699 = vld [vmem:[%s989 + $0x2c40] sm:$0xff]
                  %1700 = vst [vmem:[%s990 + $0xb10] sm:$0xff] %v1699
                  %v1701 = vld [vmem:[%s989 + $0x2c60] sm:$0xff]
                  %1702 = vst [vmem:[%s990 + $0xb18] sm:$0xff] %v1701
                  %v1703 = vld [vmem:[%s989 + $0x2c80] sm:$0xff]
                  %1704 = vst [vmem:[%s990 + $0xb20] sm:$0xff] %v1703
                  %v1705 = vld [vmem:[%s989 + $0x2ca0] sm:$0xff]
                  %1706 = vst [vmem:[%s990 + $0xb28] sm:$0xff] %v1705
                  %v1707 = vld [vmem:[%s989 + $0x2cc0] sm:$0xff]
                  %1708 = vst [vmem:[%s990 + $0xb30] sm:$0xff] %v1707
                  %v1709 = vld [vmem:[%s989 + $0x2ce0] sm:$0xff]
                  %1710 = vst [vmem:[%s990 + $0xb38] sm:$0xff] %v1709
                  %v1711 = vld [vmem:[%s989 + $0x2d00] sm:$0xff]
                  %1712 = vst [vmem:[%s990 + $0xb40] sm:$0xff] %v1711
                  %v1713 = vld [vmem:[%s989 + $0x2d20] sm:$0xff]
                  %1714 = vst [vmem:[%s990 + $0xb48] sm:$0xff] %v1713
                  %v1715 = vld [vmem:[%s989 + $0x2d40] sm:$0xff]
                  %1716 = vst [vmem:[%s990 + $0xb50] sm:$0xff] %v1715
                  %v1717 = vld [vmem:[%s989 + $0x2d60] sm:$0xff]
                  %1718 = vst [vmem:[%s990 + $0xb58] sm:$0xff] %v1717
                  %v1719 = vld [vmem:[%s989 + $0x2d80] sm:$0xff]
                  %1720 = vst [vmem:[%s990 + $0xb60] sm:$0xff] %v1719
                  %v1721 = vld [vmem:[%s989 + $0x2da0] sm:$0xff]
                  %1722 = vst [vmem:[%s990 + $0xb68] sm:$0xff] %v1721
                  %v1723 = vld [vmem:[%s989 + $0x2dc0] sm:$0xff]
                  %1724 = vst [vmem:[%s990 + $0xb70] sm:$0xff] %v1723
                  %v1725 = vld [vmem:[%s989 + $0x2de0] sm:$0xff]
                  %1726 = vst [vmem:[%s990 + $0xb78] sm:$0xff] %v1725
                  %v1727 = vld [vmem:[%s989 + $0x2e00] sm:$0xff]
                  %1728 = vst [vmem:[%s990 + $0xb80] sm:$0xff] %v1727
                  %v1729 = vld [vmem:[%s989 + $0x2e20] sm:$0xff]
                  %1730 = vst [vmem:[%s990 + $0xb88] sm:$0xff] %v1729
                  %v1731 = vld [vmem:[%s989 + $0x2e40] sm:$0xff]
                  %1732 = vst [vmem:[%s990 + $0xb90] sm:$0xff] %v1731
                  %v1733 = vld [vmem:[%s989 + $0x2e60] sm:$0xff]
                  %1734 = vst [vmem:[%s990 + $0xb98] sm:$0xff] %v1733
                  %v1735 = vld [vmem:[%s989 + $0x2e80] sm:$0xff]
                  %1736 = vst [vmem:[%s990 + $0xba0] sm:$0xff] %v1735
                  %v1737 = vld [vmem:[%s989 + $0x2ea0] sm:$0xff]
                  %1738 = vst [vmem:[%s990 + $0xba8] sm:$0xff] %v1737
                  %v1739 = vld [vmem:[%s989 + $0x2ec0] sm:$0xff]
                  %1740 = vst [vmem:[%s990 + $0xbb0] sm:$0xff] %v1739
                  %v1741 = vld [vmem:[%s989 + $0x2ee0] sm:$0xff]
                  %1742 = vst [vmem:[%s990 + $0xbb8] sm:$0xff] %v1741
                  %v1743 = vld [vmem:[%s989 + $0x2f00] sm:$0xff]
                  %1744 = vst [vmem:[%s990 + $0xbc0] sm:$0xff] %v1743
                  %v1745 = vld [vmem:[%s989 + $0x2f20] sm:$0xff]
                  %1746 = vst [vmem:[%s990 + $0xbc8] sm:$0xff] %v1745
                  %v1747 = vld [vmem:[%s989 + $0x2f40] sm:$0xff]
                  %1748 = vst [vmem:[%s990 + $0xbd0] sm:$0xff] %v1747
                  %v1749 = vld [vmem:[%s989 + $0x2f60] sm:$0xff]
                  %1750 = vst [vmem:[%s990 + $0xbd8] sm:$0xff] %v1749
                  %v1751 = vld [vmem:[%s989 + $0x2f80] sm:$0xff]
                  %1752 = vst [vmem:[%s990 + $0xbe0] sm:$0xff] %v1751
                  %v1753 = vld [vmem:[%s989 + $0x2fa0] sm:$0xff]
                  %1754 = vst [vmem:[%s990 + $0xbe8] sm:$0xff] %v1753
                  %v1755 = vld [vmem:[%s989 + $0x2fc0] sm:$0xff]
                  %1756 = vst [vmem:[%s990 + $0xbf0] sm:$0xff] %v1755
                  %v1757 = vld [vmem:[%s989 + $0x2fe0] sm:$0xff]
                  %1758 = vst [vmem:[%s990 + $0xbf8] sm:$0xff] %v1757
                  %v1759 = vld [vmem:[%s989 + $0x3000] sm:$0xff]
                  %1760 = vst [vmem:[%s990 + $0xc00] sm:$0xff] %v1759
                  %v1761 = vld [vmem:[%s989 + $0x3020] sm:$0xff]
                  %1762 = vst [vmem:[%s990 + $0xc08] sm:$0xff] %v1761
                  %v1763 = vld [vmem:[%s989 + $0x3040] sm:$0xff]
                  %1764 = vst [vmem:[%s990 + $0xc10] sm:$0xff] %v1763
                  %v1765 = vld [vmem:[%s989 + $0x3060] sm:$0xff]
                  %1766 = vst [vmem:[%s990 + $0xc18] sm:$0xff] %v1765
                  %v1767 = vld [vmem:[%s989 + $0x3080] sm:$0xff]
                  %1768 = vst [vmem:[%s990 + $0xc20] sm:$0xff] %v1767
                  %v1769 = vld [vmem:[%s989 + $0x30a0] sm:$0xff]
                  %1770 = vst [vmem:[%s990 + $0xc28] sm:$0xff] %v1769
                  %v1771 = vld [vmem:[%s989 + $0x30c0] sm:$0xff]
                  %1772 = vst [vmem:[%s990 + $0xc30] sm:$0xff] %v1771
                  %v1773 = vld [vmem:[%s989 + $0x30e0] sm:$0xff]
                  %1774 = vst [vmem:[%s990 + $0xc38] sm:$0xff] %v1773
                  %v1775 = vld [vmem:[%s989 + $0x3100] sm:$0xff]
                  %1776 = vst [vmem:[%s990 + $0xc40] sm:$0xff] %v1775
                  %v1777 = vld [vmem:[%s989 + $0x3120] sm:$0xff]
                  %1778 = vst [vmem:[%s990 + $0xc48] sm:$0xff] %v1777
                  %v1779 = vld [vmem:[%s989 + $0x3140] sm:$0xff]
                  %1780 = vst [vmem:[%s990 + $0xc50] sm:$0xff] %v1779
                  %v1781 = vld [vmem:[%s989 + $0x3160] sm:$0xff]
                  %1782 = vst [vmem:[%s990 + $0xc58] sm:$0xff] %v1781
                  %v1783 = vld [vmem:[%s989 + $0x3180] sm:$0xff]
                  %1784 = vst [vmem:[%s990 + $0xc60] sm:$0xff] %v1783
                  %v1785 = vld [vmem:[%s989 + $0x31a0] sm:$0xff]
                  %1786 = vst [vmem:[%s990 + $0xc68] sm:$0xff] %v1785
                  %v1787 = vld [vmem:[%s989 + $0x31c0] sm:$0xff]
                  %1788 = vst [vmem:[%s990 + $0xc70] sm:$0xff] %v1787
                  %v1789 = vld [vmem:[%s989 + $0x31e0] sm:$0xff]
                  %1790 = vst [vmem:[%s990 + $0xc78] sm:$0xff] %v1789
                $region52: #{dueling_cnn_dqn_forward.8} parent=46 // loop_footer
                  %s988 = sadd.s32 1, %s984
                $region53: #{dueling_cnn_dqn_forward.8} parent=46 // loop_footer_branch
                  %983 = sbr.rel target = $region49
                $region54: #{dueling_cnn_dqn_forward.8} parent=46 // loop_exit
                  _
              $region47: #{dueling_cnn_dqn_forward.8} parent=31 // pred_fallthru
                _
              // Predicated region
              $region55: #{dueling_cnn_dqn_forward.8} parent=31 // pred_check
                _
              $region56: #{dueling_cnn_dqn_forward.8} parent=31 // pred_check_branch
                %1792 = sbr.rel target = $region58
              $region57: #{dueling_cnn_dqn_forward.8} parent=31 // pred_region
                _
              $region58: #{dueling_cnn_dqn_forward.8} parent=31 // pred_fallthru
                _
            $region32: #{dueling_cnn_dqn_forward.8} parent=27 // pred_fallthru
              _
            // Predicated region
            $region33: #{dueling_cnn_dqn_forward.8} parent=27 // pred_check
              _
            $region34: #{dueling_cnn_dqn_forward.8} parent=27 // pred_check_branch
              %171 = sbr.rel target = $region36
            $region35: #{dueling_cnn_dqn_forward.8} parent=27 // pred_region
              loop: start=0, step=1, limit=1
              $region37: #{dueling_cnn_dqn_forward.8} parent=35 // loop_pre_header
                _
              $region38: #{dueling_cnn_dqn_forward.8} parent=35 // loop_header
                %s174 = sphi 0, %s178
                %p175 = scmp.ge.s32.totalorder %s174, 1
                %s179 = sphi %s165, %s165
                %s180 = sphi %s162, %s162
              $region39: #{dueling_cnn_dqn_forward.8} parent=35 // loop_header_branch
                %177 = sbr.rel (%p175) target = $region43
              $region40: #{dueling_cnn_dqn_forward.8} parent=35 // loop_body
                %v181 = vld [vmem:[%s179] sm:$0xff]
                %182 = vst [vmem:[%s180] sm:$0xff] %v181
                %v183 = vld [vmem:[%s179 + $0x20] sm:$0xff]
                %184 = vst [vmem:[%s180 + $0x8] sm:$0xff] %v183
                %v185 = vld [vmem:[%s179 + $0x40] sm:$0xff]
                %186 = vst [vmem:[%s180 + $0x10] sm:$0xff] %v185
                %v187 = vld [vmem:[%s179 + $0x60] sm:$0xff]
                %188 = vst [vmem:[%s180 + $0x18] sm:$0xff] %v187
                %v189 = vld [vmem:[%s179 + $0x80] sm:$0xff]
                %190 = vst [vmem:[%s180 + $0x20] sm:$0xff] %v189
                %v191 = vld [vmem:[%s179 + $0xa0] sm:$0xff]
                %192 = vst [vmem:[%s180 + $0x28] sm:$0xff] %v191
                %v193 = vld [vmem:[%s179 + $0xc0] sm:$0xff]
                %194 = vst [vmem:[%s180 + $0x30] sm:$0xff] %v193
                %v195 = vld [vmem:[%s179 + $0xe0] sm:$0xff]
                %196 = vst [vmem:[%s180 + $0x38] sm:$0xff] %v195
                %v197 = vld [vmem:[%s179 + $0x100] sm:$0xff]
                %198 = vst [vmem:[%s180 + $0x40] sm:$0xff] %v197
                %v199 = vld [vmem:[%s179 + $0x120] sm:$0xff]
                %200 = vst [vmem:[%s180 + $0x48] sm:$0xff] %v199
                %v201 = vld [vmem:[%s179 + $0x140] sm:$0xff]
                %202 = vst [vmem:[%s180 + $0x50] sm:$0xff] %v201
                %v203 = vld [vmem:[%s179 + $0x160] sm:$0xff]
                %204 = vst [vmem:[%s180 + $0x58] sm:$0xff] %v203
                %v205 = vld [vmem:[%s179 + $0x180] sm:$0xff]
                %206 = vst [vmem:[%s180 + $0x60] sm:$0xff] %v205
                %v207 = vld [vmem:[%s179 + $0x1a0] sm:$0xff]
                %208 = vst [vmem:[%s180 + $0x68] sm:$0xff] %v207
                %v209 = vld [vmem:[%s179 + $0x1c0] sm:$0xff]
                %210 = vst [vmem:[%s180 + $0x70] sm:$0xff] %v209
                %v211 = vld [vmem:[%s179 + $0x1e0] sm:$0xff]
                %212 = vst [vmem:[%s180 + $0x78] sm:$0xff] %v211
                %v213 = vld [vmem:[%s179 + $0x200] sm:$0xff]
                %214 = vst [vmem:[%s180 + $0x80] sm:$0xff] %v213
                %v215 = vld [vmem:[%s179 + $0x220] sm:$0xff]
                %216 = vst [vmem:[%s180 + $0x88] sm:$0xff] %v215
                %v217 = vld [vmem:[%s179 + $0x240] sm:$0xff]
                %218 = vst [vmem:[%s180 + $0x90] sm:$0xff] %v217
                %v219 = vld [vmem:[%s179 + $0x260] sm:$0xff]
                %220 = vst [vmem:[%s180 + $0x98] sm:$0xff] %v219
                %v221 = vld [vmem:[%s179 + $0x280] sm:$0xff]
                %222 = vst [vmem:[%s180 + $0xa0] sm:$0xff] %v221
                %v223 = vld [vmem:[%s179 + $0x2a0] sm:$0xff]
                %224 = vst [vmem:[%s180 + $0xa8] sm:$0xff] %v223
                %v225 = vld [vmem:[%s179 + $0x2c0] sm:$0xff]
                %226 = vst [vmem:[%s180 + $0xb0] sm:$0xff] %v225
                %v227 = vld [vmem:[%s179 + $0x2e0] sm:$0xff]
                %228 = vst [vmem:[%s180 + $0xb8] sm:$0xff] %v227
                %v229 = vld [vmem:[%s179 + $0x300] sm:$0xff]
                %230 = vst [vmem:[%s180 + $0xc0] sm:$0xff] %v229
                %v231 = vld [vmem:[%s179 + $0x320] sm:$0xff]
                %232 = vst [vmem:[%s180 + $0xc8] sm:$0xff] %v231
                %v233 = vld [vmem:[%s179 + $0x340] sm:$0xff]
                %234 = vst [vmem:[%s180 + $0xd0] sm:$0xff] %v233
                %v235 = vld [vmem:[%s179 + $0x360] sm:$0xff]
                %236 = vst [vmem:[%s180 + $0xd8] sm:$0xff] %v235
                %v237 = vld [vmem:[%s179 + $0x380] sm:$0xff]
                %238 = vst [vmem:[%s180 + $0xe0] sm:$0xff] %v237
                %v239 = vld [vmem:[%s179 + $0x3a0] sm:$0xff]
                %240 = vst [vmem:[%s180 + $0xe8] sm:$0xff] %v239
                %v241 = vld [vmem:[%s179 + $0x3c0] sm:$0xff]
                %242 = vst [vmem:[%s180 + $0xf0] sm:$0xff] %v241
                %v243 = vld [vmem:[%s179 + $0x3e0] sm:$0xff]
                %244 = vst [vmem:[%s180 + $0xf8] sm:$0xff] %v243
                %v245 = vld [vmem:[%s179 + $0x400] sm:$0xff]
                %246 = vst [vmem:[%s180 + $0x100] sm:$0xff] %v245
                %v247 = vld [vmem:[%s179 + $0x420] sm:$0xff]
                %248 = vst [vmem:[%s180 + $0x108] sm:$0xff] %v247
                %v249 = vld [vmem:[%s179 + $0x440] sm:$0xff]
                %250 = vst [vmem:[%s180 + $0x110] sm:$0xff] %v249
                %v251 = vld [vmem:[%s179 + $0x460] sm:$0xff]
                %252 = vst [vmem:[%s180 + $0x118] sm:$0xff] %v251
                %v253 = vld [vmem:[%s179 + $0x480] sm:$0xff]
                %254 = vst [vmem:[%s180 + $0x120] sm:$0xff] %v253
                %v255 = vld [vmem:[%s179 + $0x4a0] sm:$0xff]
                %256 = vst [vmem:[%s180 + $0x128] sm:$0xff] %v255
                %v257 = vld [vmem:[%s179 + $0x4c0] sm:$0xff]
                %258 = vst [vmem:[%s180 + $0x130] sm:$0xff] %v257
                %v259 = vld [vmem:[%s179 + $0x4e0] sm:$0xff]
                %260 = vst [vmem:[%s180 + $0x138] sm:$0xff] %v259
                %v261 = vld [vmem:[%s179 + $0x500] sm:$0xff]
                %262 = vst [vmem:[%s180 + $0x140] sm:$0xff] %v261
                %v263 = vld [vmem:[%s179 + $0x520] sm:$0xff]
                %264 = vst [vmem:[%s180 + $0x148] sm:$0xff] %v263
                %v265 = vld [vmem:[%s179 + $0x540] sm:$0xff]
                %266 = vst [vmem:[%s180 + $0x150] sm:$0xff] %v265
                %v267 = vld [vmem:[%s179 + $0x560] sm:$0xff]
                %268 = vst [vmem:[%s180 + $0x158] sm:$0xff] %v267
                %v269 = vld [vmem:[%s179 + $0x580] sm:$0xff]
                %270 = vst [vmem:[%s180 + $0x160] sm:$0xff] %v269
                %v271 = vld [vmem:[%s179 + $0x5a0] sm:$0xff]
                %272 = vst [vmem:[%s180 + $0x168] sm:$0xff] %v271
                %v273 = vld [vmem:[%s179 + $0x5c0] sm:$0xff]
                %274 = vst [vmem:[%s180 + $0x170] sm:$0xff] %v273
                %v275 = vld [vmem:[%s179 + $0x5e0] sm:$0xff]
                %276 = vst [vmem:[%s180 + $0x178] sm:$0xff] %v275
                %v277 = vld [vmem:[%s179 + $0x600] sm:$0xff]
                %278 = vst [vmem:[%s180 + $0x180] sm:$0xff] %v277
                %v279 = vld [vmem:[%s179 + $0x620] sm:$0xff]
                %280 = vst [vmem:[%s180 + $0x188] sm:$0xff] %v279
                %v281 = vld [vmem:[%s179 + $0x640] sm:$0xff]
                %282 = vst [vmem:[%s180 + $0x190] sm:$0xff] %v281
                %v283 = vld [vmem:[%s179 + $0x660] sm:$0xff]
                %284 = vst [vmem:[%s180 + $0x198] sm:$0xff] %v283
                %v285 = vld [vmem:[%s179 + $0x680] sm:$0xff]
                %286 = vst [vmem:[%s180 + $0x1a0] sm:$0xff] %v285
                %v287 = vld [vmem:[%s179 + $0x6a0] sm:$0xff]
                %288 = vst [vmem:[%s180 + $0x1a8] sm:$0xff] %v287
                %v289 = vld [vmem:[%s179 + $0x6c0] sm:$0xff]
                %290 = vst [vmem:[%s180 + $0x1b0] sm:$0xff] %v289
                %v291 = vld [vmem:[%s179 + $0x6e0] sm:$0xff]
                %292 = vst [vmem:[%s180 + $0x1b8] sm:$0xff] %v291
                %v293 = vld [vmem:[%s179 + $0x700] sm:$0xff]
                %294 = vst [vmem:[%s180 + $0x1c0] sm:$0xff] %v293
                %v295 = vld [vmem:[%s179 + $0x720] sm:$0xff]
                %296 = vst [vmem:[%s180 + $0x1c8] sm:$0xff] %v295
                %v297 = vld [vmem:[%s179 + $0x740] sm:$0xff]
                %298 = vst [vmem:[%s180 + $0x1d0] sm:$0xff] %v297
                %v299 = vld [vmem:[%s179 + $0x760] sm:$0xff]
                %300 = vst [vmem:[%s180 + $0x1d8] sm:$0xff] %v299
                %v301 = vld [vmem:[%s179 + $0x780] sm:$0xff]
                %302 = vst [vmem:[%s180 + $0x1e0] sm:$0xff] %v301
                %v303 = vld [vmem:[%s179 + $0x7a0] sm:$0xff]
                %304 = vst [vmem:[%s180 + $0x1e8] sm:$0xff] %v303
                %v305 = vld [vmem:[%s179 + $0x7c0] sm:$0xff]
                %306 = vst [vmem:[%s180 + $0x1f0] sm:$0xff] %v305
                %v307 = vld [vmem:[%s179 + $0x7e0] sm:$0xff]
                %308 = vst [vmem:[%s180 + $0x1f8] sm:$0xff] %v307
                %v309 = vld [vmem:[%s179 + $0x800] sm:$0xff]
                %310 = vst [vmem:[%s180 + $0x200] sm:$0xff] %v309
                %v311 = vld [vmem:[%s179 + $0x820] sm:$0xff]
                %312 = vst [vmem:[%s180 + $0x208] sm:$0xff] %v311
                %v313 = vld [vmem:[%s179 + $0x840] sm:$0xff]
                %314 = vst [vmem:[%s180 + $0x210] sm:$0xff] %v313
                %v315 = vld [vmem:[%s179 + $0x860] sm:$0xff]
                %316 = vst [vmem:[%s180 + $0x218] sm:$0xff] %v315
                %v317 = vld [vmem:[%s179 + $0x880] sm:$0xff]
                %318 = vst [vmem:[%s180 + $0x220] sm:$0xff] %v317
                %v319 = vld [vmem:[%s179 + $0x8a0] sm:$0xff]
                %320 = vst [vmem:[%s180 + $0x228] sm:$0xff] %v319
                %v321 = vld [vmem:[%s179 + $0x8c0] sm:$0xff]
                %322 = vst [vmem:[%s180 + $0x230] sm:$0xff] %v321
                %v323 = vld [vmem:[%s179 + $0x8e0] sm:$0xff]
                %324 = vst [vmem:[%s180 + $0x238] sm:$0xff] %v323
                %v325 = vld [vmem:[%s179 + $0x900] sm:$0xff]
                %326 = vst [vmem:[%s180 + $0x240] sm:$0xff] %v325
                %v327 = vld [vmem:[%s179 + $0x920] sm:$0xff]
                %328 = vst [vmem:[%s180 + $0x248] sm:$0xff] %v327
                %v329 = vld [vmem:[%s179 + $0x940] sm:$0xff]
                %330 = vst [vmem:[%s180 + $0x250] sm:$0xff] %v329
                %v331 = vld [vmem:[%s179 + $0x960] sm:$0xff]
                %332 = vst [vmem:[%s180 + $0x258] sm:$0xff] %v331
                %v333 = vld [vmem:[%s179 + $0x980] sm:$0xff]
                %334 = vst [vmem:[%s180 + $0x260] sm:$0xff] %v333
                %v335 = vld [vmem:[%s179 + $0x9a0] sm:$0xff]
                %336 = vst [vmem:[%s180 + $0x268] sm:$0xff] %v335
                %v337 = vld [vmem:[%s179 + $0x9c0] sm:$0xff]
                %338 = vst [vmem:[%s180 + $0x270] sm:$0xff] %v337
                %v339 = vld [vmem:[%s179 + $0x9e0] sm:$0xff]
                %340 = vst [vmem:[%s180 + $0x278] sm:$0xff] %v339
                %v341 = vld [vmem:[%s179 + $0xa00] sm:$0xff]
                %342 = vst [vmem:[%s180 + $0x280] sm:$0xff] %v341
                %v343 = vld [vmem:[%s179 + $0xa20] sm:$0xff]
                %344 = vst [vmem:[%s180 + $0x288] sm:$0xff] %v343
                %v345 = vld [vmem:[%s179 + $0xa40] sm:$0xff]
                %346 = vst [vmem:[%s180 + $0x290] sm:$0xff] %v345
                %v347 = vld [vmem:[%s179 + $0xa60] sm:$0xff]
                %348 = vst [vmem:[%s180 + $0x298] sm:$0xff] %v347
                %v349 = vld [vmem:[%s179 + $0xa80] sm:$0xff]
                %350 = vst [vmem:[%s180 + $0x2a0] sm:$0xff] %v349
                %v351 = vld [vmem:[%s179 + $0xaa0] sm:$0xff]
                %352 = vst [vmem:[%s180 + $0x2a8] sm:$0xff] %v351
                %v353 = vld [vmem:[%s179 + $0xac0] sm:$0xff]
                %354 = vst [vmem:[%s180 + $0x2b0] sm:$0xff] %v353
                %v355 = vld [vmem:[%s179 + $0xae0] sm:$0xff]
                %356 = vst [vmem:[%s180 + $0x2b8] sm:$0xff] %v355
                %v357 = vld [vmem:[%s179 + $0xb00] sm:$0xff]
                %358 = vst [vmem:[%s180 + $0x2c0] sm:$0xff] %v357
                %v359 = vld [vmem:[%s179 + $0xb20] sm:$0xff]
                %360 = vst [vmem:[%s180 + $0x2c8] sm:$0xff] %v359
                %v361 = vld [vmem:[%s179 + $0xb40] sm:$0xff]
                %362 = vst [vmem:[%s180 + $0x2d0] sm:$0xff] %v361
                %v363 = vld [vmem:[%s179 + $0xb60] sm:$0xff]
                %364 = vst [vmem:[%s180 + $0x2d8] sm:$0xff] %v363
                %v365 = vld [vmem:[%s179 + $0xb80] sm:$0xff]
                %366 = vst [vmem:[%s180 + $0x2e0] sm:$0xff] %v365
                %v367 = vld [vmem:[%s179 + $0xba0] sm:$0xff]
                %368 = vst [vmem:[%s180 + $0x2e8] sm:$0xff] %v367
                %v369 = vld [vmem:[%s179 + $0xbc0] sm:$0xff]
                %370 = vst [vmem:[%s180 + $0x2f0] sm:$0xff] %v369
                %v371 = vld [vmem:[%s179 + $0xbe0] sm:$0xff]
                %372 = vst [vmem:[%s180 + $0x2f8] sm:$0xff] %v371
                %v373 = vld [vmem:[%s179 + $0xc00] sm:$0xff]
                %374 = vst [vmem:[%s180 + $0x300] sm:$0xff] %v373
                %v375 = vld [vmem:[%s179 + $0xc20] sm:$0xff]
                %376 = vst [vmem:[%s180 + $0x308] sm:$0xff] %v375
                %v377 = vld [vmem:[%s179 + $0xc40] sm:$0xff]
                %378 = vst [vmem:[%s180 + $0x310] sm:$0xff] %v377
                %v379 = vld [vmem:[%s179 + $0xc60] sm:$0xff]
                %380 = vst [vmem:[%s180 + $0x318] sm:$0xff] %v379
                %v381 = vld [vmem:[%s179 + $0xc80] sm:$0xff]
                %382 = vst [vmem:[%s180 + $0x320] sm:$0xff] %v381
                %v383 = vld [vmem:[%s179 + $0xca0] sm:$0xff]
                %384 = vst [vmem:[%s180 + $0x328] sm:$0xff] %v383
                %v385 = vld [vmem:[%s179 + $0xcc0] sm:$0xff]
                %386 = vst [vmem:[%s180 + $0x330] sm:$0xff] %v385
                %v387 = vld [vmem:[%s179 + $0xce0] sm:$0xff]
                %388 = vst [vmem:[%s180 + $0x338] sm:$0xff] %v387
                %v389 = vld [vmem:[%s179 + $0xd00] sm:$0xff]
                %390 = vst [vmem:[%s180 + $0x340] sm:$0xff] %v389
                %v391 = vld [vmem:[%s179 + $0xd20] sm:$0xff]
                %392 = vst [vmem:[%s180 + $0x348] sm:$0xff] %v391
                %v393 = vld [vmem:[%s179 + $0xd40] sm:$0xff]
                %394 = vst [vmem:[%s180 + $0x350] sm:$0xff] %v393
                %v395 = vld [vmem:[%s179 + $0xd60] sm:$0xff]
                %396 = vst [vmem:[%s180 + $0x358] sm:$0xff] %v395
                %v397 = vld [vmem:[%s179 + $0xd80] sm:$0xff]
                %398 = vst [vmem:[%s180 + $0x360] sm:$0xff] %v397
                %v399 = vld [vmem:[%s179 + $0xda0] sm:$0xff]
                %400 = vst [vmem:[%s180 + $0x368] sm:$0xff] %v399
                %v401 = vld [vmem:[%s179 + $0xdc0] sm:$0xff]
                %402 = vst [vmem:[%s180 + $0x370] sm:$0xff] %v401
                %v403 = vld [vmem:[%s179 + $0xde0] sm:$0xff]
                %404 = vst [vmem:[%s180 + $0x378] sm:$0xff] %v403
                %v405 = vld [vmem:[%s179 + $0xe00] sm:$0xff]
                %406 = vst [vmem:[%s180 + $0x380] sm:$0xff] %v405
                %v407 = vld [vmem:[%s179 + $0xe20] sm:$0xff]
                %408 = vst [vmem:[%s180 + $0x388] sm:$0xff] %v407
                %v409 = vld [vmem:[%s179 + $0xe40] sm:$0xff]
                %410 = vst [vmem:[%s180 + $0x390] sm:$0xff] %v409
                %v411 = vld [vmem:[%s179 + $0xe60] sm:$0xff]
                %412 = vst [vmem:[%s180 + $0x398] sm:$0xff] %v411
                %v413 = vld [vmem:[%s179 + $0xe80] sm:$0xff]
                %414 = vst [vmem:[%s180 + $0x3a0] sm:$0xff] %v413
                %v415 = vld [vmem:[%s179 + $0xea0] sm:$0xff]
                %416 = vst [vmem:[%s180 + $0x3a8] sm:$0xff] %v415
                %v417 = vld [vmem:[%s179 + $0xec0] sm:$0xff]
                %418 = vst [vmem:[%s180 + $0x3b0] sm:$0xff] %v417
                %v419 = vld [vmem:[%s179 + $0xee0] sm:$0xff]
                %420 = vst [vmem:[%s180 + $0x3b8] sm:$0xff] %v419
                %v421 = vld [vmem:[%s179 + $0xf00] sm:$0xff]
                %422 = vst [vmem:[%s180 + $0x3c0] sm:$0xff] %v421
                %v423 = vld [vmem:[%s179 + $0xf20] sm:$0xff]
                %424 = vst [vmem:[%s180 + $0x3c8] sm:$0xff] %v423
                %v425 = vld [vmem:[%s179 + $0xf40] sm:$0xff]
                %426 = vst [vmem:[%s180 + $0x3d0] sm:$0xff] %v425
                %v427 = vld [vmem:[%s179 + $0xf60] sm:$0xff]
                %428 = vst [vmem:[%s180 + $0x3d8] sm:$0xff] %v427
                %v429 = vld [vmem:[%s179 + $0xf80] sm:$0xff]
                %430 = vst [vmem:[%s180 + $0x3e0] sm:$0xff] %v429
                %v431 = vld [vmem:[%s179 + $0xfa0] sm:$0xff]
                %432 = vst [vmem:[%s180 + $0x3e8] sm:$0xff] %v431
                %v433 = vld [vmem:[%s179 + $0xfc0] sm:$0xff]
                %434 = vst [vmem:[%s180 + $0x3f0] sm:$0xff] %v433
                %v435 = vld [vmem:[%s179 + $0xfe0] sm:$0xff]
                %436 = vst [vmem:[%s180 + $0x3f8] sm:$0xff] %v435
                %v437 = vld [vmem:[%s179 + $0x1000] sm:$0xff]
                %438 = vst [vmem:[%s180 + $0x400] sm:$0xff] %v437
                %v439 = vld [vmem:[%s179 + $0x1020] sm:$0xff]
                %440 = vst [vmem:[%s180 + $0x408] sm:$0xff] %v439
                %v441 = vld [vmem:[%s179 + $0x1040] sm:$0xff]
                %442 = vst [vmem:[%s180 + $0x410] sm:$0xff] %v441
                %v443 = vld [vmem:[%s179 + $0x1060] sm:$0xff]
                %444 = vst [vmem:[%s180 + $0x418] sm:$0xff] %v443
                %v445 = vld [vmem:[%s179 + $0x1080] sm:$0xff]
                %446 = vst [vmem:[%s180 + $0x420] sm:$0xff] %v445
                %v447 = vld [vmem:[%s179 + $0x10a0] sm:$0xff]
                %448 = vst [vmem:[%s180 + $0x428] sm:$0xff] %v447
                %v449 = vld [vmem:[%s179 + $0x10c0] sm:$0xff]
                %450 = vst [vmem:[%s180 + $0x430] sm:$0xff] %v449
                %v451 = vld [vmem:[%s179 + $0x10e0] sm:$0xff]
                %452 = vst [vmem:[%s180 + $0x438] sm:$0xff] %v451
                %v453 = vld [vmem:[%s179 + $0x1100] sm:$0xff]
                %454 = vst [vmem:[%s180 + $0x440] sm:$0xff] %v453
                %v455 = vld [vmem:[%s179 + $0x1120] sm:$0xff]
                %456 = vst [vmem:[%s180 + $0x448] sm:$0xff] %v455
                %v457 = vld [vmem:[%s179 + $0x1140] sm:$0xff]
                %458 = vst [vmem:[%s180 + $0x450] sm:$0xff] %v457
                %v459 = vld [vmem:[%s179 + $0x1160] sm:$0xff]
                %460 = vst [vmem:[%s180 + $0x458] sm:$0xff] %v459
                %v461 = vld [vmem:[%s179 + $0x1180] sm:$0xff]
                %462 = vst [vmem:[%s180 + $0x460] sm:$0xff] %v461
                %v463 = vld [vmem:[%s179 + $0x11a0] sm:$0xff]
                %464 = vst [vmem:[%s180 + $0x468] sm:$0xff] %v463
                %v465 = vld [vmem:[%s179 + $0x11c0] sm:$0xff]
                %466 = vst [vmem:[%s180 + $0x470] sm:$0xff] %v465
                %v467 = vld [vmem:[%s179 + $0x11e0] sm:$0xff]
                %468 = vst [vmem:[%s180 + $0x478] sm:$0xff] %v467
                %v469 = vld [vmem:[%s179 + $0x1200] sm:$0xff]
                %470 = vst [vmem:[%s180 + $0x480] sm:$0xff] %v469
                %v471 = vld [vmem:[%s179 + $0x1220] sm:$0xff]
                %472 = vst [vmem:[%s180 + $0x488] sm:$0xff] %v471
                %v473 = vld [vmem:[%s179 + $0x1240] sm:$0xff]
                %474 = vst [vmem:[%s180 + $0x490] sm:$0xff] %v473
                %v475 = vld [vmem:[%s179 + $0x1260] sm:$0xff]
                %476 = vst [vmem:[%s180 + $0x498] sm:$0xff] %v475
                %v477 = vld [vmem:[%s179 + $0x1280] sm:$0xff]
                %478 = vst [vmem:[%s180 + $0x4a0] sm:$0xff] %v477
                %v479 = vld [vmem:[%s179 + $0x12a0] sm:$0xff]
                %480 = vst [vmem:[%s180 + $0x4a8] sm:$0xff] %v479
                %v481 = vld [vmem:[%s179 + $0x12c0] sm:$0xff]
                %482 = vst [vmem:[%s180 + $0x4b0] sm:$0xff] %v481
                %v483 = vld [vmem:[%s179 + $0x12e0] sm:$0xff]
                %484 = vst [vmem:[%s180 + $0x4b8] sm:$0xff] %v483
                %v485 = vld [vmem:[%s179 + $0x1300] sm:$0xff]
                %486 = vst [vmem:[%s180 + $0x4c0] sm:$0xff] %v485
                %v487 = vld [vmem:[%s179 + $0x1320] sm:$0xff]
                %488 = vst [vmem:[%s180 + $0x4c8] sm:$0xff] %v487
                %v489 = vld [vmem:[%s179 + $0x1340] sm:$0xff]
                %490 = vst [vmem:[%s180 + $0x4d0] sm:$0xff] %v489
                %v491 = vld [vmem:[%s179 + $0x1360] sm:$0xff]
                %492 = vst [vmem:[%s180 + $0x4d8] sm:$0xff] %v491
                %v493 = vld [vmem:[%s179 + $0x1380] sm:$0xff]
                %494 = vst [vmem:[%s180 + $0x4e0] sm:$0xff] %v493
                %v495 = vld [vmem:[%s179 + $0x13a0] sm:$0xff]
                %496 = vst [vmem:[%s180 + $0x4e8] sm:$0xff] %v495
                %v497 = vld [vmem:[%s179 + $0x13c0] sm:$0xff]
                %498 = vst [vmem:[%s180 + $0x4f0] sm:$0xff] %v497
                %v499 = vld [vmem:[%s179 + $0x13e0] sm:$0xff]
                %500 = vst [vmem:[%s180 + $0x4f8] sm:$0xff] %v499
                %v501 = vld [vmem:[%s179 + $0x1400] sm:$0xff]
                %502 = vst [vmem:[%s180 + $0x500] sm:$0xff] %v501
                %v503 = vld [vmem:[%s179 + $0x1420] sm:$0xff]
                %504 = vst [vmem:[%s180 + $0x508] sm:$0xff] %v503
                %v505 = vld [vmem:[%s179 + $0x1440] sm:$0xff]
                %506 = vst [vmem:[%s180 + $0x510] sm:$0xff] %v505
                %v507 = vld [vmem:[%s179 + $0x1460] sm:$0xff]
                %508 = vst [vmem:[%s180 + $0x518] sm:$0xff] %v507
                %v509 = vld [vmem:[%s179 + $0x1480] sm:$0xff]
                %510 = vst [vmem:[%s180 + $0x520] sm:$0xff] %v509
                %v511 = vld [vmem:[%s179 + $0x14a0] sm:$0xff]
                %512 = vst [vmem:[%s180 + $0x528] sm:$0xff] %v511
                %v513 = vld [vmem:[%s179 + $0x14c0] sm:$0xff]
                %514 = vst [vmem:[%s180 + $0x530] sm:$0xff] %v513
                %v515 = vld [vmem:[%s179 + $0x14e0] sm:$0xff]
                %516 = vst [vmem:[%s180 + $0x538] sm:$0xff] %v515
                %v517 = vld [vmem:[%s179 + $0x1500] sm:$0xff]
                %518 = vst [vmem:[%s180 + $0x540] sm:$0xff] %v517
                %v519 = vld [vmem:[%s179 + $0x1520] sm:$0xff]
                %520 = vst [vmem:[%s180 + $0x548] sm:$0xff] %v519
                %v521 = vld [vmem:[%s179 + $0x1540] sm:$0xff]
                %522 = vst [vmem:[%s180 + $0x550] sm:$0xff] %v521
                %v523 = vld [vmem:[%s179 + $0x1560] sm:$0xff]
                %524 = vst [vmem:[%s180 + $0x558] sm:$0xff] %v523
                %v525 = vld [vmem:[%s179 + $0x1580] sm:$0xff]
                %526 = vst [vmem:[%s180 + $0x560] sm:$0xff] %v525
                %v527 = vld [vmem:[%s179 + $0x15a0] sm:$0xff]
                %528 = vst [vmem:[%s180 + $0x568] sm:$0xff] %v527
                %v529 = vld [vmem:[%s179 + $0x15c0] sm:$0xff]
                %530 = vst [vmem:[%s180 + $0x570] sm:$0xff] %v529
                %v531 = vld [vmem:[%s179 + $0x15e0] sm:$0xff]
                %532 = vst [vmem:[%s180 + $0x578] sm:$0xff] %v531
                %v533 = vld [vmem:[%s179 + $0x1600] sm:$0xff]
                %534 = vst [vmem:[%s180 + $0x580] sm:$0xff] %v533
                %v535 = vld [vmem:[%s179 + $0x1620] sm:$0xff]
                %536 = vst [vmem:[%s180 + $0x588] sm:$0xff] %v535
                %v537 = vld [vmem:[%s179 + $0x1640] sm:$0xff]
                %538 = vst [vmem:[%s180 + $0x590] sm:$0xff] %v537
                %v539 = vld [vmem:[%s179 + $0x1660] sm:$0xff]
                %540 = vst [vmem:[%s180 + $0x598] sm:$0xff] %v539
                %v541 = vld [vmem:[%s179 + $0x1680] sm:$0xff]
                %542 = vst [vmem:[%s180 + $0x5a0] sm:$0xff] %v541
                %v543 = vld [vmem:[%s179 + $0x16a0] sm:$0xff]
                %544 = vst [vmem:[%s180 + $0x5a8] sm:$0xff] %v543
                %v545 = vld [vmem:[%s179 + $0x16c0] sm:$0xff]
                %546 = vst [vmem:[%s180 + $0x5b0] sm:$0xff] %v545
                %v547 = vld [vmem:[%s179 + $0x16e0] sm:$0xff]
                %548 = vst [vmem:[%s180 + $0x5b8] sm:$0xff] %v547
                %v549 = vld [vmem:[%s179 + $0x1700] sm:$0xff]
                %550 = vst [vmem:[%s180 + $0x5c0] sm:$0xff] %v549
                %v551 = vld [vmem:[%s179 + $0x1720] sm:$0xff]
                %552 = vst [vmem:[%s180 + $0x5c8] sm:$0xff] %v551
                %v553 = vld [vmem:[%s179 + $0x1740] sm:$0xff]
                %554 = vst [vmem:[%s180 + $0x5d0] sm:$0xff] %v553
                %v555 = vld [vmem:[%s179 + $0x1760] sm:$0xff]
                %556 = vst [vmem:[%s180 + $0x5d8] sm:$0xff] %v555
                %v557 = vld [vmem:[%s179 + $0x1780] sm:$0xff]
                %558 = vst [vmem:[%s180 + $0x5e0] sm:$0xff] %v557
                %v559 = vld [vmem:[%s179 + $0x17a0] sm:$0xff]
                %560 = vst [vmem:[%s180 + $0x5e8] sm:$0xff] %v559
                %v561 = vld [vmem:[%s179 + $0x17c0] sm:$0xff]
                %562 = vst [vmem:[%s180 + $0x5f0] sm:$0xff] %v561
                %v563 = vld [vmem:[%s179 + $0x17e0] sm:$0xff]
                %564 = vst [vmem:[%s180 + $0x5f8] sm:$0xff] %v563
                %v565 = vld [vmem:[%s179 + $0x1800] sm:$0xff]
                %566 = vst [vmem:[%s180 + $0x600] sm:$0xff] %v565
                %v567 = vld [vmem:[%s179 + $0x1820] sm:$0xff]
                %568 = vst [vmem:[%s180 + $0x608] sm:$0xff] %v567
                %v569 = vld [vmem:[%s179 + $0x1840] sm:$0xff]
                %570 = vst [vmem:[%s180 + $0x610] sm:$0xff] %v569
                %v571 = vld [vmem:[%s179 + $0x1860] sm:$0xff]
                %572 = vst [vmem:[%s180 + $0x618] sm:$0xff] %v571
                %v573 = vld [vmem:[%s179 + $0x1880] sm:$0xff]
                %574 = vst [vmem:[%s180 + $0x620] sm:$0xff] %v573
                %v575 = vld [vmem:[%s179 + $0x18a0] sm:$0xff]
                %576 = vst [vmem:[%s180 + $0x628] sm:$0xff] %v575
                %v577 = vld [vmem:[%s179 + $0x18c0] sm:$0xff]
                %578 = vst [vmem:[%s180 + $0x630] sm:$0xff] %v577
                %v579 = vld [vmem:[%s179 + $0x18e0] sm:$0xff]
                %580 = vst [vmem:[%s180 + $0x638] sm:$0xff] %v579
                %v581 = vld [vmem:[%s179 + $0x1900] sm:$0xff]
                %582 = vst [vmem:[%s180 + $0x640] sm:$0xff] %v581
                %v583 = vld [vmem:[%s179 + $0x1920] sm:$0xff]
                %584 = vst [vmem:[%s180 + $0x648] sm:$0xff] %v583
                %v585 = vld [vmem:[%s179 + $0x1940] sm:$0xff]
                %586 = vst [vmem:[%s180 + $0x650] sm:$0xff] %v585
                %v587 = vld [vmem:[%s179 + $0x1960] sm:$0xff]
                %588 = vst [vmem:[%s180 + $0x658] sm:$0xff] %v587
                %v589 = vld [vmem:[%s179 + $0x1980] sm:$0xff]
                %590 = vst [vmem:[%s180 + $0x660] sm:$0xff] %v589
                %v591 = vld [vmem:[%s179 + $0x19a0] sm:$0xff]
                %592 = vst [vmem:[%s180 + $0x668] sm:$0xff] %v591
                %v593 = vld [vmem:[%s179 + $0x19c0] sm:$0xff]
                %594 = vst [vmem:[%s180 + $0x670] sm:$0xff] %v593
                %v595 = vld [vmem:[%s179 + $0x19e0] sm:$0xff]
                %596 = vst [vmem:[%s180 + $0x678] sm:$0xff] %v595
                %v597 = vld [vmem:[%s179 + $0x1a00] sm:$0xff]
                %598 = vst [vmem:[%s180 + $0x680] sm:$0xff] %v597
                %v599 = vld [vmem:[%s179 + $0x1a20] sm:$0xff]
                %600 = vst [vmem:[%s180 + $0x688] sm:$0xff] %v599
                %v601 = vld [vmem:[%s179 + $0x1a40] sm:$0xff]
                %602 = vst [vmem:[%s180 + $0x690] sm:$0xff] %v601
                %v603 = vld [vmem:[%s179 + $0x1a60] sm:$0xff]
                %604 = vst [vmem:[%s180 + $0x698] sm:$0xff] %v603
                %v605 = vld [vmem:[%s179 + $0x1a80] sm:$0xff]
                %606 = vst [vmem:[%s180 + $0x6a0] sm:$0xff] %v605
                %v607 = vld [vmem:[%s179 + $0x1aa0] sm:$0xff]
                %608 = vst [vmem:[%s180 + $0x6a8] sm:$0xff] %v607
                %v609 = vld [vmem:[%s179 + $0x1ac0] sm:$0xff]
                %610 = vst [vmem:[%s180 + $0x6b0] sm:$0xff] %v609
                %v611 = vld [vmem:[%s179 + $0x1ae0] sm:$0xff]
                %612 = vst [vmem:[%s180 + $0x6b8] sm:$0xff] %v611
                %v613 = vld [vmem:[%s179 + $0x1b00] sm:$0xff]
                %614 = vst [vmem:[%s180 + $0x6c0] sm:$0xff] %v613
                %v615 = vld [vmem:[%s179 + $0x1b20] sm:$0xff]
                %616 = vst [vmem:[%s180 + $0x6c8] sm:$0xff] %v615
                %v617 = vld [vmem:[%s179 + $0x1b40] sm:$0xff]
                %618 = vst [vmem:[%s180 + $0x6d0] sm:$0xff] %v617
                %v619 = vld [vmem:[%s179 + $0x1b60] sm:$0xff]
                %620 = vst [vmem:[%s180 + $0x6d8] sm:$0xff] %v619
                %v621 = vld [vmem:[%s179 + $0x1b80] sm:$0xff]
                %622 = vst [vmem:[%s180 + $0x6e0] sm:$0xff] %v621
                %v623 = vld [vmem:[%s179 + $0x1ba0] sm:$0xff]
                %624 = vst [vmem:[%s180 + $0x6e8] sm:$0xff] %v623
                %v625 = vld [vmem:[%s179 + $0x1bc0] sm:$0xff]
                %626 = vst [vmem:[%s180 + $0x6f0] sm:$0xff] %v625
                %v627 = vld [vmem:[%s179 + $0x1be0] sm:$0xff]
                %628 = vst [vmem:[%s180 + $0x6f8] sm:$0xff] %v627
                %v629 = vld [vmem:[%s179 + $0x1c00] sm:$0xff]
                %630 = vst [vmem:[%s180 + $0x700] sm:$0xff] %v629
                %v631 = vld [vmem:[%s179 + $0x1c20] sm:$0xff]
                %632 = vst [vmem:[%s180 + $0x708] sm:$0xff] %v631
                %v633 = vld [vmem:[%s179 + $0x1c40] sm:$0xff]
                %634 = vst [vmem:[%s180 + $0x710] sm:$0xff] %v633
                %v635 = vld [vmem:[%s179 + $0x1c60] sm:$0xff]
                %636 = vst [vmem:[%s180 + $0x718] sm:$0xff] %v635
                %v637 = vld [vmem:[%s179 + $0x1c80] sm:$0xff]
                %638 = vst [vmem:[%s180 + $0x720] sm:$0xff] %v637
                %v639 = vld [vmem:[%s179 + $0x1ca0] sm:$0xff]
                %640 = vst [vmem:[%s180 + $0x728] sm:$0xff] %v639
                %v641 = vld [vmem:[%s179 + $0x1cc0] sm:$0xff]
                %642 = vst [vmem:[%s180 + $0x730] sm:$0xff] %v641
                %v643 = vld [vmem:[%s179 + $0x1ce0] sm:$0xff]
                %644 = vst [vmem:[%s180 + $0x738] sm:$0xff] %v643
                %v645 = vld [vmem:[%s179 + $0x1d00] sm:$0xff]
                %646 = vst [vmem:[%s180 + $0x740] sm:$0xff] %v645
                %v647 = vld [vmem:[%s179 + $0x1d20] sm:$0xff]
                %648 = vst [vmem:[%s180 + $0x748] sm:$0xff] %v647
                %v649 = vld [vmem:[%s179 + $0x1d40] sm:$0xff]
                %650 = vst [vmem:[%s180 + $0x750] sm:$0xff] %v649
                %v651 = vld [vmem:[%s179 + $0x1d60] sm:$0xff]
                %652 = vst [vmem:[%s180 + $0x758] sm:$0xff] %v651
                %v653 = vld [vmem:[%s179 + $0x1d80] sm:$0xff]
                %654 = vst [vmem:[%s180 + $0x760] sm:$0xff] %v653
                %v655 = vld [vmem:[%s179 + $0x1da0] sm:$0xff]
                %656 = vst [vmem:[%s180 + $0x768] sm:$0xff] %v655
                %v657 = vld [vmem:[%s179 + $0x1dc0] sm:$0xff]
                %658 = vst [vmem:[%s180 + $0x770] sm:$0xff] %v657
                %v659 = vld [vmem:[%s179 + $0x1de0] sm:$0xff]
                %660 = vst [vmem:[%s180 + $0x778] sm:$0xff] %v659
                %v661 = vld [vmem:[%s179 + $0x1e00] sm:$0xff]
                %662 = vst [vmem:[%s180 + $0x780] sm:$0xff] %v661
                %v663 = vld [vmem:[%s179 + $0x1e20] sm:$0xff]
                %664 = vst [vmem:[%s180 + $0x788] sm:$0xff] %v663
                %v665 = vld [vmem:[%s179 + $0x1e40] sm:$0xff]
                %666 = vst [vmem:[%s180 + $0x790] sm:$0xff] %v665
                %v667 = vld [vmem:[%s179 + $0x1e60] sm:$0xff]
                %668 = vst [vmem:[%s180 + $0x798] sm:$0xff] %v667
                %v669 = vld [vmem:[%s179 + $0x1e80] sm:$0xff]
                %670 = vst [vmem:[%s180 + $0x7a0] sm:$0xff] %v669
                %v671 = vld [vmem:[%s179 + $0x1ea0] sm:$0xff]
                %672 = vst [vmem:[%s180 + $0x7a8] sm:$0xff] %v671
                %v673 = vld [vmem:[%s179 + $0x1ec0] sm:$0xff]
                %674 = vst [vmem:[%s180 + $0x7b0] sm:$0xff] %v673
                %v675 = vld [vmem:[%s179 + $0x1ee0] sm:$0xff]
                %676 = vst [vmem:[%s180 + $0x7b8] sm:$0xff] %v675
                %v677 = vld [vmem:[%s179 + $0x1f00] sm:$0xff]
                %678 = vst [vmem:[%s180 + $0x7c0] sm:$0xff] %v677
                %v679 = vld [vmem:[%s179 + $0x1f20] sm:$0xff]
                %680 = vst [vmem:[%s180 + $0x7c8] sm:$0xff] %v679
                %v681 = vld [vmem:[%s179 + $0x1f40] sm:$0xff]
                %682 = vst [vmem:[%s180 + $0x7d0] sm:$0xff] %v681
                %v683 = vld [vmem:[%s179 + $0x1f60] sm:$0xff]
                %684 = vst [vmem:[%s180 + $0x7d8] sm:$0xff] %v683
                %v685 = vld [vmem:[%s179 + $0x1f80] sm:$0xff]
                %686 = vst [vmem:[%s180 + $0x7e0] sm:$0xff] %v685
                %v687 = vld [vmem:[%s179 + $0x1fa0] sm:$0xff]
                %688 = vst [vmem:[%s180 + $0x7e8] sm:$0xff] %v687
                %v689 = vld [vmem:[%s179 + $0x1fc0] sm:$0xff]
                %690 = vst [vmem:[%s180 + $0x7f0] sm:$0xff] %v689
                %v691 = vld [vmem:[%s179 + $0x1fe0] sm:$0xff]
                %692 = vst [vmem:[%s180 + $0x7f8] sm:$0xff] %v691
                %v693 = vld [vmem:[%s179 + $0x2000] sm:$0xff]
                %694 = vst [vmem:[%s180 + $0x800] sm:$0xff] %v693
                %v695 = vld [vmem:[%s179 + $0x2020] sm:$0xff]
                %696 = vst [vmem:[%s180 + $0x808] sm:$0xff] %v695
                %v697 = vld [vmem:[%s179 + $0x2040] sm:$0xff]
                %698 = vst [vmem:[%s180 + $0x810] sm:$0xff] %v697
                %v699 = vld [vmem:[%s179 + $0x2060] sm:$0xff]
                %700 = vst [vmem:[%s180 + $0x818] sm:$0xff] %v699
                %v701 = vld [vmem:[%s179 + $0x2080] sm:$0xff]
                %702 = vst [vmem:[%s180 + $0x820] sm:$0xff] %v701
                %v703 = vld [vmem:[%s179 + $0x20a0] sm:$0xff]
                %704 = vst [vmem:[%s180 + $0x828] sm:$0xff] %v703
                %v705 = vld [vmem:[%s179 + $0x20c0] sm:$0xff]
                %706 = vst [vmem:[%s180 + $0x830] sm:$0xff] %v705
                %v707 = vld [vmem:[%s179 + $0x20e0] sm:$0xff]
                %708 = vst [vmem:[%s180 + $0x838] sm:$0xff] %v707
                %v709 = vld [vmem:[%s179 + $0x2100] sm:$0xff]
                %710 = vst [vmem:[%s180 + $0x840] sm:$0xff] %v709
                %v711 = vld [vmem:[%s179 + $0x2120] sm:$0xff]
                %712 = vst [vmem:[%s180 + $0x848] sm:$0xff] %v711
                %v713 = vld [vmem:[%s179 + $0x2140] sm:$0xff]
                %714 = vst [vmem:[%s180 + $0x850] sm:$0xff] %v713
                %v715 = vld [vmem:[%s179 + $0x2160] sm:$0xff]
                %716 = vst [vmem:[%s180 + $0x858] sm:$0xff] %v715
                %v717 = vld [vmem:[%s179 + $0x2180] sm:$0xff]
                %718 = vst [vmem:[%s180 + $0x860] sm:$0xff] %v717
                %v719 = vld [vmem:[%s179 + $0x21a0] sm:$0xff]
                %720 = vst [vmem:[%s180 + $0x868] sm:$0xff] %v719
                %v721 = vld [vmem:[%s179 + $0x21c0] sm:$0xff]
                %722 = vst [vmem:[%s180 + $0x870] sm:$0xff] %v721
                %v723 = vld [vmem:[%s179 + $0x21e0] sm:$0xff]
                %724 = vst [vmem:[%s180 + $0x878] sm:$0xff] %v723
                %v725 = vld [vmem:[%s179 + $0x2200] sm:$0xff]
                %726 = vst [vmem:[%s180 + $0x880] sm:$0xff] %v725
                %v727 = vld [vmem:[%s179 + $0x2220] sm:$0xff]
                %728 = vst [vmem:[%s180 + $0x888] sm:$0xff] %v727
                %v729 = vld [vmem:[%s179 + $0x2240] sm:$0xff]
                %730 = vst [vmem:[%s180 + $0x890] sm:$0xff] %v729
                %v731 = vld [vmem:[%s179 + $0x2260] sm:$0xff]
                %732 = vst [vmem:[%s180 + $0x898] sm:$0xff] %v731
                %v733 = vld [vmem:[%s179 + $0x2280] sm:$0xff]
                %734 = vst [vmem:[%s180 + $0x8a0] sm:$0xff] %v733
                %v735 = vld [vmem:[%s179 + $0x22a0] sm:$0xff]
                %736 = vst [vmem:[%s180 + $0x8a8] sm:$0xff] %v735
                %v737 = vld [vmem:[%s179 + $0x22c0] sm:$0xff]
                %738 = vst [vmem:[%s180 + $0x8b0] sm:$0xff] %v737
                %v739 = vld [vmem:[%s179 + $0x22e0] sm:$0xff]
                %740 = vst [vmem:[%s180 + $0x8b8] sm:$0xff] %v739
                %v741 = vld [vmem:[%s179 + $0x2300] sm:$0xff]
                %742 = vst [vmem:[%s180 + $0x8c0] sm:$0xff] %v741
                %v743 = vld [vmem:[%s179 + $0x2320] sm:$0xff]
                %744 = vst [vmem:[%s180 + $0x8c8] sm:$0xff] %v743
                %v745 = vld [vmem:[%s179 + $0x2340] sm:$0xff]
                %746 = vst [vmem:[%s180 + $0x8d0] sm:$0xff] %v745
                %v747 = vld [vmem:[%s179 + $0x2360] sm:$0xff]
                %748 = vst [vmem:[%s180 + $0x8d8] sm:$0xff] %v747
                %v749 = vld [vmem:[%s179 + $0x2380] sm:$0xff]
                %750 = vst [vmem:[%s180 + $0x8e0] sm:$0xff] %v749
                %v751 = vld [vmem:[%s179 + $0x23a0] sm:$0xff]
                %752 = vst [vmem:[%s180 + $0x8e8] sm:$0xff] %v751
                %v753 = vld [vmem:[%s179 + $0x23c0] sm:$0xff]
                %754 = vst [vmem:[%s180 + $0x8f0] sm:$0xff] %v753
                %v755 = vld [vmem:[%s179 + $0x23e0] sm:$0xff]
                %756 = vst [vmem:[%s180 + $0x8f8] sm:$0xff] %v755
                %v757 = vld [vmem:[%s179 + $0x2400] sm:$0xff]
                %758 = vst [vmem:[%s180 + $0x900] sm:$0xff] %v757
                %v759 = vld [vmem:[%s179 + $0x2420] sm:$0xff]
                %760 = vst [vmem:[%s180 + $0x908] sm:$0xff] %v759
                %v761 = vld [vmem:[%s179 + $0x2440] sm:$0xff]
                %762 = vst [vmem:[%s180 + $0x910] sm:$0xff] %v761
                %v763 = vld [vmem:[%s179 + $0x2460] sm:$0xff]
                %764 = vst [vmem:[%s180 + $0x918] sm:$0xff] %v763
                %v765 = vld [vmem:[%s179 + $0x2480] sm:$0xff]
                %766 = vst [vmem:[%s180 + $0x920] sm:$0xff] %v765
                %v767 = vld [vmem:[%s179 + $0x24a0] sm:$0xff]
                %768 = vst [vmem:[%s180 + $0x928] sm:$0xff] %v767
                %v769 = vld [vmem:[%s179 + $0x24c0] sm:$0xff]
                %770 = vst [vmem:[%s180 + $0x930] sm:$0xff] %v769
                %v771 = vld [vmem:[%s179 + $0x24e0] sm:$0xff]
                %772 = vst [vmem:[%s180 + $0x938] sm:$0xff] %v771
                %v773 = vld [vmem:[%s179 + $0x2500] sm:$0xff]
                %774 = vst [vmem:[%s180 + $0x940] sm:$0xff] %v773
                %v775 = vld [vmem:[%s179 + $0x2520] sm:$0xff]
                %776 = vst [vmem:[%s180 + $0x948] sm:$0xff] %v775
                %v777 = vld [vmem:[%s179 + $0x2540] sm:$0xff]
                %778 = vst [vmem:[%s180 + $0x950] sm:$0xff] %v777
                %v779 = vld [vmem:[%s179 + $0x2560] sm:$0xff]
                %780 = vst [vmem:[%s180 + $0x958] sm:$0xff] %v779
                %v781 = vld [vmem:[%s179 + $0x2580] sm:$0xff]
                %782 = vst [vmem:[%s180 + $0x960] sm:$0xff] %v781
                %v783 = vld [vmem:[%s179 + $0x25a0] sm:$0xff]
                %784 = vst [vmem:[%s180 + $0x968] sm:$0xff] %v783
                %v785 = vld [vmem:[%s179 + $0x25c0] sm:$0xff]
                %786 = vst [vmem:[%s180 + $0x970] sm:$0xff] %v785
                %v787 = vld [vmem:[%s179 + $0x25e0] sm:$0xff]
                %788 = vst [vmem:[%s180 + $0x978] sm:$0xff] %v787
                %v789 = vld [vmem:[%s179 + $0x2600] sm:$0xff]
                %790 = vst [vmem:[%s180 + $0x980] sm:$0xff] %v789
                %v791 = vld [vmem:[%s179 + $0x2620] sm:$0xff]
                %792 = vst [vmem:[%s180 + $0x988] sm:$0xff] %v791
                %v793 = vld [vmem:[%s179 + $0x2640] sm:$0xff]
                %794 = vst [vmem:[%s180 + $0x990] sm:$0xff] %v793
                %v795 = vld [vmem:[%s179 + $0x2660] sm:$0xff]
                %796 = vst [vmem:[%s180 + $0x998] sm:$0xff] %v795
                %v797 = vld [vmem:[%s179 + $0x2680] sm:$0xff]
                %798 = vst [vmem:[%s180 + $0x9a0] sm:$0xff] %v797
                %v799 = vld [vmem:[%s179 + $0x26a0] sm:$0xff]
                %800 = vst [vmem:[%s180 + $0x9a8] sm:$0xff] %v799
                %v801 = vld [vmem:[%s179 + $0x26c0] sm:$0xff]
                %802 = vst [vmem:[%s180 + $0x9b0] sm:$0xff] %v801
                %v803 = vld [vmem:[%s179 + $0x26e0] sm:$0xff]
                %804 = vst [vmem:[%s180 + $0x9b8] sm:$0xff] %v803
                %v805 = vld [vmem:[%s179 + $0x2700] sm:$0xff]
                %806 = vst [vmem:[%s180 + $0x9c0] sm:$0xff] %v805
                %v807 = vld [vmem:[%s179 + $0x2720] sm:$0xff]
                %808 = vst [vmem:[%s180 + $0x9c8] sm:$0xff] %v807
                %v809 = vld [vmem:[%s179 + $0x2740] sm:$0xff]
                %810 = vst [vmem:[%s180 + $0x9d0] sm:$0xff] %v809
                %v811 = vld [vmem:[%s179 + $0x2760] sm:$0xff]
                %812 = vst [vmem:[%s180 + $0x9d8] sm:$0xff] %v811
                %v813 = vld [vmem:[%s179 + $0x2780] sm:$0xff]
                %814 = vst [vmem:[%s180 + $0x9e0] sm:$0xff] %v813
                %v815 = vld [vmem:[%s179 + $0x27a0] sm:$0xff]
                %816 = vst [vmem:[%s180 + $0x9e8] sm:$0xff] %v815
                %v817 = vld [vmem:[%s179 + $0x27c0] sm:$0xff]
                %818 = vst [vmem:[%s180 + $0x9f0] sm:$0xff] %v817
                %v819 = vld [vmem:[%s179 + $0x27e0] sm:$0xff]
                %820 = vst [vmem:[%s180 + $0x9f8] sm:$0xff] %v819
                %v821 = vld [vmem:[%s179 + $0x2800] sm:$0xff]
                %822 = vst [vmem:[%s180 + $0xa00] sm:$0xff] %v821
                %v823 = vld [vmem:[%s179 + $0x2820] sm:$0xff]
                %824 = vst [vmem:[%s180 + $0xa08] sm:$0xff] %v823
                %v825 = vld [vmem:[%s179 + $0x2840] sm:$0xff]
                %826 = vst [vmem:[%s180 + $0xa10] sm:$0xff] %v825
                %v827 = vld [vmem:[%s179 + $0x2860] sm:$0xff]
                %828 = vst [vmem:[%s180 + $0xa18] sm:$0xff] %v827
                %v829 = vld [vmem:[%s179 + $0x2880] sm:$0xff]
                %830 = vst [vmem:[%s180 + $0xa20] sm:$0xff] %v829
                %v831 = vld [vmem:[%s179 + $0x28a0] sm:$0xff]
                %832 = vst [vmem:[%s180 + $0xa28] sm:$0xff] %v831
                %v833 = vld [vmem:[%s179 + $0x28c0] sm:$0xff]
                %834 = vst [vmem:[%s180 + $0xa30] sm:$0xff] %v833
                %v835 = vld [vmem:[%s179 + $0x28e0] sm:$0xff]
                %836 = vst [vmem:[%s180 + $0xa38] sm:$0xff] %v835
                %v837 = vld [vmem:[%s179 + $0x2900] sm:$0xff]
                %838 = vst [vmem:[%s180 + $0xa40] sm:$0xff] %v837
                %v839 = vld [vmem:[%s179 + $0x2920] sm:$0xff]
                %840 = vst [vmem:[%s180 + $0xa48] sm:$0xff] %v839
                %v841 = vld [vmem:[%s179 + $0x2940] sm:$0xff]
                %842 = vst [vmem:[%s180 + $0xa50] sm:$0xff] %v841
                %v843 = vld [vmem:[%s179 + $0x2960] sm:$0xff]
                %844 = vst [vmem:[%s180 + $0xa58] sm:$0xff] %v843
                %v845 = vld [vmem:[%s179 + $0x2980] sm:$0xff]
                %846 = vst [vmem:[%s180 + $0xa60] sm:$0xff] %v845
                %v847 = vld [vmem:[%s179 + $0x29a0] sm:$0xff]
                %848 = vst [vmem:[%s180 + $0xa68] sm:$0xff] %v847
                %v849 = vld [vmem:[%s179 + $0x29c0] sm:$0xff]
                %850 = vst [vmem:[%s180 + $0xa70] sm:$0xff] %v849
                %v851 = vld [vmem:[%s179 + $0x29e0] sm:$0xff]
                %852 = vst [vmem:[%s180 + $0xa78] sm:$0xff] %v851
                %v853 = vld [vmem:[%s179 + $0x2a00] sm:$0xff]
                %854 = vst [vmem:[%s180 + $0xa80] sm:$0xff] %v853
                %v855 = vld [vmem:[%s179 + $0x2a20] sm:$0xff]
                %856 = vst [vmem:[%s180 + $0xa88] sm:$0xff] %v855
                %v857 = vld [vmem:[%s179 + $0x2a40] sm:$0xff]
                %858 = vst [vmem:[%s180 + $0xa90] sm:$0xff] %v857
                %v859 = vld [vmem:[%s179 + $0x2a60] sm:$0xff]
                %860 = vst [vmem:[%s180 + $0xa98] sm:$0xff] %v859
                %v861 = vld [vmem:[%s179 + $0x2a80] sm:$0xff]
                %862 = vst [vmem:[%s180 + $0xaa0] sm:$0xff] %v861
                %v863 = vld [vmem:[%s179 + $0x2aa0] sm:$0xff]
                %864 = vst [vmem:[%s180 + $0xaa8] sm:$0xff] %v863
                %v865 = vld [vmem:[%s179 + $0x2ac0] sm:$0xff]
                %866 = vst [vmem:[%s180 + $0xab0] sm:$0xff] %v865
                %v867 = vld [vmem:[%s179 + $0x2ae0] sm:$0xff]
                %868 = vst [vmem:[%s180 + $0xab8] sm:$0xff] %v867
                %v869 = vld [vmem:[%s179 + $0x2b00] sm:$0xff]
                %870 = vst [vmem:[%s180 + $0xac0] sm:$0xff] %v869
                %v871 = vld [vmem:[%s179 + $0x2b20] sm:$0xff]
                %872 = vst [vmem:[%s180 + $0xac8] sm:$0xff] %v871
                %v873 = vld [vmem:[%s179 + $0x2b40] sm:$0xff]
                %874 = vst [vmem:[%s180 + $0xad0] sm:$0xff] %v873
                %v875 = vld [vmem:[%s179 + $0x2b60] sm:$0xff]
                %876 = vst [vmem:[%s180 + $0xad8] sm:$0xff] %v875
                %v877 = vld [vmem:[%s179 + $0x2b80] sm:$0xff]
                %878 = vst [vmem:[%s180 + $0xae0] sm:$0xff] %v877
                %v879 = vld [vmem:[%s179 + $0x2ba0] sm:$0xff]
                %880 = vst [vmem:[%s180 + $0xae8] sm:$0xff] %v879
                %v881 = vld [vmem:[%s179 + $0x2bc0] sm:$0xff]
                %882 = vst [vmem:[%s180 + $0xaf0] sm:$0xff] %v881
                %v883 = vld [vmem:[%s179 + $0x2be0] sm:$0xff]
                %884 = vst [vmem:[%s180 + $0xaf8] sm:$0xff] %v883
                %v885 = vld [vmem:[%s179 + $0x2c00] sm:$0xff]
                %886 = vst [vmem:[%s180 + $0xb00] sm:$0xff] %v885
                %v887 = vld [vmem:[%s179 + $0x2c20] sm:$0xff]
                %888 = vst [vmem:[%s180 + $0xb08] sm:$0xff] %v887
                %v889 = vld [vmem:[%s179 + $0x2c40] sm:$0xff]
                %890 = vst [vmem:[%s180 + $0xb10] sm:$0xff] %v889
                %v891 = vld [vmem:[%s179 + $0x2c60] sm:$0xff]
                %892 = vst [vmem:[%s180 + $0xb18] sm:$0xff] %v891
                %v893 = vld [vmem:[%s179 + $0x2c80] sm:$0xff]
                %894 = vst [vmem:[%s180 + $0xb20] sm:$0xff] %v893
                %v895 = vld [vmem:[%s179 + $0x2ca0] sm:$0xff]
                %896 = vst [vmem:[%s180 + $0xb28] sm:$0xff] %v895
                %v897 = vld [vmem:[%s179 + $0x2cc0] sm:$0xff]
                %898 = vst [vmem:[%s180 + $0xb30] sm:$0xff] %v897
                %v899 = vld [vmem:[%s179 + $0x2ce0] sm:$0xff]
                %900 = vst [vmem:[%s180 + $0xb38] sm:$0xff] %v899
                %v901 = vld [vmem:[%s179 + $0x2d00] sm:$0xff]
                %902 = vst [vmem:[%s180 + $0xb40] sm:$0xff] %v901
                %v903 = vld [vmem:[%s179 + $0x2d20] sm:$0xff]
                %904 = vst [vmem:[%s180 + $0xb48] sm:$0xff] %v903
                %v905 = vld [vmem:[%s179 + $0x2d40] sm:$0xff]
                %906 = vst [vmem:[%s180 + $0xb50] sm:$0xff] %v905
                %v907 = vld [vmem:[%s179 + $0x2d60] sm:$0xff]
                %908 = vst [vmem:[%s180 + $0xb58] sm:$0xff] %v907
                %v909 = vld [vmem:[%s179 + $0x2d80] sm:$0xff]
                %910 = vst [vmem:[%s180 + $0xb60] sm:$0xff] %v909
                %v911 = vld [vmem:[%s179 + $0x2da0] sm:$0xff]
                %912 = vst [vmem:[%s180 + $0xb68] sm:$0xff] %v911
                %v913 = vld [vmem:[%s179 + $0x2dc0] sm:$0xff]
                %914 = vst [vmem:[%s180 + $0xb70] sm:$0xff] %v913
                %v915 = vld [vmem:[%s179 + $0x2de0] sm:$0xff]
                %916 = vst [vmem:[%s180 + $0xb78] sm:$0xff] %v915
                %v917 = vld [vmem:[%s179 + $0x2e00] sm:$0xff]
                %918 = vst [vmem:[%s180 + $0xb80] sm:$0xff] %v917
                %v919 = vld [vmem:[%s179 + $0x2e20] sm:$0xff]
                %920 = vst [vmem:[%s180 + $0xb88] sm:$0xff] %v919
                %v921 = vld [vmem:[%s179 + $0x2e40] sm:$0xff]
                %922 = vst [vmem:[%s180 + $0xb90] sm:$0xff] %v921
                %v923 = vld [vmem:[%s179 + $0x2e60] sm:$0xff]
                %924 = vst [vmem:[%s180 + $0xb98] sm:$0xff] %v923
                %v925 = vld [vmem:[%s179 + $0x2e80] sm:$0xff]
                %926 = vst [vmem:[%s180 + $0xba0] sm:$0xff] %v925
                %v927 = vld [vmem:[%s179 + $0x2ea0] sm:$0xff]
                %928 = vst [vmem:[%s180 + $0xba8] sm:$0xff] %v927
                %v929 = vld [vmem:[%s179 + $0x2ec0] sm:$0xff]
                %930 = vst [vmem:[%s180 + $0xbb0] sm:$0xff] %v929
                %v931 = vld [vmem:[%s179 + $0x2ee0] sm:$0xff]
                %932 = vst [vmem:[%s180 + $0xbb8] sm:$0xff] %v931
                %v933 = vld [vmem:[%s179 + $0x2f00] sm:$0xff]
                %934 = vst [vmem:[%s180 + $0xbc0] sm:$0xff] %v933
                %v935 = vld [vmem:[%s179 + $0x2f20] sm:$0xff]
                %936 = vst [vmem:[%s180 + $0xbc8] sm:$0xff] %v935
                %v937 = vld [vmem:[%s179 + $0x2f40] sm:$0xff]
                %938 = vst [vmem:[%s180 + $0xbd0] sm:$0xff] %v937
                %v939 = vld [vmem:[%s179 + $0x2f60] sm:$0xff]
                %940 = vst [vmem:[%s180 + $0xbd8] sm:$0xff] %v939
                %v941 = vld [vmem:[%s179 + $0x2f80] sm:$0xff]
                %942 = vst [vmem:[%s180 + $0xbe0] sm:$0xff] %v941
                %v943 = vld [vmem:[%s179 + $0x2fa0] sm:$0xff]
                %944 = vst [vmem:[%s180 + $0xbe8] sm:$0xff] %v943
                %v945 = vld [vmem:[%s179 + $0x2fc0] sm:$0xff]
                %946 = vst [vmem:[%s180 + $0xbf0] sm:$0xff] %v945
                %v947 = vld [vmem:[%s179 + $0x2fe0] sm:$0xff]
                %948 = vst [vmem:[%s180 + $0xbf8] sm:$0xff] %v947
                %v949 = vld [vmem:[%s179 + $0x3000] sm:$0xff]
                %950 = vst [vmem:[%s180 + $0xc00] sm:$0xff] %v949
                %v951 = vld [vmem:[%s179 + $0x3020] sm:$0xff]
                %952 = vst [vmem:[%s180 + $0xc08] sm:$0xff] %v951
                %v953 = vld [vmem:[%s179 + $0x3040] sm:$0xff]
                %954 = vst [vmem:[%s180 + $0xc10] sm:$0xff] %v953
                %v955 = vld [vmem:[%s179 + $0x3060] sm:$0xff]
                %956 = vst [vmem:[%s180 + $0xc18] sm:$0xff] %v955
                %v957 = vld [vmem:[%s179 + $0x3080] sm:$0xff]
                %958 = vst [vmem:[%s180 + $0xc20] sm:$0xff] %v957
                %v959 = vld [vmem:[%s179 + $0x30a0] sm:$0xff]
                %960 = vst [vmem:[%s180 + $0xc28] sm:$0xff] %v959
                %v961 = vld [vmem:[%s179 + $0x30c0] sm:$0xff]
                %962 = vst [vmem:[%s180 + $0xc30] sm:$0xff] %v961
                %v963 = vld [vmem:[%s179 + $0x30e0] sm:$0xff]
                %964 = vst [vmem:[%s180 + $0xc38] sm:$0xff] %v963
                %v965 = vld [vmem:[%s179 + $0x3100] sm:$0xff]
                %966 = vst [vmem:[%s180 + $0xc40] sm:$0xff] %v965
                %v967 = vld [vmem:[%s179 + $0x3120] sm:$0xff]
                %968 = vst [vmem:[%s180 + $0xc48] sm:$0xff] %v967
                %v969 = vld [vmem:[%s179 + $0x3140] sm:$0xff]
                %970 = vst [vmem:[%s180 + $0xc50] sm:$0xff] %v969
                %v971 = vld [vmem:[%s179 + $0x3160] sm:$0xff]
                %972 = vst [vmem:[%s180 + $0xc58] sm:$0xff] %v971
                %v973 = vld [vmem:[%s179 + $0x3180] sm:$0xff]
                %974 = vst [vmem:[%s180 + $0xc60] sm:$0xff] %v973
                %v975 = vld [vmem:[%s179 + $0x31a0] sm:$0xff]
                %976 = vst [vmem:[%s180 + $0xc68] sm:$0xff] %v975
                %v977 = vld [vmem:[%s179 + $0x31c0] sm:$0xff]
                %978 = vst [vmem:[%s180 + $0xc70] sm:$0xff] %v977
                %v979 = vld [vmem:[%s179 + $0x31e0] sm:$0xff]
                %980 = vst [vmem:[%s180 + $0xc78] sm:$0xff] %v979
              $region41: #{dueling_cnn_dqn_forward.8} parent=35 // loop_footer
                %s178 = sadd.s32 1, %s174
              $region42: #{dueling_cnn_dqn_forward.8} parent=35 // loop_footer_branch
                %173 = sbr.rel target = $region38
              $region43: #{dueling_cnn_dqn_forward.8} parent=35 // loop_exit
                _
            $region36: #{dueling_cnn_dqn_forward.8} parent=27 // pred_fallthru
              _
          $region28: #{dueling_cnn_dqn_forward.8} parent=23 // pred_fallthru
            _
          %1793 = vnop
        $region24: #{dueling_cnn_dqn_forward.8} parent=19 // pred_fallthru
          _
        // Predicated region
        $region59: #{dueling_cnn_dqn_forward.8} parent=19 // pred_check
          %p1794 = pneg %p93
        $region60: #{dueling_cnn_dqn_forward.8} parent=19 // pred_check_branch
          %1796 = sbr.rel (%p1794) target = $region62
        $region61: #{dueling_cnn_dqn_forward.8} parent=19 // pred_region
          %s1797 = smul.u32 2, %s17
          %p1798 = scmp.lt.s32.totalorder %s1797, 7
          %s1799 = scalar_select %p1798, %s1797, 7
          %s1800 = scalar_lea.vmem %s2, %s1799
          %s1801 = smul.u32 2, %s17
        $region62: #{dueling_cnn_dqn_forward.8} parent=19 // pred_fallthru
          _
      $region20: #{dueling_cnn_dqn_forward.8} parent=5 // pred_fallthru
        _
      %p1802 = scmp.le.s32.totalorder 1, %s9
      %p1803 = scmp.lt.s32.totalorder %s9, 5
      %p1804 = pnand %p1802, %p1803
      %p1805 = pneg %p1804
      // Predicated region
      $region63: #{dueling_cnn_dqn_forward.8} parent=5 // pred_check
        _
      $region64: #{dueling_cnn_dqn_forward.8} parent=5 // pred_check_branch
        %1807 = sbr.rel (%p1804) target = $region66
      $region65: #{dueling_cnn_dqn_forward.8} parent=5 // pred_region
        %s1808 = ssub.s32 %s9, 1
        %s1809 = sand.u32 %s60, 1
        %s1810 = sand.u32 %s60, 1
        %s1811 = smul.addr %s1810, 3200
        %s1812 = scalar_lea.vmem [#allocation2], %s1811
        // Predicated region
        $region67: #{dueling_cnn_dqn_forward.8} parent=65 // pred_check
          %p1813 = pneg %p73
        $region68: #{dueling_cnn_dqn_forward.8} parent=65 // pred_check_branch
          %1815 = sbr.rel (%p1813) target = $region70
        $region69: #{dueling_cnn_dqn_forward.8} parent=65 // pred_region
          _
        $region70: #{dueling_cnn_dqn_forward.8} parent=65 // pred_fallthru
          _
        %s1816 = smul.u32 2, %s18
        %p1817 = scmp.lt.s32.totalorder %s1816, 1
        %s1818 = scalar_select %p1817, %s1816, 1
        %s1819 = smul.addr %s1818, 25
        %s1820 = smul.addr %s1819, 4
        %s1821 = scalar_lea.vmem %s0, %s1820
        %p1822 = pneg %p47
        %p1823 = pneg %p44
        %s1824 = sand.u32 %s60, 1
        %s1825 = sand.u32 %s60, 1
        %s1826 = smul.addr %s1825, 3200
        %s1827 = scalar_lea.vmem [#allocation2], %s1826
        %p1828 = pneg %p73
        %p1829 = pneg %p70
        %s1830 = smul.u32 2, %s19
        %p1831 = scmp.lt.s32.totalorder %s1830, 7
        %s1832 = scalar_select %p1831, %s1830, 7
        %s1833 = scalar_lea.vmem %s2, %s1832
        %p1834 = pneg %p99
        %p1835 = pneg %p96
        %p1836 = pneg %p127
        %p1837 = pneg %p124
        %s1838 = sand.u32 %s114, 1
        %s1839 = sand.u32 %s114, 1
        %s1840 = smul.addr %s1839, 32
        %s1841 = scalar_lea.vmem [#allocation3], %s1840
        %s1842 = smul.u32 2, %s18
        %p1843 = scmp.lt.s32.totalorder %s1842, 1
        %s1844 = scalar_select %p1843, %s1842, 1
        %s1845 = smul.addr %s1844, 25
        %s1846 = smul.addr %s1845, 4
        %s1847 = scalar_lea.vmem %s0, %s1846
        %s1848 = smul.u32 2, %s18
        %s1849 = smul.u32 2, %s19
        %s1850 = smul.u32 2, %s19
        %p1851 = scmp.lt.s32.totalorder %s1850, 7
        %s1852 = scalar_select %p1851, %s1850, 7
        %s1853 = scalar_lea.vmem %s2, %s1852
        %s1854 = smul.u32 2, %s19
        %s1855 = smul.u32 2, %s18
        %s1856 = smul.u32 2, %s19
        %v1858 = vld [vmem:[%s1847] sm:$0xff]
        %v1859 = vld [vmem:[%s1847 + $0x8] sm:$0xff]
        %v1860 = vld [vmem:[%s1847 + $0x10] sm:$0xff]
        %v1861 = vld [vmem:[%s1847 + $0x18] sm:$0xff]
        %v1862 = vld [vmem:[%s1847 + $0x20] sm:$0xff]
        %v1863 = vld [vmem:[%s1847 + $0x28] sm:$0xff]
        %v1864 = vld [vmem:[%s1847 + $0x30] sm:$0xff]
        %v1865 = vld [vmem:[%s1847 + $0x38] sm:$0xff]
        %v1866 = vld [vmem:[%s1847 + $0x40] sm:$0xff]
        %v1867 = vld [vmem:[%s1847 + $0x48] sm:$0xff]
        %v1868 = vld [vmem:[%s1847 + $0x50] sm:$0xff]
        %v1869 = vld [vmem:[%s1847 + $0x58] sm:$0xff]
        %v1870 = vld [vmem:[%s1847 + $0x60] sm:$0xf]
        %v1871 = vld [vmem:[%s1847 + $0x64] sm:$0xff]
        %v1872 = vld [vmem:[%s1847 + $0x6c] sm:$0xff]
        %v1873 = vld [vmem:[%s1847 + $0x74] sm:$0xff]
        %v1874 = vld [vmem:[%s1847 + $0x7c] sm:$0xff]
        %v1875 = vld [vmem:[%s1847 + $0x84] sm:$0xff]
        %v1876 = vld [vmem:[%s1847 + $0x8c] sm:$0xff]
        %v1877 = vld [vmem:[%s1847 + $0x94] sm:$0xff]
        %v1878 = vld [vmem:[%s1847 + $0x9c] sm:$0xff]
        %v1879 = vld [vmem:[%s1847 + $0xa4] sm:$0xff]
        %v1880 = vld [vmem:[%s1847 + $0xac] sm:$0xff]
        %v1881 = vld [vmem:[%s1847 + $0xb4] sm:$0xff]
        %v1882 = vld [vmem:[%s1847 + $0xbc] sm:$0xff]
        %v1883 = vld [vmem:[%s1847 + $0xc4] sm:$0xf]
        %v1884 = vld [vmem:[%s1812] sm:$0xff]
        %v1885 = vld [vmem:[%s1812 + $0x8] sm:$0xff]
        %v1886 = vld [vmem:[%s1812 + $0x10] sm:$0xff]
        %v1887 = vld [vmem:[%s1812 + $0x18] sm:$0xff]
        %v1888 = vld [vmem:[%s1812 + $0x20] sm:$0xff]
        %v1889 = vld [vmem:[%s1812 + $0x28] sm:$0xff]
        %v1890 = vld [vmem:[%s1812 + $0x30] sm:$0xff]
        %v1891 = vld [vmem:[%s1812 + $0x38] sm:$0xff]
        %v1892 = vld [vmem:[%s1812 + $0x40] sm:$0xff]
        %v1893 = vld [vmem:[%s1812 + $0x48] sm:$0xff]
        %v1894 = vld [vmem:[%s1812 + $0x50] sm:$0xff]
        %v1895 = vld [vmem:[%s1812 + $0x58] sm:$0xff]
        %v1896 = vld [vmem:[%s1812 + $0x60] sm:$0xff]
        %v1897 = vld [vmem:[%s1812 + $0x68] sm:$0xff]
        %v1898 = vld [vmem:[%s1812 + $0x70] sm:$0xff]
        %v1899 = vld [vmem:[%s1812 + $0x78] sm:$0xff]
        %v1900 = vld [vmem:[%s1812 + $0x80] sm:$0xff]
        %v1901 = vld [vmem:[%s1812 + $0x88] sm:$0xff]
        %v1902 = vld [vmem:[%s1812 + $0x90] sm:$0xff]
        %v1903 = vld [vmem:[%s1812 + $0x98] sm:$0xff]
        %v1904 = vld [vmem:[%s1812 + $0xa0] sm:$0xff]
        %v1905 = vld [vmem:[%s1812 + $0xa8] sm:$0xff]
        %v1906 = vld [vmem:[%s1812 + $0xb0] sm:$0xff]
        %v1907 = vld [vmem:[%s1812 + $0xb8] sm:$0xff]
        %v1908 = vld [vmem:[%s1812 + $0xc0] sm:$0xff]
        %v1909 = vld [vmem:[%s1812 + $0xc8] sm:$0xff]
        %v1910 = vld [vmem:[%s1812 + $0xd0] sm:$0xff]
        %v1911 = vld [vmem:[%s1812 + $0xd8] sm:$0xff]
        %v1912 = vld [vmem:[%s1812 + $0xe0] sm:$0xff]
        %v1913 = vld [vmem:[%s1812 + $0xe8] sm:$0xff]
        %v1914 = vld [vmem:[%s1812 + $0xf0] sm:$0xff]
        %v1915 = vld [vmem:[%s1812 + $0xf8] sm:$0xff]
        %v1916 = vld [vmem:[%s1812 + $0x100] sm:$0xff]
        %v1917 = vld [vmem:[%s1812 + $0x108] sm:$0xff]
        %v1918 = vld [vmem:[%s1812 + $0x110] sm:$0xff]
        %v1919 = vld [vmem:[%s1812 + $0x118] sm:$0xff]
        %v1920 = vld [vmem:[%s1812 + $0x120] sm:$0xff]
        %v1921 = vld [vmem:[%s1812 + $0x128] sm:$0xff]
        %v1922 = vld [vmem:[%s1812 + $0x130] sm:$0xff]
        %v1923 = vld [vmem:[%s1812 + $0x138] sm:$0xff]
        %v1924 = vld [vmem:[%s1812 + $0x140] sm:$0xff]
        %v1925 = vld [vmem:[%s1812 + $0x148] sm:$0xff]
        %v1926 = vld [vmem:[%s1812 + $0x150] sm:$0xff]
        %v1927 = vld [vmem:[%s1812 + $0x158] sm:$0xff]
        %v1928 = vld [vmem:[%s1812 + $0x160] sm:$0xff]
        %v1929 = vld [vmem:[%s1812 + $0x168] sm:$0xff]
        %v1930 = vld [vmem:[%s1812 + $0x170] sm:$0xff]
        %v1931 = vld [vmem:[%s1812 + $0x178] sm:$0xff]
        %v1932 = vld [vmem:[%s1812 + $0x180] sm:$0xff]
        %v1933 = vld [vmem:[%s1812 + $0x188] sm:$0xff]
        %v1934 = vld [vmem:[%s1812 + $0x190] sm:$0xff]
        %v1935 = vld [vmem:[%s1812 + $0x198] sm:$0xff]
        %v1936 = vld [vmem:[%s1812 + $0x1a0] sm:$0xff]
        %v1937 = vld [vmem:[%s1812 + $0x1a8] sm:$0xff]
        %v1938 = vld [vmem:[%s1812 + $0x1b0] sm:$0xff]
        %v1939 = vld [vmem:[%s1812 + $0x1b8] sm:$0xff]
        %v1940 = vld [vmem:[%s1812 + $0x1c0] sm:$0xff]
        %v1941 = vld [vmem:[%s1812 + $0x1c8] sm:$0xff]
        %v1942 = vld [vmem:[%s1812 + $0x1d0] sm:$0xff]
        %v1943 = vld [vmem:[%s1812 + $0x1d8] sm:$0xff]
        %v1944 = vld [vmem:[%s1812 + $0x1e0] sm:$0xff]
        %v1945 = vld [vmem:[%s1812 + $0x1e8] sm:$0xff]
        %v1946 = vld [vmem:[%s1812 + $0x1f0] sm:$0xff]
        %v1947 = vld [vmem:[%s1812 + $0x1f8] sm:$0xff]
        %v1948 = vld [vmem:[%s1812 + $0x200] sm:$0xff]
        %v1949 = vld [vmem:[%s1812 + $0x208] sm:$0xff]
        %v1950 = vld [vmem:[%s1812 + $0x210] sm:$0xff]
        %v1951 = vld [vmem:[%s1812 + $0x218] sm:$0xff]
        %v1952 = vld [vmem:[%s1812 + $0x220] sm:$0xff]
        %v1953 = vld [vmem:[%s1812 + $0x228] sm:$0xff]
        %v1954 = vld [vmem:[%s1812 + $0x230] sm:$0xff]
        %v1955 = vld [vmem:[%s1812 + $0x238] sm:$0xff]
        %v1956 = vld [vmem:[%s1812 + $0x240] sm:$0xff]
        %v1957 = vld [vmem:[%s1812 + $0x248] sm:$0xff]
        %v1958 = vld [vmem:[%s1812 + $0x250] sm:$0xff]
        %v1959 = vld [vmem:[%s1812 + $0x258] sm:$0xff]
        %v1960 = vld [vmem:[%s1812 + $0x260] sm:$0xff]
        %v1961 = vld [vmem:[%s1812 + $0x268] sm:$0xff]
        %v1962 = vld [vmem:[%s1812 + $0x270] sm:$0xff]
        %v1963 = vld [vmem:[%s1812 + $0x278] sm:$0xff]
        %v1964 = vld [vmem:[%s1812 + $0x280] sm:$0xff]
        %v1965 = vld [vmem:[%s1812 + $0x288] sm:$0xff]
        %v1966 = vld [vmem:[%s1812 + $0x290] sm:$0xff]
        %v1967 = vld [vmem:[%s1812 + $0x298] sm:$0xff]
        %v1968 = vld [vmem:[%s1812 + $0x2a0] sm:$0xff]
        %v1969 = vld [vmem:[%s1812 + $0x2a8] sm:$0xff]
        %v1970 = vld [vmem:[%s1812 + $0x2b0] sm:$0xff]
        %v1971 = vld [vmem:[%s1812 + $0x2b8] sm:$0xff]
        %v1972 = vld [vmem:[%s1812 + $0x2c0] sm:$0xff]
        %v1973 = vld [vmem:[%s1812 + $0x2c8] sm:$0xff]
        %v1974 = vld [vmem:[%s1812 + $0x2d0] sm:$0xff]
        %v1975 = vld [vmem:[%s1812 + $0x2d8] sm:$0xff]
        %v1976 = vld [vmem:[%s1812 + $0x2e0] sm:$0xff]
        %v1977 = vld [vmem:[%s1812 + $0x2e8] sm:$0xff]
        %v1978 = vld [vmem:[%s1812 + $0x2f0] sm:$0xff]
        %v1979 = vld [vmem:[%s1812 + $0x2f8] sm:$0xff]
        %v1980 = vld [vmem:[%s1812 + $0x300] sm:$0xff]
        %v1981 = vld [vmem:[%s1812 + $0x308] sm:$0xff]
        %v1982 = vld [vmem:[%s1812 + $0x310] sm:$0xff]
        %v1983 = vld [vmem:[%s1812 + $0x318] sm:$0xff]
        %v1984 = vld [vmem:[%s1812 + $0x320] sm:$0xff]
        %v1985 = vld [vmem:[%s1812 + $0x328] sm:$0xff]
        %v1986 = vld [vmem:[%s1812 + $0x330] sm:$0xff]
        %v1987 = vld [vmem:[%s1812 + $0x338] sm:$0xff]
        %v1988 = vld [vmem:[%s1812 + $0x340] sm:$0xff]
        %v1989 = vld [vmem:[%s1812 + $0x348] sm:$0xff]
        %v1990 = vld [vmem:[%s1812 + $0x350] sm:$0xff]
        %v1991 = vld [vmem:[%s1812 + $0x358] sm:$0xff]
        %v1992 = vld [vmem:[%s1812 + $0x360] sm:$0xff]
        %v1993 = vld [vmem:[%s1812 + $0x368] sm:$0xff]
        %v1994 = vld [vmem:[%s1812 + $0x370] sm:$0xff]
        %v1995 = vld [vmem:[%s1812 + $0x378] sm:$0xff]
        %v1996 = vld [vmem:[%s1812 + $0x380] sm:$0xff]
        %v1997 = vld [vmem:[%s1812 + $0x388] sm:$0xff]
        %v1998 = vld [vmem:[%s1812 + $0x390] sm:$0xff]
        %v1999 = vld [vmem:[%s1812 + $0x398] sm:$0xff]
        %v2000 = vld [vmem:[%s1812 + $0x3a0] sm:$0xff]
        %v2001 = vld [vmem:[%s1812 + $0x3a8] sm:$0xff]
        %v2002 = vld [vmem:[%s1812 + $0x3b0] sm:$0xff]
        %v2003 = vld [vmem:[%s1812 + $0x3b8] sm:$0xff]
        %v2004 = vld [vmem:[%s1812 + $0x3c0] sm:$0xff]
        %v2005 = vld [vmem:[%s1812 + $0x3c8] sm:$0xff]
        %v2006 = vld [vmem:[%s1812 + $0x3d0] sm:$0xff]
        %v2007 = vld [vmem:[%s1812 + $0x3d8] sm:$0xff]
        %v2008 = vld [vmem:[%s1812 + $0x3e0] sm:$0xff]
        %v2009 = vld [vmem:[%s1812 + $0x3e8] sm:$0xff]
        %v2010 = vld [vmem:[%s1812 + $0x3f0] sm:$0xff]
        %v2011 = vld [vmem:[%s1812 + $0x3f8] sm:$0xff]
        %v2012 = vld [vmem:[%s1812 + $0x400] sm:$0xff]
        %v2013 = vld [vmem:[%s1812 + $0x408] sm:$0xff]
        %v2014 = vld [vmem:[%s1812 + $0x410] sm:$0xff]
        %v2015 = vld [vmem:[%s1812 + $0x418] sm:$0xff]
        %v2016 = vld [vmem:[%s1812 + $0x420] sm:$0xff]
        %v2017 = vld [vmem:[%s1812 + $0x428] sm:$0xff]
        %v2018 = vld [vmem:[%s1812 + $0x430] sm:$0xff]
        %v2019 = vld [vmem:[%s1812 + $0x438] sm:$0xff]
        %v2020 = vld [vmem:[%s1812 + $0x440] sm:$0xff]
        %v2021 = vld [vmem:[%s1812 + $0x448] sm:$0xff]
        %v2022 = vld [vmem:[%s1812 + $0x450] sm:$0xff]
        %v2023 = vld [vmem:[%s1812 + $0x458] sm:$0xff]
        %v2024 = vld [vmem:[%s1812 + $0x460] sm:$0xff]
        %v2025 = vld [vmem:[%s1812 + $0x468] sm:$0xff]
        %v2026 = vld [vmem:[%s1812 + $0x470] sm:$0xff]
        %v2027 = vld [vmem:[%s1812 + $0x478] sm:$0xff]
        %v2028 = vld [vmem:[%s1812 + $0x480] sm:$0xff]
        %v2029 = vld [vmem:[%s1812 + $0x488] sm:$0xff]
        %v2030 = vld [vmem:[%s1812 + $0x490] sm:$0xff]
        %v2031 = vld [vmem:[%s1812 + $0x498] sm:$0xff]
        %v2032 = vld [vmem:[%s1812 + $0x4a0] sm:$0xff]
        %v2033 = vld [vmem:[%s1812 + $0x4a8] sm:$0xff]
        %v2034 = vld [vmem:[%s1812 + $0x4b0] sm:$0xff]
        %v2035 = vld [vmem:[%s1812 + $0x4b8] sm:$0xff]
        %v2036 = vld [vmem:[%s1812 + $0x4c0] sm:$0xff]
        %v2037 = vld [vmem:[%s1812 + $0x4c8] sm:$0xff]
        %v2038 = vld [vmem:[%s1812 + $0x4d0] sm:$0xff]
        %v2039 = vld [vmem:[%s1812 + $0x4d8] sm:$0xff]
        %v2040 = vld [vmem:[%s1812 + $0x4e0] sm:$0xff]
        %v2041 = vld [vmem:[%s1812 + $0x4e8] sm:$0xff]
        %v2042 = vld [vmem:[%s1812 + $0x4f0] sm:$0xff]
        %v2043 = vld [vmem:[%s1812 + $0x4f8] sm:$0xff]
        %v2044 = vld [vmem:[%s1812 + $0x500] sm:$0xff]
        %v2045 = vld [vmem:[%s1812 + $0x508] sm:$0xff]
        %v2046 = vld [vmem:[%s1812 + $0x510] sm:$0xff]
        %v2047 = vld [vmem:[%s1812 + $0x518] sm:$0xff]
        %v2048 = vld [vmem:[%s1812 + $0x520] sm:$0xff]
        %v2049 = vld [vmem:[%s1812 + $0x528] sm:$0xff]
        %v2050 = vld [vmem:[%s1812 + $0x530] sm:$0xff]
        %v2051 = vld [vmem:[%s1812 + $0x538] sm:$0xff]
        %v2052 = vld [vmem:[%s1812 + $0x540] sm:$0xff]
        %v2053 = vld [vmem:[%s1812 + $0x548] sm:$0xff]
        %v2054 = vld [vmem:[%s1812 + $0x550] sm:$0xff]
        %v2055 = vld [vmem:[%s1812 + $0x558] sm:$0xff]
        %v2056 = vld [vmem:[%s1812 + $0x560] sm:$0xff]
        %v2057 = vld [vmem:[%s1812 + $0x568] sm:$0xff]
        %v2058 = vld [vmem:[%s1812 + $0x570] sm:$0xff]
        %v2059 = vld [vmem:[%s1812 + $0x578] sm:$0xff]
        %v2060 = vld [vmem:[%s1812 + $0x580] sm:$0xff]
        %v2061 = vld [vmem:[%s1812 + $0x588] sm:$0xff]
        %v2062 = vld [vmem:[%s1812 + $0x590] sm:$0xff]
        %v2063 = vld [vmem:[%s1812 + $0x598] sm:$0xff]
        %v2064 = vld [vmem:[%s1812 + $0x5a0] sm:$0xff]
        %v2065 = vld [vmem:[%s1812 + $0x5a8] sm:$0xff]
        %v2066 = vld [vmem:[%s1812 + $0x5b0] sm:$0xff]
        %v2067 = vld [vmem:[%s1812 + $0x5b8] sm:$0xff]
        %v2068 = vld [vmem:[%s1812 + $0x5c0] sm:$0xff]
        %v2069 = vld [vmem:[%s1812 + $0x5c8] sm:$0xff]
        %v2070 = vld [vmem:[%s1812 + $0x5d0] sm:$0xff]
        %v2071 = vld [vmem:[%s1812 + $0x5d8] sm:$0xff]
        %v2072 = vld [vmem:[%s1812 + $0x5e0] sm:$0xff]
        %v2073 = vld [vmem:[%s1812 + $0x5e8] sm:$0xff]
        %v2074 = vld [vmem:[%s1812 + $0x5f0] sm:$0xff]
        %v2075 = vld [vmem:[%s1812 + $0x5f8] sm:$0xff]
        %v2076 = vld [vmem:[%s1812 + $0x600] sm:$0xff]
        %v2077 = vld [vmem:[%s1812 + $0x608] sm:$0xff]
        %v2078 = vld [vmem:[%s1812 + $0x610] sm:$0xff]
        %v2079 = vld [vmem:[%s1812 + $0x618] sm:$0xff]
        %v2080 = vld [vmem:[%s1812 + $0x620] sm:$0xff]
        %v2081 = vld [vmem:[%s1812 + $0x628] sm:$0xff]
        %v2082 = vld [vmem:[%s1812 + $0x630] sm:$0xff]
        %v2083 = vld [vmem:[%s1812 + $0x638] sm:$0xff]
        %v2084 = vld [vmem:[%s1812 + $0x640] sm:$0xff]
        %v2085 = vld [vmem:[%s1812 + $0x648] sm:$0xff]
        %v2086 = vld [vmem:[%s1812 + $0x650] sm:$0xff]
        %v2087 = vld [vmem:[%s1812 + $0x658] sm:$0xff]
        %v2088 = vld [vmem:[%s1812 + $0x660] sm:$0xff]
        %v2089 = vld [vmem:[%s1812 + $0x668] sm:$0xff]
        %v2090 = vld [vmem:[%s1812 + $0x670] sm:$0xff]
        %v2091 = vld [vmem:[%s1812 + $0x678] sm:$0xff]
        %v2092 = vld [vmem:[%s1812 + $0x680] sm:$0xff]
        %v2093 = vld [vmem:[%s1812 + $0x688] sm:$0xff]
        %v2094 = vld [vmem:[%s1812 + $0x690] sm:$0xff]
        %v2095 = vld [vmem:[%s1812 + $0x698] sm:$0xff]
        %v2096 = vld [vmem:[%s1812 + $0x6a0] sm:$0xff]
        %v2097 = vld [vmem:[%s1812 + $0x6a8] sm:$0xff]
        %v2098 = vld [vmem:[%s1812 + $0x6b0] sm:$0xff]
        %v2099 = vld [vmem:[%s1812 + $0x6b8] sm:$0xff]
        %v2100 = vld [vmem:[%s1812 + $0x6c0] sm:$0xff]
        %v2101 = vld [vmem:[%s1812 + $0x6c8] sm:$0xff]
        %v2102 = vld [vmem:[%s1812 + $0x6d0] sm:$0xff]
        %v2103 = vld [vmem:[%s1812 + $0x6d8] sm:$0xff]
        %v2104 = vld [vmem:[%s1812 + $0x6e0] sm:$0xff]
        %v2105 = vld [vmem:[%s1812 + $0x6e8] sm:$0xff]
        %v2106 = vld [vmem:[%s1812 + $0x6f0] sm:$0xff]
        %v2107 = vld [vmem:[%s1812 + $0x6f8] sm:$0xff]
        %v2108 = vld [vmem:[%s1812 + $0x700] sm:$0xff]
        %v2109 = vld [vmem:[%s1812 + $0x708] sm:$0xff]
        %v2110 = vld [vmem:[%s1812 + $0x710] sm:$0xff]
        %v2111 = vld [vmem:[%s1812 + $0x718] sm:$0xff]
        %v2112 = vld [vmem:[%s1812 + $0x720] sm:$0xff]
        %v2113 = vld [vmem:[%s1812 + $0x728] sm:$0xff]
        %v2114 = vld [vmem:[%s1812 + $0x730] sm:$0xff]
        %v2115 = vld [vmem:[%s1812 + $0x738] sm:$0xff]
        %v2116 = vld [vmem:[%s1812 + $0x740] sm:$0xff]
        %v2117 = vld [vmem:[%s1812 + $0x748] sm:$0xff]
        %v2118 = vld [vmem:[%s1812 + $0x750] sm:$0xff]
        %v2119 = vld [vmem:[%s1812 + $0x758] sm:$0xff]
        %v2120 = vld [vmem:[%s1812 + $0x760] sm:$0xff]
        %v2121 = vld [vmem:[%s1812 + $0x768] sm:$0xff]
        %v2122 = vld [vmem:[%s1812 + $0x770] sm:$0xff]
        %v2123 = vld [vmem:[%s1812 + $0x778] sm:$0xff]
        %v2124 = vld [vmem:[%s1812 + $0x780] sm:$0xff]
        %v2125 = vld [vmem:[%s1812 + $0x788] sm:$0xff]
        %v2126 = vld [vmem:[%s1812 + $0x790] sm:$0xff]
        %v2127 = vld [vmem:[%s1812 + $0x798] sm:$0xff]
        %v2128 = vld [vmem:[%s1812 + $0x7a0] sm:$0xff]
        %v2129 = vld [vmem:[%s1812 + $0x7a8] sm:$0xff]
        %v2130 = vld [vmem:[%s1812 + $0x7b0] sm:$0xff]
        %v2131 = vld [vmem:[%s1812 + $0x7b8] sm:$0xff]
        %v2132 = vld [vmem:[%s1812 + $0x7c0] sm:$0xff]
        %v2133 = vld [vmem:[%s1812 + $0x7c8] sm:$0xff]
        %v2134 = vld [vmem:[%s1812 + $0x7d0] sm:$0xff]
        %v2135 = vld [vmem:[%s1812 + $0x7d8] sm:$0xff]
        %v2136 = vld [vmem:[%s1812 + $0x7e0] sm:$0xff]
        %v2137 = vld [vmem:[%s1812 + $0x7e8] sm:$0xff]
        %v2138 = vld [vmem:[%s1812 + $0x7f0] sm:$0xff]
        %v2139 = vld [vmem:[%s1812 + $0x7f8] sm:$0xff]
        %v2140 = vld [vmem:[%s1812 + $0x800] sm:$0xff]
        %v2141 = vld [vmem:[%s1812 + $0x808] sm:$0xff]
        %v2142 = vld [vmem:[%s1812 + $0x810] sm:$0xff]
        %v2143 = vld [vmem:[%s1812 + $0x818] sm:$0xff]
        %v2144 = vld [vmem:[%s1812 + $0x820] sm:$0xff]
        %v2145 = vld [vmem:[%s1812 + $0x828] sm:$0xff]
        %v2146 = vld [vmem:[%s1812 + $0x830] sm:$0xff]
        %v2147 = vld [vmem:[%s1812 + $0x838] sm:$0xff]
        %v2148 = vld [vmem:[%s1812 + $0x840] sm:$0xff]
        %v2149 = vld [vmem:[%s1812 + $0x848] sm:$0xff]
        %v2150 = vld [vmem:[%s1812 + $0x850] sm:$0xff]
        %v2151 = vld [vmem:[%s1812 + $0x858] sm:$0xff]
        %v2152 = vld [vmem:[%s1812 + $0x860] sm:$0xff]
        %v2153 = vld [vmem:[%s1812 + $0x868] sm:$0xff]
        %v2154 = vld [vmem:[%s1812 + $0x870] sm:$0xff]
        %v2155 = vld [vmem:[%s1812 + $0x878] sm:$0xff]
        %v2156 = vld [vmem:[%s1812 + $0x880] sm:$0xff]
        %v2157 = vld [vmem:[%s1812 + $0x888] sm:$0xff]
        %v2158 = vld [vmem:[%s1812 + $0x890] sm:$0xff]
        %v2159 = vld [vmem:[%s1812 + $0x898] sm:$0xff]
        %v2160 = vld [vmem:[%s1812 + $0x8a0] sm:$0xff]
        %v2161 = vld [vmem:[%s1812 + $0x8a8] sm:$0xff]
        %v2162 = vld [vmem:[%s1812 + $0x8b0] sm:$0xff]
        %v2163 = vld [vmem:[%s1812 + $0x8b8] sm:$0xff]
        %v2164 = vld [vmem:[%s1812 + $0x8c0] sm:$0xff]
        %v2165 = vld [vmem:[%s1812 + $0x8c8] sm:$0xff]
        %v2166 = vld [vmem:[%s1812 + $0x8d0] sm:$0xff]
        %v2167 = vld [vmem:[%s1812 + $0x8d8] sm:$0xff]
        %v2168 = vld [vmem:[%s1812 + $0x8e0] sm:$0xff]
        %v2169 = vld [vmem:[%s1812 + $0x8e8] sm:$0xff]
        %v2170 = vld [vmem:[%s1812 + $0x8f0] sm:$0xff]
        %v2171 = vld [vmem:[%s1812 + $0x8f8] sm:$0xff]
        %v2172 = vld [vmem:[%s1812 + $0x900] sm:$0xff]
        %v2173 = vld [vmem:[%s1812 + $0x908] sm:$0xff]
        %v2174 = vld [vmem:[%s1812 + $0x910] sm:$0xff]
        %v2175 = vld [vmem:[%s1812 + $0x918] sm:$0xff]
        %v2176 = vld [vmem:[%s1812 + $0x920] sm:$0xff]
        %v2177 = vld [vmem:[%s1812 + $0x928] sm:$0xff]
        %v2178 = vld [vmem:[%s1812 + $0x930] sm:$0xff]
        %v2179 = vld [vmem:[%s1812 + $0x938] sm:$0xff]
        %v2180 = vld [vmem:[%s1812 + $0x940] sm:$0xff]
        %v2181 = vld [vmem:[%s1812 + $0x948] sm:$0xff]
        %v2182 = vld [vmem:[%s1812 + $0x950] sm:$0xff]
        %v2183 = vld [vmem:[%s1812 + $0x958] sm:$0xff]
        %v2184 = vld [vmem:[%s1812 + $0x960] sm:$0xff]
        %v2185 = vld [vmem:[%s1812 + $0x968] sm:$0xff]
        %v2186 = vld [vmem:[%s1812 + $0x970] sm:$0xff]
        %v2187 = vld [vmem:[%s1812 + $0x978] sm:$0xff]
        %v2188 = vld [vmem:[%s1812 + $0x980] sm:$0xff]
        %v2189 = vld [vmem:[%s1812 + $0x988] sm:$0xff]
        %v2190 = vld [vmem:[%s1812 + $0x990] sm:$0xff]
        %v2191 = vld [vmem:[%s1812 + $0x998] sm:$0xff]
        %v2192 = vld [vmem:[%s1812 + $0x9a0] sm:$0xff]
        %v2193 = vld [vmem:[%s1812 + $0x9a8] sm:$0xff]
        %v2194 = vld [vmem:[%s1812 + $0x9b0] sm:$0xff]
        %v2195 = vld [vmem:[%s1812 + $0x9b8] sm:$0xff]
        %v2196 = vld [vmem:[%s1812 + $0x9c0] sm:$0xff]
        %v2197 = vld [vmem:[%s1812 + $0x9c8] sm:$0xff]
        %v2198 = vld [vmem:[%s1812 + $0x9d0] sm:$0xff]
        %v2199 = vld [vmem:[%s1812 + $0x9d8] sm:$0xff]
        %v2200 = vld [vmem:[%s1812 + $0x9e0] sm:$0xff]
        %v2201 = vld [vmem:[%s1812 + $0x9e8] sm:$0xff]
        %v2202 = vld [vmem:[%s1812 + $0x9f0] sm:$0xff]
        %v2203 = vld [vmem:[%s1812 + $0x9f8] sm:$0xff]
        %v2204 = vld [vmem:[%s1812 + $0xa00] sm:$0xff]
        %v2205 = vld [vmem:[%s1812 + $0xa08] sm:$0xff]
        %v2206 = vld [vmem:[%s1812 + $0xa10] sm:$0xff]
        %v2207 = vld [vmem:[%s1812 + $0xa18] sm:$0xff]
        %v2208 = vld [vmem:[%s1812 + $0xa20] sm:$0xff]
        %v2209 = vld [vmem:[%s1812 + $0xa28] sm:$0xff]
        %v2210 = vld [vmem:[%s1812 + $0xa30] sm:$0xff]
        %v2211 = vld [vmem:[%s1812 + $0xa38] sm:$0xff]
        %v2212 = vld [vmem:[%s1812 + $0xa40] sm:$0xff]
        %v2213 = vld [vmem:[%s1812 + $0xa48] sm:$0xff]
        %v2214 = vld [vmem:[%s1812 + $0xa50] sm:$0xff]
        %v2215 = vld [vmem:[%s1812 + $0xa58] sm:$0xff]
        %v2216 = vld [vmem:[%s1812 + $0xa60] sm:$0xff]
        %v2217 = vld [vmem:[%s1812 + $0xa68] sm:$0xff]
        %v2218 = vld [vmem:[%s1812 + $0xa70] sm:$0xff]
        %v2219 = vld [vmem:[%s1812 + $0xa78] sm:$0xff]
        %v2220 = vld [vmem:[%s1812 + $0xa80] sm:$0xff]
        %v2221 = vld [vmem:[%s1812 + $0xa88] sm:$0xff]
        %v2222 = vld [vmem:[%s1812 + $0xa90] sm:$0xff]
        %v2223 = vld [vmem:[%s1812 + $0xa98] sm:$0xff]
        %v2224 = vld [vmem:[%s1812 + $0xaa0] sm:$0xff]
        %v2225 = vld [vmem:[%s1812 + $0xaa8] sm:$0xff]
        %v2226 = vld [vmem:[%s1812 + $0xab0] sm:$0xff]
        %v2227 = vld [vmem:[%s1812 + $0xab8] sm:$0xff]
        %v2228 = vld [vmem:[%s1812 + $0xac0] sm:$0xff]
        %v2229 = vld [vmem:[%s1812 + $0xac8] sm:$0xff]
        %v2230 = vld [vmem:[%s1812 + $0xad0] sm:$0xff]
        %v2231 = vld [vmem:[%s1812 + $0xad8] sm:$0xff]
        %v2232 = vld [vmem:[%s1812 + $0xae0] sm:$0xff]
        %v2233 = vld [vmem:[%s1812 + $0xae8] sm:$0xff]
        %v2234 = vld [vmem:[%s1812 + $0xaf0] sm:$0xff]
        %v2235 = vld [vmem:[%s1812 + $0xaf8] sm:$0xff]
        %v2236 = vld [vmem:[%s1812 + $0xb00] sm:$0xff]
        %v2237 = vld [vmem:[%s1812 + $0xb08] sm:$0xff]
        %v2238 = vld [vmem:[%s1812 + $0xb10] sm:$0xff]
        %v2239 = vld [vmem:[%s1812 + $0xb18] sm:$0xff]
        %v2240 = vld [vmem:[%s1812 + $0xb20] sm:$0xff]
        %v2241 = vld [vmem:[%s1812 + $0xb28] sm:$0xff]
        %v2242 = vld [vmem:[%s1812 + $0xb30] sm:$0xff]
        %v2243 = vld [vmem:[%s1812 + $0xb38] sm:$0xff]
        %v2244 = vld [vmem:[%s1812 + $0xb40] sm:$0xff]
        %v2245 = vld [vmem:[%s1812 + $0xb48] sm:$0xff]
        %v2246 = vld [vmem:[%s1812 + $0xb50] sm:$0xff]
        %v2247 = vld [vmem:[%s1812 + $0xb58] sm:$0xff]
        %v2248 = vld [vmem:[%s1812 + $0xb60] sm:$0xff]
        %v2249 = vld [vmem:[%s1812 + $0xb68] sm:$0xff]
        %v2250 = vld [vmem:[%s1812 + $0xb70] sm:$0xff]
        %v2251 = vld [vmem:[%s1812 + $0xb78] sm:$0xff]
        %v2252 = vld [vmem:[%s1812 + $0xb80] sm:$0xff]
        %v2253 = vld [vmem:[%s1812 + $0xb88] sm:$0xff]
        %v2254 = vld [vmem:[%s1812 + $0xb90] sm:$0xff]
        %v2255 = vld [vmem:[%s1812 + $0xb98] sm:$0xff]
        %v2256 = vld [vmem:[%s1812 + $0xba0] sm:$0xff]
        %v2257 = vld [vmem:[%s1812 + $0xba8] sm:$0xff]
        %v2258 = vld [vmem:[%s1812 + $0xbb0] sm:$0xff]
        %v2259 = vld [vmem:[%s1812 + $0xbb8] sm:$0xff]
        %v2260 = vld [vmem:[%s1812 + $0xbc0] sm:$0xff]
        %v2261 = vld [vmem:[%s1812 + $0xbc8] sm:$0xff]
        %v2262 = vld [vmem:[%s1812 + $0xbd0] sm:$0xff]
        %v2263 = vld [vmem:[%s1812 + $0xbd8] sm:$0xff]
        %v2264 = vld [vmem:[%s1812 + $0xbe0] sm:$0xff]
        %v2265 = vld [vmem:[%s1812 + $0xbe8] sm:$0xff]
        %v2266 = vld [vmem:[%s1812 + $0xbf0] sm:$0xff]
        %v2267 = vld [vmem:[%s1812 + $0xbf8] sm:$0xff]
        %v2268 = vld [vmem:[%s1812 + $0xc00] sm:$0xff]
        %v2269 = vld [vmem:[%s1812 + $0xc08] sm:$0xff]
        %v2270 = vld [vmem:[%s1812 + $0xc10] sm:$0xff]
        %v2271 = vld [vmem:[%s1812 + $0xc18] sm:$0xff]
        %v2272 = vld [vmem:[%s1812 + $0xc20] sm:$0xff]
        %v2273 = vld [vmem:[%s1812 + $0xc28] sm:$0xff]
        %v2274 = vld [vmem:[%s1812 + $0xc30] sm:$0xff]
        %v2275 = vld [vmem:[%s1812 + $0xc38] sm:$0xff]
        %v2276 = vld [vmem:[%s1812 + $0xc40] sm:$0xff]
        %v2277 = vld [vmem:[%s1812 + $0xc48] sm:$0xff]
        %v2278 = vld [vmem:[%s1812 + $0xc50] sm:$0xff]
        %v2279 = vld [vmem:[%s1812 + $0xc58] sm:$0xff]
        %v2280 = vld [vmem:[%s1812 + $0xc60] sm:$0xff]
        %v2281 = vld [vmem:[%s1812 + $0xc68] sm:$0xff]
        %v2282 = vld [vmem:[%s1812 + $0xc70] sm:$0xff]
        %v2283 = vld [vmem:[%s1812 + $0xc78] sm:$0xff]
        %v2284 = vld [vmem:[%s1853] sm:$0x3]
        %v2286 = vlaneseq
        %v2287 = vshrl.u32 %v2286, 7
        %v2288 = vsub.s32 0, %v2287
        %v2289 = vrot.slane %v2284, %v2288
        %v2290 = vlaneseq
        %v2291 = vshrl.u32 %v2290, 7
        %v2292 = vsub.s32 1, %v2291
        %v2293 = vrot.slane %v2284, %v2292
        %v2322 = vunpack.c.l.b16 %v1858
        %v2323 = vunpack.c.h.b16 %v1858
        %v2324 = vunpack.c.l.b16 %v1859
        %v2325 = vunpack.c.h.b16 %v1859
        %v2326 = vunpack.c.l.b16 %v1860
        %v2327 = vunpack.c.h.b16 %v1860
        %v2328 = vunpack.c.l.b16 %v1861
        %v2329 = vunpack.c.h.b16 %v1861
        %v2330 = vunpack.c.l.b16 %v1862
        %v2331 = vunpack.c.h.b16 %v1862
        %v2332 = vunpack.c.l.b16 %v1863
        %v2333 = vunpack.c.h.b16 %v1863
        %v2334 = vunpack.c.l.b16 %v1864
        %v2335 = vunpack.c.h.b16 %v1864
        %v2336 = vunpack.c.l.b16 %v1865
        %v2337 = vunpack.c.h.b16 %v1865
        %v2338 = vunpack.c.l.b16 %v1866
        %v2339 = vunpack.c.h.b16 %v1866
        %v2340 = vunpack.c.l.b16 %v1867
        %v2341 = vunpack.c.h.b16 %v1867
        %v2342 = vunpack.c.l.b16 %v1868
        %v2343 = vunpack.c.h.b16 %v1868
        %v2344 = vunpack.c.l.b16 %v1869
        %v2345 = vunpack.c.h.b16 %v1869
        %v2346 = vunpack.c.l.b16 %v1870
        %v2347 = vunpack.c.l.b16 %v1871
        %v2348 = vunpack.c.h.b16 %v1871
        %v2349 = vunpack.c.l.b16 %v1872
        %v2350 = vunpack.c.h.b16 %v1872
        %v2351 = vunpack.c.l.b16 %v1873
        %v2352 = vunpack.c.h.b16 %v1873
        %v2353 = vunpack.c.l.b16 %v1874
        %v2354 = vunpack.c.h.b16 %v1874
        %v2355 = vunpack.c.l.b16 %v1875
        %v2356 = vunpack.c.h.b16 %v1875
        %v2357 = vunpack.c.l.b16 %v1876
        %v2358 = vunpack.c.h.b16 %v1876
        %v2359 = vunpack.c.l.b16 %v1877
        %v2360 = vunpack.c.h.b16 %v1877
        %v2361 = vunpack.c.l.b16 %v1878
        %v2362 = vunpack.c.h.b16 %v1878
        %v2363 = vunpack.c.l.b16 %v1879
        %v2364 = vunpack.c.h.b16 %v1879
        %v2365 = vunpack.c.l.b16 %v1880
        %v2366 = vunpack.c.h.b16 %v1880
        %v2367 = vunpack.c.l.b16 %v1881
        %v2368 = vunpack.c.h.b16 %v1881
        %v2369 = vunpack.c.l.b16 %v1882
        %v2370 = vunpack.c.h.b16 %v1882
        %v2371 = vunpack.c.l.b16 %v1883
        %v2372 = vpack.c.b16 %v2347, %v2322
        %v2373 = vpack.c.b16 %v2348, %v2323
        %v2374 = vpack.c.b16 %v2349, %v2324
        %v2375 = vpack.c.b16 %v2350, %v2325
        %v2376 = vpack.c.b16 %v2351, %v2326
        %v2377 = vpack.c.b16 %v2352, %v2327
        %v2378 = vpack.c.b16 %v2353, %v2328
        %v2379 = vpack.c.b16 %v2354, %v2329
        %v2380 = vpack.c.b16 %v2355, %v2330
        %v2381 = vpack.c.b16 %v2356, %v2331
        %v2382 = vpack.c.b16 %v2357, %v2332
        %v2383 = vpack.c.b16 %v2358, %v2333
        %v2384 = vpack.c.b16 %v2359, %v2334
        %v2385 = vpack.c.b16 %v2360, %v2335
        %v2386 = vpack.c.b16 %v2361, %v2336
        %v2387 = vpack.c.b16 %v2362, %v2337
        %v2388 = vpack.c.b16 %v2363, %v2338
        %v2389 = vpack.c.b16 %v2364, %v2339
        %v2390 = vpack.c.b16 %v2365, %v2340
        %v2391 = vpack.c.b16 %v2366, %v2341
        %v2392 = vpack.c.b16 %v2367, %v2342
        %v2393 = vpack.c.b16 %v2368, %v2343
        %v2394 = vpack.c.b16 %v2369, %v2344
        %v2395 = vpack.c.b16 %v2370, %v2345
        %v2396 = vpack.c.b16 %v2371, %v2346
        %v2822 = vunpack.c.l.b16 %v1884
        %v2823 = vunpack.c.h.b16 %v1884
        %v2824 = vunpack.c.l.b16 %v1885
        %v2825 = vunpack.c.h.b16 %v1885
        %v2826 = vunpack.c.l.b16 %v1886
        %v2827 = vunpack.c.h.b16 %v1886
        %v2828 = vunpack.c.l.b16 %v1887
        %v2829 = vunpack.c.h.b16 %v1887
        %v2830 = vunpack.c.l.b16 %v1888
        %v2831 = vunpack.c.h.b16 %v1888
        %v2832 = vunpack.c.l.b16 %v1889
        %v2833 = vunpack.c.h.b16 %v1889
        %v2834 = vunpack.c.l.b16 %v1890
        %v2835 = vunpack.c.h.b16 %v1890
        %v2836 = vunpack.c.l.b16 %v1891
        %v2837 = vunpack.c.h.b16 %v1891
        %v2838 = vunpack.c.l.b16 %v1892
        %v2839 = vunpack.c.h.b16 %v1892
        %v2840 = vunpack.c.l.b16 %v1893
        %v2841 = vunpack.c.h.b16 %v1893
        %v2842 = vunpack.c.l.b16 %v1894
        %v2843 = vunpack.c.h.b16 %v1894
        %v2844 = vunpack.c.l.b16 %v1895
        %v2845 = vunpack.c.h.b16 %v1895
        %v2846 = vunpack.c.l.b16 %v1896
        %v2847 = vunpack.c.h.b16 %v1896
        %v2848 = vunpack.c.l.b16 %v1897
        %v2849 = vunpack.c.h.b16 %v1897
        %v2850 = vunpack.c.l.b16 %v1898
        %v2851 = vunpack.c.h.b16 %v1898
        %v2852 = vunpack.c.l.b16 %v1899
        %v2853 = vunpack.c.h.b16 %v1899
        %v2854 = vunpack.c.l.b16 %v1900
        %v2855 = vunpack.c.h.b16 %v1900
        %v2856 = vunpack.c.l.b16 %v1901
        %v2857 = vunpack.c.h.b16 %v1901
        %v2858 = vunpack.c.l.b16 %v1902
        %v2859 = vunpack.c.h.b16 %v1902
        %v2860 = vunpack.c.l.b16 %v1903
        %v2861 = vunpack.c.h.b16 %v1903
        %v2862 = vunpack.c.l.b16 %v1904
        %v2863 = vunpack.c.h.b16 %v1904
        %v2864 = vunpack.c.l.b16 %v1905
        %v2865 = vunpack.c.h.b16 %v1905
        %v2866 = vunpack.c.l.b16 %v1906
        %v2867 = vunpack.c.h.b16 %v1906
        %v2868 = vunpack.c.l.b16 %v1907
        %v2869 = vunpack.c.h.b16 %v1907
        %v2870 = vunpack.c.l.b16 %v1908
        %v2871 = vunpack.c.h.b16 %v1908
        %v2872 = vunpack.c.l.b16 %v1909
        %v2873 = vunpack.c.h.b16 %v1909
        %v2874 = vunpack.c.l.b16 %v1910
        %v2875 = vunpack.c.h.b16 %v1910
        %v2876 = vunpack.c.l.b16 %v1911
        %v2877 = vunpack.c.h.b16 %v1911
        %v2878 = vunpack.c.l.b16 %v1912
        %v2879 = vunpack.c.h.b16 %v1912
        %v2880 = vunpack.c.l.b16 %v1913
        %v2881 = vunpack.c.h.b16 %v1913
        %v2882 = vunpack.c.l.b16 %v1914
        %v2883 = vunpack.c.h.b16 %v1914
        %v2884 = vunpack.c.l.b16 %v1915
        %v2885 = vunpack.c.h.b16 %v1915
        %v2886 = vunpack.c.l.b16 %v1916
        %v2887 = vunpack.c.h.b16 %v1916
        %v2888 = vunpack.c.l.b16 %v1917
        %v2889 = vunpack.c.h.b16 %v1917
        %v2890 = vunpack.c.l.b16 %v1918
        %v2891 = vunpack.c.h.b16 %v1918
        %v2892 = vunpack.c.l.b16 %v1919
        %v2893 = vunpack.c.h.b16 %v1919
        %v2894 = vunpack.c.l.b16 %v1920
        %v2895 = vunpack.c.h.b16 %v1920
        %v2896 = vunpack.c.l.b16 %v1921
        %v2897 = vunpack.c.h.b16 %v1921
        %v2898 = vunpack.c.l.b16 %v1922
        %v2899 = vunpack.c.h.b16 %v1922
        %v2900 = vunpack.c.l.b16 %v1923
        %v2901 = vunpack.c.h.b16 %v1923
        %v2902 = vunpack.c.l.b16 %v1924
        %v2903 = vunpack.c.h.b16 %v1924
        %v2904 = vunpack.c.l.b16 %v1925
        %v2905 = vunpack.c.h.b16 %v1925
        %v2906 = vunpack.c.l.b16 %v1926
        %v2907 = vunpack.c.h.b16 %v1926
        %v2908 = vunpack.c.l.b16 %v1927
        %v2909 = vunpack.c.h.b16 %v1927
        %v2910 = vunpack.c.l.b16 %v1928
        %v2911 = vunpack.c.h.b16 %v1928
        %v2912 = vunpack.c.l.b16 %v1929
        %v2913 = vunpack.c.h.b16 %v1929
        %v2914 = vunpack.c.l.b16 %v1930
        %v2915 = vunpack.c.h.b16 %v1930
        %v2916 = vunpack.c.l.b16 %v1931
        %v2917 = vunpack.c.h.b16 %v1931
        %v2918 = vunpack.c.l.b16 %v1932
        %v2919 = vunpack.c.h.b16 %v1932
        %v2920 = vunpack.c.l.b16 %v1933
        %v2921 = vunpack.c.h.b16 %v1933
        %v2922 = vunpack.c.l.b16 %v1934
        %v2923 = vunpack.c.h.b16 %v1934
        %v2924 = vunpack.c.l.b16 %v1935
        %v2925 = vunpack.c.h.b16 %v1935
        %v2926 = vunpack.c.l.b16 %v1936
        %v2927 = vunpack.c.h.b16 %v1936
        %v2928 = vunpack.c.l.b16 %v1937
        %v2929 = vunpack.c.h.b16 %v1937
        %v2930 = vunpack.c.l.b16 %v1938
        %v2931 = vunpack.c.h.b16 %v1938
        %v2932 = vunpack.c.l.b16 %v1939
        %v2933 = vunpack.c.h.b16 %v1939
        %v2934 = vunpack.c.l.b16 %v1940
        %v2935 = vunpack.c.h.b16 %v1940
        %v2936 = vunpack.c.l.b16 %v1941
        %v2937 = vunpack.c.h.b16 %v1941
        %v2938 = vunpack.c.l.b16 %v1942
        %v2939 = vunpack.c.h.b16 %v1942
        %v2940 = vunpack.c.l.b16 %v1943
        %v2941 = vunpack.c.h.b16 %v1943
        %v2942 = vunpack.c.l.b16 %v1944
        %v2943 = vunpack.c.h.b16 %v1944
        %v2944 = vunpack.c.l.b16 %v1945
        %v2945 = vunpack.c.h.b16 %v1945
        %v2946 = vunpack.c.l.b16 %v1946
        %v2947 = vunpack.c.h.b16 %v1946
        %v2948 = vunpack.c.l.b16 %v1947
        %v2949 = vunpack.c.h.b16 %v1947
        %v2950 = vunpack.c.l.b16 %v1948
        %v2951 = vunpack.c.h.b16 %v1948
        %v2952 = vunpack.c.l.b16 %v1949
        %v2953 = vunpack.c.h.b16 %v1949
        %v2954 = vunpack.c.l.b16 %v1950
        %v2955 = vunpack.c.h.b16 %v1950
        %v2956 = vunpack.c.l.b16 %v1951
        %v2957 = vunpack.c.h.b16 %v1951
        %v2958 = vunpack.c.l.b16 %v1952
        %v2959 = vunpack.c.h.b16 %v1952
        %v2960 = vunpack.c.l.b16 %v1953
        %v2961 = vunpack.c.h.b16 %v1953
        %v2962 = vunpack.c.l.b16 %v1954
        %v2963 = vunpack.c.h.b16 %v1954
        %v2964 = vunpack.c.l.b16 %v1955
        %v2965 = vunpack.c.h.b16 %v1955
        %v2966 = vunpack.c.l.b16 %v1956
        %v2967 = vunpack.c.h.b16 %v1956
        %v2968 = vunpack.c.l.b16 %v1957
        %v2969 = vunpack.c.h.b16 %v1957
        %v2970 = vunpack.c.l.b16 %v1958
        %v2971 = vunpack.c.h.b16 %v1958
        %v2972 = vunpack.c.l.b16 %v1959
        %v2973 = vunpack.c.h.b16 %v1959
        %v2974 = vunpack.c.l.b16 %v1960
        %v2975 = vunpack.c.h.b16 %v1960
        %v2976 = vunpack.c.l.b16 %v1961
        %v2977 = vunpack.c.h.b16 %v1961
        %v2978 = vunpack.c.l.b16 %v1962
        %v2979 = vunpack.c.h.b16 %v1962
        %v2980 = vunpack.c.l.b16 %v1963
        %v2981 = vunpack.c.h.b16 %v1963
        %v2982 = vunpack.c.l.b16 %v1964
        %v2983 = vunpack.c.h.b16 %v1964
        %v2984 = vunpack.c.l.b16 %v1965
        %v2985 = vunpack.c.h.b16 %v1965
        %v2986 = vunpack.c.l.b16 %v1966
        %v2987 = vunpack.c.h.b16 %v1966
        %v2988 = vunpack.c.l.b16 %v1967
        %v2989 = vunpack.c.h.b16 %v1967
        %v2990 = vunpack.c.l.b16 %v1968
        %v2991 = vunpack.c.h.b16 %v1968
        %v2992 = vunpack.c.l.b16 %v1969
        %v2993 = vunpack.c.h.b16 %v1969
        %v2994 = vunpack.c.l.b16 %v1970
        %v2995 = vunpack.c.h.b16 %v1970
        %v2996 = vunpack.c.l.b16 %v1971
        %v2997 = vunpack.c.h.b16 %v1971
        %v2998 = vunpack.c.l.b16 %v1972
        %v2999 = vunpack.c.h.b16 %v1972
        %v3000 = vunpack.c.l.b16 %v1973
        %v3001 = vunpack.c.h.b16 %v1973
        %v3002 = vunpack.c.l.b16 %v1974
        %v3003 = vunpack.c.h.b16 %v1974
        %v3004 = vunpack.c.l.b16 %v1975
        %v3005 = vunpack.c.h.b16 %v1975
        %v3006 = vunpack.c.l.b16 %v1976
        %v3007 = vunpack.c.h.b16 %v1976
        %v3008 = vunpack.c.l.b16 %v1977
        %v3009 = vunpack.c.h.b16 %v1977
        %v3010 = vunpack.c.l.b16 %v1978
        %v3011 = vunpack.c.h.b16 %v1978
        %v3012 = vunpack.c.l.b16 %v1979
        %v3013 = vunpack.c.h.b16 %v1979
        %v3014 = vunpack.c.l.b16 %v1980
        %v3015 = vunpack.c.h.b16 %v1980
        %v3016 = vunpack.c.l.b16 %v1981
        %v3017 = vunpack.c.h.b16 %v1981
        %v3018 = vunpack.c.l.b16 %v1982
        %v3019 = vunpack.c.h.b16 %v1982
        %v3020 = vunpack.c.l.b16 %v1983
        %v3021 = vunpack.c.h.b16 %v1983
        %v3022 = vunpack.c.l.b16 %v1984
        %v3023 = vunpack.c.h.b16 %v1984
        %v3024 = vunpack.c.l.b16 %v1985
        %v3025 = vunpack.c.h.b16 %v1985
        %v3026 = vunpack.c.l.b16 %v1986
        %v3027 = vunpack.c.h.b16 %v1986
        %v3028 = vunpack.c.l.b16 %v1987
        %v3029 = vunpack.c.h.b16 %v1987
        %v3030 = vunpack.c.l.b16 %v1988
        %v3031 = vunpack.c.h.b16 %v1988
        %v3032 = vunpack.c.l.b16 %v1989
        %v3033 = vunpack.c.h.b16 %v1989
        %v3034 = vunpack.c.l.b16 %v1990
        %v3035 = vunpack.c.h.b16 %v1990
        %v3036 = vunpack.c.l.b16 %v1991
        %v3037 = vunpack.c.h.b16 %v1991
        %v3038 = vunpack.c.l.b16 %v1992
        %v3039 = vunpack.c.h.b16 %v1992
        %v3040 = vunpack.c.l.b16 %v1993
        %v3041 = vunpack.c.h.b16 %v1993
        %v3042 = vunpack.c.l.b16 %v1994
        %v3043 = vunpack.c.h.b16 %v1994
        %v3044 = vunpack.c.l.b16 %v1995
        %v3045 = vunpack.c.h.b16 %v1995
        %v3046 = vunpack.c.l.b16 %v1996
        %v3047 = vunpack.c.h.b16 %v1996
        %v3048 = vunpack.c.l.b16 %v1997
        %v3049 = vunpack.c.h.b16 %v1997
        %v3050 = vunpack.c.l.b16 %v1998
        %v3051 = vunpack.c.h.b16 %v1998
        %v3052 = vunpack.c.l.b16 %v1999
        %v3053 = vunpack.c.h.b16 %v1999
        %v3054 = vunpack.c.l.b16 %v2000
        %v3055 = vunpack.c.h.b16 %v2000
        %v3056 = vunpack.c.l.b16 %v2001
        %v3057 = vunpack.c.h.b16 %v2001
        %v3058 = vunpack.c.l.b16 %v2002
        %v3059 = vunpack.c.h.b16 %v2002
        %v3060 = vunpack.c.l.b16 %v2003
        %v3061 = vunpack.c.h.b16 %v2003
        %v3062 = vunpack.c.l.b16 %v2004
        %v3063 = vunpack.c.h.b16 %v2004
        %v3064 = vunpack.c.l.b16 %v2005
        %v3065 = vunpack.c.h.b16 %v2005
        %v3066 = vunpack.c.l.b16 %v2006
        %v3067 = vunpack.c.h.b16 %v2006
        %v3068 = vunpack.c.l.b16 %v2007
        %v3069 = vunpack.c.h.b16 %v2007
        %v3070 = vunpack.c.l.b16 %v2008
        %v3071 = vunpack.c.h.b16 %v2008
        %v3072 = vunpack.c.l.b16 %v2009
        %v3073 = vunpack.c.h.b16 %v2009
        %v3074 = vunpack.c.l.b16 %v2010
        %v3075 = vunpack.c.h.b16 %v2010
        %v3076 = vunpack.c.l.b16 %v2011
        %v3077 = vunpack.c.h.b16 %v2011
        %v3078 = vunpack.c.l.b16 %v2012
        %v3079 = vunpack.c.h.b16 %v2012
        %v3080 = vunpack.c.l.b16 %v2013
        %v3081 = vunpack.c.h.b16 %v2013
        %v3082 = vunpack.c.l.b16 %v2014
        %v3083 = vunpack.c.h.b16 %v2014
        %v3084 = vunpack.c.l.b16 %v2015
        %v3085 = vunpack.c.h.b16 %v2015
        %v3086 = vunpack.c.l.b16 %v2016
        %v3087 = vunpack.c.h.b16 %v2016
        %v3088 = vunpack.c.l.b16 %v2017
        %v3089 = vunpack.c.h.b16 %v2017
        %v3090 = vunpack.c.l.b16 %v2018
        %v3091 = vunpack.c.h.b16 %v2018
        %v3092 = vunpack.c.l.b16 %v2019
        %v3093 = vunpack.c.h.b16 %v2019
        %v3094 = vunpack.c.l.b16 %v2020
        %v3095 = vunpack.c.h.b16 %v2020
        %v3096 = vunpack.c.l.b16 %v2021
        %v3097 = vunpack.c.h.b16 %v2021
        %v3098 = vunpack.c.l.b16 %v2022
        %v3099 = vunpack.c.h.b16 %v2022
        %v3100 = vunpack.c.l.b16 %v2023
        %v3101 = vunpack.c.h.b16 %v2023
        %v3102 = vunpack.c.l.b16 %v2024
        %v3103 = vunpack.c.h.b16 %v2024
        %v3104 = vunpack.c.l.b16 %v2025
        %v3105 = vunpack.c.h.b16 %v2025
        %v3106 = vunpack.c.l.b16 %v2026
        %v3107 = vunpack.c.h.b16 %v2026
        %v3108 = vunpack.c.l.b16 %v2027
        %v3109 = vunpack.c.h.b16 %v2027
        %v3110 = vunpack.c.l.b16 %v2028
        %v3111 = vunpack.c.h.b16 %v2028
        %v3112 = vunpack.c.l.b16 %v2029
        %v3113 = vunpack.c.h.b16 %v2029
        %v3114 = vunpack.c.l.b16 %v2030
        %v3115 = vunpack.c.h.b16 %v2030
        %v3116 = vunpack.c.l.b16 %v2031
        %v3117 = vunpack.c.h.b16 %v2031
        %v3118 = vunpack.c.l.b16 %v2032
        %v3119 = vunpack.c.h.b16 %v2032
        %v3120 = vunpack.c.l.b16 %v2033
        %v3121 = vunpack.c.h.b16 %v2033
        %v3122 = vunpack.c.l.b16 %v2034
        %v3123 = vunpack.c.h.b16 %v2034
        %v3124 = vunpack.c.l.b16 %v2035
        %v3125 = vunpack.c.h.b16 %v2035
        %v3126 = vunpack.c.l.b16 %v2036
        %v3127 = vunpack.c.h.b16 %v2036
        %v3128 = vunpack.c.l.b16 %v2037
        %v3129 = vunpack.c.h.b16 %v2037
        %v3130 = vunpack.c.l.b16 %v2038
        %v3131 = vunpack.c.h.b16 %v2038
        %v3132 = vunpack.c.l.b16 %v2039
        %v3133 = vunpack.c.h.b16 %v2039
        %v3134 = vunpack.c.l.b16 %v2040
        %v3135 = vunpack.c.h.b16 %v2040
        %v3136 = vunpack.c.l.b16 %v2041
        %v3137 = vunpack.c.h.b16 %v2041
        %v3138 = vunpack.c.l.b16 %v2042
        %v3139 = vunpack.c.h.b16 %v2042
        %v3140 = vunpack.c.l.b16 %v2043
        %v3141 = vunpack.c.h.b16 %v2043
        %v3142 = vunpack.c.l.b16 %v2044
        %v3143 = vunpack.c.h.b16 %v2044
        %v3144 = vunpack.c.l.b16 %v2045
        %v3145 = vunpack.c.h.b16 %v2045
        %v3146 = vunpack.c.l.b16 %v2046
        %v3147 = vunpack.c.h.b16 %v2046
        %v3148 = vunpack.c.l.b16 %v2047
        %v3149 = vunpack.c.h.b16 %v2047
        %v3150 = vunpack.c.l.b16 %v2048
        %v3151 = vunpack.c.h.b16 %v2048
        %v3152 = vunpack.c.l.b16 %v2049
        %v3153 = vunpack.c.h.b16 %v2049
        %v3154 = vunpack.c.l.b16 %v2050
        %v3155 = vunpack.c.h.b16 %v2050
        %v3156 = vunpack.c.l.b16 %v2051
        %v3157 = vunpack.c.h.b16 %v2051
        %v3158 = vunpack.c.l.b16 %v2052
        %v3159 = vunpack.c.h.b16 %v2052
        %v3160 = vunpack.c.l.b16 %v2053
        %v3161 = vunpack.c.h.b16 %v2053
        %v3162 = vunpack.c.l.b16 %v2054
        %v3163 = vunpack.c.h.b16 %v2054
        %v3164 = vunpack.c.l.b16 %v2055
        %v3165 = vunpack.c.h.b16 %v2055
        %v3166 = vunpack.c.l.b16 %v2056
        %v3167 = vunpack.c.h.b16 %v2056
        %v3168 = vunpack.c.l.b16 %v2057
        %v3169 = vunpack.c.h.b16 %v2057
        %v3170 = vunpack.c.l.b16 %v2058
        %v3171 = vunpack.c.h.b16 %v2058
        %v3172 = vunpack.c.l.b16 %v2059
        %v3173 = vunpack.c.h.b16 %v2059
        %v3174 = vunpack.c.l.b16 %v2060
        %v3175 = vunpack.c.h.b16 %v2060
        %v3176 = vunpack.c.l.b16 %v2061
        %v3177 = vunpack.c.h.b16 %v2061
        %v3178 = vunpack.c.l.b16 %v2062
        %v3179 = vunpack.c.h.b16 %v2062
        %v3180 = vunpack.c.l.b16 %v2063
        %v3181 = vunpack.c.h.b16 %v2063
        %v3182 = vunpack.c.l.b16 %v2064
        %v3183 = vunpack.c.h.b16 %v2064
        %v3184 = vunpack.c.l.b16 %v2065
        %v3185 = vunpack.c.h.b16 %v2065
        %v3186 = vunpack.c.l.b16 %v2066
        %v3187 = vunpack.c.h.b16 %v2066
        %v3188 = vunpack.c.l.b16 %v2067
        %v3189 = vunpack.c.h.b16 %v2067
        %v3190 = vunpack.c.l.b16 %v2068
        %v3191 = vunpack.c.h.b16 %v2068
        %v3192 = vunpack.c.l.b16 %v2069
        %v3193 = vunpack.c.h.b16 %v2069
        %v3194 = vunpack.c.l.b16 %v2070
        %v3195 = vunpack.c.h.b16 %v2070
        %v3196 = vunpack.c.l.b16 %v2071
        %v3197 = vunpack.c.h.b16 %v2071
        %v3198 = vunpack.c.l.b16 %v2072
        %v3199 = vunpack.c.h.b16 %v2072
        %v3200 = vunpack.c.l.b16 %v2073
        %v3201 = vunpack.c.h.b16 %v2073
        %v3202 = vunpack.c.l.b16 %v2074
        %v3203 = vunpack.c.h.b16 %v2074
        %v3204 = vunpack.c.l.b16 %v2075
        %v3205 = vunpack.c.h.b16 %v2075
        %v3206 = vunpack.c.l.b16 %v2076
        %v3207 = vunpack.c.h.b16 %v2076
        %v3208 = vunpack.c.l.b16 %v2077
        %v3209 = vunpack.c.h.b16 %v2077
        %v3210 = vunpack.c.l.b16 %v2078
        %v3211 = vunpack.c.h.b16 %v2078
        %v3212 = vunpack.c.l.b16 %v2079
        %v3213 = vunpack.c.h.b16 %v2079
        %v3214 = vunpack.c.l.b16 %v2080
        %v3215 = vunpack.c.h.b16 %v2080
        %v3216 = vunpack.c.l.b16 %v2081
        %v3217 = vunpack.c.h.b16 %v2081
        %v3218 = vunpack.c.l.b16 %v2082
        %v3219 = vunpack.c.h.b16 %v2082
        %v3220 = vunpack.c.l.b16 %v2083
        %v3221 = vunpack.c.h.b16 %v2083
        %v3222 = vunpack.c.l.b16 %v2084
        %v3223 = vunpack.c.h.b16 %v2084
        %v3224 = vunpack.c.l.b16 %v2085
        %v3225 = vunpack.c.h.b16 %v2085
        %v3226 = vunpack.c.l.b16 %v2086
        %v3227 = vunpack.c.h.b16 %v2086
        %v3228 = vunpack.c.l.b16 %v2087
        %v3229 = vunpack.c.h.b16 %v2087
        %v3230 = vunpack.c.l.b16 %v2088
        %v3231 = vunpack.c.h.b16 %v2088
        %v3232 = vunpack.c.l.b16 %v2089
        %v3233 = vunpack.c.h.b16 %v2089
        %v3234 = vunpack.c.l.b16 %v2090
        %v3235 = vunpack.c.h.b16 %v2090
        %v3236 = vunpack.c.l.b16 %v2091
        %v3237 = vunpack.c.h.b16 %v2091
        %v3238 = vunpack.c.l.b16 %v2092
        %v3239 = vunpack.c.h.b16 %v2092
        %v3240 = vunpack.c.l.b16 %v2093
        %v3241 = vunpack.c.h.b16 %v2093
        %v3242 = vunpack.c.l.b16 %v2094
        %v3243 = vunpack.c.h.b16 %v2094
        %v3244 = vunpack.c.l.b16 %v2095
        %v3245 = vunpack.c.h.b16 %v2095
        %v3246 = vunpack.c.l.b16 %v2096
        %v3247 = vunpack.c.h.b16 %v2096
        %v3248 = vunpack.c.l.b16 %v2097
        %v3249 = vunpack.c.h.b16 %v2097
        %v3250 = vunpack.c.l.b16 %v2098
        %v3251 = vunpack.c.h.b16 %v2098
        %v3252 = vunpack.c.l.b16 %v2099
        %v3253 = vunpack.c.h.b16 %v2099
        %v3254 = vunpack.c.l.b16 %v2100
        %v3255 = vunpack.c.h.b16 %v2100
        %v3256 = vunpack.c.l.b16 %v2101
        %v3257 = vunpack.c.h.b16 %v2101
        %v3258 = vunpack.c.l.b16 %v2102
        %v3259 = vunpack.c.h.b16 %v2102
        %v3260 = vunpack.c.l.b16 %v2103
        %v3261 = vunpack.c.h.b16 %v2103
        %v3262 = vunpack.c.l.b16 %v2104
        %v3263 = vunpack.c.h.b16 %v2104
        %v3264 = vunpack.c.l.b16 %v2105
        %v3265 = vunpack.c.h.b16 %v2105
        %v3266 = vunpack.c.l.b16 %v2106
        %v3267 = vunpack.c.h.b16 %v2106
        %v3268 = vunpack.c.l.b16 %v2107
        %v3269 = vunpack.c.h.b16 %v2107
        %v3270 = vunpack.c.l.b16 %v2108
        %v3271 = vunpack.c.h.b16 %v2108
        %v3272 = vunpack.c.l.b16 %v2109
        %v3273 = vunpack.c.h.b16 %v2109
        %v3274 = vunpack.c.l.b16 %v2110
        %v3275 = vunpack.c.h.b16 %v2110
        %v3276 = vunpack.c.l.b16 %v2111
        %v3277 = vunpack.c.h.b16 %v2111
        %v3278 = vunpack.c.l.b16 %v2112
        %v3279 = vunpack.c.h.b16 %v2112
        %v3280 = vunpack.c.l.b16 %v2113
        %v3281 = vunpack.c.h.b16 %v2113
        %v3282 = vunpack.c.l.b16 %v2114
        %v3283 = vunpack.c.h.b16 %v2114
        %v3284 = vunpack.c.l.b16 %v2115
        %v3285 = vunpack.c.h.b16 %v2115
        %v3286 = vunpack.c.l.b16 %v2116
        %v3287 = vunpack.c.h.b16 %v2116
        %v3288 = vunpack.c.l.b16 %v2117
        %v3289 = vunpack.c.h.b16 %v2117
        %v3290 = vunpack.c.l.b16 %v2118
        %v3291 = vunpack.c.h.b16 %v2118
        %v3292 = vunpack.c.l.b16 %v2119
        %v3293 = vunpack.c.h.b16 %v2119
        %v3294 = vunpack.c.l.b16 %v2120
        %v3295 = vunpack.c.h.b16 %v2120
        %v3296 = vunpack.c.l.b16 %v2121
        %v3297 = vunpack.c.h.b16 %v2121
        %v3298 = vunpack.c.l.b16 %v2122
        %v3299 = vunpack.c.h.b16 %v2122
        %v3300 = vunpack.c.l.b16 %v2123
        %v3301 = vunpack.c.h.b16 %v2123
        %v3302 = vunpack.c.l.b16 %v2124
        %v3303 = vunpack.c.h.b16 %v2124
        %v3304 = vunpack.c.l.b16 %v2125
        %v3305 = vunpack.c.h.b16 %v2125
        %v3306 = vunpack.c.l.b16 %v2126
        %v3307 = vunpack.c.h.b16 %v2126
        %v3308 = vunpack.c.l.b16 %v2127
        %v3309 = vunpack.c.h.b16 %v2127
        %v3310 = vunpack.c.l.b16 %v2128
        %v3311 = vunpack.c.h.b16 %v2128
        %v3312 = vunpack.c.l.b16 %v2129
        %v3313 = vunpack.c.h.b16 %v2129
        %v3314 = vunpack.c.l.b16 %v2130
        %v3315 = vunpack.c.h.b16 %v2130
        %v3316 = vunpack.c.l.b16 %v2131
        %v3317 = vunpack.c.h.b16 %v2131
        %v3318 = vunpack.c.l.b16 %v2132
        %v3319 = vunpack.c.h.b16 %v2132
        %v3320 = vunpack.c.l.b16 %v2133
        %v3321 = vunpack.c.h.b16 %v2133
        %v3322 = vunpack.c.l.b16 %v2134
        %v3323 = vunpack.c.h.b16 %v2134
        %v3324 = vunpack.c.l.b16 %v2135
        %v3325 = vunpack.c.h.b16 %v2135
        %v3326 = vunpack.c.l.b16 %v2136
        %v3327 = vunpack.c.h.b16 %v2136
        %v3328 = vunpack.c.l.b16 %v2137
        %v3329 = vunpack.c.h.b16 %v2137
        %v3330 = vunpack.c.l.b16 %v2138
        %v3331 = vunpack.c.h.b16 %v2138
        %v3332 = vunpack.c.l.b16 %v2139
        %v3333 = vunpack.c.h.b16 %v2139
        %v3334 = vunpack.c.l.b16 %v2140
        %v3335 = vunpack.c.h.b16 %v2140
        %v3336 = vunpack.c.l.b16 %v2141
        %v3337 = vunpack.c.h.b16 %v2141
        %v3338 = vunpack.c.l.b16 %v2142
        %v3339 = vunpack.c.h.b16 %v2142
        %v3340 = vunpack.c.l.b16 %v2143
        %v3341 = vunpack.c.h.b16 %v2143
        %v3342 = vunpack.c.l.b16 %v2144
        %v3343 = vunpack.c.h.b16 %v2144
        %v3344 = vunpack.c.l.b16 %v2145
        %v3345 = vunpack.c.h.b16 %v2145
        %v3346 = vunpack.c.l.b16 %v2146
        %v3347 = vunpack.c.h.b16 %v2146
        %v3348 = vunpack.c.l.b16 %v2147
        %v3349 = vunpack.c.h.b16 %v2147
        %v3350 = vunpack.c.l.b16 %v2148
        %v3351 = vunpack.c.h.b16 %v2148
        %v3352 = vunpack.c.l.b16 %v2149
        %v3353 = vunpack.c.h.b16 %v2149
        %v3354 = vunpack.c.l.b16 %v2150
        %v3355 = vunpack.c.h.b16 %v2150
        %v3356 = vunpack.c.l.b16 %v2151
        %v3357 = vunpack.c.h.b16 %v2151
        %v3358 = vunpack.c.l.b16 %v2152
        %v3359 = vunpack.c.h.b16 %v2152
        %v3360 = vunpack.c.l.b16 %v2153
        %v3361 = vunpack.c.h.b16 %v2153
        %v3362 = vunpack.c.l.b16 %v2154
        %v3363 = vunpack.c.h.b16 %v2154
        %v3364 = vunpack.c.l.b16 %v2155
        %v3365 = vunpack.c.h.b16 %v2155
        %v3366 = vunpack.c.l.b16 %v2156
        %v3367 = vunpack.c.h.b16 %v2156
        %v3368 = vunpack.c.l.b16 %v2157
        %v3369 = vunpack.c.h.b16 %v2157
        %v3370 = vunpack.c.l.b16 %v2158
        %v3371 = vunpack.c.h.b16 %v2158
        %v3372 = vunpack.c.l.b16 %v2159
        %v3373 = vunpack.c.h.b16 %v2159
        %v3374 = vunpack.c.l.b16 %v2160
        %v3375 = vunpack.c.h.b16 %v2160
        %v3376 = vunpack.c.l.b16 %v2161
        %v3377 = vunpack.c.h.b16 %v2161
        %v3378 = vunpack.c.l.b16 %v2162
        %v3379 = vunpack.c.h.b16 %v2162
        %v3380 = vunpack.c.l.b16 %v2163
        %v3381 = vunpack.c.h.b16 %v2163
        %v3382 = vunpack.c.l.b16 %v2164
        %v3383 = vunpack.c.h.b16 %v2164
        %v3384 = vunpack.c.l.b16 %v2165
        %v3385 = vunpack.c.h.b16 %v2165
        %v3386 = vunpack.c.l.b16 %v2166
        %v3387 = vunpack.c.h.b16 %v2166
        %v3388 = vunpack.c.l.b16 %v2167
        %v3389 = vunpack.c.h.b16 %v2167
        %v3390 = vunpack.c.l.b16 %v2168
        %v3391 = vunpack.c.h.b16 %v2168
        %v3392 = vunpack.c.l.b16 %v2169
        %v3393 = vunpack.c.h.b16 %v2169
        %v3394 = vunpack.c.l.b16 %v2170
        %v3395 = vunpack.c.h.b16 %v2170
        %v3396 = vunpack.c.l.b16 %v2171
        %v3397 = vunpack.c.h.b16 %v2171
        %v3398 = vunpack.c.l.b16 %v2172
        %v3399 = vunpack.c.h.b16 %v2172
        %v3400 = vunpack.c.l.b16 %v2173
        %v3401 = vunpack.c.h.b16 %v2173
        %v3402 = vunpack.c.l.b16 %v2174
        %v3403 = vunpack.c.h.b16 %v2174
        %v3404 = vunpack.c.l.b16 %v2175
        %v3405 = vunpack.c.h.b16 %v2175
        %v3406 = vunpack.c.l.b16 %v2176
        %v3407 = vunpack.c.h.b16 %v2176
        %v3408 = vunpack.c.l.b16 %v2177
        %v3409 = vunpack.c.h.b16 %v2177
        %v3410 = vunpack.c.l.b16 %v2178
        %v3411 = vunpack.c.h.b16 %v2178
        %v3412 = vunpack.c.l.b16 %v2179
        %v3413 = vunpack.c.h.b16 %v2179
        %v3414 = vunpack.c.l.b16 %v2180
        %v3415 = vunpack.c.h.b16 %v2180
        %v3416 = vunpack.c.l.b16 %v2181
        %v3417 = vunpack.c.h.b16 %v2181
        %v3418 = vunpack.c.l.b16 %v2182
        %v3419 = vunpack.c.h.b16 %v2182
        %v3420 = vunpack.c.l.b16 %v2183
        %v3421 = vunpack.c.h.b16 %v2183
        %v3422 = vunpack.c.l.b16 %v2184
        %v3423 = vunpack.c.h.b16 %v2184
        %v3424 = vunpack.c.l.b16 %v2185
        %v3425 = vunpack.c.h.b16 %v2185
        %v3426 = vunpack.c.l.b16 %v2186
        %v3427 = vunpack.c.h.b16 %v2186
        %v3428 = vunpack.c.l.b16 %v2187
        %v3429 = vunpack.c.h.b16 %v2187
        %v3430 = vunpack.c.l.b16 %v2188
        %v3431 = vunpack.c.h.b16 %v2188
        %v3432 = vunpack.c.l.b16 %v2189
        %v3433 = vunpack.c.h.b16 %v2189
        %v3434 = vunpack.c.l.b16 %v2190
        %v3435 = vunpack.c.h.b16 %v2190
        %v3436 = vunpack.c.l.b16 %v2191
        %v3437 = vunpack.c.h.b16 %v2191
        %v3438 = vunpack.c.l.b16 %v2192
        %v3439 = vunpack.c.h.b16 %v2192
        %v3440 = vunpack.c.l.b16 %v2193
        %v3441 = vunpack.c.h.b16 %v2193
        %v3442 = vunpack.c.l.b16 %v2194
        %v3443 = vunpack.c.h.b16 %v2194
        %v3444 = vunpack.c.l.b16 %v2195
        %v3445 = vunpack.c.h.b16 %v2195
        %v3446 = vunpack.c.l.b16 %v2196
        %v3447 = vunpack.c.h.b16 %v2196
        %v3448 = vunpack.c.l.b16 %v2197
        %v3449 = vunpack.c.h.b16 %v2197
        %v3450 = vunpack.c.l.b16 %v2198
        %v3451 = vunpack.c.h.b16 %v2198
        %v3452 = vunpack.c.l.b16 %v2199
        %v3453 = vunpack.c.h.b16 %v2199
        %v3454 = vunpack.c.l.b16 %v2200
        %v3455 = vunpack.c.h.b16 %v2200
        %v3456 = vunpack.c.l.b16 %v2201
        %v3457 = vunpack.c.h.b16 %v2201
        %v3458 = vunpack.c.l.b16 %v2202
        %v3459 = vunpack.c.h.b16 %v2202
        %v3460 = vunpack.c.l.b16 %v2203
        %v3461 = vunpack.c.h.b16 %v2203
        %v3462 = vunpack.c.l.b16 %v2204
        %v3463 = vunpack.c.h.b16 %v2204
        %v3464 = vunpack.c.l.b16 %v2205
        %v3465 = vunpack.c.h.b16 %v2205
        %v3466 = vunpack.c.l.b16 %v2206
        %v3467 = vunpack.c.h.b16 %v2206
        %v3468 = vunpack.c.l.b16 %v2207
        %v3469 = vunpack.c.h.b16 %v2207
        %v3470 = vunpack.c.l.b16 %v2208
        %v3471 = vunpack.c.h.b16 %v2208
        %v3472 = vunpack.c.l.b16 %v2209
        %v3473 = vunpack.c.h.b16 %v2209
        %v3474 = vunpack.c.l.b16 %v2210
        %v3475 = vunpack.c.h.b16 %v2210
        %v3476 = vunpack.c.l.b16 %v2211
        %v3477 = vunpack.c.h.b16 %v2211
        %v3478 = vunpack.c.l.b16 %v2212
        %v3479 = vunpack.c.h.b16 %v2212
        %v3480 = vunpack.c.l.b16 %v2213
        %v3481 = vunpack.c.h.b16 %v2213
        %v3482 = vunpack.c.l.b16 %v2214
        %v3483 = vunpack.c.h.b16 %v2214
        %v3484 = vunpack.c.l.b16 %v2215
        %v3485 = vunpack.c.h.b16 %v2215
        %v3486 = vunpack.c.l.b16 %v2216
        %v3487 = vunpack.c.h.b16 %v2216
        %v3488 = vunpack.c.l.b16 %v2217
        %v3489 = vunpack.c.h.b16 %v2217
        %v3490 = vunpack.c.l.b16 %v2218
        %v3491 = vunpack.c.h.b16 %v2218
        %v3492 = vunpack.c.l.b16 %v2219
        %v3493 = vunpack.c.h.b16 %v2219
        %v3494 = vunpack.c.l.b16 %v2220
        %v3495 = vunpack.c.h.b16 %v2220
        %v3496 = vunpack.c.l.b16 %v2221
        %v3497 = vunpack.c.h.b16 %v2221
        %v3498 = vunpack.c.l.b16 %v2222
        %v3499 = vunpack.c.h.b16 %v2222
        %v3500 = vunpack.c.l.b16 %v2223
        %v3501 = vunpack.c.h.b16 %v2223
        %v3502 = vunpack.c.l.b16 %v2224
        %v3503 = vunpack.c.h.b16 %v2224
        %v3504 = vunpack.c.l.b16 %v2225
        %v3505 = vunpack.c.h.b16 %v2225
        %v3506 = vunpack.c.l.b16 %v2226
        %v3507 = vunpack.c.h.b16 %v2226
        %v3508 = vunpack.c.l.b16 %v2227
        %v3509 = vunpack.c.h.b16 %v2227
        %v3510 = vunpack.c.l.b16 %v2228
        %v3511 = vunpack.c.h.b16 %v2228
        %v3512 = vunpack.c.l.b16 %v2229
        %v3513 = vunpack.c.h.b16 %v2229
        %v3514 = vunpack.c.l.b16 %v2230
        %v3515 = vunpack.c.h.b16 %v2230
        %v3516 = vunpack.c.l.b16 %v2231
        %v3517 = vunpack.c.h.b16 %v2231
        %v3518 = vunpack.c.l.b16 %v2232
        %v3519 = vunpack.c.h.b16 %v2232
        %v3520 = vunpack.c.l.b16 %v2233
        %v3521 = vunpack.c.h.b16 %v2233
        %v3522 = vunpack.c.l.b16 %v2234
        %v3523 = vunpack.c.h.b16 %v2234
        %v3524 = vunpack.c.l.b16 %v2235
        %v3525 = vunpack.c.h.b16 %v2235
        %v3526 = vunpack.c.l.b16 %v2236
        %v3527 = vunpack.c.h.b16 %v2236
        %v3528 = vunpack.c.l.b16 %v2237
        %v3529 = vunpack.c.h.b16 %v2237
        %v3530 = vunpack.c.l.b16 %v2238
        %v3531 = vunpack.c.h.b16 %v2238
        %v3532 = vunpack.c.l.b16 %v2239
        %v3533 = vunpack.c.h.b16 %v2239
        %v3534 = vunpack.c.l.b16 %v2240
        %v3535 = vunpack.c.h.b16 %v2240
        %v3536 = vunpack.c.l.b16 %v2241
        %v3537 = vunpack.c.h.b16 %v2241
        %v3538 = vunpack.c.l.b16 %v2242
        %v3539 = vunpack.c.h.b16 %v2242
        %v3540 = vunpack.c.l.b16 %v2243
        %v3541 = vunpack.c.h.b16 %v2243
        %v3542 = vunpack.c.l.b16 %v2244
        %v3543 = vunpack.c.h.b16 %v2244
        %v3544 = vunpack.c.l.b16 %v2245
        %v3545 = vunpack.c.h.b16 %v2245
        %v3546 = vunpack.c.l.b16 %v2246
        %v3547 = vunpack.c.h.b16 %v2246
        %v3548 = vunpack.c.l.b16 %v2247
        %v3549 = vunpack.c.h.b16 %v2247
        %v3550 = vunpack.c.l.b16 %v2248
        %v3551 = vunpack.c.h.b16 %v2248
        %v3552 = vunpack.c.l.b16 %v2249
        %v3553 = vunpack.c.h.b16 %v2249
        %v3554 = vunpack.c.l.b16 %v2250
        %v3555 = vunpack.c.h.b16 %v2250
        %v3556 = vunpack.c.l.b16 %v2251
        %v3557 = vunpack.c.h.b16 %v2251
        %v3558 = vunpack.c.l.b16 %v2252
        %v3559 = vunpack.c.h.b16 %v2252
        %v3560 = vunpack.c.l.b16 %v2253
        %v3561 = vunpack.c.h.b16 %v2253
        %v3562 = vunpack.c.l.b16 %v2254
        %v3563 = vunpack.c.h.b16 %v2254
        %v3564 = vunpack.c.l.b16 %v2255
        %v3565 = vunpack.c.h.b16 %v2255
        %v3566 = vunpack.c.l.b16 %v2256
        %v3567 = vunpack.c.h.b16 %v2256
        %v3568 = vunpack.c.l.b16 %v2257
        %v3569 = vunpack.c.h.b16 %v2257
        %v3570 = vunpack.c.l.b16 %v2258
        %v3571 = vunpack.c.h.b16 %v2258
        %v3572 = vunpack.c.l.b16 %v2259
        %v3573 = vunpack.c.h.b16 %v2259
        %v3574 = vunpack.c.l.b16 %v2260
        %v3575 = vunpack.c.h.b16 %v2260
        %v3576 = vunpack.c.l.b16 %v2261
        %v3577 = vunpack.c.h.b16 %v2261
        %v3578 = vunpack.c.l.b16 %v2262
        %v3579 = vunpack.c.h.b16 %v2262
        %v3580 = vunpack.c.l.b16 %v2263
        %v3581 = vunpack.c.h.b16 %v2263
        %v3582 = vunpack.c.l.b16 %v2264
        %v3583 = vunpack.c.h.b16 %v2264
        %v3584 = vunpack.c.l.b16 %v2265
        %v3585 = vunpack.c.h.b16 %v2265
        %v3586 = vunpack.c.l.b16 %v2266
        %v3587 = vunpack.c.h.b16 %v2266
        %v3588 = vunpack.c.l.b16 %v2267
        %v3589 = vunpack.c.h.b16 %v2267
        %v3590 = vunpack.c.l.b16 %v2268
        %v3591 = vunpack.c.h.b16 %v2268
        %v3592 = vunpack.c.l.b16 %v2269
        %v3593 = vunpack.c.h.b16 %v2269
        %v3594 = vunpack.c.l.b16 %v2270
        %v3595 = vunpack.c.h.b16 %v2270
        %v3596 = vunpack.c.l.b16 %v2271
        %v3597 = vunpack.c.h.b16 %v2271
        %v3598 = vunpack.c.l.b16 %v2272
        %v3599 = vunpack.c.h.b16 %v2272
        %v3600 = vunpack.c.l.b16 %v2273
        %v3601 = vunpack.c.h.b16 %v2273
        %v3602 = vunpack.c.l.b16 %v2274
        %v3603 = vunpack.c.h.b16 %v2274
        %v3604 = vunpack.c.l.b16 %v2275
        %v3605 = vunpack.c.h.b16 %v2275
        %v3606 = vunpack.c.l.b16 %v2276
        %v3607 = vunpack.c.h.b16 %v2276
        %v3608 = vunpack.c.l.b16 %v2277
        %v3609 = vunpack.c.h.b16 %v2277
        %v3610 = vunpack.c.l.b16 %v2278
        %v3611 = vunpack.c.h.b16 %v2278
        %v3612 = vunpack.c.l.b16 %v2279
        %v3613 = vunpack.c.h.b16 %v2279
        %v3614 = vunpack.c.l.b16 %v2280
        %v3615 = vunpack.c.h.b16 %v2280
        %v3616 = vunpack.c.l.b16 %v2281
        %v3617 = vunpack.c.h.b16 %v2281
        %v3618 = vunpack.c.l.b16 %v2282
        %v3619 = vunpack.c.h.b16 %v2282
        %v3620 = vunpack.c.l.b16 %v2283
        %v3621 = vunpack.c.h.b16 %v2283
        %v3622 = vpack.c.b16 %v2824, %v2822
        %v3623 = vpack.c.b16 %v2825, %v2823
        %v3624 = vpack.c.b16 %v2828, %v2826
        %v3625 = vpack.c.b16 %v2829, %v2827
        %v3626 = vpack.c.b16 %v2832, %v2830
        %v3627 = vpack.c.b16 %v2833, %v2831
        %v3628 = vpack.c.b16 %v2836, %v2834
        %v3629 = vpack.c.b16 %v2837, %v2835
        %v3630 = vpack.c.b16 %v2840, %v2838
        %v3631 = vpack.c.b16 %v2841, %v2839
        %v3632 = vpack.c.b16 %v2844, %v2842
        %v3633 = vpack.c.b16 %v2845, %v2843
        %v3634 = vpack.c.b16 %v2848, %v2846
        %v3635 = vpack.c.b16 %v2849, %v2847
        %v3636 = vpack.c.b16 %v2852, %v2850
        %v3637 = vpack.c.b16 %v2853, %v2851
        %v3638 = vpack.c.b16 %v2856, %v2854
        %v3639 = vpack.c.b16 %v2857, %v2855
        %v3640 = vpack.c.b16 %v2860, %v2858
        %v3641 = vpack.c.b16 %v2861, %v2859
        %v3642 = vpack.c.b16 %v2864, %v2862
        %v3643 = vpack.c.b16 %v2865, %v2863
        %v3644 = vpack.c.b16 %v2868, %v2866
        %v3645 = vpack.c.b16 %v2869, %v2867
        %v3646 = vpack.c.b16 %v2872, %v2870
        %v3647 = vpack.c.b16 %v2873, %v2871
        %v3648 = vpack.c.b16 %v2876, %v2874
        %v3649 = vpack.c.b16 %v2877, %v2875
        %v3650 = vpack.c.b16 %v2880, %v2878
        %v3651 = vpack.c.b16 %v2881, %v2879
        %v3652 = vpack.c.b16 %v2884, %v2882
        %v3653 = vpack.c.b16 %v2885, %v2883
        %v3654 = vpack.c.b16 %v2888, %v2886
        %v3655 = vpack.c.b16 %v2889, %v2887
        %v3656 = vpack.c.b16 %v2892, %v2890
        %v3657 = vpack.c.b16 %v2893, %v2891
        %v3658 = vpack.c.b16 %v2896, %v2894
        %v3659 = vpack.c.b16 %v2897, %v2895
        %v3660 = vpack.c.b16 %v2900, %v2898
        %v3661 = vpack.c.b16 %v2901, %v2899
        %v3662 = vpack.c.b16 %v2904, %v2902
        %v3663 = vpack.c.b16 %v2905, %v2903
        %v3664 = vpack.c.b16 %v2908, %v2906
        %v3665 = vpack.c.b16 %v2909, %v2907
        %v3666 = vpack.c.b16 %v2912, %v2910
        %v3667 = vpack.c.b16 %v2913, %v2911
        %v3668 = vpack.c.b16 %v2916, %v2914
        %v3669 = vpack.c.b16 %v2917, %v2915
        %v3670 = vpack.c.b16 %v2920, %v2918
        %v3671 = vpack.c.b16 %v2921, %v2919
        %v3672 = vpack.c.b16 %v2924, %v2922
        %v3673 = vpack.c.b16 %v2925, %v2923
        %v3674 = vpack.c.b16 %v2928, %v2926
        %v3675 = vpack.c.b16 %v2929, %v2927
        %v3676 = vpack.c.b16 %v2932, %v2930
        %v3677 = vpack.c.b16 %v2933, %v2931
        %v3678 = vpack.c.b16 %v2936, %v2934
        %v3679 = vpack.c.b16 %v2937, %v2935
        %v3680 = vpack.c.b16 %v2940, %v2938
        %v3681 = vpack.c.b16 %v2941, %v2939
        %v3682 = vpack.c.b16 %v2944, %v2942
        %v3683 = vpack.c.b16 %v2945, %v2943
        %v3684 = vpack.c.b16 %v2948, %v2946
        %v3685 = vpack.c.b16 %v2949, %v2947
        %v3686 = vpack.c.b16 %v2952, %v2950
        %v3687 = vpack.c.b16 %v2953, %v2951
        %v3688 = vpack.c.b16 %v2956, %v2954
        %v3689 = vpack.c.b16 %v2957, %v2955
        %v3690 = vpack.c.b16 %v2960, %v2958
        %v3691 = vpack.c.b16 %v2961, %v2959
        %v3692 = vpack.c.b16 %v2964, %v2962
        %v3693 = vpack.c.b16 %v2965, %v2963
        %v3694 = vpack.c.b16 %v2968, %v2966
        %v3695 = vpack.c.b16 %v2969, %v2967
        %v3696 = vpack.c.b16 %v2972, %v2970
        %v3697 = vpack.c.b16 %v2973, %v2971
        %v3698 = vpack.c.b16 %v2976, %v2974
        %v3699 = vpack.c.b16 %v2977, %v2975
        %v3700 = vpack.c.b16 %v2980, %v2978
        %v3701 = vpack.c.b16 %v2981, %v2979
        %v3702 = vpack.c.b16 %v2984, %v2982
        %v3703 = vpack.c.b16 %v2985, %v2983
        %v3704 = vpack.c.b16 %v2988, %v2986
        %v3705 = vpack.c.b16 %v2989, %v2987
        %v3706 = vpack.c.b16 %v2992, %v2990
        %v3707 = vpack.c.b16 %v2993, %v2991
        %v3708 = vpack.c.b16 %v2996, %v2994
        %v3709 = vpack.c.b16 %v2997, %v2995
        %v3710 = vpack.c.b16 %v3000, %v2998
        %v3711 = vpack.c.b16 %v3001, %v2999
        %v3712 = vpack.c.b16 %v3004, %v3002
        %v3713 = vpack.c.b16 %v3005, %v3003
        %v3714 = vpack.c.b16 %v3008, %v3006
        %v3715 = vpack.c.b16 %v3009, %v3007
        %v3716 = vpack.c.b16 %v3012, %v3010
        %v3717 = vpack.c.b16 %v3013, %v3011
        %v3718 = vpack.c.b16 %v3016, %v3014
        %v3719 = vpack.c.b16 %v3017, %v3015
        %v3720 = vpack.c.b16 %v3020, %v3018
        %v3721 = vpack.c.b16 %v3021, %v3019
        %v3722 = vpack.c.b16 %v3024, %v3022
        %v3723 = vpack.c.b16 %v3025, %v3023
        %v3724 = vpack.c.b16 %v3028, %v3026
        %v3725 = vpack.c.b16 %v3029, %v3027
        %v3726 = vpack.c.b16 %v3032, %v3030
        %v3727 = vpack.c.b16 %v3033, %v3031
        %v3728 = vpack.c.b16 %v3036, %v3034
        %v3729 = vpack.c.b16 %v3037, %v3035
        %v3730 = vpack.c.b16 %v3040, %v3038
        %v3731 = vpack.c.b16 %v3041, %v3039
        %v3732 = vpack.c.b16 %v3044, %v3042
        %v3733 = vpack.c.b16 %v3045, %v3043
        %v3734 = vpack.c.b16 %v3048, %v3046
        %v3735 = vpack.c.b16 %v3049, %v3047
        %v3736 = vpack.c.b16 %v3052, %v3050
        %v3737 = vpack.c.b16 %v3053, %v3051
        %v3738 = vpack.c.b16 %v3056, %v3054
        %v3739 = vpack.c.b16 %v3057, %v3055
        %v3740 = vpack.c.b16 %v3060, %v3058
        %v3741 = vpack.c.b16 %v3061, %v3059
        %v3742 = vpack.c.b16 %v3064, %v3062
        %v3743 = vpack.c.b16 %v3065, %v3063
        %v3744 = vpack.c.b16 %v3068, %v3066
        %v3745 = vpack.c.b16 %v3069, %v3067
        %v3746 = vpack.c.b16 %v3072, %v3070
        %v3747 = vpack.c.b16 %v3073, %v3071
        %v3748 = vpack.c.b16 %v3076, %v3074
        %v3749 = vpack.c.b16 %v3077, %v3075
        %v3750 = vpack.c.b16 %v3080, %v3078
        %v3751 = vpack.c.b16 %v3081, %v3079
        %v3752 = vpack.c.b16 %v3084, %v3082
        %v3753 = vpack.c.b16 %v3085, %v3083
        %v3754 = vpack.c.b16 %v3088, %v3086
        %v3755 = vpack.c.b16 %v3089, %v3087
        %v3756 = vpack.c.b16 %v3092, %v3090
        %v3757 = vpack.c.b16 %v3093, %v3091
        %v3758 = vpack.c.b16 %v3096, %v3094
        %v3759 = vpack.c.b16 %v3097, %v3095
        %v3760 = vpack.c.b16 %v3100, %v3098
        %v3761 = vpack.c.b16 %v3101, %v3099
        %v3762 = vpack.c.b16 %v3104, %v3102
        %v3763 = vpack.c.b16 %v3105, %v3103
        %v3764 = vpack.c.b16 %v3108, %v3106
        %v3765 = vpack.c.b16 %v3109, %v3107
        %v3766 = vpack.c.b16 %v3112, %v3110
        %v3767 = vpack.c.b16 %v3113, %v3111
        %v3768 = vpack.c.b16 %v3116, %v3114
        %v3769 = vpack.c.b16 %v3117, %v3115
        %v3770 = vpack.c.b16 %v3120, %v3118
        %v3771 = vpack.c.b16 %v3121, %v3119
        %v3772 = vpack.c.b16 %v3124, %v3122
        %v3773 = vpack.c.b16 %v3125, %v3123
        %v3774 = vpack.c.b16 %v3128, %v3126
        %v3775 = vpack.c.b16 %v3129, %v3127
        %v3776 = vpack.c.b16 %v3132, %v3130
        %v3777 = vpack.c.b16 %v3133, %v3131
        %v3778 = vpack.c.b16 %v3136, %v3134
        %v3779 = vpack.c.b16 %v3137, %v3135
        %v3780 = vpack.c.b16 %v3140, %v3138
        %v3781 = vpack.c.b16 %v3141, %v3139
        %v3782 = vpack.c.b16 %v3144, %v3142
        %v3783 = vpack.c.b16 %v3145, %v3143
        %v3784 = vpack.c.b16 %v3148, %v3146
        %v3785 = vpack.c.b16 %v3149, %v3147
        %v3786 = vpack.c.b16 %v3152, %v3150
        %v3787 = vpack.c.b16 %v3153, %v3151
        %v3788 = vpack.c.b16 %v3156, %v3154
        %v3789 = vpack.c.b16 %v3157, %v3155
        %v3790 = vpack.c.b16 %v3160, %v3158
        %v3791 = vpack.c.b16 %v3161, %v3159
        %v3792 = vpack.c.b16 %v3164, %v3162
        %v3793 = vpack.c.b16 %v3165, %v3163
        %v3794 = vpack.c.b16 %v3168, %v3166
        %v3795 = vpack.c.b16 %v3169, %v3167
        %v3796 = vpack.c.b16 %v3172, %v3170
        %v3797 = vpack.c.b16 %v3173, %v3171
        %v3798 = vpack.c.b16 %v3176, %v3174
        %v3799 = vpack.c.b16 %v3177, %v3175
        %v3800 = vpack.c.b16 %v3180, %v3178
        %v3801 = vpack.c.b16 %v3181, %v3179
        %v3802 = vpack.c.b16 %v3184, %v3182
        %v3803 = vpack.c.b16 %v3185, %v3183
        %v3804 = vpack.c.b16 %v3188, %v3186
        %v3805 = vpack.c.b16 %v3189, %v3187
        %v3806 = vpack.c.b16 %v3192, %v3190
        %v3807 = vpack.c.b16 %v3193, %v3191
        %v3808 = vpack.c.b16 %v3196, %v3194
        %v3809 = vpack.c.b16 %v3197, %v3195
        %v3810 = vpack.c.b16 %v3200, %v3198
        %v3811 = vpack.c.b16 %v3201, %v3199
        %v3812 = vpack.c.b16 %v3204, %v3202
        %v3813 = vpack.c.b16 %v3205, %v3203
        %v3814 = vpack.c.b16 %v3208, %v3206
        %v3815 = vpack.c.b16 %v3209, %v3207
        %v3816 = vpack.c.b16 %v3212, %v3210
        %v3817 = vpack.c.b16 %v3213, %v3211
        %v3818 = vpack.c.b16 %v3216, %v3214
        %v3819 = vpack.c.b16 %v3217, %v3215
        %v3820 = vpack.c.b16 %v3220, %v3218
        %v3821 = vpack.c.b16 %v3221, %v3219
        %v3822 = vpack.c.b16 %v3224, %v3222
        %v3823 = vpack.c.b16 %v3225, %v3223
        %v3824 = vpack.c.b16 %v3228, %v3226
        %v3825 = vpack.c.b16 %v3229, %v3227
        %v3826 = vpack.c.b16 %v3232, %v3230
        %v3827 = vpack.c.b16 %v3233, %v3231
        %v3828 = vpack.c.b16 %v3236, %v3234
        %v3829 = vpack.c.b16 %v3237, %v3235
        %v3830 = vpack.c.b16 %v3240, %v3238
        %v3831 = vpack.c.b16 %v3241, %v3239
        %v3832 = vpack.c.b16 %v3244, %v3242
        %v3833 = vpack.c.b16 %v3245, %v3243
        %v3834 = vpack.c.b16 %v3248, %v3246
        %v3835 = vpack.c.b16 %v3249, %v3247
        %v3836 = vpack.c.b16 %v3252, %v3250
        %v3837 = vpack.c.b16 %v3253, %v3251
        %v3838 = vpack.c.b16 %v3256, %v3254
        %v3839 = vpack.c.b16 %v3257, %v3255
        %v3840 = vpack.c.b16 %v3260, %v3258
        %v3841 = vpack.c.b16 %v3261, %v3259
        %v3842 = vpack.c.b16 %v3264, %v3262
        %v3843 = vpack.c.b16 %v3265, %v3263
        %v3844 = vpack.c.b16 %v3268, %v3266
        %v3845 = vpack.c.b16 %v3269, %v3267
        %v3846 = vpack.c.b16 %v3272, %v3270
        %v3847 = vpack.c.b16 %v3273, %v3271
        %v3848 = vpack.c.b16 %v3276, %v3274
        %v3849 = vpack.c.b16 %v3277, %v3275
        %v3850 = vpack.c.b16 %v3280, %v3278
        %v3851 = vpack.c.b16 %v3281, %v3279
        %v3852 = vpack.c.b16 %v3284, %v3282
        %v3853 = vpack.c.b16 %v3285, %v3283
        %v3854 = vpack.c.b16 %v3288, %v3286
        %v3855 = vpack.c.b16 %v3289, %v3287
        %v3856 = vpack.c.b16 %v3292, %v3290
        %v3857 = vpack.c.b16 %v3293, %v3291
        %v3858 = vpack.c.b16 %v3296, %v3294
        %v3859 = vpack.c.b16 %v3297, %v3295
        %v3860 = vpack.c.b16 %v3300, %v3298
        %v3861 = vpack.c.b16 %v3301, %v3299
        %v3862 = vpack.c.b16 %v3304, %v3302
        %v3863 = vpack.c.b16 %v3305, %v3303
        %v3864 = vpack.c.b16 %v3308, %v3306
        %v3865 = vpack.c.b16 %v3309, %v3307
        %v3866 = vpack.c.b16 %v3312, %v3310
        %v3867 = vpack.c.b16 %v3313, %v3311
        %v3868 = vpack.c.b16 %v3316, %v3314
        %v3869 = vpack.c.b16 %v3317, %v3315
        %v3870 = vpack.c.b16 %v3320, %v3318
        %v3871 = vpack.c.b16 %v3321, %v3319
        %v3872 = vpack.c.b16 %v3324, %v3322
        %v3873 = vpack.c.b16 %v3325, %v3323
        %v3874 = vpack.c.b16 %v3328, %v3326
        %v3875 = vpack.c.b16 %v3329, %v3327
        %v3876 = vpack.c.b16 %v3332, %v3330
        %v3877 = vpack.c.b16 %v3333, %v3331
        %v3878 = vpack.c.b16 %v3336, %v3334
        %v3879 = vpack.c.b16 %v3337, %v3335
        %v3880 = vpack.c.b16 %v3340, %v3338
        %v3881 = vpack.c.b16 %v3341, %v3339
        %v3882 = vpack.c.b16 %v3344, %v3342
        %v3883 = vpack.c.b16 %v3345, %v3343
        %v3884 = vpack.c.b16 %v3348, %v3346
        %v3885 = vpack.c.b16 %v3349, %v3347
        %v3886 = vpack.c.b16 %v3352, %v3350
        %v3887 = vpack.c.b16 %v3353, %v3351
        %v3888 = vpack.c.b16 %v3356, %v3354
        %v3889 = vpack.c.b16 %v3357, %v3355
        %v3890 = vpack.c.b16 %v3360, %v3358
        %v3891 = vpack.c.b16 %v3361, %v3359
        %v3892 = vpack.c.b16 %v3364, %v3362
        %v3893 = vpack.c.b16 %v3365, %v3363
        %v3894 = vpack.c.b16 %v3368, %v3366
        %v3895 = vpack.c.b16 %v3369, %v3367
        %v3896 = vpack.c.b16 %v3372, %v3370
        %v3897 = vpack.c.b16 %v3373, %v3371
        %v3898 = vpack.c.b16 %v3376, %v3374
        %v3899 = vpack.c.b16 %v3377, %v3375
        %v3900 = vpack.c.b16 %v3380, %v3378
        %v3901 = vpack.c.b16 %v3381, %v3379
        %v3902 = vpack.c.b16 %v3384, %v3382
        %v3903 = vpack.c.b16 %v3385, %v3383
        %v3904 = vpack.c.b16 %v3388, %v3386
        %v3905 = vpack.c.b16 %v3389, %v3387
        %v3906 = vpack.c.b16 %v3392, %v3390
        %v3907 = vpack.c.b16 %v3393, %v3391
        %v3908 = vpack.c.b16 %v3396, %v3394
        %v3909 = vpack.c.b16 %v3397, %v3395
        %v3910 = vpack.c.b16 %v3400, %v3398
        %v3911 = vpack.c.b16 %v3401, %v3399
        %v3912 = vpack.c.b16 %v3404, %v3402
        %v3913 = vpack.c.b16 %v3405, %v3403
        %v3914 = vpack.c.b16 %v3408, %v3406
        %v3915 = vpack.c.b16 %v3409, %v3407
        %v3916 = vpack.c.b16 %v3412, %v3410
        %v3917 = vpack.c.b16 %v3413, %v3411
        %v3918 = vpack.c.b16 %v3416, %v3414
        %v3919 = vpack.c.b16 %v3417, %v3415
        %v3920 = vpack.c.b16 %v3420, %v3418
        %v3921 = vpack.c.b16 %v3421, %v3419
        %v3922 = vpack.c.b16 %v3424, %v3422
        %v3923 = vpack.c.b16 %v3425, %v3423
        %v3924 = vpack.c.b16 %v3428, %v3426
        %v3925 = vpack.c.b16 %v3429, %v3427
        %v3926 = vpack.c.b16 %v3432, %v3430
        %v3927 = vpack.c.b16 %v3433, %v3431
        %v3928 = vpack.c.b16 %v3436, %v3434
        %v3929 = vpack.c.b16 %v3437, %v3435
        %v3930 = vpack.c.b16 %v3440, %v3438
        %v3931 = vpack.c.b16 %v3441, %v3439
        %v3932 = vpack.c.b16 %v3444, %v3442
        %v3933 = vpack.c.b16 %v3445, %v3443
        %v3934 = vpack.c.b16 %v3448, %v3446
        %v3935 = vpack.c.b16 %v3449, %v3447
        %v3936 = vpack.c.b16 %v3452, %v3450
        %v3937 = vpack.c.b16 %v3453, %v3451
        %v3938 = vpack.c.b16 %v3456, %v3454
        %v3939 = vpack.c.b16 %v3457, %v3455
        %v3940 = vpack.c.b16 %v3460, %v3458
        %v3941 = vpack.c.b16 %v3461, %v3459
        %v3942 = vpack.c.b16 %v3464, %v3462
        %v3943 = vpack.c.b16 %v3465, %v3463
        %v3944 = vpack.c.b16 %v3468, %v3466
        %v3945 = vpack.c.b16 %v3469, %v3467
        %v3946 = vpack.c.b16 %v3472, %v3470
        %v3947 = vpack.c.b16 %v3473, %v3471
        %v3948 = vpack.c.b16 %v3476, %v3474
        %v3949 = vpack.c.b16 %v3477, %v3475
        %v3950 = vpack.c.b16 %v3480, %v3478
        %v3951 = vpack.c.b16 %v3481, %v3479
        %v3952 = vpack.c.b16 %v3484, %v3482
        %v3953 = vpack.c.b16 %v3485, %v3483
        %v3954 = vpack.c.b16 %v3488, %v3486
        %v3955 = vpack.c.b16 %v3489, %v3487
        %v3956 = vpack.c.b16 %v3492, %v3490
        %v3957 = vpack.c.b16 %v3493, %v3491
        %v3958 = vpack.c.b16 %v3496, %v3494
        %v3959 = vpack.c.b16 %v3497, %v3495
        %v3960 = vpack.c.b16 %v3500, %v3498
        %v3961 = vpack.c.b16 %v3501, %v3499
        %v3962 = vpack.c.b16 %v3504, %v3502
        %v3963 = vpack.c.b16 %v3505, %v3503
        %v3964 = vpack.c.b16 %v3508, %v3506
        %v3965 = vpack.c.b16 %v3509, %v3507
        %v3966 = vpack.c.b16 %v3512, %v3510
        %v3967 = vpack.c.b16 %v3513, %v3511
        %v3968 = vpack.c.b16 %v3516, %v3514
        %v3969 = vpack.c.b16 %v3517, %v3515
        %v3970 = vpack.c.b16 %v3520, %v3518
        %v3971 = vpack.c.b16 %v3521, %v3519
        %v3972 = vpack.c.b16 %v3524, %v3522
        %v3973 = vpack.c.b16 %v3525, %v3523
        %v3974 = vpack.c.b16 %v3528, %v3526
        %v3975 = vpack.c.b16 %v3529, %v3527
        %v3976 = vpack.c.b16 %v3532, %v3530
        %v3977 = vpack.c.b16 %v3533, %v3531
        %v3978 = vpack.c.b16 %v3536, %v3534
        %v3979 = vpack.c.b16 %v3537, %v3535
        %v3980 = vpack.c.b16 %v3540, %v3538
        %v3981 = vpack.c.b16 %v3541, %v3539
        %v3982 = vpack.c.b16 %v3544, %v3542
        %v3983 = vpack.c.b16 %v3545, %v3543
        %v3984 = vpack.c.b16 %v3548, %v3546
        %v3985 = vpack.c.b16 %v3549, %v3547
        %v3986 = vpack.c.b16 %v3552, %v3550
        %v3987 = vpack.c.b16 %v3553, %v3551
        %v3988 = vpack.c.b16 %v3556, %v3554
        %v3989 = vpack.c.b16 %v3557, %v3555
        %v3990 = vpack.c.b16 %v3560, %v3558
        %v3991 = vpack.c.b16 %v3561, %v3559
        %v3992 = vpack.c.b16 %v3564, %v3562
        %v3993 = vpack.c.b16 %v3565, %v3563
        %v3994 = vpack.c.b16 %v3568, %v3566
        %v3995 = vpack.c.b16 %v3569, %v3567
        %v3996 = vpack.c.b16 %v3572, %v3570
        %v3997 = vpack.c.b16 %v3573, %v3571
        %v3998 = vpack.c.b16 %v3576, %v3574
        %v3999 = vpack.c.b16 %v3577, %v3575
        %v4000 = vpack.c.b16 %v3580, %v3578
        %v4001 = vpack.c.b16 %v3581, %v3579
        %v4002 = vpack.c.b16 %v3584, %v3582
        %v4003 = vpack.c.b16 %v3585, %v3583
        %v4004 = vpack.c.b16 %v3588, %v3586
        %v4005 = vpack.c.b16 %v3589, %v3587
        %v4006 = vpack.c.b16 %v3592, %v3590
        %v4007 = vpack.c.b16 %v3593, %v3591
        %v4008 = vpack.c.b16 %v3596, %v3594
        %v4009 = vpack.c.b16 %v3597, %v3595
        %v4010 = vpack.c.b16 %v3600, %v3598
        %v4011 = vpack.c.b16 %v3601, %v3599
        %v4012 = vpack.c.b16 %v3604, %v3602
        %v4013 = vpack.c.b16 %v3605, %v3603
        %v4014 = vpack.c.b16 %v3608, %v3606
        %v4015 = vpack.c.b16 %v3609, %v3607
        %v4016 = vpack.c.b16 %v3612, %v3610
        %v4017 = vpack.c.b16 %v3613, %v3611
        %v4018 = vpack.c.b16 %v3616, %v3614
        %v4019 = vpack.c.b16 %v3617, %v3615
        %v4020 = vpack.c.b16 %v3620, %v3618
        %v4021 = vpack.c.b16 %v3621, %v3619
        %4422 = vmatprep.subr.bf16.mxu0 %v3623
        %4423 = vmatpush1.bf16.msra.mxu0 %v3622
        %4424 = vmatprep.subr.bf16.mxu0 %v3625
        %4425 = vmatpush1.bf16.msra.mxu0 %v3624
        %4426 = vmatprep.subr.bf16.mxu0 %v3627
        %4427 = vmatpush1.bf16.msra.mxu0 %v3626
        %4428 = vmatprep.subr.bf16.mxu0 %v3629
        %4429 = vmatpush1.bf16.msra.mxu0 %v3628
        %4430 = vmatprep.subr.bf16.mxu0 %v3631
        %4431 = vmatpush1.bf16.msra.mxu0 %v3630
        %4432 = vmatprep.subr.bf16.mxu0 %v3633
        %4433 = vmatpush1.bf16.msra.mxu0 %v3632
        %4434 = vmatprep.subr.bf16.mxu0 %v3635
        %4435 = vmatpush1.bf16.msra.mxu0 %v3634
        %4436 = vmatprep.subr.bf16.mxu0 %v3637
        %4437 = vmatpush1.bf16.msra.mxu0 %v3636
        %4438 = vmatprep.subr.bf16.mxu0 %v3639
        %4439 = vmatpush1.bf16.msra.mxu0 %v3638
        %4440 = vmatprep.subr.bf16.mxu0 %v3641
        %4441 = vmatpush1.bf16.msra.mxu0 %v3640
        %4442 = vmatprep.subr.bf16.mxu0 %v3643
        %4443 = vmatpush1.bf16.msra.mxu0 %v3642
        %4444 = vmatprep.subr.bf16.mxu0 %v3645
        %4445 = vmatpush1.bf16.msra.mxu0 %v3644
        %4446 = vmatprep.subr.bf16.mxu0 %v3647
        %4447 = vmatpush1.bf16.msra.mxu0 %v3646
        %4448 = vmatprep.subr.bf16.mxu0 %v3649
        %4449 = vmatpush1.bf16.msra.mxu0 %v3648
        %4450 = vmatprep.subr.bf16.mxu0 %v3651
        %4451 = vmatpush1.bf16.msra.mxu0 %v3650
        %4452 = vmatprep.subr.bf16.mxu0 %v3653
        %4453 = vmatpush1.bf16.msra.mxu0 %v3652
        %4454 = vmatprep.mubr.bf16.mxu0 %v2373
        %4455 = vmatmul.mubr.bf16.gmra.mrb[0].mxu0 %v2372
        %v4456 = vpop.f32.mrb[0].mxu0
        %v4457 = vadd.f32 %v2289, %v4456
        %v4458 = vpop.f32.mrb[0].mxu0
        %v4459 = vadd.f32 %v2293, %v4458
        %v4460 = vpop.f32.mrb[0].mxu0
        %v4461 = vadd.f32 %v2289, %v4460
        %v4462 = vpop.f32.mrb[0].mxu0
        %v4463 = vadd.f32 %v2293, %v4462
        %4464 = vdwg.mxu0
        %4465 = vmatprep.subr.bf16.mxu0 %v3655
        %4466 = vmatpush1.bf16.msra.mxu0 %v3654
        %4467 = vmatprep.subr.bf16.mxu0 %v3657
        %4468 = vmatpush1.bf16.msra.mxu0 %v3656
        %4469 = vmatprep.subr.bf16.mxu0 %v3659
        %4470 = vmatpush1.bf16.msra.mxu0 %v3658
        %4471 = vmatprep.subr.bf16.mxu0 %v3661
        %4472 = vmatpush1.bf16.msra.mxu0 %v3660
        %4473 = vmatprep.subr.bf16.mxu0 %v3663
        %4474 = vmatpush1.bf16.msra.mxu0 %v3662
        %4475 = vmatprep.subr.bf16.mxu0 %v3665
        %4476 = vmatpush1.bf16.msra.mxu0 %v3664
        %4477 = vmatprep.subr.bf16.mxu0 %v3667
        %4478 = vmatpush1.bf16.msra.mxu0 %v3666
        %4479 = vmatprep.subr.bf16.mxu0 %v3669
        %4480 = vmatpush1.bf16.msra.mxu0 %v3668
        %4481 = vmatprep.subr.bf16.mxu0 %v3671
        %4482 = vmatpush1.bf16.msra.mxu0 %v3670
        %4483 = vmatprep.subr.bf16.mxu0 %v3673
        %4484 = vmatpush1.bf16.msra.mxu0 %v3672
        %4485 = vmatprep.subr.bf16.mxu0 %v3675
        %4486 = vmatpush1.bf16.msra.mxu0 %v3674
        %4487 = vmatprep.subr.bf16.mxu0 %v3677
        %4488 = vmatpush1.bf16.msra.mxu0 %v3676
        %4489 = vmatprep.subr.bf16.mxu0 %v3679
        %4490 = vmatpush1.bf16.msra.mxu0 %v3678
        %4491 = vmatprep.subr.bf16.mxu0 %v3681
        %4492 = vmatpush1.bf16.msra.mxu0 %v3680
        %4493 = vmatprep.subr.bf16.mxu0 %v3683
        %4494 = vmatpush1.bf16.msra.mxu0 %v3682
        %4495 = vmatprep.subr.bf16.mxu0 %v3685
        %4496 = vmatpush1.bf16.msra.mxu0 %v3684
        %4497 = vmatprep.mubr.bf16.mxu0 %v2375
        %4498 = vmatmul.mubr.bf16.gmra.mrb[0].mxu0 %v2374
        %v4499 = vpop.f32.mrb[0].mxu0
        %v4500 = vadd.f32 %v4457, %v4499
        %v4501 = vpop.f32.mrb[0].mxu0
        %v4502 = vadd.f32 %v4459, %v4501
        %v4503 = vpop.f32.mrb[0].mxu0
        %v4504 = vadd.f32 %v4461, %v4503
        %v4505 = vpop.f32.mrb[0].mxu0
        %v4506 = vadd.f32 %v4463, %v4505
        %4507 = vdwg.mxu0
        %4508 = vmatprep.subr.bf16.mxu0 %v3687
        %4509 = vmatpush1.bf16.msra.mxu0 %v3686
        %4510 = vmatprep.subr.bf16.mxu0 %v3689
        %4511 = vmatpush1.bf16.msra.mxu0 %v3688
        %4512 = vmatprep.subr.bf16.mxu0 %v3691
        %4513 = vmatpush1.bf16.msra.mxu0 %v3690
        %4514 = vmatprep.subr.bf16.mxu0 %v3693
        %4515 = vmatpush1.bf16.msra.mxu0 %v3692
        %4516 = vmatprep.subr.bf16.mxu0 %v3695
        %4517 = vmatpush1.bf16.msra.mxu0 %v3694
        %4518 = vmatprep.subr.bf16.mxu0 %v3697
        %4519 = vmatpush1.bf16.msra.mxu0 %v3696
        %4520 = vmatprep.subr.bf16.mxu0 %v3699
        %4521 = vmatpush1.bf16.msra.mxu0 %v3698
        %4522 = vmatprep.subr.bf16.mxu0 %v3701
        %4523 = vmatpush1.bf16.msra.mxu0 %v3700
        %4524 = vmatprep.subr.bf16.mxu0 %v3703
        %4525 = vmatpush1.bf16.msra.mxu0 %v3702
        %4526 = vmatprep.subr.bf16.mxu0 %v3705
        %4527 = vmatpush1.bf16.msra.mxu0 %v3704
        %4528 = vmatprep.subr.bf16.mxu0 %v3707
        %4529 = vmatpush1.bf16.msra.mxu0 %v3706
        %4530 = vmatprep.subr.bf16.mxu0 %v3709
        %4531 = vmatpush1.bf16.msra.mxu0 %v3708
        %4532 = vmatprep.subr.bf16.mxu0 %v3711
        %4533 = vmatpush1.bf16.msra.mxu0 %v3710
        %4534 = vmatprep.subr.bf16.mxu0 %v3713
        %4535 = vmatpush1.bf16.msra.mxu0 %v3712
        %4536 = vmatprep.subr.bf16.mxu0 %v3715
        %4537 = vmatpush1.bf16.msra.mxu0 %v3714
        %4538 = vmatprep.subr.bf16.mxu0 %v3717
        %4539 = vmatpush1.bf16.msra.mxu0 %v3716
        %4540 = vmatprep.mubr.bf16.mxu0 %v2377
        %4541 = vmatmul.mubr.bf16.gmra.mrb[0].mxu0 %v2376
        %v4542 = vpop.f32.mrb[0].mxu0
        %v4543 = vadd.f32 %v4500, %v4542
        %v4544 = vpop.f32.mrb[0].mxu0
        %v4545 = vadd.f32 %v4502, %v4544
        %v4546 = vpop.f32.mrb[0].mxu0
        %v4547 = vadd.f32 %v4504, %v4546
        %v4548 = vpop.f32.mrb[0].mxu0
        %v4549 = vadd.f32 %v4506, %v4548
        %4550 = vdwg.mxu0
        %4551 = vmatprep.subr.bf16.mxu0 %v3719
        %4552 = vmatpush1.bf16.msra.mxu0 %v3718
        %4553 = vmatprep.subr.bf16.mxu0 %v3721
        %4554 = vmatpush1.bf16.msra.mxu0 %v3720
        %4555 = vmatprep.subr.bf16.mxu0 %v3723
        %4556 = vmatpush1.bf16.msra.mxu0 %v3722
        %4557 = vmatprep.subr.bf16.mxu0 %v3725
        %4558 = vmatpush1.bf16.msra.mxu0 %v3724
        %4559 = vmatprep.subr.bf16.mxu0 %v3727
        %4560 = vmatpush1.bf16.msra.mxu0 %v3726
        %4561 = vmatprep.subr.bf16.mxu0 %v3729
        %4562 = vmatpush1.bf16.msra.mxu0 %v3728
        %4563 = vmatprep.subr.bf16.mxu0 %v3731
        %4564 = vmatpush1.bf16.msra.mxu0 %v3730
        %4565 = vmatprep.subr.bf16.mxu0 %v3733
        %4566 = vmatpush1.bf16.msra.mxu0 %v3732
        %4567 = vmatprep.subr.bf16.mxu0 %v3735
        %4568 = vmatpush1.bf16.msra.mxu0 %v3734
        %4569 = vmatprep.subr.bf16.mxu0 %v3737
        %4570 = vmatpush1.bf16.msra.mxu0 %v3736
        %4571 = vmatprep.subr.bf16.mxu0 %v3739
        %4572 = vmatpush1.bf16.msra.mxu0 %v3738
        %4573 = vmatprep.subr.bf16.mxu0 %v3741
        %4574 = vmatpush1.bf16.msra.mxu0 %v3740
        %4575 = vmatprep.subr.bf16.mxu0 %v3743
        %4576 = vmatpush1.bf16.msra.mxu0 %v3742
        %4577 = vmatprep.subr.bf16.mxu0 %v3745
        %4578 = vmatpush1.bf16.msra.mxu0 %v3744
        %4579 = vmatprep.subr.bf16.mxu0 %v3747
        %4580 = vmatpush1.bf16.msra.mxu0 %v3746
        %4581 = vmatprep.subr.bf16.mxu0 %v3749
        %4582 = vmatpush1.bf16.msra.mxu0 %v3748
        %4583 = vmatprep.mubr.bf16.mxu0 %v2379
        %4584 = vmatmul.mubr.bf16.gmra.mrb[0].mxu0 %v2378
        %v4585 = vpop.f32.mrb[0].mxu0
        %v4586 = vadd.f32 %v4543, %v4585
        %v4587 = vpop.f32.mrb[0].mxu0
        %v4588 = vadd.f32 %v4545, %v4587
        %v4589 = vpop.f32.mrb[0].mxu0
        %v4590 = vadd.f32 %v4547, %v4589
        %v4591 = vpop.f32.mrb[0].mxu0
        %v4592 = vadd.f32 %v4549, %v4591
        %4593 = vdwg.mxu0
        %4594 = vmatprep.subr.bf16.mxu0 %v3751
        %4595 = vmatpush1.bf16.msra.mxu0 %v3750
        %4596 = vmatprep.subr.bf16.mxu0 %v3753
        %4597 = vmatpush1.bf16.msra.mxu0 %v3752
        %4598 = vmatprep.subr.bf16.mxu0 %v3755
        %4599 = vmatpush1.bf16.msra.mxu0 %v3754
        %4600 = vmatprep.subr.bf16.mxu0 %v3757
        %4601 = vmatpush1.bf16.msra.mxu0 %v3756
        %4602 = vmatprep.subr.bf16.mxu0 %v3759
        %4603 = vmatpush1.bf16.msra.mxu0 %v3758
        %4604 = vmatprep.subr.bf16.mxu0 %v3761
        %4605 = vmatpush1.bf16.msra.mxu0 %v3760
        %4606 = vmatprep.subr.bf16.mxu0 %v3763
        %4607 = vmatpush1.bf16.msra.mxu0 %v3762
        %4608 = vmatprep.subr.bf16.mxu0 %v3765
        %4609 = vmatpush1.bf16.msra.mxu0 %v3764
        %4610 = vmatprep.subr.bf16.mxu0 %v3767
        %4611 = vmatpush1.bf16.msra.mxu0 %v3766
        %4612 = vmatprep.subr.bf16.mxu0 %v3769
        %4613 = vmatpush1.bf16.msra.mxu0 %v3768
        %4614 = vmatprep.subr.bf16.mxu0 %v3771
        %4615 = vmatpush1.bf16.msra.mxu0 %v3770
        %4616 = vmatprep.subr.bf16.mxu0 %v3773
        %4617 = vmatpush1.bf16.msra.mxu0 %v3772
        %4618 = vmatprep.subr.bf16.mxu0 %v3775
        %4619 = vmatpush1.bf16.msra.mxu0 %v3774
        %4620 = vmatprep.subr.bf16.mxu0 %v3777
        %4621 = vmatpush1.bf16.msra.mxu0 %v3776
        %4622 = vmatprep.subr.bf16.mxu0 %v3779
        %4623 = vmatpush1.bf16.msra.mxu0 %v3778
        %4624 = vmatprep.subr.bf16.mxu0 %v3781
        %4625 = vmatpush1.bf16.msra.mxu0 %v3780
        %4626 = vmatprep.mubr.bf16.mxu0 %v2381
        %4627 = vmatmul.mubr.bf16.gmra.mrb[0].mxu0 %v2380
        %v4628 = vpop.f32.mrb[0].mxu0
        %v4629 = vadd.f32 %v4586, %v4628
        %v4630 = vpop.f32.mrb[0].mxu0
        %v4631 = vadd.f32 %v4588, %v4630
        %v4632 = vpop.f32.mrb[0].mxu0
        %v4633 = vadd.f32 %v4590, %v4632
        %v4634 = vpop.f32.mrb[0].mxu0
        %v4635 = vadd.f32 %v4592, %v4634
        %4636 = vdwg.mxu0
        %4637 = vmatprep.subr.bf16.mxu0 %v3783
        %4638 = vmatpush1.bf16.msra.mxu0 %v3782
        %4639 = vmatprep.subr.bf16.mxu0 %v3785
        %4640 = vmatpush1.bf16.msra.mxu0 %v3784
        %4641 = vmatprep.subr.bf16.mxu0 %v3787
        %4642 = vmatpush1.bf16.msra.mxu0 %v3786
        %4643 = vmatprep.subr.bf16.mxu0 %v3789
        %4644 = vmatpush1.bf16.msra.mxu0 %v3788
        %4645 = vmatprep.subr.bf16.mxu0 %v3791
        %4646 = vmatpush1.bf16.msra.mxu0 %v3790
        %4647 = vmatprep.subr.bf16.mxu0 %v3793
        %4648 = vmatpush1.bf16.msra.mxu0 %v3792
        %4649 = vmatprep.subr.bf16.mxu0 %v3795
        %4650 = vmatpush1.bf16.msra.mxu0 %v3794
        %4651 = vmatprep.subr.bf16.mxu0 %v3797
        %4652 = vmatpush1.bf16.msra.mxu0 %v3796
        %4653 = vmatprep.subr.bf16.mxu0 %v3799
        %4654 = vmatpush1.bf16.msra.mxu0 %v3798
        %4655 = vmatprep.subr.bf16.mxu0 %v3801
        %4656 = vmatpush1.bf16.msra.mxu0 %v3800
        %4657 = vmatprep.subr.bf16.mxu0 %v3803
        %4658 = vmatpush1.bf16.msra.mxu0 %v3802
        %4659 = vmatprep.subr.bf16.mxu0 %v3805
        %4660 = vmatpush1.bf16.msra.mxu0 %v3804
        %4661 = vmatprep.subr.bf16.mxu0 %v3807
        %4662 = vmatpush1.bf16.msra.mxu0 %v3806
        %4663 = vmatprep.subr.bf16.mxu0 %v3809
        %4664 = vmatpush1.bf16.msra.mxu0 %v3808
        %4665 = vmatprep.subr.bf16.mxu0 %v3811
        %4666 = vmatpush1.bf16.msra.mxu0 %v3810
        %4667 = vmatprep.subr.bf16.mxu0 %v3813
        %4668 = vmatpush1.bf16.msra.mxu0 %v3812
        %4669 = vmatprep.mubr.bf16.mxu0 %v2383
        %4670 = vmatmul.mubr.bf16.gmra.mrb[0].mxu0 %v2382
        %v4671 = vpop.f32.mrb[0].mxu0
        %v4672 = vadd.f32 %v4629, %v4671
        %v4673 = vpop.f32.mrb[0].mxu0
        %v4674 = vadd.f32 %v4631, %v4673
        %v4675 = vpop.f32.mrb[0].mxu0
        %v4676 = vadd.f32 %v4633, %v4675
        %v4677 = vpop.f32.mrb[0].mxu0
        %v4678 = vadd.f32 %v4635, %v4677
        %4679 = vdwg.mxu0
        %4680 = vmatprep.subr.bf16.mxu0 %v3815
        %4681 = vmatpush1.bf16.msra.mxu0 %v3814
        %4682 = vmatprep.subr.bf16.mxu0 %v3817
        %4683 = vmatpush1.bf16.msra.mxu0 %v3816
        %4684 = vmatprep.subr.bf16.mxu0 %v3819
        %4685 = vmatpush1.bf16.msra.mxu0 %v3818
        %4686 = vmatprep.subr.bf16.mxu0 %v3821
        %4687 = vmatpush1.bf16.msra.mxu0 %v3820
        %4688 = vmatprep.subr.bf16.mxu0 %v3823
        %4689 = vmatpush1.bf16.msra.mxu0 %v3822
        %4690 = vmatprep.subr.bf16.mxu0 %v3825
        %4691 = vmatpush1.bf16.msra.mxu0 %v3824
        %4692 = vmatprep.subr.bf16.mxu0 %v3827
        %4693 = vmatpush1.bf16.msra.mxu0 %v3826
        %4694 = vmatprep.subr.bf16.mxu0 %v3829
        %4695 = vmatpush1.bf16.msra.mxu0 %v3828
        %4696 = vmatprep.subr.bf16.mxu0 %v3831
        %4697 = vmatpush1.bf16.msra.mxu0 %v3830
        %4698 = vmatprep.subr.bf16.mxu0 %v3833
        %4699 = vmatpush1.bf16.msra.mxu0 %v3832
        %4700 = vmatprep.subr.bf16.mxu0 %v3835
        %4701 = vmatpush1.bf16.msra.mxu0 %v3834
        %4702 = vmatprep.subr.bf16.mxu0 %v3837
        %4703 = vmatpush1.bf16.msra.mxu0 %v3836
        %4704 = vmatprep.subr.bf16.mxu0 %v3839
        %4705 = vmatpush1.bf16.msra.mxu0 %v3838
        %4706 = vmatprep.subr.bf16.mxu0 %v3841
        %4707 = vmatpush1.bf16.msra.mxu0 %v3840
        %4708 = vmatprep.subr.bf16.mxu0 %v3843
        %4709 = vmatpush1.bf16.msra.mxu0 %v3842
        %4710 = vmatprep.subr.bf16.mxu0 %v3845
        %4711 = vmatpush1.bf16.msra.mxu0 %v3844
        %4712 = vmatprep.mubr.bf16.mxu0 %v2385
        %4713 = vmatmul.mubr.bf16.gmra.mrb[0].mxu0 %v2384
        %v4714 = vpop.f32.mrb[0].mxu0
        %v4715 = vadd.f32 %v4672, %v4714
        %v4716 = vpop.f32.mrb[0].mxu0
        %v4717 = vadd.f32 %v4674, %v4716
        %v4718 = vpop.f32.mrb[0].mxu0
        %v4719 = vadd.f32 %v4676, %v4718
        %v4720 = vpop.f32.mrb[0].mxu0
        %v4721 = vadd.f32 %v4678, %v4720
        %4722 = vdwg.mxu0
        %4723 = vmatprep.subr.bf16.mxu0 %v3847
        %4724 = vmatpush1.bf16.msra.mxu0 %v3846
        %4725 = vmatprep.subr.bf16.mxu0 %v3849
        %4726 = vmatpush1.bf16.msra.mxu0 %v3848
        %4727 = vmatprep.subr.bf16.mxu0 %v3851
        %4728 = vmatpush1.bf16.msra.mxu0 %v3850
        %4729 = vmatprep.subr.bf16.mxu0 %v3853
        %4730 = vmatpush1.bf16.msra.mxu0 %v3852
        %4731 = vmatprep.subr.bf16.mxu0 %v3855
        %4732 = vmatpush1.bf16.msra.mxu0 %v3854
        %4733 = vmatprep.subr.bf16.mxu0 %v3857
        %4734 = vmatpush1.bf16.msra.mxu0 %v3856
        %4735 = vmatprep.subr.bf16.mxu0 %v3859
        %4736 = vmatpush1.bf16.msra.mxu0 %v3858
        %4737 = vmatprep.subr.bf16.mxu0 %v3861
        %4738 = vmatpush1.bf16.msra.mxu0 %v3860
        %4739 = vmatprep.subr.bf16.mxu0 %v3863
        %4740 = vmatpush1.bf16.msra.mxu0 %v3862
        %4741 = vmatprep.subr.bf16.mxu0 %v3865
        %4742 = vmatpush1.bf16.msra.mxu0 %v3864
        %4743 = vmatprep.subr.bf16.mxu0 %v3867
        %4744 = vmatpush1.bf16.msra.mxu0 %v3866
        %4745 = vmatprep.subr.bf16.mxu0 %v3869
        %4746 = vmatpush1.bf16.msra.mxu0 %v3868
        %4747 = vmatprep.subr.bf16.mxu0 %v3871
        %4748 = vmatpush1.bf16.msra.mxu0 %v3870
        %4749 = vmatprep.subr.bf16.mxu0 %v3873
        %4750 = vmatpush1.bf16.msra.mxu0 %v3872
        %4751 = vmatprep.subr.bf16.mxu0 %v3875
        %4752 = vmatpush1.bf16.msra.mxu0 %v3874
        %4753 = vmatprep.subr.bf16.mxu0 %v3877
        %4754 = vmatpush1.bf16.msra.mxu0 %v3876
        %4755 = vmatprep.mubr.bf16.mxu0 %v2387
        %4756 = vmatmul.mubr.bf16.gmra.mrb[0].mxu0 %v2386
        %v4757 = vpop.f32.mrb[0].mxu0
        %v4758 = vadd.f32 %v4715, %v4757
        %v4759 = vpop.f32.mrb[0].mxu0
        %v4760 = vadd.f32 %v4717, %v4759
        %v4761 = vpop.f32.mrb[0].mxu0
        %v4762 = vadd.f32 %v4719, %v4761
        %v4763 = vpop.f32.mrb[0].mxu0
        %v4764 = vadd.f32 %v4721, %v4763
        %4765 = vdwg.mxu0
        %4766 = vmatprep.subr.bf16.mxu0 %v3879
        %4767 = vmatpush1.bf16.msra.mxu0 %v3878
        %4768 = vmatprep.subr.bf16.mxu0 %v3881
        %4769 = vmatpush1.bf16.msra.mxu0 %v3880
        %4770 = vmatprep.subr.bf16.mxu0 %v3883
        %4771 = vmatpush1.bf16.msra.mxu0 %v3882
        %4772 = vmatprep.subr.bf16.mxu0 %v3885
        %4773 = vmatpush1.bf16.msra.mxu0 %v3884
        %4774 = vmatprep.subr.bf16.mxu0 %v3887
        %4775 = vmatpush1.bf16.msra.mxu0 %v3886
        %4776 = vmatprep.subr.bf16.mxu0 %v3889
        %4777 = vmatpush1.bf16.msra.mxu0 %v3888
        %4778 = vmatprep.subr.bf16.mxu0 %v3891
        %4779 = vmatpush1.bf16.msra.mxu0 %v3890
        %4780 = vmatprep.subr.bf16.mxu0 %v3893
        %4781 = vmatpush1.bf16.msra.mxu0 %v3892
        %4782 = vmatprep.subr.bf16.mxu0 %v3895
        %4783 = vmatpush1.bf16.msra.mxu0 %v3894
        %4784 = vmatprep.subr.bf16.mxu0 %v3897
        %4785 = vmatpush1.bf16.msra.mxu0 %v3896
        %4786 = vmatprep.subr.bf16.mxu0 %v3899
        %4787 = vmatpush1.bf16.msra.mxu0 %v3898
        %4788 = vmatprep.subr.bf16.mxu0 %v3901
        %4789 = vmatpush1.bf16.msra.mxu0 %v3900
        %4790 = vmatprep.subr.bf16.mxu0 %v3903
        %4791 = vmatpush1.bf16.msra.mxu0 %v3902
        %4792 = vmatprep.subr.bf16.mxu0 %v3905
        %4793 = vmatpush1.bf16.msra.mxu0 %v3904
        %4794 = vmatprep.subr.bf16.mxu0 %v3907
        %4795 = vmatpush1.bf16.msra.mxu0 %v3906
        %4796 = vmatprep.subr.bf16.mxu0 %v3909
        %4797 = vmatpush1.bf16.msra.mxu0 %v3908
        %4798 = vmatprep.mubr.bf16.mxu0 %v2389
        %4799 = vmatmul.mubr.bf16.gmra.mrb[0].mxu0 %v2388
        %v4800 = vpop.f32.mrb[0].mxu0
        %v4801 = vadd.f32 %v4758, %v4800
        %v4802 = vpop.f32.mrb[0].mxu0
        %v4803 = vadd.f32 %v4760, %v4802
        %v4804 = vpop.f32.mrb[0].mxu0
        %v4805 = vadd.f32 %v4762, %v4804
        %v4806 = vpop.f32.mrb[0].mxu0
        %v4807 = vadd.f32 %v4764, %v4806
        %4808 = vdwg.mxu0
        %4809 = vmatprep.subr.bf16.mxu0 %v3911
        %4810 = vmatpush1.bf16.msra.mxu0 %v3910
        %4811 = vmatprep.subr.bf16.mxu0 %v3913
        %4812 = vmatpush1.bf16.msra.mxu0 %v3912
        %4813 = vmatprep.subr.bf16.mxu0 %v3915
        %4814 = vmatpush1.bf16.msra.mxu0 %v3914
        %4815 = vmatprep.subr.bf16.mxu0 %v3917
        %4816 = vmatpush1.bf16.msra.mxu0 %v3916
        %4817 = vmatprep.subr.bf16.mxu0 %v3919
        %4818 = vmatpush1.bf16.msra.mxu0 %v3918
        %4819 = vmatprep.subr.bf16.mxu0 %v3921
        %4820 = vmatpush1.bf16.msra.mxu0 %v3920
        %4821 = vmatprep.subr.bf16.mxu0 %v3923
        %4822 = vmatpush1.bf16.msra.mxu0 %v3922
        %4823 = vmatprep.subr.bf16.mxu0 %v3925
        %4824 = vmatpush1.bf16.msra.mxu0 %v3924
        %4825 = vmatprep.subr.bf16.mxu0 %v3927
        %4826 = vmatpush1.bf16.msra.mxu0 %v3926
        %4827 = vmatprep.subr.bf16.mxu0 %v3929
        %4828 = vmatpush1.bf16.msra.mxu0 %v3928
        %4829 = vmatprep.subr.bf16.mxu0 %v3931
        %4830 = vmatpush1.bf16.msra.mxu0 %v3930
        %4831 = vmatprep.subr.bf16.mxu0 %v3933
        %4832 = vmatpush1.bf16.msra.mxu0 %v3932
        %4833 = vmatprep.subr.bf16.mxu0 %v3935
        %4834 = vmatpush1.bf16.msra.mxu0 %v3934
        %4835 = vmatprep.subr.bf16.mxu0 %v3937
        %4836 = vmatpush1.bf16.msra.mxu0 %v3936
        %4837 = vmatprep.subr.bf16.mxu0 %v3939
        %4838 = vmatpush1.bf16.msra.mxu0 %v3938
        %4839 = vmatprep.subr.bf16.mxu0 %v3941
        %4840 = vmatpush1.bf16.msra.mxu0 %v3940
        %4841 = vmatprep.mubr.bf16.mxu0 %v2391
        %4842 = vmatmul.mubr.bf16.gmra.mrb[0].mxu0 %v2390
        %v4843 = vpop.f32.mrb[0].mxu0
        %v4844 = vadd.f32 %v4801, %v4843
        %v4845 = vpop.f32.mrb[0].mxu0
        %v4846 = vadd.f32 %v4803, %v4845
        %v4847 = vpop.f32.mrb[0].mxu0
        %v4848 = vadd.f32 %v4805, %v4847
        %v4849 = vpop.f32.mrb[0].mxu0
        %v4850 = vadd.f32 %v4807, %v4849
        %4851 = vdwg.mxu0
        %4852 = vmatprep.subr.bf16.mxu0 %v3943
        %4853 = vmatpush1.bf16.msra.mxu0 %v3942
        %4854 = vmatprep.subr.bf16.mxu0 %v3945
        %4855 = vmatpush1.bf16.msra.mxu0 %v3944
        %4856 = vmatprep.subr.bf16.mxu0 %v3947
        %4857 = vmatpush1.bf16.msra.mxu0 %v3946
        %4858 = vmatprep.subr.bf16.mxu0 %v3949
        %4859 = vmatpush1.bf16.msra.mxu0 %v3948
        %4860 = vmatprep.subr.bf16.mxu0 %v3951
        %4861 = vmatpush1.bf16.msra.mxu0 %v3950
        %4862 = vmatprep.subr.bf16.mxu0 %v3953
        %4863 = vmatpush1.bf16.msra.mxu0 %v3952
        %4864 = vmatprep.subr.bf16.mxu0 %v3955
        %4865 = vmatpush1.bf16.msra.mxu0 %v3954
        %4866 = vmatprep.subr.bf16.mxu0 %v3957
        %4867 = vmatpush1.bf16.msra.mxu0 %v3956
        %4868 = vmatprep.subr.bf16.mxu0 %v3959
        %4869 = vmatpush1.bf16.msra.mxu0 %v3958
        %4870 = vmatprep.subr.bf16.mxu0 %v3961
        %4871 = vmatpush1.bf16.msra.mxu0 %v3960
        %4872 = vmatprep.subr.bf16.mxu0 %v3963
        %4873 = vmatpush1.bf16.msra.mxu0 %v3962
        %4874 = vmatprep.subr.bf16.mxu0 %v3965
        %4875 = vmatpush1.bf16.msra.mxu0 %v3964
        %4876 = vmatprep.subr.bf16.mxu0 %v3967
        %4877 = vmatpush1.bf16.msra.mxu0 %v3966
        %4878 = vmatprep.subr.bf16.mxu0 %v3969
        %4879 = vmatpush1.bf16.msra.mxu0 %v3968
        %4880 = vmatprep.subr.bf16.mxu0 %v3971
        %4881 = vmatpush1.bf16.msra.mxu0 %v3970
        %4882 = vmatprep.subr.bf16.mxu0 %v3973
        %4883 = vmatpush1.bf16.msra.mxu0 %v3972
        %4884 = vmatprep.mubr.bf16.mxu0 %v2393
        %4885 = vmatmul.mubr.bf16.gmra.mrb[0].mxu0 %v2392
        %v4886 = vpop.f32.mrb[0].mxu0
        %v4887 = vadd.f32 %v4844, %v4886
        %v4888 = vpop.f32.mrb[0].mxu0
        %v4889 = vadd.f32 %v4846, %v4888
        %v4890 = vpop.f32.mrb[0].mxu0
        %v4891 = vadd.f32 %v4848, %v4890
        %v4892 = vpop.f32.mrb[0].mxu0
        %v4893 = vadd.f32 %v4850, %v4892
        %4894 = vdwg.mxu0
        %4895 = vmatprep.subr.bf16.mxu0 %v3975
        %4896 = vmatpush1.bf16.msra.mxu0 %v3974
        %4897 = vmatprep.subr.bf16.mxu0 %v3977
        %4898 = vmatpush1.bf16.msra.mxu0 %v3976
        %4899 = vmatprep.subr.bf16.mxu0 %v3979
        %4900 = vmatpush1.bf16.msra.mxu0 %v3978
        %4901 = vmatprep.subr.bf16.mxu0 %v3981
        %4902 = vmatpush1.bf16.msra.mxu0 %v3980
        %4903 = vmatprep.subr.bf16.mxu0 %v3983
        %4904 = vmatpush1.bf16.msra.mxu0 %v3982
        %4905 = vmatprep.subr.bf16.mxu0 %v3985
        %4906 = vmatpush1.bf16.msra.mxu0 %v3984
        %4907 = vmatprep.subr.bf16.mxu0 %v3987
        %4908 = vmatpush1.bf16.msra.mxu0 %v3986
        %4909 = vmatprep.subr.bf16.mxu0 %v3989
        %4910 = vmatpush1.bf16.msra.mxu0 %v3988
        %4911 = vmatprep.subr.bf16.mxu0 %v3991
        %4912 = vmatpush1.bf16.msra.mxu0 %v3990
        %4913 = vmatprep.subr.bf16.mxu0 %v3993
        %4914 = vmatpush1.bf16.msra.mxu0 %v3992
        %4915 = vmatprep.subr.bf16.mxu0 %v3995
        %4916 = vmatpush1.bf16.msra.mxu0 %v3994
        %4917 = vmatprep.subr.bf16.mxu0 %v3997
        %4918 = vmatpush1.bf16.msra.mxu0 %v3996
        %4919 = vmatprep.subr.bf16.mxu0 %v3999
        %4920 = vmatpush1.bf16.msra.mxu0 %v3998
        %4921 = vmatprep.subr.bf16.mxu0 %v4001
        %4922 = vmatpush1.bf16.msra.mxu0 %v4000
        %4923 = vmatprep.subr.bf16.mxu0 %v4003
        %4924 = vmatpush1.bf16.msra.mxu0 %v4002
        %4925 = vmatprep.subr.bf16.mxu0 %v4005
        %4926 = vmatpush1.bf16.msra.mxu0 %v4004
        %4927 = vmatprep.mubr.bf16.mxu0 %v2395
        %4928 = vmatmul.mubr.bf16.gmra.mrb[0].mxu0 %v2394
        %v4929 = vpop.f32.mrb[0].mxu0
        %v4930 = vadd.f32 %v4887, %v4929
        %v4931 = vpop.f32.mrb[0].mxu0
        %v4932 = vadd.f32 %v4889, %v4931
        %v4933 = vpop.f32.mrb[0].mxu0
        %v4934 = vadd.f32 %v4891, %v4933
        %v4935 = vpop.f32.mrb[0].mxu0
        %v4936 = vadd.f32 %v4893, %v4935
        %4937 = vdwg.mxu0
        %4938 = vmatprep.subr.bf16.mxu0 %v4007
        %4939 = vmatpush1.bf16.msra.mxu0 %v4006
        %4940 = vmatprep.subr.bf16.mxu0 %v4009
        %4941 = vmatpush1.bf16.msra.mxu0 %v4008
        %4942 = vmatprep.subr.bf16.mxu0 %v4011
        %4943 = vmatpush1.bf16.msra.mxu0 %v4010
        %4944 = vmatprep.subr.bf16.mxu0 %v4013
        %4945 = vmatpush1.bf16.msra.mxu0 %v4012
        %4946 = vmatprep.subr.bf16.mxu0 %v4015
        %4947 = vmatpush1.bf16.msra.mxu0 %v4014
        %4948 = vmatprep.subr.bf16.mxu0 %v4017
        %4949 = vmatpush1.bf16.msra.mxu0 %v4016
        %4950 = vmatprep.subr.bf16.mxu0 %v4019
        %4951 = vmatpush1.bf16.msra.mxu0 %v4018
        %4952 = vmatprep.subr.bf16.mxu0 %v4021
        %4953 = vmatpush1.bf16.msra.mxu0 %v4020
        %4954 = vmatprep.subr.bf16.mxu0 0
        %4955 = vmatpush1.bf16.msra.mxu0 0
        %4956 = vmatprep.subr.bf16.mxu0 0
        %4957 = vmatpush1.bf16.msra.mxu0 0
        %4958 = vmatprep.subr.bf16.mxu0 0
        %4959 = vmatpush1.bf16.msra.mxu0 0
        %4960 = vmatprep.subr.bf16.mxu0 0
        %4961 = vmatpush1.bf16.msra.mxu0 0
        %4962 = vmatprep.subr.bf16.mxu0 0
        %4963 = vmatpush1.bf16.msra.mxu0 0
        %4964 = vmatprep.subr.bf16.mxu0 0
        %4965 = vmatpush1.bf16.msra.mxu0 0
        %4966 = vmatprep.subr.bf16.mxu0 0
        %4967 = vmatpush1.bf16.msra.mxu0 0
        %4968 = vmatprep.subr.bf16.mxu0 0
        %4969 = vmatpush1.bf16.msra.mxu0 0
        %4970 = vmatprep.mubr.bf16.mxu0 0
        %4971 = vmatmul.mubr.bf16.gmra.mrb[0].mxu0 %v2396
        %v4972 = vpop.f32.mrb[0].mxu0
        %v4973 = vadd.f32 %v4930, %v4972
        %v4974 = vpop.f32.mrb[0].mxu0
        %v4975 = vadd.f32 %v4932, %v4974
        %v4976 = vpop.f32.mrb[0].mxu0
        %v4977 = vadd.f32 %v4934, %v4976
        %v4978 = vpop.f32.mrb[0].mxu0
        %v4979 = vadd.f32 %v4936, %v4978
        %4980 = vdwg.mxu0
        %v4981 = vmax.f32 %v4973, 0.0
        %v4982 = vmax.f32 %v4975, 0.0
        %v4983 = vmax.f32 %v4977, 0.0
        %v4984 = vmax.f32 %v4979, 0.0
        %4985 = vst [vmem:[%s1841] sm:$0xff] %v4981
        %4986 = vst [vmem:[%s1841 + $0x8] sm:$0xff] %v4982
        %4987 = vst [vmem:[%s1841 + $0x10] sm:$0xff] %v4983
        %4988 = vst [vmem:[%s1841 + $0x18] sm:$0xff] %v4984
        %s4989 = sand.u32 %s114, 1
        %s4990 = sand.u32 %s114, 1
        %s4991 = smul.addr %s4990, 32
        %s4992 = scalar_lea.vmem [#allocation3], %s4991
        // Predicated region
        $region71: #{dueling_cnn_dqn_forward.8} parent=65 // pred_check
          %p4993 = pneg %p124
        $region72: #{dueling_cnn_dqn_forward.8} parent=65 // pred_check_branch
          %4995 = sbr.rel (%p4993) target = $region74
        $region73: #{dueling_cnn_dqn_forward.8} parent=65 // pred_region
          %s4996 = smul.u32 2, %s18
          %s4997 = smul.u32 2, %s19
          %s4998 = smul.addr %s4996, 8
          %s4999 = sadd.s32 %s4997, %s4998
          %s5000 = smul.addr %s4999, 8
          %s5001 = scalar_lea.vmem %s3, %s5000
          // Predicated region
          $region75: #{dueling_cnn_dqn_forward.8} parent=73 // pred_check
            _
          $region76: #{dueling_cnn_dqn_forward.8} parent=73 // pred_check_branch
            %5003 = sbr.rel (0) target = $region78
          $region77: #{dueling_cnn_dqn_forward.8} parent=73 // pred_region
            // Predicated region
            $region79: #{dueling_cnn_dqn_forward.8} parent=77 // pred_check
              _
            $region80: #{dueling_cnn_dqn_forward.8} parent=77 // pred_check_branch
              %5005 = sbr.rel (0) target = $region82
            $region81: #{dueling_cnn_dqn_forward.8} parent=77 // pred_region
              loop: start=0, step=1, limit=1
              $region83: #{dueling_cnn_dqn_forward.8} parent=81 // loop_pre_header
                _
              $region84: #{dueling_cnn_dqn_forward.8} parent=81 // loop_header
                %s5007 = sphi 0, %s5011
                %p5008 = scmp.ge.s32.totalorder %s5007, 1
                %s5012 = sphi %s4992, %s4992
                %s5013 = sphi %s5001, %s5001
              $region85: #{dueling_cnn_dqn_forward.8} parent=81 // loop_header_branch
                %5010 = sbr.rel (%p5008) target = $region89
              $region86: #{dueling_cnn_dqn_forward.8} parent=81 // loop_body
                %v5014 = vld [vmem:[%s5012] sm:$0xff]
                %5015 = vst [vmem:[%s5013] sm:$0xff] %v5014
                %v5016 = vld [vmem:[%s5012 + $0x8] sm:$0xff]
                %5017 = vst [vmem:[%s5013 + $0x8] sm:$0xff] %v5016
                %v5018 = vld [vmem:[%s5012 + $0x10] sm:$0xff]
                %5019 = vst [vmem:[%s5013 + $0x40] sm:$0xff] %v5018
                %v5020 = vld [vmem:[%s5012 + $0x18] sm:$0xff]
                %5021 = vst [vmem:[%s5013 + $0x48] sm:$0xff] %v5020
              $region87: #{dueling_cnn_dqn_forward.8} parent=81 // loop_footer
                %s5011 = sadd.s32 1, %s5007
              $region88: #{dueling_cnn_dqn_forward.8} parent=81 // loop_footer_branch
                %5006 = sbr.rel target = $region84
              $region89: #{dueling_cnn_dqn_forward.8} parent=81 // loop_exit
                _
            $region82: #{dueling_cnn_dqn_forward.8} parent=77 // pred_fallthru
              _
            // Predicated region
            $region90: #{dueling_cnn_dqn_forward.8} parent=77 // pred_check
              _
            $region91: #{dueling_cnn_dqn_forward.8} parent=77 // pred_check_branch
              %5023 = sbr.rel target = $region93
            $region92: #{dueling_cnn_dqn_forward.8} parent=77 // pred_region
              _
            $region93: #{dueling_cnn_dqn_forward.8} parent=77 // pred_fallthru
              _
          $region78: #{dueling_cnn_dqn_forward.8} parent=73 // pred_fallthru
            _
          %5024 = vnop
        $region74: #{dueling_cnn_dqn_forward.8} parent=65 // pred_fallthru
          _
      $region66: #{dueling_cnn_dqn_forward.8} parent=5 // pred_fallthru
        _
      %p5025 = scmp.le.s32.totalorder 2, %s9
      // Predicated region
      $region94: #{dueling_cnn_dqn_forward.8} parent=5 // pred_check
        %p5026 = pneg %p5025
      $region95: #{dueling_cnn_dqn_forward.8} parent=5 // pred_check_branch
        %5028 = sbr.rel (%p5026) target = $region97
      $region96: #{dueling_cnn_dqn_forward.8} parent=5 // pred_region
        %s5029 = ssub.s32 %s9, 2
        // Predicated region
        $region98: #{dueling_cnn_dqn_forward.8} parent=96 // pred_check
          %p5030 = pneg %p130
        $region99: #{dueling_cnn_dqn_forward.8} parent=96 // pred_check_branch
          %5032 = sbr.rel (%p5030) target = $region101
        $region100: #{dueling_cnn_dqn_forward.8} parent=96 // pred_region
          %s5033 = sand.u32 %s115, 1
          %s5034 = sand.u32 %s115, 1
          %s5035 = smul.addr %s5034, 32
          %s5036 = scalar_lea.vmem [#allocation3], %s5035
        $region101: #{dueling_cnn_dqn_forward.8} parent=96 // pred_fallthru
          _
      $region97: #{dueling_cnn_dqn_forward.8} parent=5 // pred_fallthru
        _
    $region6: #{dueling_cnn_dqn_forward.8} parent=1 // loop_footer
      %s13 = sadd.s32 1, %s9
    $region7: #{dueling_cnn_dqn_forward.8} parent=1 // loop_footer_branch
      %8 = sbr.rel target = $region3
    $region8: #{dueling_cnn_dqn_forward.8} parent=1 // loop_exit
      _

</llo_original>
